<compile_context>
chip_gen: v6e
topology: v6e:2x2x1
jax: 0.10.0
libtpu: 0.0.40
codegen_flags: <defaults>
</compile_context>

<pallas_src>
import jax
import jax.numpy as jnp
from jax.experimental import pallas as pl
from jax.experimental.pallas import tpu as pltpu

_PMAX = 3  # largest padding in the module (7x7 conv -> pad 3)


# ------------------------------ Pallas kernel ------------------------------

def _msp3_kernel(a_ref, b_ref,
                 w1a_ref, w1b_ref, b1_ref,
                 w3_ref, b3_ref,
                 w5_ref, b5_ref,
                 w7_ref, b7_ref,
                 wm_ref, bm_ref,
                 wf_ref,
                 o_ref,
                 xp_ref):
    H = xp_ref.shape[0] - 2 * _PMAX
    W = xp_ref.shape[1] - 2 * _PMAX
    C = xp_ref.shape[2]
    Ca = a_ref.shape[3]
    Cb = b_ref.shape[3]
    NC = wf_ref.shape[0]

    # Zero the padding scratch; the halo ring is never written again inside
    # this grid step, so it provides 'SAME' zero padding for every conv below.
    # (Zeroed every step -> correct even if the batch axis is split across
    # TensorCores; it is ~60 KB so the cost is negligible.)
    xp_ref[...] = jnp.zeros(xp_ref.shape, xp_ref.dtype)

    # ---- conv1x1 on the two (un-concatenated) input streams + BN + ReLU ----
    # Only 5 input channels -> do it on the VPU as broadcast multiply-adds.
    a = a_ref[0]                                   # (H, W, Ca) f32
    b = b_ref[0]                                   # (H, W, Cb) f32
    acc0 = jnp.zeros((H, W, C), jnp.float32)
    for c in range(Ca):
        acc0 = acc0 + a[:, :, c:c + 1] * w1a_ref[c]
    for c in range(Cb):
        acc0 = acc0 + b[:, :, c:c + 1] * w1b_ref[c]
    x0 = jnp.maximum(acc0 + b1_ref[...], 0.0)      # (H, W, C) f32

    # ---- KxK conv (+ folded BN bias), zero 'SAME' padding, bf16 MXU ----
    # One matmul per kernel row: contraction over (kx, c) = K*C (the weight
    # rows are already laid out as ((ky*K + kx)*C + c), so the per-ky block
    # w_ref[ky*K*C:(ky+1)*K*C, :] matches the lane-concatenated tap order).
    def conv_khw(img, w_ref, bias_ref, K):
        p = (K - 1) // 2
        xp_ref[_PMAX:_PMAX + H, _PMAX:_PMAX + W, :] = img
        win = xp_ref[_PMAX - p:_PMAX + H + p,
                     _PMAX - p:_PMAX + W + p, :].astype(jnp.bfloat16)
        acc = jnp.zeros((H, W, C), jnp.float32)
        for ky in range(K):
            band = jnp.concatenate(
                [win[ky:ky + H, kx:kx + W, :] for kx in range(K)],
                axis=-1)                                   # (H, W, K*C) bf16
            wt = w_ref[ky * K * C:(ky + 1) * K * C, :]     # (K*C, C) bf16
            acc = acc + jnp.einsum('hwc,cd->hwd', band, wt,
                                   preferred_element_type=jnp.float32)
        return acc + bias_ref[...]

    s3 = conv_khw(x0, w3_ref, b3_ref, 3)           # bn3x3(conv3x3(x))
    s5 = conv_khw(s3, w5_ref, b5_ref, 5)           # bn5x5(conv5x5(w3x3))
    s7 = conv_khw(s5, w7_ref, b7_ref, 7)           # bn7x7(conv7x7(w5x5))

    # x = x*w7 + x*w5 + x*w3 + x  (w* = sigmoid of the post-BN conv outputs)
    gate = (1.0 + jax.nn.sigmoid(s3) + jax.nn.sigmoid(s5) + jax.nn.sigmoid(s7))
    x1 = x0 * gate

    # merge conv (3x3) + BN + ReLU
    y = jnp.maximum(conv_khw(x1, wm_ref, bm_ref, 3), 0.0)

    # final 1x1 conv (C -> num_classes, bias=False): VPU multiply + lane reduce
    outs = [jnp.sum(y * wf_ref[cls], axis=-1, keepdims=True)
            for cls in range(NC)]
    out = outs[0] if NC == 1 else jnp.concatenate(outs, axis=-1)
    o_ref[...] = out[None].astype(o_ref.dtype)


# --------------------------------- wrapper ---------------------------------

def msp3_forward(xa, xb, params, *, vmem_limit_bytes=32 * 1024 * 1024):
    """MSP3 forward. xa/xb: NCHW float32 maps whose channels concat to 5.

    Returns (N, num_classes, H, W) float32.
    """
    N, Ca, H, W = xa.shape
    Cb = xb.shape[1]
    C = params['b1'].shape[1]
    NC = params['wf'].shape[0]
    assert xb.shape == (N, Cb, H, W)
    assert params['w1a'].shape == (Ca, C) and params['w1b'].shape == (Cb, C)

    Hp, Wp = H + 2 * _PMAX, W + 2 * _PMAX
    # whole-image-per-batch fusion: all activations stay in VMEM.
    est_bytes = (Hp * Wp * C + 8 * H * W * C + 7 * H * W * C) * 4
    assert est_bytes < vmem_limit_bytes // 2, \
        "image too large for the fused whole-image kernel; tile over rows"

    a = jnp.transpose(xa, (0, 2, 3, 1))            # NHWC
    b = jnp.transpose(xb, (0, 2, 3, 1))

    out_nhwc = pl.pallas_call(
        _msp3_kernel,
        out_shape=jax.ShapeDtypeStruct((N, H, W, NC), jnp.float32),
        grid_spec=pltpu.PrefetchScalarGridSpec(
            num_scalar_prefetch=0,
            grid=(N,),
            in_specs=[
                pl.BlockSpec((1, H, W, Ca), lambda n: (n, 0, 0, 0)),
                pl.BlockSpec((1, H, W, Cb), lambda n: (n, 0, 0, 0)),
                pl.BlockSpec((Ca, C), lambda n: (0, 0)),
                pl.BlockSpec((Cb, C), lambda n: (0, 0)),
                pl.BlockSpec((1, C), lambda n: (0, 0)),
                pl.BlockSpec((9 * C, C), lambda n: (0, 0)),
                pl.BlockSpec((1, C), lambda n: (0, 0)),
                pl.BlockSpec((25 * C, C), lambda n: (0, 0)),
                pl.BlockSpec((1, C), lambda n: (0, 0)),
                pl.BlockSpec((49 * C, C), lambda n: (0, 0)),
                pl.BlockSpec((1, C), lambda n: (0, 0)),
                pl.BlockSpec((9 * C, C), lambda n: (0, 0)),
                pl.BlockSpec((1, C), lambda n: (0, 0)),
                pl.BlockSpec((NC, C), lambda n: (0, 0)),
            ],
            out_specs=pl.BlockSpec((1, H, W, NC), lambda n: (n, 0, 0, 0)),
            scratch_shapes=[pltpu.VMEM((Hp, Wp, C), jnp.float32)],
        ),
        compiler_params=pltpu.CompilerParams(
            dimension_semantics=("parallel",),
            vmem_limit_bytes=vmem_limit_bytes,
        ),
    )(a, b,
      params['w1a'], params['w1b'], params['b1'],
      params['w3'], params['b3'],
      params['w5'], params['b5'],
      params['w7'], params['b7'],
      params['wm'], params['bm'],
      params['wf'])

    return jnp.transpose(out_nhwc, (0, 3, 1, 2))   # back to NCHW


# -------------------------- parameters (PyTorch-like) -----------------------

def init_raw_params(key, cin=5, inter_channels=32, num_classes=1):
    """Random MSP3 parameters: HWIO conv weights, conv biases, BN stats."""
    C = inter_channels
    keys = iter(jax.random.split(key, 24))

    def conv_w(kh, kw, ci, co):
        fan_in = kh * kw * ci
        return (fan_in ** -0.5) * jax.random.normal(
            next(keys), (kh, kw, ci, co), jnp.float32)

    def conv_b(co):
        return 0.05 * jax.random.normal(next(keys), (co,), jnp.float32)

    def bn(co):
        k1, k2, k3, k4 = jax.random.split(next(keys), 4)
        gamma = 1.0 + 0.1 * jax.random.normal(k1, (co,), jnp.float32)
        beta = 0.1 * jax.random.normal(k2, (co,), jnp.float32)
        mean = 0.05 * jax.random.normal(k3, (co,), jnp.float32)
        var = 1.0 + 0.1 * jax.random.uniform(k4, (co,), jnp.float32)
        return gamma, beta, mean, var

    return dict(
        w1=conv_w(1, 1, cin, C), b1=conv_b(C), bn1=bn(C),
        w3=conv_w(3, 3, C, C), b3=conv_b(C), bn3=bn(C),
        w5=conv_w(5, 5, C, C), b5=conv_b(C), bn5=bn(C),
        w7=conv_w(7, 7, C, C), b7=conv_b(C), bn7=bn(C),
        wm=conv_w(3, 3, C, C), bm=conv_b(C), bnm=bn(C),
        wf=conv_w(1, 1, C, num_classes),            # final conv: bias=False
    )


def prepare_params(raw, split_a, eps=1e-5):
    """Fold BN (eval) + conv bias into weight scale / bias; bf16 MXU weights."""
    def fold(w_hwio, cb, bnp):
        g, bt, mu, var = bnp
        s = g * jax.lax.rsqrt(var + eps)             # (Cout,)
        kh, kw, ci, co = w_hwio.shape
        w = (w_hwio * s).reshape(kh * kw * ci, co)   # rows ordered ((ky*kw+kx)*ci+c)
        bias = (bt + s * (cb - mu)).reshape(1, co)
        return w, bias

    w1, b1 = fold(raw['w1'], raw['b1'], raw['bn1'])  # (5, C) stays f32 (VPU path)
    w3, b3 = fold(raw['w3'], raw['b3'], raw['bn3'])
    w5, b5 = fold(raw['w5'], raw['b5'], raw['bn5'])
    w7, b7 = fold(raw['w7'], raw['b7'], raw['bn7'])
    wm, bm = fold(raw['wm'], raw['bm'], raw['bnm'])
    C, NC = raw['wf'].shape[2], raw['wf'].shape[3]
    wf = jnp.transpose(raw['wf'].reshape(C, NC), (1, 0))   # (NC, C) f32
    bf16 = jnp.bfloat16
    return dict(
        w1a=w1[:split_a], w1b=w1[split_a:], b1=b1,
        w3=w3.astype(bf16), b3=b3,
        w5=w5.astype(bf16), b5=b5,
        w7=w7.astype(bf16), b7=b7,
        wm=wm.astype(bf16), bm=bm,
        wf=wf,
    )


# ------------------------------ JAX reference -------------------------------

def msp3_reference(xa, xb, raw, eps=1e-5):
    x = jnp.concatenate([xa, xb], axis=1)                  # NCHW concat
    x = jnp.transpose(x, (0, 2, 3, 1))                     # NHWC

    def conv(t, w, b=None):
        y = jax.lax.conv_general_dilated(
            t, w, (1, 1), 'SAME',
            dimension_numbers=('NHWC', 'HWIO', 'NHWC'))
        return y if b is None else y + b

    def bn(t, p):
        g, bt, mu, var = p
        return (t - mu) * (g * jax.lax.rsqrt(var + eps)) + bt

    x0 = jax.nn.relu(bn(conv(x, raw['w1'], raw['b1']), raw['bn1']))
    s3 = bn(conv(x0, raw['w3'], raw['b3']), raw['bn3'])
    s5 = bn(conv(s3, raw['w5'], raw['b5']), raw['bn5'])
    s7 = bn(conv(s5, raw['w7'], raw['b7']), raw['bn7'])
    x1 = x0 * (1.0 + jax.nn.sigmoid(s3) + jax.nn.sigmoid(s5)
               + jax.nn.sigmoid(s7))
    y = jax.nn.relu(bn(conv(x1, raw['wm'], raw['bm']), raw['bnm']))
    out = conv(y, raw['wf'])
    return jnp.transpose(out, (0, 3, 1, 2))                # NCHW


# ----------------------------------- test -----------------------------------

if __name__ == "__main__":
    key = jax.random.PRNGKey(0)
    N, H, W = 2, 16, 16
    Ca, Cb = 3, 2                       # cat(x_tuple) -> 5 channels
    C, NC = 32, 1                       # inter_channels, num_classes

    k1, k2, k3 = jax.random.split(key, 3)
    xa = jax.random.normal(k1, (N, Ca, H, W), jnp.float32)
    xb = jax.random.normal(k2, (N, Cb, H, W), jnp.float32)

    raw = init_raw_params(k3, cin=Ca + Cb, inter_channels=C, num_classes=NC)
    params = prepare_params(raw, split_a=Ca)

    out = msp3_forward(xa, xb, params)
    out = jax.block_until_ready(out)
    assert out.shape == (N, NC, H, W)

    ref = msp3_reference(xa, xb, raw)
    err = float(jnp.max(jnp.abs(out - ref)))
    assert jnp.allclose(out, ref, atol=5e-2, rtol=5e-2), f"max abs err {err}"
    print("KERNEL_OK")
</pallas_src>

<mosaic_0001>
module attributes {stable_mosaic.version = 11 : i64} {
  func.func @_msp3_kernel(%arg0: i32, %arg1: memref<1x16x16x3xf32, #tpu.memory_space<vmem>>, %arg2: memref<1x16x16x2xf32, #tpu.memory_space<vmem>>, %arg3: memref<3x32xf32, #tpu.memory_space<vmem>>, %arg4: memref<2x32xf32, #tpu.memory_space<vmem>>, %arg5: memref<1x32xf32, #tpu.memory_space<vmem>>, %arg6: memref<288x32xbf16, #tpu.memory_space<vmem>>, %arg7: memref<1x32xf32, #tpu.memory_space<vmem>>, %arg8: memref<800x32xbf16, #tpu.memory_space<vmem>>, %arg9: memref<1x32xf32, #tpu.memory_space<vmem>>, %arg10: memref<1568x32xbf16, #tpu.memory_space<vmem>>, %arg11: memref<1x32xf32, #tpu.memory_space<vmem>>, %arg12: memref<288x32xbf16, #tpu.memory_space<vmem>>, %arg13: memref<1x32xf32, #tpu.memory_space<vmem>>, %arg14: memref<1x32xf32, #tpu.memory_space<vmem>>, %arg15: memref<1x16x16x1xf32, #tpu.memory_space<vmem>>, %arg16: memref<22x22x32xf32, #tpu.memory_space<vmem>>) attributes {dimension_semantics = [#tpu.dimension_semantics<parallel>], iteration_bounds = array<i64: 2>, scalar_prefetch = 0 : i64, scratch_operands = 1 : i64, tpu.core_type = #tpu.core_type<tc>, window_params = [{transform_indices = @transform_0, window_bounds = array<i64: 1, 16, 16, 3>}, {transform_indices = @transform_1, window_bounds = array<i64: 1, 16, 16, 2>}, {pipeline_mode = #tpu.pipeline_mode<synchronous>, transform_indices = @transform_2, window_bounds = array<i64: 3, 32>}, {pipeline_mode = #tpu.pipeline_mode<synchronous>, transform_indices = @transform_3, window_bounds = array<i64: 2, 32>}, {pipeline_mode = #tpu.pipeline_mode<synchronous>, transform_indices = @transform_4, window_bounds = array<i64: 1, 32>}, {pipeline_mode = #tpu.pipeline_mode<synchronous>, transform_indices = @transform_5, window_bounds = array<i64: 288, 32>}, {pipeline_mode = #tpu.pipeline_mode<synchronous>, transform_indices = @transform_6, window_bounds = array<i64: 1, 32>}, {pipeline_mode = #tpu.pipeline_mode<synchronous>, transform_indices = @transform_7, window_bounds = array<i64: 800, 32>}, {pipeline_mode = #tpu.pipeline_mode<synchronous>, transform_indices = @transform_8, window_bounds = array<i64: 1, 32>}, {pipeline_mode = #tpu.pipeline_mode<synchronous>, transform_indices = @transform_9, window_bounds = array<i64: 1568, 32>}, {pipeline_mode = #tpu.pipeline_mode<synchronous>, transform_indices = @transform_10, window_bounds = array<i64: 1, 32>}, {pipeline_mode = #tpu.pipeline_mode<synchronous>, transform_indices = @transform_11, window_bounds = array<i64: 288, 32>}, {pipeline_mode = #tpu.pipeline_mode<synchronous>, transform_indices = @transform_12, window_bounds = array<i64: 1, 32>}, {pipeline_mode = #tpu.pipeline_mode<synchronous>, transform_indices = @transform_13, window_bounds = array<i64: 1, 32>}, {transform_indices = @transform_14, window_bounds = array<i64: 1, 16, 16, 1>}]} {
    %cst = arith.constant 0.000000e+00 : f32
    %0 = vector.broadcast %cst : f32 to vector<22x22x32xf32>
    %c0 = arith.constant 0 : index
    %c0_0 = arith.constant 0 : index
    %c0_1 = arith.constant 0 : index
    %1 = vector.load %arg16[%c0, %c0_0, %c0_1] : memref<22x22x32xf32, #tpu.memory_space<vmem>>, vector<22x22x32xf32>
    tpu.vector_store %arg16[%c0, %c0_0, %c0_1], %0 {strides = array<i32>} : memref<22x22x32xf32, #tpu.memory_space<vmem>>, vector<22x22x32xf32>,
    %c0_2 = arith.constant 0 : index
    %c0_3 = arith.constant 0 : index
    %c0_4 = arith.constant 0 : index
    %c0_5 = arith.constant 0 : index
    %2 = vector.load %arg1[%c0_2, %c0_3, %c0_4, %c0_5] : memref<1x16x16x3xf32, #tpu.memory_space<vmem>>, vector<1x16x16x3xf32>
    %3 = vector.shape_cast %2 : vector<1x16x16x3xf32> to vector<16x16x3xf32>
    %c0_6 = arith.constant 0 : index
    %c0_7 = arith.constant 0 : index
    %c0_8 = arith.constant 0 : index
    %c0_9 = arith.constant 0 : index
    %4 = vector.load %arg2[%c0_6, %c0_7, %c0_8, %c0_9] : memref<1x16x16x2xf32, #tpu.memory_space<vmem>>, vector<1x16x16x2xf32>
    %5 = vector.shape_cast %4 : vector<1x16x16x2xf32> to vector<16x16x2xf32>
    %cst_10 = arith.constant 0.000000e+00 : f32
    %6 = vector.broadcast %cst_10 : f32 to vector<16x16x32xf32>
    %7 = vector.extract_strided_slice %3 {offsets = [0, 0, 0], sizes = [16, 16, 1], strides = [1, 1, 1]} : vector<16x16x3xf32> to vector<16x16x1xf32>
    %c0_11 = arith.constant 0 : index
    %c0_12 = arith.constant 0 : index
    %8 = vector.load %arg3[%c0_11, %c0_12] : memref<3x32xf32, #tpu.memory_space<vmem>>, vector<1x32xf32>
    %9 = vector.shape_cast %8 : vector<1x32xf32> to vector<32xf32>
    %10 = vector.shape_cast %9 : vector<32xf32> to vector<1x1x32xf32>
    %11 = vector.broadcast %7 : vector<16x16x1xf32> to vector<16x16x32xf32>
    %12 = vector.broadcast %10 : vector<1x1x32xf32> to vector<16x16x32xf32>
    %13 = arith.mulf %11, %12 : vector<16x16x32xf32>
    %14 = arith.addf %6, %13 : vector<16x16x32xf32>
    %15 = vector.extract_strided_slice %3 {offsets = [0, 0, 1], sizes = [16, 16, 1], strides = [1, 1, 1]} : vector<16x16x3xf32> to vector<16x16x1xf32>
    %c1 = arith.constant 1 : index
    %c0_13 = arith.constant 0 : index
    %16 = vector.load %arg3[%c1, %c0_13] : memref<3x32xf32, #tpu.memory_space<vmem>>, vector<1x32xf32>
    %17 = vector.shape_cast %16 : vector<1x32xf32> to vector<32xf32>
    %18 = vector.shape_cast %17 : vector<32xf32> to vector<1x1x32xf32>
    %19 = vector.broadcast %15 : vector<16x16x1xf32> to vector<16x16x32xf32>
    %20 = vector.broadcast %18 : vector<1x1x32xf32> to vector<16x16x32xf32>
    %21 = arith.mulf %19, %20 : vector<16x16x32xf32>
    %22 = arith.addf %14, %21 : vector<16x16x32xf32>
    %23 = vector.extract_strided_slice %3 {offsets = [0, 0, 2], sizes = [16, 16, 1], strides = [1, 1, 1]} : vector<16x16x3xf32> to vector<16x16x1xf32>
    %c2 = arith.constant 2 : index
    %c0_14 = arith.constant 0 : index
    %24 = vector.load %arg3[%c2, %c0_14] : memref<3x32xf32, #tpu.memory_space<vmem>>, vector<1x32xf32>
    %25 = vector.shape_cast %24 : vector<1x32xf32> to vector<32xf32>
    %26 = vector.shape_cast %25 : vector<32xf32> to vector<1x1x32xf32>
    %27 = vector.broadcast %23 : vector<16x16x1xf32> to vector<16x16x32xf32>
    %28 = vector.broadcast %26 : vector<1x1x32xf32> to vector<16x16x32xf32>
    %29 = arith.mulf %27, %28 : vector<16x16x32xf32>
    %30 = arith.addf %22, %29 : vector<16x16x32xf32>
    %31 = vector.extract_strided_slice %5 {offsets = [0, 0, 0], sizes = [16, 16, 1], strides = [1, 1, 1]} : vector<16x16x2xf32> to vector<16x16x1xf32>
    %c0_15 = arith.constant 0 : index
    %c0_16 = arith.constant 0 : index
    %32 = vector.load %arg4[%c0_15, %c0_16] : memref<2x32xf32, #tpu.memory_space<vmem>>, vector<1x32xf32>
    %33 = vector.shape_cast %32 : vector<1x32xf32> to vector<32xf32>
    %34 = vector.shape_cast %33 : vector<32xf32> to vector<1x1x32xf32>
    %35 = vector.broadcast %31 : vector<16x16x1xf32> to vector<16x16x32xf32>
    %36 = vector.broadcast %34 : vector<1x1x32xf32> to vector<16x16x32xf32>
    %37 = arith.mulf %35, %36 : vector<16x16x32xf32>
    %38 = arith.addf %30, %37 : vector<16x16x32xf32>
    %39 = vector.extract_strided_slice %5 {offsets = [0, 0, 1], sizes = [16, 16, 1], strides = [1, 1, 1]} : vector<16x16x2xf32> to vector<16x16x1xf32>
    %c1_17 = arith.constant 1 : index
    %c0_18 = arith.constant 0 : index
    %40 = vector.load %arg4[%c1_17, %c0_18] : memref<2x32xf32, #tpu.memory_space<vmem>>, vector<1x32xf32>
    %41 = vector.shape_cast %40 : vector<1x32xf32> to vector<32xf32>
    %42 = vector.shape_cast %41 : vector<32xf32> to vector<1x1x32xf32>
    %43 = vector.broadcast %39 : vector<16x16x1xf32> to vector<16x16x32xf32>
    %44 = vector.broadcast %42 : vector<1x1x32xf32> to vector<16x16x32xf32>
    %45 = arith.mulf %43, %44 : vector<16x16x32xf32>
    %46 = arith.addf %38, %45 : vector<16x16x32xf32>
    %c0_19 = arith.constant 0 : index
    %c0_20 = arith.constant 0 : index
    %47 = vector.load %arg5[%c0_19, %c0_20] : memref<1x32xf32, #tpu.memory_space<vmem>>, vector<1x32xf32>
    %48 = vector.shape_cast %47 : vector<1x32xf32> to vector<1x1x32xf32>
    %49 = vector.broadcast %48 : vector<1x1x32xf32> to vector<16x16x32xf32>
    %50 = arith.addf %46, %49 : vector<16x16x32xf32>
    %cst_21 = arith.constant 0.000000e+00 : f32
    %51 = vector.broadcast %cst_21 : f32 to vector<16x16x32xf32>
    %52 = arith.maximumf %50, %51 : vector<16x16x32xf32>
    %c3 = arith.constant 3 : index
    %c3_22 = arith.constant 3 : index
    %c0_23 = arith.constant 0 : index
    %53 = vector.load %arg16[%c3, %c3_22, %c0_23] : memref<22x22x32xf32, #tpu.memory_space<vmem>>, vector<16x16x32xf32>
    tpu.vector_store %arg16[%c3, %c3_22, %c0_23], %52 {strides = array<i32>} : memref<22x22x32xf32, #tpu.memory_space<vmem>>, vector<16x16x32xf32>,
    %c2_24 = arith.constant 2 : index
    %c2_25 = arith.constant 2 : index
    %c0_26 = arith.constant 0 : index
    %54 = vector.load %arg16[%c2_24, %c2_25, %c0_26] : memref<22x22x32xf32, #tpu.memory_space<vmem>>, vector<18x18x32xf32>
    %55 = arith.truncf %54 : vector<18x18x32xf32> to vector<18x18x32xbf16>
    %cst_27 = arith.constant 0.000000e+00 : f32
    %56 = vector.broadcast %cst_27 : f32 to vector<16x16x32xf32>
    %57 = vector.extract_strided_slice %55 {offsets = [0, 0, 0], sizes = [16, 16, 32], strides = [1, 1, 1]} : vector<18x18x32xbf16> to vector<16x16x32xbf16>
    %58 = vector.extract_strided_slice %55 {offsets = [0, 1, 0], sizes = [16, 16, 32], strides = [1, 1, 1]} : vector<18x18x32xbf16> to vector<16x16x32xbf16>
    %59 = vector.extract_strided_slice %55 {offsets = [0, 2, 0], sizes = [16, 16, 32], strides = [1, 1, 1]} : vector<18x18x32xbf16> to vector<16x16x32xbf16>
    %60 = tpu.concatenate %57, %58, %59 in 2 : vector<16x16x32xbf16>, vector<16x16x32xbf16>, vector<16x16x32xbf16> -> vector<16x16x96xbf16>
    %c0_28 = arith.constant 0 : index
    %c0_29 = arith.constant 0 : index
    %61 = vector.load %arg6[%c0_28, %c0_29] : memref<288x32xbf16, #tpu.memory_space<vmem>>, vector<96x32xbf16>
    "tpu.trace_start"() <{level = 10 : i32, message = "hwc,cd->hwd"}> : () -> ()
    %cst_30 = arith.constant dense<0.000000e+00> : vector<16x16x32xf32>
    %62 = tpu.matmul %60, %61, %cst_30 {dimension_numbers = #tpu.dot_dimension_numbers<[2], [0], [0, 1], [1], [0, 0, 0, 1, 1, 1], [], []>} : vector<16x16x96xbf16>, vector<96x32xbf16>, vector<16x16x32xf32> -> vector<16x16x32xf32>
    "tpu.trace_stop"() : () -> ()
    %63 = arith.addf %56, %62 : vector<16x16x32xf32>
    %64 = vector.extract_strided_slice %55 {offsets = [1, 0, 0], sizes = [16, 16, 32], strides = [1, 1, 1]} : vector<18x18x32xbf16> to vector<16x16x32xbf16>
    %65 = vector.extract_strided_slice %55 {offsets = [1, 1, 0], sizes = [16, 16, 32], strides = [1, 1, 1]} : vector<18x18x32xbf16> to vector<16x16x32xbf16>
    %66 = vector.extract_strided_slice %55 {offsets = [1, 2, 0], sizes = [16, 16, 32], strides = [1, 1, 1]} : vector<18x18x32xbf16> to vector<16x16x32xbf16>
    %67 = tpu.concatenate %64, %65, %66 in 2 : vector<16x16x32xbf16>, vector<16x16x32xbf16>, vector<16x16x32xbf16> -> vector<16x16x96xbf16>
    %c96 = arith.constant 96 : index
    %c0_31 = arith.constant 0 : index
    %68 = vector.load %arg6[%c96, %c0_31] : memref<288x32xbf16, #tpu.memory_space<vmem>>, vector<96x32xbf16>
    "tpu.trace_start"() <{level = 10 : i32, message = "hwc,cd->hwd"}> : () -> ()
    %cst_32 = arith.constant dense<0.000000e+00> : vector<16x16x32xf32>
    %69 = tpu.matmul %67, %68, %cst_32 {dimension_numbers = #tpu.dot_dimension_numbers<[2], [0], [0, 1], [1], [0, 0, 0, 1, 1, 1], [], []>} : vector<16x16x96xbf16>, vector<96x32xbf16>, vector<16x16x32xf32> -> vector<16x16x32xf32>
    "tpu.trace_stop"() : () -> ()
    %70 = arith.addf %63, %69 : vector<16x16x32xf32>
    %71 = vector.extract_strided_slice %55 {offsets = [2, 0, 0], sizes = [16, 16, 32], strides = [1, 1, 1]} : vector<18x18x32xbf16> to vector<16x16x32xbf16>
    %72 = vector.extract_strided_slice %55 {offsets = [2, 1, 0], sizes = [16, 16, 32], strides = [1, 1, 1]} : vector<18x18x32xbf16> to vector<16x16x32xbf16>
    %73 = vector.extract_strided_slice %55 {offsets = [2, 2, 0], sizes = [16, 16, 32], strides = [1, 1, 1]} : vector<18x18x32xbf16> to vector<16x16x32xbf16>
    %74 = tpu.concatenate %71, %72, %73 in 2 : vector<16x16x32xbf16>, vector<16x16x32xbf16>, vector<16x16x32xbf16> -> vector<16x16x96xbf16>
    %c192 = arith.constant 192 : index
    %c0_33 = arith.constant 0 : index
    %75 = vector.load %arg6[%c192, %c0_33] : memref<288x32xbf16, #tpu.memory_space<vmem>>, vector<96x32xbf16>
    "tpu.trace_start"() <{level = 10 : i32, message = "hwc,cd->hwd"}> : () -> ()
    %cst_34 = arith.constant dense<0.000000e+00> : vector<16x16x32xf32>
    %76 = tpu.matmul %74, %75, %cst_34 {dimension_numbers = #tpu.dot_dimension_numbers<[2], [0], [0, 1], [1], [0, 0, 0, 1, 1, 1], [], []>} : vector<16x16x96xbf16>, vector<96x32xbf16>, vector<16x16x32xf32> -> vector<16x16x32xf32>
    "tpu.trace_stop"() : () -> ()
    %77 = arith.addf %70, %76 : vector<16x16x32xf32>
    %c0_35 = arith.constant 0 : index
    %c0_36 = arith.constant 0 : index
    %78 = vector.load %arg7[%c0_35, %c0_36] : memref<1x32xf32, #tpu.memory_space<vmem>>, vector<1x32xf32>
    %79 = vector.shape_cast %78 : vector<1x32xf32> to vector<1x1x32xf32>
    %80 = vector.broadcast %79 : vector<1x1x32xf32> to vector<16x16x32xf32>
    %81 = arith.addf %77, %80 : vector<16x16x32xf32>
    %c3_37 = arith.constant 3 : index
    %c3_38 = arith.constant 3 : index
    %c0_39 = arith.constant 0 : index
    %82 = vector.load %arg16[%c3_37, %c3_38, %c0_39] : memref<22x22x32xf32, #tpu.memory_space<vmem>>, vector<16x16x32xf32>
    tpu.vector_store %arg16[%c3_37, %c3_38, %c0_39], %81 {strides = array<i32>} : memref<22x22x32xf32, #tpu.memory_space<vmem>>, vector<16x16x32xf32>,
    %c1_40 = arith.constant 1 : index
    %c1_41 = arith.constant 1 : index
    %c0_42 = arith.constant 0 : index
    %83 = vector.load %arg16[%c1_40, %c1_41, %c0_42] : memref<22x22x32xf32, #tpu.memory_space<vmem>>, vector<20x20x32xf32>
    %84 = arith.truncf %83 : vector<20x20x32xf32> to vector<20x20x32xbf16>
    %cst_43 = arith.constant 0.000000e+00 : f32
    %85 = vector.broadcast %cst_43 : f32 to vector<16x16x32xf32>
    %86 = vector.extract_strided_slice %84 {offsets = [0, 0, 0], sizes = [16, 16, 32], strides = [1, 1, 1]} : vector<20x20x32xbf16> to vector<16x16x32xbf16>
    %87 = vector.extract_strided_slice %84 {offsets = [0, 1, 0], sizes = [16, 16, 32], strides = [1, 1, 1]} : vector<20x20x32xbf16> to vector<16x16x32xbf16>
    %88 = vector.extract_strided_slice %84 {offsets = [0, 2, 0], sizes = [16, 16, 32], strides = [1, 1, 1]} : vector<20x20x32xbf16> to vector<16x16x32xbf16>
    %89 = vector.extract_strided_slice %84 {offsets = [0, 3, 0], sizes = [16, 16, 32], strides = [1, 1, 1]} : vector<20x20x32xbf16> to vector<16x16x32xbf16>
    %90 = vector.extract_strided_slice %84 {offsets = [0, 4, 0], sizes = [16, 16, 32], strides = [1, 1, 1]} : vector<20x20x32xbf16> to vector<16x16x32xbf16>
    %91 = tpu.concatenate %86, %87, %88, %89, %90 in 2 : vector<16x16x32xbf16>, vector<16x16x32xbf16>, vector<16x16x32xbf16>, vector<16x16x32xbf16>, vector<16x16x32xbf16> -> vector<16x16x160xbf16>
    %c0_44 = arith.constant 0 : index
    %c0_45 = arith.constant 0 : index
    %92 = vector.load %arg8[%c0_44, %c0_45] : memref<800x32xbf16, #tpu.memory_space<vmem>>, vector<160x32xbf16>
    "tpu.trace_start"() <{level = 10 : i32, message = "hwc,cd->hwd"}> : () -> ()
    %cst_46 = arith.constant dense<0.000000e+00> : vector<16x16x32xf32>
    %93 = tpu.matmul %91, %92, %cst_46 {dimension_numbers = #tpu.dot_dimension_numbers<[2], [0], [0, 1], [1], [0, 0, 0, 1, 1, 1], [], []>} : vector<16x16x160xbf16>, vector<160x32xbf16>, vector<16x16x32xf32> -> vector<16x16x32xf32>
    "tpu.trace_stop"() : () -> ()
    %94 = arith.addf %85, %93 : vector<16x16x32xf32>
    %95 = vector.extract_strided_slice %84 {offsets = [1, 0, 0], sizes = [16, 16, 32], strides = [1, 1, 1]} : vector<20x20x32xbf16> to vector<16x16x32xbf16>
    %96 = vector.extract_strided_slice %84 {offsets = [1, 1, 0], sizes = [16, 16, 32], strides = [1, 1, 1]} : vector<20x20x32xbf16> to vector<16x16x32xbf16>
    %97 = vector.extract_strided_slice %84 {offsets = [1, 2, 0], sizes = [16, 16, 32], strides = [1, 1, 1]} : vector<20x20x32xbf16> to vector<16x16x32xbf16>
    %98 = vector.extract_strided_slice %84 {offsets = [1, 3, 0], sizes = [16, 16, 32], strides = [1, 1, 1]} : vector<20x20x32xbf16> to vector<16x16x32xbf16>
    %99 = vector.extract_strided_slice %84 {offsets = [1, 4, 0], sizes = [16, 16, 32], strides = [1, 1, 1]} : vector<20x20x32xbf16> to vector<16x16x32xbf16>
    %100 = tpu.concatenate %95, %96, %97, %98, %99 in 2 : vector<16x16x32xbf16>, vector<16x16x32xbf16>, vector<16x16x32xbf16>, vector<16x16x32xbf16>, vector<16x16x32xbf16> -> vector<16x16x160xbf16>
    %c160 = arith.constant 160 : index
    %c0_47 = arith.constant 0 : index
    %101 = vector.load %arg8[%c160, %c0_47] : memref<800x32xbf16, #tpu.memory_space<vmem>>, vector<160x32xbf16>
    "tpu.trace_start"() <{level = 10 : i32, message = "hwc,cd->hwd"}> : () -> ()
    %cst_48 = arith.constant dense<0.000000e+00> : vector<16x16x32xf32>
    %102 = tpu.matmul %100, %101, %cst_48 {dimension_numbers = #tpu.dot_dimension_numbers<[2], [0], [0, 1], [1], [0, 0, 0, 1, 1, 1], [], []>} : vector<16x16x160xbf16>, vector<160x32xbf16>, vector<16x16x32xf32> -> vector<16x16x32xf32>
    "tpu.trace_stop"() : () -> ()
    %103 = arith.addf %94, %102 : vector<16x16x32xf32>
    %104 = vector.extract_strided_slice %84 {offsets = [2, 0, 0], sizes = [16, 16, 32], strides = [1, 1, 1]} : vector<20x20x32xbf16> to vector<16x16x32xbf16>
    %105 = vector.extract_strided_slice %84 {offsets = [2, 1, 0], sizes = [16, 16, 32], strides = [1, 1, 1]} : vector<20x20x32xbf16> to vector<16x16x32xbf16>
    %106 = vector.extract_strided_slice %84 {offsets = [2, 2, 0], sizes = [16, 16, 32], strides = [1, 1, 1]} : vector<20x20x32xbf16> to vector<16x16x32xbf16>
    %107 = vector.extract_strided_slice %84 {offsets = [2, 3, 0], sizes = [16, 16, 32], strides = [1, 1, 1]} : vector<20x20x32xbf16> to vector<16x16x32xbf16>
    %108 = vector.extract_strided_slice %84 {offsets = [2, 4, 0], sizes = [16, 16, 32], strides = [1, 1, 1]} : vector<20x20x32xbf16> to vector<16x16x32xbf16>
    %109 = tpu.concatenate %104, %105, %106, %107, %108 in 2 : vector<16x16x32xbf16>, vector<16x16x32xbf16>, vector<16x16x32xbf16>, vector<16x16x32xbf16>, vector<16x16x32xbf16> -> vector<16x16x160xbf16>
    %c320 = arith.constant 320 : index
    %c0_49 = arith.constant 0 : index
    %110 = vector.load %arg8[%c320, %c0_49] : memref<800x32xbf16, #tpu.memory_space<vmem>>, vector<160x32xbf16>
    "tpu.trace_start"() <{level = 10 : i32, message = "hwc,cd->hwd"}> : () -> ()
    %cst_50 = arith.constant dense<0.000000e+00> : vector<16x16x32xf32>
    %111 = tpu.matmul %109, %110, %cst_50 {dimension_numbers = #tpu.dot_dimension_numbers<[2], [0], [0, 1], [1], [0, 0, 0, 1, 1, 1], [], []>} : vector<16x16x160xbf16>, vector<160x32xbf16>, vector<16x16x32xf32> -> vector<16x16x32xf32>
    "tpu.trace_stop"() : () -> ()
    %112 = arith.addf %103, %111 : vector<16x16x32xf32>
    %113 = vector.extract_strided_slice %84 {offsets = [3, 0, 0], sizes = [16, 16, 32], strides = [1, 1, 1]} : vector<20x20x32xbf16> to vector<16x16x32xbf16>
    %114 = vector.extract_strided_slice %84 {offsets = [3, 1, 0], sizes = [16, 16, 32], strides = [1, 1, 1]} : vector<20x20x32xbf16> to vector<16x16x32xbf16>
    %115 = vector.extract_strided_slice %84 {offsets = [3, 2, 0], sizes = [16, 16, 32], strides = [1, 1, 1]} : vector<20x20x32xbf16> to vector<16x16x32xbf16>
    %116 = vector.extract_strided_slice %84 {offsets = [3, 3, 0], sizes = [16, 16, 32], strides = [1, 1, 1]} : vector<20x20x32xbf16> to vector<16x16x32xbf16>
    %117 = vector.extract_strided_slice %84 {offsets = [3, 4, 0], sizes = [16, 16, 32], strides = [1, 1, 1]} : vector<20x20x32xbf16> to vector<16x16x32xbf16>
    %118 = tpu.concatenate %113, %114, %115, %116, %117 in 2 : vector<16x16x32xbf16>, vector<16x16x32xbf16>, vector<16x16x32xbf16>, vector<16x16x32xbf16>, vector<16x16x32xbf16> -> vector<16x16x160xbf16>
    %c480 = arith.constant 480 : index
    %c0_51 = arith.constant 0 : index
    %119 = vector.load %arg8[%c480, %c0_51] : memref<800x32xbf16, #tpu.memory_space<vmem>>, vector<160x32xbf16>
    "tpu.trace_start"() <{level = 10 : i32, message = "hwc,cd->hwd"}> : () -> ()
    %cst_52 = arith.constant dense<0.000000e+00> : vector<16x16x32xf32>
    %120 = tpu.matmul %118, %119, %cst_52 {dimension_numbers = #tpu.dot_dimension_numbers<[2], [0], [0, 1], [1], [0, 0, 0, 1, 1, 1], [], []>} : vector<16x16x160xbf16>, vector<160x32xbf16>, vector<16x16x32xf32> -> vector<16x16x32xf32>
    "tpu.trace_stop"() : () -> ()
    %121 = arith.addf %112, %120 : vector<16x16x32xf32>
    %122 = vector.extract_strided_slice %84 {offsets = [4, 0, 0], sizes = [16, 16, 32], strides = [1, 1, 1]} : vector<20x20x32xbf16> to vector<16x16x32xbf16>
    %123 = vector.extract_strided_slice %84 {offsets = [4, 1, 0], sizes = [16, 16, 32], strides = [1, 1, 1]} : vector<20x20x32xbf16> to vector<16x16x32xbf16>
    %124 = vector.extract_strided_slice %84 {offsets = [4, 2, 0], sizes = [16, 16, 32], strides = [1, 1, 1]} : vector<20x20x32xbf16> to vector<16x16x32xbf16>
    %125 = vector.extract_strided_slice %84 {offsets = [4, 3, 0], sizes = [16, 16, 32], strides = [1, 1, 1]} : vector<20x20x32xbf16> to vector<16x16x32xbf16>
    %126 = vector.extract_strided_slice %84 {offsets = [4, 4, 0], sizes = [16, 16, 32], strides = [1, 1, 1]} : vector<20x20x32xbf16> to vector<16x16x32xbf16>
    %127 = tpu.concatenate %122, %123, %124, %125, %126 in 2 : vector<16x16x32xbf16>, vector<16x16x32xbf16>, vector<16x16x32xbf16>, vector<16x16x32xbf16>, vector<16x16x32xbf16> -> vector<16x16x160xbf16>
    %c640 = arith.constant 640 : index
    %c0_53 = arith.constant 0 : index
    %128 = vector.load %arg8[%c640, %c0_53] : memref<800x32xbf16, #tpu.memory_space<vmem>>, vector<160x32xbf16>
    "tpu.trace_start"() <{level = 10 : i32, message = "hwc,cd->hwd"}> : () -> ()
    %cst_54 = arith.constant dense<0.000000e+00> : vector<16x16x32xf32>
    %129 = tpu.matmul %127, %128, %cst_54 {dimension_numbers = #tpu.dot_dimension_numbers<[2], [0], [0, 1], [1], [0, 0, 0, 1, 1, 1], [], []>} : vector<16x16x160xbf16>, vector<160x32xbf16>, vector<16x16x32xf32> -> vector<16x16x32xf32>
    "tpu.trace_stop"() : () -> ()
    %130 = arith.addf %121, %129 : vector<16x16x32xf32>
    %c0_55 = arith.constant 0 : index
    %c0_56 = arith.constant 0 : index
    %131 = vector.load %arg9[%c0_55, %c0_56] : memref<1x32xf32, #tpu.memory_space<vmem>>, vector<1x32xf32>
    %132 = vector.shape_cast %131 : vector<1x32xf32> to vector<1x1x32xf32>
    %133 = vector.broadcast %132 : vector<1x1x32xf32> to vector<16x16x32xf32>
    %134 = arith.addf %130, %133 : vector<16x16x32xf32>
    %c3_57 = arith.constant 3 : index
    %c3_58 = arith.constant 3 : index
    %c0_59 = arith.constant 0 : index
    %135 = vector.load %arg16[%c3_57, %c3_58, %c0_59] : memref<22x22x32xf32, #tpu.memory_space<vmem>>, vector<16x16x32xf32>
    tpu.vector_store %arg16[%c3_57, %c3_58, %c0_59], %134 {strides = array<i32>} : memref<22x22x32xf32, #tpu.memory_space<vmem>>, vector<16x16x32xf32>,
    %c0_60 = arith.constant 0 : index
    %c0_61 = arith.constant 0 : index
    %c0_62 = arith.constant 0 : index
    %136 = vector.load %arg16[%c0_60, %c0_61, %c0_62] : memref<22x22x32xf32, #tpu.memory_space<vmem>>, vector<22x22x32xf32>
    %137 = arith.truncf %136 : vector<22x22x32xf32> to vector<22x22x32xbf16>
    %cst_63 = arith.constant 0.000000e+00 : f32
    %138 = vector.broadcast %cst_63 : f32 to vector<16x16x32xf32>
    %139 = vector.extract_strided_slice %137 {offsets = [0, 0, 0], sizes = [16, 16, 32], strides = [1, 1, 1]} : vector<22x22x32xbf16> to vector<16x16x32xbf16>
    %140 = vector.extract_strided_slice %137 {offsets = [0, 1, 0], sizes = [16, 16, 32], strides = [1, 1, 1]} : vector<22x22x32xbf16> to vector<16x16x32xbf16>
    %141 = vector.extract_strided_slice %137 {offsets = [0, 2, 0], sizes = [16, 16, 32], strides = [1, 1, 1]} : vector<22x22x32xbf16> to vector<16x16x32xbf16>
    %142 = vector.extract_strided_slice %137 {offsets = [0, 3, 0], sizes = [16, 16, 32], strides = [1, 1, 1]} : vector<22x22x32xbf16> to vector<16x16x32xbf16>
    %143 = vector.extract_strided_slice %137 {offsets = [0, 4, 0], sizes = [16, 16, 32], strides = [1, 1, 1]} : vector<22x22x32xbf16> to vector<16x16x32xbf16>
    %144 = vector.extract_strided_slice %137 {offsets = [0, 5, 0], sizes = [16, 16, 32], strides = [1, 1, 1]} : vector<22x22x32xbf16> to vector<16x16x32xbf16>
    %145 = vector.extract_strided_slice %137 {offsets = [0, 6, 0], sizes = [16, 16, 32], strides = [1, 1, 1]} : vector<22x22x32xbf16> to vector<16x16x32xbf16>
    %146 = tpu.concatenate %139, %140, %141, %142, %143, %144, %145 in 2 : vector<16x16x32xbf16>, vector<16x16x32xbf16>, vector<16x16x32xbf16>, vector<16x16x32xbf16>, vector<16x16x32xbf16>, vector<16x16x32xbf16>, vector<16x16x32xbf16> -> vector<16x16x224xbf16>
    %c0_64 = arith.constant 0 : index
    %c0_65 = arith.constant 0 : index
    %147 = vector.load %arg10[%c0_64, %c0_65] : memref<1568x32xbf16, #tpu.memory_space<vmem>>, vector<224x32xbf16>
    "tpu.trace_start"() <{level = 10 : i32, message = "hwc,cd->hwd"}> : () -> ()
    %cst_66 = arith.constant dense<0.000000e+00> : vector<16x16x32xf32>
    %148 = tpu.matmul %146, %147, %cst_66 {dimension_numbers = #tpu.dot_dimension_numbers<[2], [0], [0, 1], [1], [0, 0, 0, 1, 1, 1], [], []>} : vector<16x16x224xbf16>, vector<224x32xbf16>, vector<16x16x32xf32> -> vector<16x16x32xf32>
    "tpu.trace_stop"() : () -> ()
    %149 = arith.addf %138, %148 : vector<16x16x32xf32>
    %150 = vector.extract_strided_slice %137 {offsets = [1, 0, 0], sizes = [16, 16, 32], strides = [1, 1, 1]} : vector<22x22x32xbf16> to vector<16x16x32xbf16>
    %151 = vector.extract_strided_slice %137 {offsets = [1, 1, 0], sizes = [16, 16, 32], strides = [1, 1, 1]} : vector<22x22x32xbf16> to vector<16x16x32xbf16>
    %152 = vector.extract_strided_slice %137 {offsets = [1, 2, 0], sizes = [16, 16, 32], strides = [1, 1, 1]} : vector<22x22x32xbf16> to vector<16x16x32xbf16>
    %153 = vector.extract_strided_slice %137 {offsets = [1, 3, 0], sizes = [16, 16, 32], strides = [1, 1, 1]} : vector<22x22x32xbf16> to vector<16x16x32xbf16>
    %154 = vector.extract_strided_slice %137 {offsets = [1, 4, 0], sizes = [16, 16, 32], strides = [1, 1, 1]} : vector<22x22x32xbf16> to vector<16x16x32xbf16>
    %155 = vector.extract_strided_slice %137 {offsets = [1, 5, 0], sizes = [16, 16, 32], strides = [1, 1, 1]} : vector<22x22x32xbf16> to vector<16x16x32xbf16>
    %156 = vector.extract_strided_slice %137 {offsets = [1, 6, 0], sizes = [16, 16, 32], strides = [1, 1, 1]} : vector<22x22x32xbf16> to vector<16x16x32xbf16>
    %157 = tpu.concatenate %150, %151, %152, %153, %154, %155, %156 in 2 : vector<16x16x32xbf16>, vector<16x16x32xbf16>, vector<16x16x32xbf16>, vector<16x16x32xbf16>, vector<16x16x32xbf16>, vector<16x16x32xbf16>, vector<16x16x32xbf16> -> vector<16x16x224xbf16>
    %c224 = arith.constant 224 : index
    %c0_67 = arith.constant 0 : index
    %158 = vector.load %arg10[%c224, %c0_67] : memref<1568x32xbf16, #tpu.memory_space<vmem>>, vector<224x32xbf16>
    "tpu.trace_start"() <{level = 10 : i32, message = "hwc,cd->hwd"}> : () -> ()
    %cst_68 = arith.constant dense<0.000000e+00> : vector<16x16x32xf32>
    %159 = tpu.matmul %157, %158, %cst_68 {dimension_numbers = #tpu.dot_dimension_numbers<[2], [0], [0, 1], [1], [0, 0, 0, 1, 1, 1], [], []>} : vector<16x16x224xbf16>, vector<224x32xbf16>, vector<16x16x32xf32> -> vector<16x16x32xf32>
    "tpu.trace_stop"() : () -> ()
    %160 = arith.addf %149, %159 : vector<16x16x32xf32>
    %161 = vector.extract_strided_slice %137 {offsets = [2, 0, 0], sizes = [16, 16, 32], strides = [1, 1, 1]} : vector<22x22x32xbf16> to vector<16x16x32xbf16>
    %162 = vector.extract_strided_slice %137 {offsets = [2, 1, 0], sizes = [16, 16, 32], strides = [1, 1, 1]} : vector<22x22x32xbf16> to vector<16x16x32xbf16>
    %163 = vector.extract_strided_slice %137 {offsets = [2, 2, 0], sizes = [16, 16, 32], strides = [1, 1, 1]} : vector<22x22x32xbf16> to vector<16x16x32xbf16>
    %164 = vector.extract_strided_slice %137 {offsets = [2, 3, 0], sizes = [16, 16, 32], strides = [1, 1, 1]} : vector<22x22x32xbf16> to vector<16x16x32xbf16>
    %165 = vector.extract_strided_slice %137 {offsets = [2, 4, 0], sizes = [16, 16, 32], strides = [1, 1, 1]} : vector<22x22x32xbf16> to vector<16x16x32xbf16>
    %166 = vector.extract_strided_slice %137 {offsets = [2, 5, 0], sizes = [16, 16, 32], strides = [1, 1, 1]} : vector<22x22x32xbf16> to vector<16x16x32xbf16>
    %167 = vector.extract_strided_slice %137 {offsets = [2, 6, 0], sizes = [16, 16, 32], strides = [1, 1, 1]} : vector<22x22x32xbf16> to vector<16x16x32xbf16>
    %168 = tpu.concatenate %161, %162, %163, %164, %165, %166, %167 in 2 : vector<16x16x32xbf16>, vector<16x16x32xbf16>, vector<16x16x32xbf16>, vector<16x16x32xbf16>, vector<16x16x32xbf16>, vector<16x16x32xbf16>, vector<16x16x32xbf16> -> vector<16x16x224xbf16>
    %c448 = arith.constant 448 : index
    %c0_69 = arith.constant 0 : index
    %169 = vector.load %arg10[%c448, %c0_69] : memref<1568x32xbf16, #tpu.memory_space<vmem>>, vector<224x32xbf16>
    "tpu.trace_start"() <{level = 10 : i32, message = "hwc,cd->hwd"}> : () -> ()
    %cst_70 = arith.constant dense<0.000000e+00> : vector<16x16x32xf32>
    %170 = tpu.matmul %168, %169, %cst_70 {dimension_numbers = #tpu.dot_dimension_numbers<[2], [0], [0, 1], [1], [0, 0, 0, 1, 1, 1], [], []>} : vector<16x16x224xbf16>, vector<224x32xbf16>, vector<16x16x32xf32> -> vector<16x16x32xf32>
    "tpu.trace_stop"() : () -> ()
    %171 = arith.addf %160, %170 : vector<16x16x32xf32>
    %172 = vector.extract_strided_slice %137 {offsets = [3, 0, 0], sizes = [16, 16, 32], strides = [1, 1, 1]} : vector<22x22x32xbf16> to vector<16x16x32xbf16>
    %173 = vector.extract_strided_slice %137 {offsets = [3, 1, 0], sizes = [16, 16, 32], strides = [1, 1, 1]} : vector<22x22x32xbf16> to vector<16x16x32xbf16>
    %174 = vector.extract_strided_slice %137 {offsets = [3, 2, 0], sizes = [16, 16, 32], strides = [1, 1, 1]} : vector<22x22x32xbf16> to vector<16x16x32xbf16>
    %175 = vector.extract_strided_slice %137 {offsets = [3, 3, 0], sizes = [16, 16, 32], strides = [1, 1, 1]} : vector<22x22x32xbf16> to vector<16x16x32xbf16>
    %176 = vector.extract_strided_slice %137 {offsets = [3, 4, 0], sizes = [16, 16, 32], strides = [1, 1, 1]} : vector<22x22x32xbf16> to vector<16x16x32xbf16>
    %177 = vector.extract_strided_slice %137 {offsets = [3, 5, 0], sizes = [16, 16, 32], strides = [1, 1, 1]} : vector<22x22x32xbf16> to vector<16x16x32xbf16>
    %178 = vector.extract_strided_slice %137 {offsets = [3, 6, 0], sizes = [16, 16, 32], strides = [1, 1, 1]} : vector<22x22x32xbf16> to vector<16x16x32xbf16>
    %179 = tpu.concatenate %172, %173, %174, %175, %176, %177, %178 in 2 : vector<16x16x32xbf16>, vector<16x16x32xbf16>, vector<16x16x32xbf16>, vector<16x16x32xbf16>, vector<16x16x32xbf16>, vector<16x16x32xbf16>, vector<16x16x32xbf16> -> vector<16x16x224xbf16>
    %c672 = arith.constant 672 : index
    %c0_71 = arith.constant 0 : index
    %180 = vector.load %arg10[%c672, %c0_71] : memref<1568x32xbf16, #tpu.memory_space<vmem>>, vector<224x32xbf16>
    "tpu.trace_start"() <{level = 10 : i32, message = "hwc,cd->hwd"}> : () -> ()
    %cst_72 = arith.constant dense<0.000000e+00> : vector<16x16x32xf32>
    %181 = tpu.matmul %179, %180, %cst_72 {dimension_numbers = #tpu.dot_dimension_numbers<[2], [0], [0, 1], [1], [0, 0, 0, 1, 1, 1], [], []>} : vector<16x16x224xbf16>, vector<224x32xbf16>, vector<16x16x32xf32> -> vector<16x16x32xf32>
    "tpu.trace_stop"() : () -> ()
    %182 = arith.addf %171, %181 : vector<16x16x32xf32>
    %183 = vector.extract_strided_slice %137 {offsets = [4, 0, 0], sizes = [16, 16, 32], strides = [1, 1, 1]} : vector<22x22x32xbf16> to vector<16x16x32xbf16>
    %184 = vector.extract_strided_slice %137 {offsets = [4, 1, 0], sizes = [16, 16, 32], strides = [1, 1, 1]} : vector<22x22x32xbf16> to vector<16x16x32xbf16>
    %185 = vector.extract_strided_slice %137 {offsets = [4, 2, 0], sizes = [16, 16, 32], strides = [1, 1, 1]} : vector<22x22x32xbf16> to vector<16x16x32xbf16>
    %186 = vector.extract_strided_slice %137 {offsets = [4, 3, 0], sizes = [16, 16, 32], strides = [1, 1, 1]} : vector<22x22x32xbf16> to vector<16x16x32xbf16>
    %187 = vector.extract_strided_slice %137 {offsets = [4, 4, 0], sizes = [16, 16, 32], strides = [1, 1, 1]} : vector<22x22x32xbf16> to vector<16x16x32xbf16>
    %188 = vector.extract_strided_slice %137 {offsets = [4, 5, 0], sizes = [16, 16, 32], strides = [1, 1, 1]} : vector<22x22x32xbf16> to vector<16x16x32xbf16>
    %189 = vector.extract_strided_slice %137 {offsets = [4, 6, 0], sizes = [16, 16, 32], strides = [1, 1, 1]} : vector<22x22x32xbf16> to vector<16x16x32xbf16>
    %190 = tpu.concatenate %183, %184, %185, %186, %187, %188, %189 in 2 : vector<16x16x32xbf16>, vector<16x16x32xbf16>, vector<16x16x32xbf16>, vector<16x16x32xbf16>, vector<16x16x32xbf16>, vector<16x16x32xbf16>, vector<16x16x32xbf16> -> vector<16x16x224xbf16>
    %c896 = arith.constant 896 : index
    %c0_73 = arith.constant 0 : index
    %191 = vector.load %arg10[%c896, %c0_73] : memref<1568x32xbf16, #tpu.memory_space<vmem>>, vector<224x32xbf16>
    "tpu.trace_start"() <{level = 10 : i32, message = "hwc,cd->hwd"}> : () -> ()
    %cst_74 = arith.constant dense<0.000000e+00> : vector<16x16x32xf32>
    %192 = tpu.matmul %190, %191, %cst_74 {dimension_numbers = #tpu.dot_dimension_numbers<[2], [0], [0, 1], [1], [0, 0, 0, 1, 1, 1], [], []>} : vector<16x16x224xbf16>, vector<224x32xbf16>, vector<16x16x32xf32> -> vector<16x16x32xf32>
    "tpu.trace_stop"() : () -> ()
    %193 = arith.addf %182, %192 : vector<16x16x32xf32>
    %194 = vector.extract_strided_slice %137 {offsets = [5, 0, 0], sizes = [16, 16, 32], strides = [1, 1, 1]} : vector<22x22x32xbf16> to vector<16x16x32xbf16>
    %195 = vector.extract_strided_slice %137 {offsets = [5, 1, 0], sizes = [16, 16, 32], strides = [1, 1, 1]} : vector<22x22x32xbf16> to vector<16x16x32xbf16>
    %196 = vector.extract_strided_slice %137 {offsets = [5, 2, 0], sizes = [16, 16, 32], strides = [1, 1, 1]} : vector<22x22x32xbf16> to vector<16x16x32xbf16>
    %197 = vector.extract_strided_slice %137 {offsets = [5, 3, 0], sizes = [16, 16, 32], strides = [1, 1, 1]} : vector<22x22x32xbf16> to vector<16x16x32xbf16>
    %198 = vector.extract_strided_slice %137 {offsets = [5, 4, 0], sizes = [16, 16, 32], strides = [1, 1, 1]} : vector<22x22x32xbf16> to vector<16x16x32xbf16>
    %199 = vector.extract_strided_slice %137 {offsets = [5, 5, 0], sizes = [16, 16, 32], strides = [1, 1, 1]} : vector<22x22x32xbf16> to vector<16x16x32xbf16>
    %200 = vector.extract_strided_slice %137 {offsets = [5, 6, 0], sizes = [16, 16, 32], strides = [1, 1, 1]} : vector<22x22x32xbf16> to vector<16x16x32xbf16>
    %201 = tpu.concatenate %194, %195, %196, %197, %198, %199, %200 in 2 : vector<16x16x32xbf16>, vector<16x16x32xbf16>, vector<16x16x32xbf16>, vector<16x16x32xbf16>, vector<16x16x32xbf16>, vector<16x16x32xbf16>, vector<16x16x32xbf16> -> vector<16x16x224xbf16>
    %c1120 = arith.constant 1120 : index
    %c0_75 = arith.constant 0 : index
    %202 = vector.load %arg10[%c1120, %c0_75] : memref<1568x32xbf16, #tpu.memory_space<vmem>>, vector<224x32xbf16>
    "tpu.trace_start"() <{level = 10 : i32, message = "hwc,cd->hwd"}> : () -> ()
    %cst_76 = arith.constant dense<0.000000e+00> : vector<16x16x32xf32>
    %203 = tpu.matmul %201, %202, %cst_76 {dimension_numbers = #tpu.dot_dimension_numbers<[2], [0], [0, 1], [1], [0, 0, 0, 1, 1, 1], [], []>} : vector<16x16x224xbf16>, vector<224x32xbf16>, vector<16x16x32xf32> -> vector<16x16x32xf32>
    "tpu.trace_stop"() : () -> ()
    %204 = arith.addf %193, %203 : vector<16x16x32xf32>
    %205 = vector.extract_strided_slice %137 {offsets = [6, 0, 0], sizes = [16, 16, 32], strides = [1, 1, 1]} : vector<22x22x32xbf16> to vector<16x16x32xbf16>
    %206 = vector.extract_strided_slice %137 {offsets = [6, 1, 0], sizes = [16, 16, 32], strides = [1, 1, 1]} : vector<22x22x32xbf16> to vector<16x16x32xbf16>
    %207 = vector.extract_strided_slice %137 {offsets = [6, 2, 0], sizes = [16, 16, 32], strides = [1, 1, 1]} : vector<22x22x32xbf16> to vector<16x16x32xbf16>
    %208 = vector.extract_strided_slice %137 {offsets = [6, 3, 0], sizes = [16, 16, 32], strides = [1, 1, 1]} : vector<22x22x32xbf16> to vector<16x16x32xbf16>
    %209 = vector.extract_strided_slice %137 {offsets = [6, 4, 0], sizes = [16, 16, 32], strides = [1, 1, 1]} : vector<22x22x32xbf16> to vector<16x16x32xbf16>
    %210 = vector.extract_strided_slice %137 {offsets = [6, 5, 0], sizes = [16, 16, 32], strides = [1, 1, 1]} : vector<22x22x32xbf16> to vector<16x16x32xbf16>
    %211 = vector.extract_strided_slice %137 {offsets = [6, 6, 0], sizes = [16, 16, 32], strides = [1, 1, 1]} : vector<22x22x32xbf16> to vector<16x16x32xbf16>
    %212 = tpu.concatenate %205, %206, %207, %208, %209, %210, %211 in 2 : vector<16x16x32xbf16>, vector<16x16x32xbf16>, vector<16x16x32xbf16>, vector<16x16x32xbf16>, vector<16x16x32xbf16>, vector<16x16x32xbf16>, vector<16x16x32xbf16> -> vector<16x16x224xbf16>
    %c1344 = arith.constant 1344 : index
    %c0_77 = arith.constant 0 : index
    %213 = vector.load %arg10[%c1344, %c0_77] : memref<1568x32xbf16, #tpu.memory_space<vmem>>, vector<224x32xbf16>
    "tpu.trace_start"() <{level = 10 : i32, message = "hwc,cd->hwd"}> : () -> ()
    %cst_78 = arith.constant dense<0.000000e+00> : vector<16x16x32xf32>
    %214 = tpu.matmul %212, %213, %cst_78 {dimension_numbers = #tpu.dot_dimension_numbers<[2], [0], [0, 1], [1], [0, 0, 0, 1, 1, 1], [], []>} : vector<16x16x224xbf16>, vector<224x32xbf16>, vector<16x16x32xf32> -> vector<16x16x32xf32>
    "tpu.trace_stop"() : () -> ()
    %215 = arith.addf %204, %214 : vector<16x16x32xf32>
    %c0_79 = arith.constant 0 : index
    %c0_80 = arith.constant 0 : index
    %216 = vector.load %arg11[%c0_79, %c0_80] : memref<1x32xf32, #tpu.memory_space<vmem>>, vector<1x32xf32>
    %217 = vector.shape_cast %216 : vector<1x32xf32> to vector<1x1x32xf32>
    %218 = vector.broadcast %217 : vector<1x1x32xf32> to vector<16x16x32xf32>
    %219 = arith.addf %215, %218 : vector<16x16x32xf32>
    %220 = arith.negf %81 : vector<16x16x32xf32>
    %221 = math.exp %220 : vector<16x16x32xf32>
    %cst_81 = arith.constant 1.000000e+00 : f32
    %222 = vector.broadcast %cst_81 : f32 to vector<16x16x32xf32>
    %223 = arith.addf %222, %221 : vector<16x16x32xf32>
    %224 = arith.divf %222, %223 : vector<16x16x32xf32>
    %cst_82 = arith.constant 1.000000e+00 : f32
    %225 = vector.broadcast %cst_82 : f32 to vector<16x16x32xf32>
    %226 = arith.addf %225, %224 : vector<16x16x32xf32>
    %227 = arith.negf %134 : vector<16x16x32xf32>
    %228 = math.exp %227 : vector<16x16x32xf32>
    %cst_83 = arith.constant 1.000000e+00 : f32
    %229 = vector.broadcast %cst_83 : f32 to vector<16x16x32xf32>
    %230 = arith.addf %229, %228 : vector<16x16x32xf32>
    %231 = arith.divf %229, %230 : vector<16x16x32xf32>
    %232 = arith.addf %226, %231 : vector<16x16x32xf32>
    %233 = arith.negf %219 : vector<16x16x32xf32>
    %234 = math.exp %233 : vector<16x16x32xf32>
    %cst_84 = arith.constant 1.000000e+00 : f32
    %235 = vector.broadcast %cst_84 : f32 to vector<16x16x32xf32>
    %236 = arith.addf %235, %234 : vector<16x16x32xf32>
    %237 = arith.divf %235, %236 : vector<16x16x32xf32>
    %238 = arith.addf %232, %237 : vector<16x16x32xf32>
    %239 = arith.mulf %52, %238 : vector<16x16x32xf32>
    %c3_85 = arith.constant 3 : index
    %c3_86 = arith.constant 3 : index
    %c0_87 = arith.constant 0 : index
    %240 = vector.load %arg16[%c3_85, %c3_86, %c0_87] : memref<22x22x32xf32, #tpu.memory_space<vmem>>, vector<16x16x32xf32>
    tpu.vector_store %arg16[%c3_85, %c3_86, %c0_87], %239 {strides = array<i32>} : memref<22x22x32xf32, #tpu.memory_space<vmem>>, vector<16x16x32xf32>,
    %c2_88 = arith.constant 2 : index
    %c2_89 = arith.constant 2 : index
    %c0_90 = arith.constant 0 : index
    %241 = vector.load %arg16[%c2_88, %c2_89, %c0_90] : memref<22x22x32xf32, #tpu.memory_space<vmem>>, vector<18x18x32xf32>
    %242 = arith.truncf %241 : vector<18x18x32xf32> to vector<18x18x32xbf16>
    %cst_91 = arith.constant 0.000000e+00 : f32
    %243 = vector.broadcast %cst_91 : f32 to vector<16x16x32xf32>
    %244 = vector.extract_strided_slice %242 {offsets = [0, 0, 0], sizes = [16, 16, 32], strides = [1, 1, 1]} : vector<18x18x32xbf16> to vector<16x16x32xbf16>
    %245 = vector.extract_strided_slice %242 {offsets = [0, 1, 0], sizes = [16, 16, 32], strides = [1, 1, 1]} : vector<18x18x32xbf16> to vector<16x16x32xbf16>
    %246 = vector.extract_strided_slice %242 {offsets = [0, 2, 0], sizes = [16, 16, 32], strides = [1, 1, 1]} : vector<18x18x32xbf16> to vector<16x16x32xbf16>
    %247 = tpu.concatenate %244, %245, %246 in 2 : vector<16x16x32xbf16>, vector<16x16x32xbf16>, vector<16x16x32xbf16> -> vector<16x16x96xbf16>
    %c0_92 = arith.constant 0 : index
    %c0_93 = arith.constant 0 : index
    %248 = vector.load %arg12[%c0_92, %c0_93] : memref<288x32xbf16, #tpu.memory_space<vmem>>, vector<96x32xbf16>
    "tpu.trace_start"() <{level = 10 : i32, message = "hwc,cd->hwd"}> : () -> ()
    %cst_94 = arith.constant dense<0.000000e+00> : vector<16x16x32xf32>
    %249 = tpu.matmul %247, %248, %cst_94 {dimension_numbers = #tpu.dot_dimension_numbers<[2], [0], [0, 1], [1], [0, 0, 0, 1, 1, 1], [], []>} : vector<16x16x96xbf16>, vector<96x32xbf16>, vector<16x16x32xf32> -> vector<16x16x32xf32>
    "tpu.trace_stop"() : () -> ()
    %250 = arith.addf %243, %249 : vector<16x16x32xf32>
    %251 = vector.extract_strided_slice %242 {offsets = [1, 0, 0], sizes = [16, 16, 32], strides = [1, 1, 1]} : vector<18x18x32xbf16> to vector<16x16x32xbf16>
    %252 = vector.extract_strided_slice %242 {offsets = [1, 1, 0], sizes = [16, 16, 32], strides = [1, 1, 1]} : vector<18x18x32xbf16> to vector<16x16x32xbf16>
    %253 = vector.extract_strided_slice %242 {offsets = [1, 2, 0], sizes = [16, 16, 32], strides = [1, 1, 1]} : vector<18x18x32xbf16> to vector<16x16x32xbf16>
    %254 = tpu.concatenate %251, %252, %253 in 2 : vector<16x16x32xbf16>, vector<16x16x32xbf16>, vector<16x16x32xbf16> -> vector<16x16x96xbf16>
    %c96_95 = arith.constant 96 : index
    %c0_96 = arith.constant 0 : index
    %255 = vector.load %arg12[%c96_95, %c0_96] : memref<288x32xbf16, #tpu.memory_space<vmem>>, vector<96x32xbf16>
    "tpu.trace_start"() <{level = 10 : i32, message = "hwc,cd->hwd"}> : () -> ()
    %cst_97 = arith.constant dense<0.000000e+00> : vector<16x16x32xf32>
    %256 = tpu.matmul %254, %255, %cst_97 {dimension_numbers = #tpu.dot_dimension_numbers<[2], [0], [0, 1], [1], [0, 0, 0, 1, 1, 1], [], []>} : vector<16x16x96xbf16>, vector<96x32xbf16>, vector<16x16x32xf32> -> vector<16x16x32xf32>
    "tpu.trace_stop"() : () -> ()
    %257 = arith.addf %250, %256 : vector<16x16x32xf32>
    %258 = vector.extract_strided_slice %242 {offsets = [2, 0, 0], sizes = [16, 16, 32], strides = [1, 1, 1]} : vector<18x18x32xbf16> to vector<16x16x32xbf16>
    %259 = vector.extract_strided_slice %242 {offsets = [2, 1, 0], sizes = [16, 16, 32], strides = [1, 1, 1]} : vector<18x18x32xbf16> to vector<16x16x32xbf16>
    %260 = vector.extract_strided_slice %242 {offsets = [2, 2, 0], sizes = [16, 16, 32], strides = [1, 1, 1]} : vector<18x18x32xbf16> to vector<16x16x32xbf16>
    %261 = tpu.concatenate %258, %259, %260 in 2 : vector<16x16x32xbf16>, vector<16x16x32xbf16>, vector<16x16x32xbf16> -> vector<16x16x96xbf16>
    %c192_98 = arith.constant 192 : index
    %c0_99 = arith.constant 0 : index
    %262 = vector.load %arg12[%c192_98, %c0_99] : memref<288x32xbf16, #tpu.memory_space<vmem>>, vector<96x32xbf16>
    "tpu.trace_start"() <{level = 10 : i32, message = "hwc,cd->hwd"}> : () -> ()
    %cst_100 = arith.constant dense<0.000000e+00> : vector<16x16x32xf32>
    %263 = tpu.matmul %261, %262, %cst_100 {dimension_numbers = #tpu.dot_dimension_numbers<[2], [0], [0, 1], [1], [0, 0, 0, 1, 1, 1], [], []>} : vector<16x16x96xbf16>, vector<96x32xbf16>, vector<16x16x32xf32> -> vector<16x16x32xf32>
    "tpu.trace_stop"() : () -> ()
    %264 = arith.addf %257, %263 : vector<16x16x32xf32>
    %c0_101 = arith.constant 0 : index
    %c0_102 = arith.constant 0 : index
    %265 = vector.load %arg13[%c0_101, %c0_102] : memref<1x32xf32, #tpu.memory_space<vmem>>, vector<1x32xf32>
    %266 = vector.shape_cast %265 : vector<1x32xf32> to vector<1x1x32xf32>
    %267 = vector.broadcast %266 : vector<1x1x32xf32> to vector<16x16x32xf32>
    %268 = arith.addf %264, %267 : vector<16x16x32xf32>
    %cst_103 = arith.constant 0.000000e+00 : f32
    %269 = vector.broadcast %cst_103 : f32 to vector<16x16x32xf32>
    %270 = arith.maximumf %268, %269 : vector<16x16x32xf32>
    %c0_104 = arith.constant 0 : index
    %c0_105 = arith.constant 0 : index
    %271 = vector.load %arg14[%c0_104, %c0_105] : memref<1x32xf32, #tpu.memory_space<vmem>>, vector<1x32xf32>
    %272 = vector.shape_cast %271 : vector<1x32xf32> to vector<32xf32>
    %273 = vector.shape_cast %272 : vector<32xf32> to vector<1x1x32xf32>
    %274 = vector.broadcast %273 : vector<1x1x32xf32> to vector<16x16x32xf32>
    %275 = arith.mulf %270, %274 : vector<16x16x32xf32>
    %cst_106 = arith.constant dense<0.000000e+00> : vector<16x16xf32>
    %276 = vector.multi_reduction <add>, %275, %cst_106 [2] : vector<16x16x32xf32> to vector<16x16xf32>
    %277 = vector.shape_cast %276 : vector<16x16xf32> to vector<16x16x1xf32>
    %278 = vector.shape_cast %277 : vector<16x16x1xf32> to vector<1x16x16x1xf32>
    %c0_107 = arith.constant 0 : index
    %c0_108 = arith.constant 0 : index
    %c0_109 = arith.constant 0 : index
    %c0_110 = arith.constant 0 : index
    %279 = vector.load %arg15[%c0_107, %c0_108, %c0_109, %c0_110] : memref<1x16x16x1xf32, #tpu.memory_space<vmem>>, vector<1x16x16x1xf32>
    tpu.vector_store %arg15[%c0_107, %c0_108, %c0_109, %c0_110], %278 {strides = array<i32>} : memref<1x16x16x1xf32, #tpu.memory_space<vmem>>, vector<1x16x16x1xf32>,
    return
  }
  func.func @transform_0(%arg0: i32) -> (i32, i32, i32, i32) {
    %c0_i32 = arith.constant 0 : i32
    %c0_i32_0 = arith.constant 0 : i32
    %c0_i32_1 = arith.constant 0 : i32
    %c0_i32_2 = arith.constant 0 : i32
    return %arg0, %c0_i32, %c0_i32_0, %c0_i32_1 : i32, i32, i32, i32
  }
  func.func @transform_1(%arg0: i32) -> (i32, i32, i32, i32) {
    %c0_i32 = arith.constant 0 : i32
    %c0_i32_0 = arith.constant 0 : i32
    %c0_i32_1 = arith.constant 0 : i32
    %c0_i32_2 = arith.constant 0 : i32
    return %arg0, %c0_i32, %c0_i32_0, %c0_i32_1 : i32, i32, i32, i32
  }
  func.func @transform_2(%arg0: i32) -> (i32, i32) {
    %c0_i32 = arith.constant 0 : i32
    %c0_i32_0 = arith.constant 0 : i32
    %c0_i32_1 = arith.constant 0 : i32
    return %c0_i32, %c0_i32_0 : i32, i32
  }
  func.func @transform_3(%arg0: i32) -> (i32, i32) {
    %c0_i32 = arith.constant 0 : i32
    %c0_i32_0 = arith.constant 0 : i32
    %c0_i32_1 = arith.constant 0 : i32
    return %c0_i32, %c0_i32_0 : i32, i32
  }
  func.func @transform_4(%arg0: i32) -> (i32, i32) {
    %c0_i32 = arith.constant 0 : i32
    %c0_i32_0 = arith.constant 0 : i32
    %c0_i32_1 = arith.constant 0 : i32
    return %c0_i32, %c0_i32_0 : i32, i32
  }
  func.func @transform_5(%arg0: i32) -> (i32, i32) {
    %c0_i32 = arith.constant 0 : i32
    %c0_i32_0 = arith.constant 0 : i32
    %c0_i32_1 = arith.constant 0 : i32
    return %c0_i32, %c0_i32_0 : i32, i32
  }
  func.func @transform_6(%arg0: i32) -> (i32, i32) {
    %c0_i32 = arith.constant 0 : i32
    %c0_i32_0 = arith.constant 0 : i32
    %c0_i32_1 = arith.constant 0 : i32
    return %c0_i32, %c0_i32_0 : i32, i32
  }
  func.func @transform_7(%arg0: i32) -> (i32, i32) {
    %c0_i32 = arith.constant 0 : i32
    %c0_i32_0 = arith.constant 0 : i32
    %c0_i32_1 = arith.constant 0 : i32
    return %c0_i32, %c0_i32_0 : i32, i32
  }
  func.func @transform_8(%arg0: i32) -> (i32, i32) {
    %c0_i32 = arith.constant 0 : i32
    %c0_i32_0 = arith.constant 0 : i32
    %c0_i32_1 = arith.constant 0 : i32
    return %c0_i32, %c0_i32_0 : i32, i32
  }
  func.func @transform_9(%arg0: i32) -> (i32, i32) {
    %c0_i32 = arith.constant 0 : i32
    %c0_i32_0 = arith.constant 0 : i32
    %c0_i32_1 = arith.constant 0 : i32
    return %c0_i32, %c0_i32_0 : i32, i32
  }
  func.func @transform_10(%arg0: i32) -> (i32, i32) {
    %c0_i32 = arith.constant 0 : i32
    %c0_i32_0 = arith.constant 0 : i32
    %c0_i32_1 = arith.constant 0 : i32
    return %c0_i32, %c0_i32_0 : i32, i32
  }
  func.func @transform_11(%arg0: i32) -> (i32, i32) {
    %c0_i32 = arith.constant 0 : i32
    %c0_i32_0 = arith.constant 0 : i32
    %c0_i32_1 = arith.constant 0 : i32
    return %c0_i32, %c0_i32_0 : i32, i32
  }
  func.func @transform_12(%arg0: i32) -> (i32, i32) {
    %c0_i32 = arith.constant 0 : i32
    %c0_i32_0 = arith.constant 0 : i32
    %c0_i32_1 = arith.constant 0 : i32
    return %c0_i32, %c0_i32_0 : i32, i32
  }
  func.func @transform_13(%arg0: i32) -> (i32, i32) {
    %c0_i32 = arith.constant 0 : i32
    %c0_i32_0 = arith.constant 0 : i32
    %c0_i32_1 = arith.constant 0 : i32
    return %c0_i32, %c0_i32_0 : i32, i32
  }
  func.func @transform_14(%arg0: i32) -> (i32, i32, i32, i32) {
    %c0_i32 = arith.constant 0 : i32
    %c0_i32_0 = arith.constant 0 : i32
    %c0_i32_1 = arith.constant 0 : i32
    %c0_i32_2 = arith.constant 0 : i32
    return %arg0, %c0_i32, %c0_i32_0, %c0_i32_1 : i32, i32, i32, i32
  }
}

</mosaic_0001>

<llo_original>
// kernel: tpu_custom_call.1
$region0: #{tpu_custom_call.1}
  #allocation0 [shape = 'u32[]', space=smem, size = 0x4, offset = 0x4, fixed_abs, tag = 'smem constant byte address 0x4 - core index']
  #allocation1 [shape = 'u32[144,128]{1,0:T(1,128)}', space=vmem, size = 0x12000, scoped, tag = 'internal scratch']
  #allocation2 [shape = 'f32[22,22,32]{2,1,0:T(8,128)}', space=vmem, size = 0x42000, scoped, tag = 'scratch operand']
  %s0 = inlined_call_operand.vmem [shape: f32[2,16,16,3], index: 0, kind: input, shape index: {}]
  %s1 = inlined_call_operand.vmem [shape: f32[2,16,16,2], index: 1, kind: input, shape index: {}]
  %s2 = inlined_call_operand.vmem [shape: f32[3,32], index: 2, kind: input, shape index: {}]
  %s3 = inlined_call_operand.vmem [shape: f32[2,32], index: 3, kind: input, shape index: {}]
  %s4 = inlined_call_operand.vmem [shape: f32[1,32], index: 4, kind: input, shape index: {}]
  %s5 = inlined_call_operand.vmem [shape: bf16[288,32], index: 5, kind: input, shape index: {}]
  %s6 = inlined_call_operand.vmem [shape: f32[1,32], index: 6, kind: input, shape index: {}]
  %s7 = inlined_call_operand.vmem [shape: bf16[800,32], index: 7, kind: input, shape index: {}]
  %s8 = inlined_call_operand.vmem [shape: f32[1,32], index: 8, kind: input, shape index: {}]
  %s9 = inlined_call_operand.vmem [shape: bf16[1568,32], index: 9, kind: input, shape index: {}]
  %s10 = inlined_call_operand.vmem [shape: f32[1,32], index: 10, kind: input, shape index: {}]
  %s11 = inlined_call_operand.vmem [shape: bf16[288,32], index: 11, kind: input, shape index: {}]
  %s12 = inlined_call_operand.vmem [shape: f32[1,32], index: 12, kind: input, shape index: {}]
  %s13 = inlined_call_operand.vmem [shape: f32[1,32], index: 13, kind: input, shape index: {}]
  %s14 = inlined_call_operand.vmem [shape: f32[2,16,16,1], index: 14, kind: output, shape index: {}]
  %s15 = sld [smem:[#allocation0]]
  $region89: #{tpu_custom_call.1} parent=0
    _
  %s17 = ssub.s32 1, %s15
  %s18 = scalar_select 0, %s17, %s15
  loop: start=0, step=1, limit=4
  $region2: #{tpu_custom_call.1} parent=0 // loop_pre_header
    _
  $region3: #{tpu_custom_call.1} parent=0 // loop_header
    %s20 = sphi 0, %s24
    %p21 = scmp.ge.s32.totalorder %s20, 4
    %s30 = sphi 0, %s32
    %s33 = sphi 0, %s30
    %s34 = sphi 0, %s33
    %s50 = sphi 0, %s34
    %s56 = sphi 0, %s58
    %s59 = sphi 0, %s56
    %s60 = sphi 0, %s59
    %s76 = sphi 0, %s60
    %s80 = sphi 0, %s80
    %s82 = sphi 0, %s80
    %s83 = sphi 0, %s82
    %s97 = sphi 0, %s83
    %s101 = sphi 0, %s101
    %s103 = sphi 0, %s101
    %s104 = sphi 0, %s103
    %s118 = sphi 0, %s104
    %s122 = sphi 0, %s122
    %s124 = sphi 0, %s122
    %s125 = sphi 0, %s124
    %s139 = sphi 0, %s125
    %s143 = sphi 0, %s143
    %s145 = sphi 0, %s143
    %s146 = sphi 0, %s145
    %s160 = sphi 0, %s146
    %s164 = sphi 0, %s164
    %s166 = sphi 0, %s164
    %s167 = sphi 0, %s166
    %s181 = sphi 0, %s167
    %s185 = sphi 0, %s185
    %s187 = sphi 0, %s185
    %s188 = sphi 0, %s187
    %s202 = sphi 0, %s188
    %s206 = sphi 0, %s206
    %s208 = sphi 0, %s206
    %s209 = sphi 0, %s208
    %s223 = sphi 0, %s209
    %s227 = sphi 0, %s227
    %s229 = sphi 0, %s227
    %s230 = sphi 0, %s229
    %s244 = sphi 0, %s230
    %s248 = sphi 0, %s248
    %s250 = sphi 0, %s248
    %s251 = sphi 0, %s250
    %s265 = sphi 0, %s251
    %s269 = sphi 0, %s269
    %s271 = sphi 0, %s269
    %s272 = sphi 0, %s271
    %s286 = sphi 0, %s272
    %s290 = sphi 0, %s290
    %s292 = sphi 0, %s290
    %s293 = sphi 0, %s292
    %s307 = sphi 0, %s293
    %s311 = sphi 0, %s311
    %s313 = sphi 0, %s311
    %s314 = sphi 0, %s313
    %s328 = sphi 0, %s314
    %s334 = sphi 0, %s336
    %s337 = sphi 0, %s334
    %s338 = sphi 0, %s337
    %s354 = sphi 0, %s338
  $region4: #{tpu_custom_call.1} parent=0 // loop_header_branch
    %23 = sbr.rel (%p21) target = $region8
  $region5: #{tpu_custom_call.1} parent=0 // loop_body
    %s25 = ssub.s32 %s20, 1
    %s26 = ssub.s32 %s20, 2
    %s27 = sadd.s32 %s20, 1
    %s28 = ssub.s32 %s20, %s27
    %p29 = scmp.eq.s32.totalorder %s28, 0
    %s31 = sadd.s32 %s30, 1
    %s32 = scalar_select %p29, %s30, %s31
    %p35 = pneg %p29
    %p36 = scmp.eq.s32.totalorder %s20, 1
    %p37 = por %p35, %p36
    %p38 = scmp.ne.s32.totalorder %s30, %s33
    %p39 = scmp.eq.s32.totalorder %s20, 0
    %p40 = por %p38, %p39
    %p41 = scmp.ne.s32.totalorder %s30, %s33
    %p42 = scmp.eq.s32.totalorder %s25, 1
    %p43 = por %p41, %p42
    %p44 = scmp.ne.s32.totalorder %s33, %s34
    %p45 = scmp.eq.s32.totalorder %s25, 0
    %p46 = por %p44, %p45
    %p47 = scmp.ne.s32.totalorder %s33, %s34
    %p48 = scmp.eq.s32.totalorder %s26, 1
    %p49 = por %p47, %p48
    %p51 = scmp.ne.s32.totalorder %s34, %s50
    %p52 = scmp.eq.s32.totalorder %s26, 0
    %p53 = por %p51, %p52
    %s54 = ssub.s32 %s20, %s27
    %p55 = scmp.eq.s32.totalorder %s54, 0
    %s57 = sadd.s32 %s56, 1
    %s58 = scalar_select %p55, %s56, %s57
    %p61 = pneg %p55
    %p62 = scmp.eq.s32.totalorder %s20, 1
    %p63 = por %p61, %p62
    %p64 = scmp.ne.s32.totalorder %s56, %s59
    %p65 = scmp.eq.s32.totalorder %s20, 0
    %p66 = por %p64, %p65
    %p67 = scmp.ne.s32.totalorder %s56, %s59
    %p68 = scmp.eq.s32.totalorder %s25, 1
    %p69 = por %p67, %p68
    %p70 = scmp.ne.s32.totalorder %s59, %s60
    %p71 = scmp.eq.s32.totalorder %s25, 0
    %p72 = por %p70, %p71
    %p73 = scmp.ne.s32.totalorder %s59, %s60
    %p74 = scmp.eq.s32.totalorder %s26, 1
    %p75 = por %p73, %p74
    %p77 = scmp.ne.s32.totalorder %s60, %s76
    %p78 = scmp.eq.s32.totalorder %s26, 0
    %p79 = por %p77, %p78
    %s81 = sadd.s32 %s80, 1
    %p84 = scmp.eq.s32.totalorder %s20, 1
    %p85 = scmp.ne.s32.totalorder %s80, %s82
    %p86 = scmp.eq.s32.totalorder %s20, 0
    %p87 = por %p85, %p86
    %p88 = scmp.ne.s32.totalorder %s80, %s82
    %p89 = scmp.eq.s32.totalorder %s25, 1
    %p90 = por %p88, %p89
    %p91 = scmp.ne.s32.totalorder %s82, %s83
    %p92 = scmp.eq.s32.totalorder %s25, 0
    %p93 = por %p91, %p92
    %p94 = scmp.ne.s32.totalorder %s82, %s83
    %p95 = scmp.eq.s32.totalorder %s26, 1
    %p96 = por %p94, %p95
    %p98 = scmp.ne.s32.totalorder %s83, %s97
    %p99 = scmp.eq.s32.totalorder %s26, 0
    %p100 = por %p98, %p99
    %s102 = sadd.s32 %s101, 1
    %p105 = scmp.eq.s32.totalorder %s20, 1
    %p106 = scmp.ne.s32.totalorder %s101, %s103
    %p107 = scmp.eq.s32.totalorder %s20, 0
    %p108 = por %p106, %p107
    %p109 = scmp.ne.s32.totalorder %s101, %s103
    %p110 = scmp.eq.s32.totalorder %s25, 1
    %p111 = por %p109, %p110
    %p112 = scmp.ne.s32.totalorder %s103, %s104
    %p113 = scmp.eq.s32.totalorder %s25, 0
    %p114 = por %p112, %p113
    %p115 = scmp.ne.s32.totalorder %s103, %s104
    %p116 = scmp.eq.s32.totalorder %s26, 1
    %p117 = por %p115, %p116
    %p119 = scmp.ne.s32.totalorder %s104, %s118
    %p120 = scmp.eq.s32.totalorder %s26, 0
    %p121 = por %p119, %p120
    %s123 = sadd.s32 %s122, 1
    %p126 = scmp.eq.s32.totalorder %s20, 1
    %p127 = scmp.ne.s32.totalorder %s122, %s124
    %p128 = scmp.eq.s32.totalorder %s20, 0
    %p129 = por %p127, %p128
    %p130 = scmp.ne.s32.totalorder %s122, %s124
    %p131 = scmp.eq.s32.totalorder %s25, 1
    %p132 = por %p130, %p131
    %p133 = scmp.ne.s32.totalorder %s124, %s125
    %p134 = scmp.eq.s32.totalorder %s25, 0
    %p135 = por %p133, %p134
    %p136 = scmp.ne.s32.totalorder %s124, %s125
    %p137 = scmp.eq.s32.totalorder %s26, 1
    %p138 = por %p136, %p137
    %p140 = scmp.ne.s32.totalorder %s125, %s139
    %p141 = scmp.eq.s32.totalorder %s26, 0
    %p142 = por %p140, %p141
    %s144 = sadd.s32 %s143, 1
    %p147 = scmp.eq.s32.totalorder %s20, 1
    %p148 = scmp.ne.s32.totalorder %s143, %s145
    %p149 = scmp.eq.s32.totalorder %s20, 0
    %p150 = por %p148, %p149
    %p151 = scmp.ne.s32.totalorder %s143, %s145
    %p152 = scmp.eq.s32.totalorder %s25, 1
    %p153 = por %p151, %p152
    %p154 = scmp.ne.s32.totalorder %s145, %s146
    %p155 = scmp.eq.s32.totalorder %s25, 0
    %p156 = por %p154, %p155
    %p157 = scmp.ne.s32.totalorder %s145, %s146
    %p158 = scmp.eq.s32.totalorder %s26, 1
    %p159 = por %p157, %p158
    %p161 = scmp.ne.s32.totalorder %s146, %s160
    %p162 = scmp.eq.s32.totalorder %s26, 0
    %p163 = por %p161, %p162
    %s165 = sadd.s32 %s164, 1
    %p168 = scmp.eq.s32.totalorder %s20, 1
    %p169 = scmp.ne.s32.totalorder %s164, %s166
    %p170 = scmp.eq.s32.totalorder %s20, 0
    %p171 = por %p169, %p170
    %p172 = scmp.ne.s32.totalorder %s164, %s166
    %p173 = scmp.eq.s32.totalorder %s25, 1
    %p174 = por %p172, %p173
    %p175 = scmp.ne.s32.totalorder %s166, %s167
    %p176 = scmp.eq.s32.totalorder %s25, 0
    %p177 = por %p175, %p176
    %p178 = scmp.ne.s32.totalorder %s166, %s167
    %p179 = scmp.eq.s32.totalorder %s26, 1
    %p180 = por %p178, %p179
    %p182 = scmp.ne.s32.totalorder %s167, %s181
    %p183 = scmp.eq.s32.totalorder %s26, 0
    %p184 = por %p182, %p183
    %s186 = sadd.s32 %s185, 1
    %p189 = scmp.eq.s32.totalorder %s20, 1
    %p190 = scmp.ne.s32.totalorder %s185, %s187
    %p191 = scmp.eq.s32.totalorder %s20, 0
    %p192 = por %p190, %p191
    %p193 = scmp.ne.s32.totalorder %s185, %s187
    %p194 = scmp.eq.s32.totalorder %s25, 1
    %p195 = por %p193, %p194
    %p196 = scmp.ne.s32.totalorder %s187, %s188
    %p197 = scmp.eq.s32.totalorder %s25, 0
    %p198 = por %p196, %p197
    %p199 = scmp.ne.s32.totalorder %s187, %s188
    %p200 = scmp.eq.s32.totalorder %s26, 1
    %p201 = por %p199, %p200
    %p203 = scmp.ne.s32.totalorder %s188, %s202
    %p204 = scmp.eq.s32.totalorder %s26, 0
    %p205 = por %p203, %p204
    %s207 = sadd.s32 %s206, 1
    %p210 = scmp.eq.s32.totalorder %s20, 1
    %p211 = scmp.ne.s32.totalorder %s206, %s208
    %p212 = scmp.eq.s32.totalorder %s20, 0
    %p213 = por %p211, %p212
    %p214 = scmp.ne.s32.totalorder %s206, %s208
    %p215 = scmp.eq.s32.totalorder %s25, 1
    %p216 = por %p214, %p215
    %p217 = scmp.ne.s32.totalorder %s208, %s209
    %p218 = scmp.eq.s32.totalorder %s25, 0
    %p219 = por %p217, %p218
    %p220 = scmp.ne.s32.totalorder %s208, %s209
    %p221 = scmp.eq.s32.totalorder %s26, 1
    %p222 = por %p220, %p221
    %p224 = scmp.ne.s32.totalorder %s209, %s223
    %p225 = scmp.eq.s32.totalorder %s26, 0
    %p226 = por %p224, %p225
    %s228 = sadd.s32 %s227, 1
    %p231 = scmp.eq.s32.totalorder %s20, 1
    %p232 = scmp.ne.s32.totalorder %s227, %s229
    %p233 = scmp.eq.s32.totalorder %s20, 0
    %p234 = por %p232, %p233
    %p235 = scmp.ne.s32.totalorder %s227, %s229
    %p236 = scmp.eq.s32.totalorder %s25, 1
    %p237 = por %p235, %p236
    %p238 = scmp.ne.s32.totalorder %s229, %s230
    %p239 = scmp.eq.s32.totalorder %s25, 0
    %p240 = por %p238, %p239
    %p241 = scmp.ne.s32.totalorder %s229, %s230
    %p242 = scmp.eq.s32.totalorder %s26, 1
    %p243 = por %p241, %p242
    %p245 = scmp.ne.s32.totalorder %s230, %s244
    %p246 = scmp.eq.s32.totalorder %s26, 0
    %p247 = por %p245, %p246
    %s249 = sadd.s32 %s248, 1
    %p252 = scmp.eq.s32.totalorder %s20, 1
    %p253 = scmp.ne.s32.totalorder %s248, %s250
    %p254 = scmp.eq.s32.totalorder %s20, 0
    %p255 = por %p253, %p254
    %p256 = scmp.ne.s32.totalorder %s248, %s250
    %p257 = scmp.eq.s32.totalorder %s25, 1
    %p258 = por %p256, %p257
    %p259 = scmp.ne.s32.totalorder %s250, %s251
    %p260 = scmp.eq.s32.totalorder %s25, 0
    %p261 = por %p259, %p260
    %p262 = scmp.ne.s32.totalorder %s250, %s251
    %p263 = scmp.eq.s32.totalorder %s26, 1
    %p264 = por %p262, %p263
    %p266 = scmp.ne.s32.totalorder %s251, %s265
    %p267 = scmp.eq.s32.totalorder %s26, 0
    %p268 = por %p266, %p267
    %s270 = sadd.s32 %s269, 1
    %p273 = scmp.eq.s32.totalorder %s20, 1
    %p274 = scmp.ne.s32.totalorder %s269, %s271
    %p275 = scmp.eq.s32.totalorder %s20, 0
    %p276 = por %p274, %p275
    %p277 = scmp.ne.s32.totalorder %s269, %s271
    %p278 = scmp.eq.s32.totalorder %s25, 1
    %p279 = por %p277, %p278
    %p280 = scmp.ne.s32.totalorder %s271, %s272
    %p281 = scmp.eq.s32.totalorder %s25, 0
    %p282 = por %p280, %p281
    %p283 = scmp.ne.s32.totalorder %s271, %s272
    %p284 = scmp.eq.s32.totalorder %s26, 1
    %p285 = por %p283, %p284
    %p287 = scmp.ne.s32.totalorder %s272, %s286
    %p288 = scmp.eq.s32.totalorder %s26, 0
    %p289 = por %p287, %p288
    %s291 = sadd.s32 %s290, 1
    %p294 = scmp.eq.s32.totalorder %s20, 1
    %p295 = scmp.ne.s32.totalorder %s290, %s292
    %p296 = scmp.eq.s32.totalorder %s20, 0
    %p297 = por %p295, %p296
    %p298 = scmp.ne.s32.totalorder %s290, %s292
    %p299 = scmp.eq.s32.totalorder %s25, 1
    %p300 = por %p298, %p299
    %p301 = scmp.ne.s32.totalorder %s292, %s293
    %p302 = scmp.eq.s32.totalorder %s25, 0
    %p303 = por %p301, %p302
    %p304 = scmp.ne.s32.totalorder %s292, %s293
    %p305 = scmp.eq.s32.totalorder %s26, 1
    %p306 = por %p304, %p305
    %p308 = scmp.ne.s32.totalorder %s293, %s307
    %p309 = scmp.eq.s32.totalorder %s26, 0
    %p310 = por %p308, %p309
    %s312 = sadd.s32 %s311, 1
    %p315 = scmp.eq.s32.totalorder %s20, 1
    %p316 = scmp.ne.s32.totalorder %s311, %s313
    %p317 = scmp.eq.s32.totalorder %s20, 0
    %p318 = por %p316, %p317
    %p319 = scmp.ne.s32.totalorder %s311, %s313
    %p320 = scmp.eq.s32.totalorder %s25, 1
    %p321 = por %p319, %p320
    %p322 = scmp.ne.s32.totalorder %s313, %s314
    %p323 = scmp.eq.s32.totalorder %s25, 0
    %p324 = por %p322, %p323
    %p325 = scmp.ne.s32.totalorder %s313, %s314
    %p326 = scmp.eq.s32.totalorder %s26, 1
    %p327 = por %p325, %p326
    %p329 = scmp.ne.s32.totalorder %s314, %s328
    %p330 = scmp.eq.s32.totalorder %s26, 0
    %p331 = por %p329, %p330
    %s332 = ssub.s32 %s20, %s27
    %p333 = scmp.eq.s32.totalorder %s332, 0
    %s335 = sadd.s32 %s334, 1
    %s336 = scalar_select %p333, %s334, %s335
    %p339 = pneg %p333
    %p340 = scmp.eq.s32.totalorder %s20, 1
    %p341 = por %p339, %p340
    %p342 = scmp.ne.s32.totalorder %s334, %s337
    %p343 = scmp.eq.s32.totalorder %s20, 0
    %p344 = por %p342, %p343
    %p345 = scmp.ne.s32.totalorder %s334, %s337
    %p346 = scmp.eq.s32.totalorder %s25, 1
    %p347 = por %p345, %p346
    %p348 = scmp.ne.s32.totalorder %s337, %s338
    %p349 = scmp.eq.s32.totalorder %s25, 0
    %p350 = por %p348, %p349
    %p351 = scmp.ne.s32.totalorder %s337, %s338
    %p352 = scmp.eq.s32.totalorder %s26, 1
    %p353 = por %p351, %p352
    %p355 = scmp.ne.s32.totalorder %s338, %s354
    %p356 = scmp.eq.s32.totalorder %s26, 0
    %p357 = por %p355, %p356
    %p358 = scmp.le.s32.totalorder 1, %s20
    %p359 = scmp.lt.s32.totalorder %s20, 3
    %p360 = pnand %p358, %p359
    %p361 = pneg %p360
    // Predicated region
    $region9: #{tpu_custom_call.1} parent=5 // pred_check
      _
    $region10: #{tpu_custom_call.1} parent=5 // pred_check_branch
      %363 = sbr.rel (%p360) target = $region12
    $region11: #{tpu_custom_call.1} parent=5 // pred_region
      %s364 = ssub.s32 %s20, 1
      // Predicated region
      $region13: #{tpu_custom_call.1} parent=11 // pred_check
        %p365 = pneg %p93
      $region14: #{tpu_custom_call.1} parent=11 // pred_check_branch
        %367 = sbr.rel (%p365) target = $region16
      $region15: #{tpu_custom_call.1} parent=11 // pred_region
        _
      $region16: #{tpu_custom_call.1} parent=11 // pred_fallthru
        _
      // Predicated region
      $region17: #{tpu_custom_call.1} parent=11 // pred_check
        %p368 = pneg %p114
      $region18: #{tpu_custom_call.1} parent=11 // pred_check_branch
        %370 = sbr.rel (%p368) target = $region20
      $region19: #{tpu_custom_call.1} parent=11 // pred_region
        _
      $region20: #{tpu_custom_call.1} parent=11 // pred_fallthru
        _
      // Predicated region
      $region21: #{tpu_custom_call.1} parent=11 // pred_check
        %p371 = pneg %p135
      $region22: #{tpu_custom_call.1} parent=11 // pred_check_branch
        %373 = sbr.rel (%p371) target = $region24
      $region23: #{tpu_custom_call.1} parent=11 // pred_region
        _
      $region24: #{tpu_custom_call.1} parent=11 // pred_fallthru
        _
      // Predicated region
      $region25: #{tpu_custom_call.1} parent=11 // pred_check
        %p374 = pneg %p156
      $region26: #{tpu_custom_call.1} parent=11 // pred_check_branch
        %376 = sbr.rel (%p374) target = $region28
      $region27: #{tpu_custom_call.1} parent=11 // pred_region
        _
      $region28: #{tpu_custom_call.1} parent=11 // pred_fallthru
        _
      // Predicated region
      $region29: #{tpu_custom_call.1} parent=11 // pred_check
        %p377 = pneg %p177
      $region30: #{tpu_custom_call.1} parent=11 // pred_check_branch
        %379 = sbr.rel (%p377) target = $region32
      $region31: #{tpu_custom_call.1} parent=11 // pred_region
        _
      $region32: #{tpu_custom_call.1} parent=11 // pred_fallthru
        _
      // Predicated region
      $region33: #{tpu_custom_call.1} parent=11 // pred_check
        %p380 = pneg %p198
      $region34: #{tpu_custom_call.1} parent=11 // pred_check_branch
        %382 = sbr.rel (%p380) target = $region36
      $region35: #{tpu_custom_call.1} parent=11 // pred_region
        _
      $region36: #{tpu_custom_call.1} parent=11 // pred_fallthru
        _
      // Predicated region
      $region37: #{tpu_custom_call.1} parent=11 // pred_check
        %p383 = pneg %p219
      $region38: #{tpu_custom_call.1} parent=11 // pred_check_branch
        %385 = sbr.rel (%p383) target = $region40
      $region39: #{tpu_custom_call.1} parent=11 // pred_region
        _
      $region40: #{tpu_custom_call.1} parent=11 // pred_fallthru
        _
      // Predicated region
      $region41: #{tpu_custom_call.1} parent=11 // pred_check
        %p386 = pneg %p240
      $region42: #{tpu_custom_call.1} parent=11 // pred_check_branch
        %388 = sbr.rel (%p386) target = $region44
      $region43: #{tpu_custom_call.1} parent=11 // pred_region
        _
      $region44: #{tpu_custom_call.1} parent=11 // pred_fallthru
        _
      // Predicated region
      $region45: #{tpu_custom_call.1} parent=11 // pred_check
        %p389 = pneg %p261
      $region46: #{tpu_custom_call.1} parent=11 // pred_check_branch
        %391 = sbr.rel (%p389) target = $region48
      $region47: #{tpu_custom_call.1} parent=11 // pred_region
        _
      $region48: #{tpu_custom_call.1} parent=11 // pred_fallthru
        _
      // Predicated region
      $region49: #{tpu_custom_call.1} parent=11 // pred_check
        %p392 = pneg %p282
      $region50: #{tpu_custom_call.1} parent=11 // pred_check_branch
        %394 = sbr.rel (%p392) target = $region52
      $region51: #{tpu_custom_call.1} parent=11 // pred_region
        _
      $region52: #{tpu_custom_call.1} parent=11 // pred_fallthru
        _
      // Predicated region
      $region53: #{tpu_custom_call.1} parent=11 // pred_check
        %p395 = pneg %p303
      $region54: #{tpu_custom_call.1} parent=11 // pred_check_branch
        %397 = sbr.rel (%p395) target = $region56
      $region55: #{tpu_custom_call.1} parent=11 // pred_region
        _
      $region56: #{tpu_custom_call.1} parent=11 // pred_fallthru
        _
      // Predicated region
      $region57: #{tpu_custom_call.1} parent=11 // pred_check
        %p398 = pneg %p324
      $region58: #{tpu_custom_call.1} parent=11 // pred_check_branch
        %400 = sbr.rel (%p398) target = $region60
      $region59: #{tpu_custom_call.1} parent=11 // pred_region
        _
      $region60: #{tpu_custom_call.1} parent=11 // pred_fallthru
        _
    $region12: #{tpu_custom_call.1} parent=5 // pred_fallthru
      _
    %p401 = scmp.lt.s32.totalorder %s20, 2
    // Predicated region
    $region61: #{tpu_custom_call.1} parent=5 // pred_check
      %p402 = pneg %p401
    $region62: #{tpu_custom_call.1} parent=5 // pred_check_branch
      %404 = sbr.rel (%p402) target = $region64
    $region63: #{tpu_custom_call.1} parent=5 // pred_region
      // Predicated region
      $region65: #{tpu_custom_call.1} parent=63 // pred_check
        %p405 = pneg %p40
      $region66: #{tpu_custom_call.1} parent=63 // pred_check_branch
        %407 = sbr.rel (%p405) target = $region68
      $region67: #{tpu_custom_call.1} parent=63 // pred_region
        %p408 = scmp.lt.s32.totalorder %s20, 1
        %s409 = scalar_select %p408, %s20, 1
        %s410 = smul.addr %s409, 32
        %s411 = smul.addr %s410, 8
        %s412 = scalar_lea.vmem %s0, %s411
      $region68: #{tpu_custom_call.1} parent=63 // pred_fallthru
        _
      // Predicated region
      $region69: #{tpu_custom_call.1} parent=63 // pred_check
        %p413 = pneg %p66
      $region70: #{tpu_custom_call.1} parent=63 // pred_check_branch
        %415 = sbr.rel (%p413) target = $region72
      $region71: #{tpu_custom_call.1} parent=63 // pred_region
        %p416 = scmp.lt.s32.totalorder %s20, 1
        %s417 = scalar_select %p416, %s20, 1
        %s418 = smul.addr %s417, 32
        %s419 = smul.addr %s418, 8
        %s420 = scalar_lea.vmem %s1, %s419
      $region72: #{tpu_custom_call.1} parent=63 // pred_fallthru
        _
    $region64: #{tpu_custom_call.1} parent=5 // pred_fallthru
      _
    %p421 = scmp.le.s32.totalorder 1, %s20
    %p422 = scmp.lt.s32.totalorder %s20, 3
    %p423 = pnand %p421, %p422
    %p424 = pneg %p423
    // Predicated region
    $region73: #{tpu_custom_call.1} parent=5 // pred_check
      _
    $region74: #{tpu_custom_call.1} parent=5 // pred_check_branch
      %426 = sbr.rel (%p423) target = $region76
    $region75: #{tpu_custom_call.1} parent=5 // pred_region
      %s427 = ssub.s32 %s20, 1
      %p428 = scmp.lt.s32.totalorder %s25, 1
      %s429 = scalar_select %p428, %s25, 1
      %s430 = smul.addr %s429, 32
      %s431 = smul.addr %s430, 8
      %s432 = scalar_lea.vmem %s0, %s431
      %p433 = pneg %p46
      %p434 = pneg %p43
      %p435 = scmp.lt.s32.totalorder %s25, 1
      %s436 = scalar_select %p435, %s25, 1
      %s437 = smul.addr %s436, 32
      %s438 = smul.addr %s437, 8
      %s439 = scalar_lea.vmem %s1, %s438
      %p440 = pneg %p72
      %p441 = pneg %p69
      %p442 = pneg %p93
      %p443 = pneg %p90
      %p444 = pneg %p114
      %p445 = pneg %p111
      %p446 = pneg %p135
      %p447 = pneg %p132
      %p448 = pneg %p156
      %p449 = pneg %p153
      %p450 = pneg %p177
      %p451 = pneg %p174
      %p452 = pneg %p198
      %p453 = pneg %p195
      %p454 = pneg %p219
      %p455 = pneg %p216
      %p456 = pneg %p240
      %p457 = pneg %p237
      %p458 = pneg %p261
      %p459 = pneg %p258
      %p460 = pneg %p282
      %p461 = pneg %p279
      %p462 = pneg %p303
      %p463 = pneg %p300
      %p464 = pneg %p324
      %p465 = pneg %p321
      %p466 = pneg %p350
      %p467 = pneg %p347
      %p468 = scmp.lt.s32.totalorder %s25, 1
      %s469 = scalar_select %p468, %s25, 1
      %s470 = smul.addr %s469, 32
      %s471 = smul.addr %s470, 8
      %s472 = scalar_lea.vmem %s14, %s471
      %p473 = scmp.lt.s32.totalorder %s25, 1
      %s474 = scalar_select %p473, %s25, 1
      %s475 = smul.addr %s474, 32
      %s476 = smul.addr %s475, 8
      %s477 = scalar_lea.vmem %s0, %s476
      %p478 = scmp.lt.s32.totalorder %s25, 1
      %s479 = scalar_select %p478, %s25, 1
      %s480 = smul.addr %s479, 32
      %s481 = smul.addr %s480, 8
      %s482 = scalar_lea.vmem %s1, %s481
      %p483 = scmp.lt.s32.totalorder %s25, 1
      %s484 = scalar_select %p483, %s25, 1
      %s485 = smul.addr %s484, 32
      %s486 = smul.addr %s485, 8
      %s487 = scalar_lea.vmem %s14, %s486
      %vm489 = vcmask 261120
      %490 = vst.msk [vmem:[#allocation2] sm:$0xff] %vm489, 0.0
      %491 = vst.msk [vmem:[#allocation2 + $0x8] sm:$0xff] %vm489, 0.0
      %vm492 = vcmask 259072
      %493 = vst.msk [vmem:[#allocation2 + $0x10] sm:$0x3f] %vm492, 0.0
      %494 = vst.msk [vmem:[#allocation2 + $0x18] sm:$0xff] %vm489, 0.0
      %495 = vst.msk [vmem:[#allocation2 + $0x20] sm:$0xff] %vm489, 0.0
      %496 = vst.msk [vmem:[#allocation2 + $0x28] sm:$0x3f] %vm492, 0.0
      %497 = vst.msk [vmem:[#allocation2 + $0x30] sm:$0xff] %vm489, 0.0
      %498 = vst.msk [vmem:[#allocation2 + $0x38] sm:$0xff] %vm489, 0.0
      %499 = vst.msk [vmem:[#allocation2 + $0x40] sm:$0x3f] %vm492, 0.0
      %500 = vst.msk [vmem:[#allocation2 + $0x48] sm:$0xff] %vm489, 0.0
      %501 = vst.msk [vmem:[#allocation2 + $0x50] sm:$0xff] %vm489, 0.0
      %502 = vst.msk [vmem:[#allocation2 + $0x58] sm:$0x3f] %vm492, 0.0
      %503 = vst.msk [vmem:[#allocation2 + $0x60] sm:$0xff] %vm489, 0.0
      %504 = vst.msk [vmem:[#allocation2 + $0x68] sm:$0xff] %vm489, 0.0
      %505 = vst.msk [vmem:[#allocation2 + $0x70] sm:$0x3f] %vm492, 0.0
      %506 = vst.msk [vmem:[#allocation2 + $0x78] sm:$0xff] %vm489, 0.0
      %507 = vst.msk [vmem:[#allocation2 + $0x80] sm:$0xff] %vm489, 0.0
      %508 = vst.msk [vmem:[#allocation2 + $0x88] sm:$0x3f] %vm492, 0.0
      %509 = vst.msk [vmem:[#allocation2 + $0x90] sm:$0xff] %vm489, 0.0
      %510 = vst.msk [vmem:[#allocation2 + $0x98] sm:$0xff] %vm489, 0.0
      %511 = vst.msk [vmem:[#allocation2 + $0xa0] sm:$0x3f] %vm492, 0.0
      %512 = vst.msk [vmem:[#allocation2 + $0xa8] sm:$0xff] %vm489, 0.0
      %513 = vst.msk [vmem:[#allocation2 + $0xb0] sm:$0xff] %vm489, 0.0
      %514 = vst.msk [vmem:[#allocation2 + $0xb8] sm:$0x3f] %vm492, 0.0
      %515 = vst.msk [vmem:[#allocation2 + $0xc0] sm:$0xff] %vm489, 0.0
      %516 = vst.msk [vmem:[#allocation2 + $0xc8] sm:$0xff] %vm489, 0.0
      %517 = vst.msk [vmem:[#allocation2 + $0xd0] sm:$0x3f] %vm492, 0.0
      %518 = vst.msk [vmem:[#allocation2 + $0xd8] sm:$0xff] %vm489, 0.0
      %519 = vst.msk [vmem:[#allocation2 + $0xe0] sm:$0xff] %vm489, 0.0
      %520 = vst.msk [vmem:[#allocation2 + $0xe8] sm:$0x3f] %vm492, 0.0
      %521 = vst.msk [vmem:[#allocation2 + $0xf0] sm:$0xff] %vm489, 0.0
      %522 = vst.msk [vmem:[#allocation2 + $0xf8] sm:$0xff] %vm489, 0.0
      %523 = vst.msk [vmem:[#allocation2 + $0x100] sm:$0x3f] %vm492, 0.0
      %524 = vst.msk [vmem:[#allocation2 + $0x108] sm:$0xff] %vm489, 0.0
      %525 = vst.msk [vmem:[#allocation2 + $0x110] sm:$0xff] %vm489, 0.0
      %526 = vst.msk [vmem:[#allocation2 + $0x118] sm:$0x3f] %vm492, 0.0
      %527 = vst.msk [vmem:[#allocation2 + $0x120] sm:$0xff] %vm489, 0.0
      %528 = vst.msk [vmem:[#allocation2 + $0x128] sm:$0xff] %vm489, 0.0
      %529 = vst.msk [vmem:[#allocation2 + $0x130] sm:$0x3f] %vm492, 0.0
      %530 = vst.msk [vmem:[#allocation2 + $0x138] sm:$0xff] %vm489, 0.0
      %531 = vst.msk [vmem:[#allocation2 + $0x140] sm:$0xff] %vm489, 0.0
      %532 = vst.msk [vmem:[#allocation2 + $0x148] sm:$0x3f] %vm492, 0.0
      %533 = vst.msk [vmem:[#allocation2 + $0x150] sm:$0xff] %vm489, 0.0
      %534 = vst.msk [vmem:[#allocation2 + $0x158] sm:$0xff] %vm489, 0.0
      %535 = vst.msk [vmem:[#allocation2 + $0x160] sm:$0x3f] %vm492, 0.0
      %536 = vst.msk [vmem:[#allocation2 + $0x168] sm:$0xff] %vm489, 0.0
      %537 = vst.msk [vmem:[#allocation2 + $0x170] sm:$0xff] %vm489, 0.0
      %538 = vst.msk [vmem:[#allocation2 + $0x178] sm:$0x3f] %vm492, 0.0
      %539 = vst.msk [vmem:[#allocation2 + $0x180] sm:$0xff] %vm489, 0.0
      %540 = vst.msk [vmem:[#allocation2 + $0x188] sm:$0xff] %vm489, 0.0
      %541 = vst.msk [vmem:[#allocation2 + $0x190] sm:$0x3f] %vm492, 0.0
      %542 = vst.msk [vmem:[#allocation2 + $0x198] sm:$0xff] %vm489, 0.0
      %543 = vst.msk [vmem:[#allocation2 + $0x1a0] sm:$0xff] %vm489, 0.0
      %544 = vst.msk [vmem:[#allocation2 + $0x1a8] sm:$0x3f] %vm492, 0.0
      %545 = vst.msk [vmem:[#allocation2 + $0x1b0] sm:$0xff] %vm489, 0.0
      %546 = vst.msk [vmem:[#allocation2 + $0x1b8] sm:$0xff] %vm489, 0.0
      %547 = vst.msk [vmem:[#allocation2 + $0x1c0] sm:$0x3f] %vm492, 0.0
      %548 = vst.msk [vmem:[#allocation2 + $0x1c8] sm:$0xff] %vm489, 0.0
      %549 = vst.msk [vmem:[#allocation2 + $0x1d0] sm:$0xff] %vm489, 0.0
      %550 = vst.msk [vmem:[#allocation2 + $0x1d8] sm:$0x3f] %vm492, 0.0
      %551 = vst.msk [vmem:[#allocation2 + $0x1e0] sm:$0xff] %vm489, 0.0
      %552 = vst.msk [vmem:[#allocation2 + $0x1e8] sm:$0xff] %vm489, 0.0
      %553 = vst.msk [vmem:[#allocation2 + $0x1f0] sm:$0x3f] %vm492, 0.0
      %554 = vst.msk [vmem:[#allocation2 + $0x1f8] sm:$0xff] %vm489, 0.0
      %555 = vst.msk [vmem:[#allocation2 + $0x200] sm:$0xff] %vm489, 0.0
      %556 = vst.msk [vmem:[#allocation2 + $0x208] sm:$0x3f] %vm492, 0.0
      %v557 = vld [vmem:[%s477] sm:$0xff]
      %v558 = vld [vmem:[%s477 + $0x8] sm:$0xff]
      %v559 = vld [vmem:[%s477 + $0x10] sm:$0xff]
      %v560 = vld [vmem:[%s477 + $0x18] sm:$0xff]
      %v561 = vld [vmem:[%s477 + $0x20] sm:$0xff]
      %v562 = vld [vmem:[%s477 + $0x28] sm:$0xff]
      %v563 = vld [vmem:[%s477 + $0x30] sm:$0xff]
      %v564 = vld [vmem:[%s477 + $0x38] sm:$0xff]
      %v565 = vld [vmem:[%s477 + $0x40] sm:$0xff]
      %v566 = vld [vmem:[%s477 + $0x48] sm:$0xff]
      %v567 = vld [vmem:[%s477 + $0x50] sm:$0xff]
      %v568 = vld [vmem:[%s477 + $0x58] sm:$0xff]
      %v569 = vld [vmem:[%s477 + $0x60] sm:$0xff]
      %v570 = vld [vmem:[%s477 + $0x68] sm:$0xff]
      %v571 = vld [vmem:[%s477 + $0x70] sm:$0xff]
      %v572 = vld [vmem:[%s477 + $0x78] sm:$0xff]
      %v573 = vld [vmem:[%s477 + $0x80] sm:$0xff]
      %v574 = vld [vmem:[%s477 + $0x88] sm:$0xff]
      %v575 = vld [vmem:[%s477 + $0x90] sm:$0xff]
      %v576 = vld [vmem:[%s477 + $0x98] sm:$0xff]
      %v577 = vld [vmem:[%s477 + $0xa0] sm:$0xff]
      %v578 = vld [vmem:[%s477 + $0xa8] sm:$0xff]
      %v579 = vld [vmem:[%s477 + $0xb0] sm:$0xff]
      %v580 = vld [vmem:[%s477 + $0xb8] sm:$0xff]
      %v581 = vld [vmem:[%s477 + $0xc0] sm:$0xff]
      %v582 = vld [vmem:[%s477 + $0xc8] sm:$0xff]
      %v583 = vld [vmem:[%s477 + $0xd0] sm:$0xff]
      %v584 = vld [vmem:[%s477 + $0xd8] sm:$0xff]
      %v585 = vld [vmem:[%s477 + $0xe0] sm:$0xff]
      %v586 = vld [vmem:[%s477 + $0xe8] sm:$0xff]
      %v587 = vld [vmem:[%s477 + $0xf0] sm:$0xff]
      %v588 = vld [vmem:[%s477 + $0xf8] sm:$0xff]
      %v589 = vld [vmem:[%s482] sm:$0xff]
      %v590 = vld [vmem:[%s482 + $0x8] sm:$0xff]
      %v591 = vld [vmem:[%s482 + $0x10] sm:$0xff]
      %v592 = vld [vmem:[%s482 + $0x18] sm:$0xff]
      %v593 = vld [vmem:[%s482 + $0x20] sm:$0xff]
      %v594 = vld [vmem:[%s482 + $0x28] sm:$0xff]
      %v595 = vld [vmem:[%s482 + $0x30] sm:$0xff]
      %v596 = vld [vmem:[%s482 + $0x38] sm:$0xff]
      %v597 = vld [vmem:[%s482 + $0x40] sm:$0xff]
      %v598 = vld [vmem:[%s482 + $0x48] sm:$0xff]
      %v599 = vld [vmem:[%s482 + $0x50] sm:$0xff]
      %v600 = vld [vmem:[%s482 + $0x58] sm:$0xff]
      %v601 = vld [vmem:[%s482 + $0x60] sm:$0xff]
      %v602 = vld [vmem:[%s482 + $0x68] sm:$0xff]
      %v603 = vld [vmem:[%s482 + $0x70] sm:$0xff]
      %v604 = vld [vmem:[%s482 + $0x78] sm:$0xff]
      %v605 = vld [vmem:[%s482 + $0x80] sm:$0xff]
      %v606 = vld [vmem:[%s482 + $0x88] sm:$0xff]
      %v607 = vld [vmem:[%s482 + $0x90] sm:$0xff]
      %v608 = vld [vmem:[%s482 + $0x98] sm:$0xff]
      %v609 = vld [vmem:[%s482 + $0xa0] sm:$0xff]
      %v610 = vld [vmem:[%s482 + $0xa8] sm:$0xff]
      %v611 = vld [vmem:[%s482 + $0xb0] sm:$0xff]
      %v612 = vld [vmem:[%s482 + $0xb8] sm:$0xff]
      %v613 = vld [vmem:[%s482 + $0xc0] sm:$0xff]
      %v614 = vld [vmem:[%s482 + $0xc8] sm:$0xff]
      %v615 = vld [vmem:[%s482 + $0xd0] sm:$0xff]
      %v616 = vld [vmem:[%s482 + $0xd8] sm:$0xff]
      %v617 = vld [vmem:[%s482 + $0xe0] sm:$0xff]
      %v618 = vld [vmem:[%s482 + $0xe8] sm:$0xff]
      %v619 = vld [vmem:[%s482 + $0xf0] sm:$0xff]
      %v620 = vld [vmem:[%s482 + $0xf8] sm:$0xff]
      %v621 = vld [vmem:[%s2] sm:$0x1]
      %623 = vset.pattern.permute.xlu0 0
      %624 = vperm.xlu0 %623, %v557
      %v625 = vpop.permute.xlu0 %624
      %628 = vset.pattern.permute.xlu0 0
      %629 = vperm.xlu0 %628, %v558
      %v630 = vpop.permute.xlu0 %629
      %633 = vset.pattern.permute.xlu0 0
      %634 = vperm.xlu0 %633, %v559
      %v635 = vpop.permute.xlu0 %634
      %638 = vset.pattern.permute.xlu0 0
      %639 = vperm.xlu0 %638, %v560
      %v640 = vpop.permute.xlu0 %639
      %643 = vset.pattern.permute.xlu0 0
      %644 = vperm.xlu0 %643, %v561
      %v645 = vpop.permute.xlu0 %644
      %648 = vset.pattern.permute.xlu0 0
      %649 = vperm.xlu0 %648, %v562
      %v650 = vpop.permute.xlu0 %649
      %653 = vset.pattern.permute.xlu0 0
      %654 = vperm.xlu0 %653, %v563
      %v655 = vpop.permute.xlu0 %654
      %658 = vset.pattern.permute.xlu0 0
      %659 = vperm.xlu0 %658, %v564
      %v660 = vpop.permute.xlu0 %659
      %663 = vset.pattern.permute.xlu0 0
      %664 = vperm.xlu0 %663, %v565
      %v665 = vpop.permute.xlu0 %664
      %668 = vset.pattern.permute.xlu0 0
      %669 = vperm.xlu0 %668, %v566
      %v670 = vpop.permute.xlu0 %669
      %673 = vset.pattern.permute.xlu0 0
      %674 = vperm.xlu0 %673, %v567
      %v675 = vpop.permute.xlu0 %674
      %678 = vset.pattern.permute.xlu0 0
      %679 = vperm.xlu0 %678, %v568
      %v680 = vpop.permute.xlu0 %679
      %683 = vset.pattern.permute.xlu0 0
      %684 = vperm.xlu0 %683, %v569
      %v685 = vpop.permute.xlu0 %684
      %688 = vset.pattern.permute.xlu0 0
      %689 = vperm.xlu0 %688, %v570
      %v690 = vpop.permute.xlu0 %689
      %693 = vset.pattern.permute.xlu0 0
      %694 = vperm.xlu0 %693, %v571
      %v695 = vpop.permute.xlu0 %694
      %698 = vset.pattern.permute.xlu0 0
      %699 = vperm.xlu0 %698, %v572
      %v700 = vpop.permute.xlu0 %699
      %703 = vset.pattern.permute.xlu0 0
      %704 = vperm.xlu0 %703, %v573
      %v705 = vpop.permute.xlu0 %704
      %708 = vset.pattern.permute.xlu0 0
      %709 = vperm.xlu0 %708, %v574
      %v710 = vpop.permute.xlu0 %709
      %713 = vset.pattern.permute.xlu0 0
      %714 = vperm.xlu0 %713, %v575
      %v715 = vpop.permute.xlu0 %714
      %718 = vset.pattern.permute.xlu0 0
      %719 = vperm.xlu0 %718, %v576
      %v720 = vpop.permute.xlu0 %719
      %723 = vset.pattern.permute.xlu0 0
      %724 = vperm.xlu0 %723, %v577
      %v725 = vpop.permute.xlu0 %724
      %728 = vset.pattern.permute.xlu0 0
      %729 = vperm.xlu0 %728, %v578
      %v730 = vpop.permute.xlu0 %729
      %733 = vset.pattern.permute.xlu0 0
      %734 = vperm.xlu0 %733, %v579
      %v735 = vpop.permute.xlu0 %734
      %738 = vset.pattern.permute.xlu0 0
      %739 = vperm.xlu0 %738, %v580
      %v740 = vpop.permute.xlu0 %739
      %743 = vset.pattern.permute.xlu0 0
      %744 = vperm.xlu0 %743, %v581
      %v745 = vpop.permute.xlu0 %744
      %748 = vset.pattern.permute.xlu0 0
      %749 = vperm.xlu0 %748, %v582
      %v750 = vpop.permute.xlu0 %749
      %753 = vset.pattern.permute.xlu0 0
      %754 = vperm.xlu0 %753, %v583
      %v755 = vpop.permute.xlu0 %754
      %758 = vset.pattern.permute.xlu0 0
      %759 = vperm.xlu0 %758, %v584
      %v760 = vpop.permute.xlu0 %759
      %763 = vset.pattern.permute.xlu0 0
      %764 = vperm.xlu0 %763, %v585
      %v765 = vpop.permute.xlu0 %764
      %768 = vset.pattern.permute.xlu0 0
      %769 = vperm.xlu0 %768, %v586
      %v770 = vpop.permute.xlu0 %769
      %773 = vset.pattern.permute.xlu0 0
      %774 = vperm.xlu0 %773, %v587
      %v775 = vpop.permute.xlu0 %774
      %778 = vset.pattern.permute.xlu0 0
      %779 = vperm.xlu0 %778, %v588
      %v780 = vpop.permute.xlu0 %779
      %v782 = vlaneseq
      %v783 = vshrl.u32 %v782, 7
      %v784 = vsub.s32 0, %v783
      %v785 = vrot.slane %v621, %v784
      %v786 = vmul.f32 %v625, %v785
      %v787 = vmul.f32 %v630, %v785
      %v788 = vmul.f32 %v635, %v785
      %v789 = vmul.f32 %v640, %v785
      %v790 = vmul.f32 %v645, %v785
      %v791 = vmul.f32 %v650, %v785
      %v792 = vmul.f32 %v655, %v785
      %v793 = vmul.f32 %v660, %v785
      %v794 = vmul.f32 %v665, %v785
      %v795 = vmul.f32 %v670, %v785
      %v796 = vmul.f32 %v675, %v785
      %v797 = vmul.f32 %v680, %v785
      %v798 = vmul.f32 %v685, %v785
      %v799 = vmul.f32 %v690, %v785
      %v800 = vmul.f32 %v695, %v785
      %v801 = vmul.f32 %v700, %v785
      %v802 = vmul.f32 %v705, %v785
      %v803 = vmul.f32 %v710, %v785
      %v804 = vmul.f32 %v715, %v785
      %v805 = vmul.f32 %v720, %v785
      %v806 = vmul.f32 %v725, %v785
      %v807 = vmul.f32 %v730, %v785
      %v808 = vmul.f32 %v735, %v785
      %v809 = vmul.f32 %v740, %v785
      %v810 = vmul.f32 %v745, %v785
      %v811 = vmul.f32 %v750, %v785
      %v812 = vmul.f32 %v755, %v785
      %v813 = vmul.f32 %v760, %v785
      %v814 = vmul.f32 %v765, %v785
      %v815 = vmul.f32 %v770, %v785
      %v816 = vmul.f32 %v775, %v785
      %v817 = vmul.f32 %v780, %v785
      %v818 = vadd.f32 %v786, 0.0
      %v819 = vadd.f32 %v787, 0.0
      %v820 = vadd.f32 %v788, 0.0
      %v821 = vadd.f32 %v789, 0.0
      %v822 = vadd.f32 %v790, 0.0
      %v823 = vadd.f32 %v791, 0.0
      %v824 = vadd.f32 %v792, 0.0
      %v825 = vadd.f32 %v793, 0.0
      %v826 = vadd.f32 %v794, 0.0
      %v827 = vadd.f32 %v795, 0.0
      %v828 = vadd.f32 %v796, 0.0
      %v829 = vadd.f32 %v797, 0.0
      %v830 = vadd.f32 %v798, 0.0
      %v831 = vadd.f32 %v799, 0.0
      %v832 = vadd.f32 %v800, 0.0
      %v833 = vadd.f32 %v801, 0.0
      %v834 = vadd.f32 %v802, 0.0
      %v835 = vadd.f32 %v803, 0.0
      %v836 = vadd.f32 %v804, 0.0
      %v837 = vadd.f32 %v805, 0.0
      %v838 = vadd.f32 %v806, 0.0
      %v839 = vadd.f32 %v807, 0.0
      %v840 = vadd.f32 %v808, 0.0
      %v841 = vadd.f32 %v809, 0.0
      %v842 = vadd.f32 %v810, 0.0
      %v843 = vadd.f32 %v811, 0.0
      %v844 = vadd.f32 %v812, 0.0
      %v845 = vadd.f32 %v813, 0.0
      %v846 = vadd.f32 %v814, 0.0
      %v847 = vadd.f32 %v815, 0.0
      %v848 = vadd.f32 %v816, 0.0
      %v849 = vadd.f32 %v817, 0.0
      %v850 = vld [vmem:[%s2 + $0x1] sm:$0x1]
      %851 = vset.pattern.permute.xlu0 1
      %852 = vperm.xlu0 %851, %v557
      %v853 = vpop.permute.xlu0 %852
      %855 = vset.pattern.permute.xlu0 1
      %856 = vperm.xlu0 %855, %v558
      %v857 = vpop.permute.xlu0 %856
      %859 = vset.pattern.permute.xlu0 1
      %860 = vperm.xlu0 %859, %v559
      %v861 = vpop.permute.xlu0 %860
      %863 = vset.pattern.permute.xlu0 1
      %864 = vperm.xlu0 %863, %v560
      %v865 = vpop.permute.xlu0 %864
      %867 = vset.pattern.permute.xlu0 1
      %868 = vperm.xlu0 %867, %v561
      %v869 = vpop.permute.xlu0 %868
      %871 = vset.pattern.permute.xlu0 1
      %872 = vperm.xlu0 %871, %v562
      %v873 = vpop.permute.xlu0 %872
      %875 = vset.pattern.permute.xlu0 1
      %876 = vperm.xlu0 %875, %v563
      %v877 = vpop.permute.xlu0 %876
      %879 = vset.pattern.permute.xlu0 1
      %880 = vperm.xlu0 %879, %v564
      %v881 = vpop.permute.xlu0 %880
      %883 = vset.pattern.permute.xlu0 1
      %884 = vperm.xlu0 %883, %v565
      %v885 = vpop.permute.xlu0 %884
      %887 = vset.pattern.permute.xlu0 1
      %888 = vperm.xlu0 %887, %v566
      %v889 = vpop.permute.xlu0 %888
      %891 = vset.pattern.permute.xlu0 1
      %892 = vperm.xlu0 %891, %v567
      %v893 = vpop.permute.xlu0 %892
      %895 = vset.pattern.permute.xlu0 1
      %896 = vperm.xlu0 %895, %v568
      %v897 = vpop.permute.xlu0 %896
      %899 = vset.pattern.permute.xlu0 1
      %900 = vperm.xlu0 %899, %v569
      %v901 = vpop.permute.xlu0 %900
      %903 = vset.pattern.permute.xlu0 1
      %904 = vperm.xlu0 %903, %v570
      %v905 = vpop.permute.xlu0 %904
      %907 = vset.pattern.permute.xlu0 1
      %908 = vperm.xlu0 %907, %v571
      %v909 = vpop.permute.xlu0 %908
      %911 = vset.pattern.permute.xlu0 1
      %912 = vperm.xlu0 %911, %v572
      %v913 = vpop.permute.xlu0 %912
      %915 = vset.pattern.permute.xlu0 1
      %916 = vperm.xlu0 %915, %v573
      %v917 = vpop.permute.xlu0 %916
      %919 = vset.pattern.permute.xlu0 1
      %920 = vperm.xlu0 %919, %v574
      %v921 = vpop.permute.xlu0 %920
      %923 = vset.pattern.permute.xlu0 1
      %924 = vperm.xlu0 %923, %v575
      %v925 = vpop.permute.xlu0 %924
      %927 = vset.pattern.permute.xlu0 1
      %928 = vperm.xlu0 %927, %v576
      %v929 = vpop.permute.xlu0 %928
      %931 = vset.pattern.permute.xlu0 1
      %932 = vperm.xlu0 %931, %v577
      %v933 = vpop.permute.xlu0 %932
      %935 = vset.pattern.permute.xlu0 1
      %936 = vperm.xlu0 %935, %v578
      %v937 = vpop.permute.xlu0 %936
      %939 = vset.pattern.permute.xlu0 1
      %940 = vperm.xlu0 %939, %v579
      %v941 = vpop.permute.xlu0 %940
      %943 = vset.pattern.permute.xlu0 1
      %944 = vperm.xlu0 %943, %v580
      %v945 = vpop.permute.xlu0 %944
      %947 = vset.pattern.permute.xlu0 1
      %948 = vperm.xlu0 %947, %v581
      %v949 = vpop.permute.xlu0 %948
      %951 = vset.pattern.permute.xlu0 1
      %952 = vperm.xlu0 %951, %v582
      %v953 = vpop.permute.xlu0 %952
      %955 = vset.pattern.permute.xlu0 1
      %956 = vperm.xlu0 %955, %v583
      %v957 = vpop.permute.xlu0 %956
      %959 = vset.pattern.permute.xlu0 1
      %960 = vperm.xlu0 %959, %v584
      %v961 = vpop.permute.xlu0 %960
      %963 = vset.pattern.permute.xlu0 1
      %964 = vperm.xlu0 %963, %v585
      %v965 = vpop.permute.xlu0 %964
      %967 = vset.pattern.permute.xlu0 1
      %968 = vperm.xlu0 %967, %v586
      %v969 = vpop.permute.xlu0 %968
      %971 = vset.pattern.permute.xlu0 1
      %972 = vperm.xlu0 %971, %v587
      %v973 = vpop.permute.xlu0 %972
      %975 = vset.pattern.permute.xlu0 1
      %976 = vperm.xlu0 %975, %v588
      %v977 = vpop.permute.xlu0 %976
      %v979 = vlaneseq
      %v980 = vshrl.u32 %v979, 7
      %v981 = vsub.s32 0, %v980
      %v982 = vrot.slane %v850, %v981
      %v983 = vmul.f32 %v853, %v982
      %v984 = vmul.f32 %v857, %v982
      %v985 = vmul.f32 %v861, %v982
      %v986 = vmul.f32 %v865, %v982
      %v987 = vmul.f32 %v869, %v982
      %v988 = vmul.f32 %v873, %v982
      %v989 = vmul.f32 %v877, %v982
      %v990 = vmul.f32 %v881, %v982
      %v991 = vmul.f32 %v885, %v982
      %v992 = vmul.f32 %v889, %v982
      %v993 = vmul.f32 %v893, %v982
      %v994 = vmul.f32 %v897, %v982
      %v995 = vmul.f32 %v901, %v982
      %v996 = vmul.f32 %v905, %v982
      %v997 = vmul.f32 %v909, %v982
      %v998 = vmul.f32 %v913, %v982
      %v999 = vmul.f32 %v917, %v982
      %v1000 = vmul.f32 %v921, %v982
      %v1001 = vmul.f32 %v925, %v982
      %v1002 = vmul.f32 %v929, %v982
      %v1003 = vmul.f32 %v933, %v982
      %v1004 = vmul.f32 %v937, %v982
      %v1005 = vmul.f32 %v941, %v982
      %v1006 = vmul.f32 %v945, %v982
      %v1007 = vmul.f32 %v949, %v982
      %v1008 = vmul.f32 %v953, %v982
      %v1009 = vmul.f32 %v957, %v982
      %v1010 = vmul.f32 %v961, %v982
      %v1011 = vmul.f32 %v965, %v982
      %v1012 = vmul.f32 %v969, %v982
      %v1013 = vmul.f32 %v973, %v982
      %v1014 = vmul.f32 %v977, %v982
      %v1015 = vadd.f32 %v818, %v983
      %v1016 = vadd.f32 %v819, %v984
      %v1017 = vadd.f32 %v820, %v985
      %v1018 = vadd.f32 %v821, %v986
      %v1019 = vadd.f32 %v822, %v987
      %v1020 = vadd.f32 %v823, %v988
      %v1021 = vadd.f32 %v824, %v989
      %v1022 = vadd.f32 %v825, %v990
      %v1023 = vadd.f32 %v826, %v991
      %v1024 = vadd.f32 %v827, %v992
      %v1025 = vadd.f32 %v828, %v993
      %v1026 = vadd.f32 %v829, %v994
      %v1027 = vadd.f32 %v830, %v995
      %v1028 = vadd.f32 %v831, %v996
      %v1029 = vadd.f32 %v832, %v997
      %v1030 = vadd.f32 %v833, %v998
      %v1031 = vadd.f32 %v834, %v999
      %v1032 = vadd.f32 %v835, %v1000
      %v1033 = vadd.f32 %v836, %v1001
      %v1034 = vadd.f32 %v837, %v1002
      %v1035 = vadd.f32 %v838, %v1003
      %v1036 = vadd.f32 %v839, %v1004
      %v1037 = vadd.f32 %v840, %v1005
      %v1038 = vadd.f32 %v841, %v1006
      %v1039 = vadd.f32 %v842, %v1007
      %v1040 = vadd.f32 %v843, %v1008
      %v1041 = vadd.f32 %v844, %v1009
      %v1042 = vadd.f32 %v845, %v1010
      %v1043 = vadd.f32 %v846, %v1011
      %v1044 = vadd.f32 %v847, %v1012
      %v1045 = vadd.f32 %v848, %v1013
      %v1046 = vadd.f32 %v849, %v1014
      %v1047 = vld [vmem:[%s2 + $0x2] sm:$0x1]
      %1048 = vset.pattern.permute.xlu0 2
      %1049 = vperm.xlu0 %1048, %v557
      %v1050 = vpop.permute.xlu0 %1049
      %1052 = vset.pattern.permute.xlu0 2
      %1053 = vperm.xlu0 %1052, %v558
      %v1054 = vpop.permute.xlu0 %1053
      %1056 = vset.pattern.permute.xlu0 2
      %1057 = vperm.xlu0 %1056, %v559
      %v1058 = vpop.permute.xlu0 %1057
      %1060 = vset.pattern.permute.xlu0 2
      %1061 = vperm.xlu0 %1060, %v560
      %v1062 = vpop.permute.xlu0 %1061
      %1064 = vset.pattern.permute.xlu0 2
      %1065 = vperm.xlu0 %1064, %v561
      %v1066 = vpop.permute.xlu0 %1065
      %1068 = vset.pattern.permute.xlu0 2
      %1069 = vperm.xlu0 %1068, %v562
      %v1070 = vpop.permute.xlu0 %1069
      %1072 = vset.pattern.permute.xlu0 2
      %1073 = vperm.xlu0 %1072, %v563
      %v1074 = vpop.permute.xlu0 %1073
      %1076 = vset.pattern.permute.xlu0 2
      %1077 = vperm.xlu0 %1076, %v564
      %v1078 = vpop.permute.xlu0 %1077
      %1080 = vset.pattern.permute.xlu0 2
      %1081 = vperm.xlu0 %1080, %v565
      %v1082 = vpop.permute.xlu0 %1081
      %1084 = vset.pattern.permute.xlu0 2
      %1085 = vperm.xlu0 %1084, %v566
      %v1086 = vpop.permute.xlu0 %1085
      %1088 = vset.pattern.permute.xlu0 2
      %1089 = vperm.xlu0 %1088, %v567
      %v1090 = vpop.permute.xlu0 %1089
      %1092 = vset.pattern.permute.xlu0 2
      %1093 = vperm.xlu0 %1092, %v568
      %v1094 = vpop.permute.xlu0 %1093
      %1096 = vset.pattern.permute.xlu0 2
      %1097 = vperm.xlu0 %1096, %v569
      %v1098 = vpop.permute.xlu0 %1097
      %1100 = vset.pattern.permute.xlu0 2
      %1101 = vperm.xlu0 %1100, %v570
      %v1102 = vpop.permute.xlu0 %1101
      %1104 = vset.pattern.permute.xlu0 2
      %1105 = vperm.xlu0 %1104, %v571
      %v1106 = vpop.permute.xlu0 %1105
      %1108 = vset.pattern.permute.xlu0 2
      %1109 = vperm.xlu0 %1108, %v572
      %v1110 = vpop.permute.xlu0 %1109
      %1112 = vset.pattern.permute.xlu0 2
      %1113 = vperm.xlu0 %1112, %v573
      %v1114 = vpop.permute.xlu0 %1113
      %1116 = vset.pattern.permute.xlu0 2
      %1117 = vperm.xlu0 %1116, %v574
      %v1118 = vpop.permute.xlu0 %1117
      %1120 = vset.pattern.permute.xlu0 2
      %1121 = vperm.xlu0 %1120, %v575
      %v1122 = vpop.permute.xlu0 %1121
      %1124 = vset.pattern.permute.xlu0 2
      %1125 = vperm.xlu0 %1124, %v576
      %v1126 = vpop.permute.xlu0 %1125
      %1128 = vset.pattern.permute.xlu0 2
      %1129 = vperm.xlu0 %1128, %v577
      %v1130 = vpop.permute.xlu0 %1129
      %1132 = vset.pattern.permute.xlu0 2
      %1133 = vperm.xlu0 %1132, %v578
      %v1134 = vpop.permute.xlu0 %1133
      %1136 = vset.pattern.permute.xlu0 2
      %1137 = vperm.xlu0 %1136, %v579
      %v1138 = vpop.permute.xlu0 %1137
      %1140 = vset.pattern.permute.xlu0 2
      %1141 = vperm.xlu0 %1140, %v580
      %v1142 = vpop.permute.xlu0 %1141
      %1144 = vset.pattern.permute.xlu0 2
      %1145 = vperm.xlu0 %1144, %v581
      %v1146 = vpop.permute.xlu0 %1145
      %1148 = vset.pattern.permute.xlu0 2
      %1149 = vperm.xlu0 %1148, %v582
      %v1150 = vpop.permute.xlu0 %1149
      %1152 = vset.pattern.permute.xlu0 2
      %1153 = vperm.xlu0 %1152, %v583
      %v1154 = vpop.permute.xlu0 %1153
      %1156 = vset.pattern.permute.xlu0 2
      %1157 = vperm.xlu0 %1156, %v584
      %v1158 = vpop.permute.xlu0 %1157
      %1160 = vset.pattern.permute.xlu0 2
      %1161 = vperm.xlu0 %1160, %v585
      %v1162 = vpop.permute.xlu0 %1161
      %1164 = vset.pattern.permute.xlu0 2
      %1165 = vperm.xlu0 %1164, %v586
      %v1166 = vpop.permute.xlu0 %1165
      %1168 = vset.pattern.permute.xlu0 2
      %1169 = vperm.xlu0 %1168, %v587
      %v1170 = vpop.permute.xlu0 %1169
      %1172 = vset.pattern.permute.xlu0 2
      %1173 = vperm.xlu0 %1172, %v588
      %v1174 = vpop.permute.xlu0 %1173
      %v1176 = vlaneseq
      %v1177 = vshrl.u32 %v1176, 7
      %v1178 = vsub.s32 0, %v1177
      %v1179 = vrot.slane %v1047, %v1178
      %v1180 = vmul.f32 %v1050, %v1179
      %v1181 = vmul.f32 %v1054, %v1179
      %v1182 = vmul.f32 %v1058, %v1179
      %v1183 = vmul.f32 %v1062, %v1179
      %v1184 = vmul.f32 %v1066, %v1179
      %v1185 = vmul.f32 %v1070, %v1179
      %v1186 = vmul.f32 %v1074, %v1179
      %v1187 = vmul.f32 %v1078, %v1179
      %v1188 = vmul.f32 %v1082, %v1179
      %v1189 = vmul.f32 %v1086, %v1179
      %v1190 = vmul.f32 %v1090, %v1179
      %v1191 = vmul.f32 %v1094, %v1179
      %v1192 = vmul.f32 %v1098, %v1179
      %v1193 = vmul.f32 %v1102, %v1179
      %v1194 = vmul.f32 %v1106, %v1179
      %v1195 = vmul.f32 %v1110, %v1179
      %v1196 = vmul.f32 %v1114, %v1179
      %v1197 = vmul.f32 %v1118, %v1179
      %v1198 = vmul.f32 %v1122, %v1179
      %v1199 = vmul.f32 %v1126, %v1179
      %v1200 = vmul.f32 %v1130, %v1179
      %v1201 = vmul.f32 %v1134, %v1179
      %v1202 = vmul.f32 %v1138, %v1179
      %v1203 = vmul.f32 %v1142, %v1179
      %v1204 = vmul.f32 %v1146, %v1179
      %v1205 = vmul.f32 %v1150, %v1179
      %v1206 = vmul.f32 %v1154, %v1179
      %v1207 = vmul.f32 %v1158, %v1179
      %v1208 = vmul.f32 %v1162, %v1179
      %v1209 = vmul.f32 %v1166, %v1179
      %v1210 = vmul.f32 %v1170, %v1179
      %v1211 = vmul.f32 %v1174, %v1179
      %v1212 = vadd.f32 %v1015, %v1180
      %v1213 = vadd.f32 %v1016, %v1181
      %v1214 = vadd.f32 %v1017, %v1182
      %v1215 = vadd.f32 %v1018, %v1183
      %v1216 = vadd.f32 %v1019, %v1184
      %v1217 = vadd.f32 %v1020, %v1185
      %v1218 = vadd.f32 %v1021, %v1186
      %v1219 = vadd.f32 %v1022, %v1187
      %v1220 = vadd.f32 %v1023, %v1188
      %v1221 = vadd.f32 %v1024, %v1189
      %v1222 = vadd.f32 %v1025, %v1190
      %v1223 = vadd.f32 %v1026, %v1191
      %v1224 = vadd.f32 %v1027, %v1192
      %v1225 = vadd.f32 %v1028, %v1193
      %v1226 = vadd.f32 %v1029, %v1194
      %v1227 = vadd.f32 %v1030, %v1195
      %v1228 = vadd.f32 %v1031, %v1196
      %v1229 = vadd.f32 %v1032, %v1197
      %v1230 = vadd.f32 %v1033, %v1198
      %v1231 = vadd.f32 %v1034, %v1199
      %v1232 = vadd.f32 %v1035, %v1200
      %v1233 = vadd.f32 %v1036, %v1201
      %v1234 = vadd.f32 %v1037, %v1202
      %v1235 = vadd.f32 %v1038, %v1203
      %v1236 = vadd.f32 %v1039, %v1204
      %v1237 = vadd.f32 %v1040, %v1205
      %v1238 = vadd.f32 %v1041, %v1206
      %v1239 = vadd.f32 %v1042, %v1207
      %v1240 = vadd.f32 %v1043, %v1208
      %v1241 = vadd.f32 %v1044, %v1209
      %v1242 = vadd.f32 %v1045, %v1210
      %v1243 = vadd.f32 %v1046, %v1211
      %v1244 = vld [vmem:[%s3] sm:$0x1]
      %1246 = vset.pattern.permute.xlu0 0
      %1247 = vperm.xlu0 %1246, %v589
      %v1248 = vpop.permute.xlu0 %1247
      %1251 = vset.pattern.permute.xlu0 0
      %1252 = vperm.xlu0 %1251, %v590
      %v1253 = vpop.permute.xlu0 %1252
      %1256 = vset.pattern.permute.xlu0 0
      %1257 = vperm.xlu0 %1256, %v591
      %v1258 = vpop.permute.xlu0 %1257
      %1261 = vset.pattern.permute.xlu0 0
      %1262 = vperm.xlu0 %1261, %v592
      %v1263 = vpop.permute.xlu0 %1262
      %1266 = vset.pattern.permute.xlu0 0
      %1267 = vperm.xlu0 %1266, %v593
      %v1268 = vpop.permute.xlu0 %1267
      %1271 = vset.pattern.permute.xlu0 0
      %1272 = vperm.xlu0 %1271, %v594
      %v1273 = vpop.permute.xlu0 %1272
      %1276 = vset.pattern.permute.xlu0 0
      %1277 = vperm.xlu0 %1276, %v595
      %v1278 = vpop.permute.xlu0 %1277
      %1281 = vset.pattern.permute.xlu0 0
      %1282 = vperm.xlu0 %1281, %v596
      %v1283 = vpop.permute.xlu0 %1282
      %1286 = vset.pattern.permute.xlu0 0
      %1287 = vperm.xlu0 %1286, %v597
      %v1288 = vpop.permute.xlu0 %1287
      %1291 = vset.pattern.permute.xlu0 0
      %1292 = vperm.xlu0 %1291, %v598
      %v1293 = vpop.permute.xlu0 %1292
      %1296 = vset.pattern.permute.xlu0 0
      %1297 = vperm.xlu0 %1296, %v599
      %v1298 = vpop.permute.xlu0 %1297
      %1301 = vset.pattern.permute.xlu0 0
      %1302 = vperm.xlu0 %1301, %v600
      %v1303 = vpop.permute.xlu0 %1302
      %1306 = vset.pattern.permute.xlu0 0
      %1307 = vperm.xlu0 %1306, %v601
      %v1308 = vpop.permute.xlu0 %1307
      %1311 = vset.pattern.permute.xlu0 0
      %1312 = vperm.xlu0 %1311, %v602
      %v1313 = vpop.permute.xlu0 %1312
      %1316 = vset.pattern.permute.xlu0 0
      %1317 = vperm.xlu0 %1316, %v603
      %v1318 = vpop.permute.xlu0 %1317
      %1321 = vset.pattern.permute.xlu0 0
      %1322 = vperm.xlu0 %1321, %v604
      %v1323 = vpop.permute.xlu0 %1322
      %1326 = vset.pattern.permute.xlu0 0
      %1327 = vperm.xlu0 %1326, %v605
      %v1328 = vpop.permute.xlu0 %1327
      %1331 = vset.pattern.permute.xlu0 0
      %1332 = vperm.xlu0 %1331, %v606
      %v1333 = vpop.permute.xlu0 %1332
      %1336 = vset.pattern.permute.xlu0 0
      %1337 = vperm.xlu0 %1336, %v607
      %v1338 = vpop.permute.xlu0 %1337
      %1341 = vset.pattern.permute.xlu0 0
      %1342 = vperm.xlu0 %1341, %v608
      %v1343 = vpop.permute.xlu0 %1342
      %1346 = vset.pattern.permute.xlu0 0
      %1347 = vperm.xlu0 %1346, %v609
      %v1348 = vpop.permute.xlu0 %1347
      %1351 = vset.pattern.permute.xlu0 0
      %1352 = vperm.xlu0 %1351, %v610
      %v1353 = vpop.permute.xlu0 %1352
      %1356 = vset.pattern.permute.xlu0 0
      %1357 = vperm.xlu0 %1356, %v611
      %v1358 = vpop.permute.xlu0 %1357
      %1361 = vset.pattern.permute.xlu0 0
      %1362 = vperm.xlu0 %1361, %v612
      %v1363 = vpop.permute.xlu0 %1362
      %1366 = vset.pattern.permute.xlu0 0
      %1367 = vperm.xlu0 %1366, %v613
      %v1368 = vpop.permute.xlu0 %1367
      %1371 = vset.pattern.permute.xlu0 0
      %1372 = vperm.xlu0 %1371, %v614
      %v1373 = vpop.permute.xlu0 %1372
      %1376 = vset.pattern.permute.xlu0 0
      %1377 = vperm.xlu0 %1376, %v615
      %v1378 = vpop.permute.xlu0 %1377
      %1381 = vset.pattern.permute.xlu0 0
      %1382 = vperm.xlu0 %1381, %v616
      %v1383 = vpop.permute.xlu0 %1382
      %1386 = vset.pattern.permute.xlu0 0
      %1387 = vperm.xlu0 %1386, %v617
      %v1388 = vpop.permute.xlu0 %1387
      %1391 = vset.pattern.permute.xlu0 0
      %1392 = vperm.xlu0 %1391, %v618
      %v1393 = vpop.permute.xlu0 %1392
      %1396 = vset.pattern.permute.xlu0 0
      %1397 = vperm.xlu0 %1396, %v619
      %v1398 = vpop.permute.xlu0 %1397
      %1401 = vset.pattern.permute.xlu0 0
      %1402 = vperm.xlu0 %1401, %v620
      %v1403 = vpop.permute.xlu0 %1402
      %v1405 = vlaneseq
      %v1406 = vshrl.u32 %v1405, 7
      %v1407 = vsub.s32 0, %v1406
      %v1408 = vrot.slane %v1244, %v1407
      %v1409 = vmul.f32 %v1248, %v1408
      %v1410 = vmul.f32 %v1253, %v1408
      %v1411 = vmul.f32 %v1258, %v1408
      %v1412 = vmul.f32 %v1263, %v1408
      %v1413 = vmul.f32 %v1268, %v1408
      %v1414 = vmul.f32 %v1273, %v1408
      %v1415 = vmul.f32 %v1278, %v1408
      %v1416 = vmul.f32 %v1283, %v1408
      %v1417 = vmul.f32 %v1288, %v1408
      %v1418 = vmul.f32 %v1293, %v1408
      %v1419 = vmul.f32 %v1298, %v1408
      %v1420 = vmul.f32 %v1303, %v1408
      %v1421 = vmul.f32 %v1308, %v1408
      %v1422 = vmul.f32 %v1313, %v1408
      %v1423 = vmul.f32 %v1318, %v1408
      %v1424 = vmul.f32 %v1323, %v1408
      %v1425 = vmul.f32 %v1328, %v1408
      %v1426 = vmul.f32 %v1333, %v1408
      %v1427 = vmul.f32 %v1338, %v1408
      %v1428 = vmul.f32 %v1343, %v1408
      %v1429 = vmul.f32 %v1348, %v1408
      %v1430 = vmul.f32 %v1353, %v1408
      %v1431 = vmul.f32 %v1358, %v1408
      %v1432 = vmul.f32 %v1363, %v1408
      %v1433 = vmul.f32 %v1368, %v1408
      %v1434 = vmul.f32 %v1373, %v1408
      %v1435 = vmul.f32 %v1378, %v1408
      %v1436 = vmul.f32 %v1383, %v1408
      %v1437 = vmul.f32 %v1388, %v1408
      %v1438 = vmul.f32 %v1393, %v1408
      %v1439 = vmul.f32 %v1398, %v1408
      %v1440 = vmul.f32 %v1403, %v1408
      %v1441 = vadd.f32 %v1212, %v1409
      %v1442 = vadd.f32 %v1213, %v1410
      %v1443 = vadd.f32 %v1214, %v1411
      %v1444 = vadd.f32 %v1215, %v1412
      %v1445 = vadd.f32 %v1216, %v1413
      %v1446 = vadd.f32 %v1217, %v1414
      %v1447 = vadd.f32 %v1218, %v1415
      %v1448 = vadd.f32 %v1219, %v1416
      %v1449 = vadd.f32 %v1220, %v1417
      %v1450 = vadd.f32 %v1221, %v1418
      %v1451 = vadd.f32 %v1222, %v1419
      %v1452 = vadd.f32 %v1223, %v1420
      %v1453 = vadd.f32 %v1224, %v1421
      %v1454 = vadd.f32 %v1225, %v1422
      %v1455 = vadd.f32 %v1226, %v1423
      %v1456 = vadd.f32 %v1227, %v1424
      %v1457 = vadd.f32 %v1228, %v1425
      %v1458 = vadd.f32 %v1229, %v1426
      %v1459 = vadd.f32 %v1230, %v1427
      %v1460 = vadd.f32 %v1231, %v1428
      %v1461 = vadd.f32 %v1232, %v1429
      %v1462 = vadd.f32 %v1233, %v1430
      %v1463 = vadd.f32 %v1234, %v1431
      %v1464 = vadd.f32 %v1235, %v1432
      %v1465 = vadd.f32 %v1236, %v1433
      %v1466 = vadd.f32 %v1237, %v1434
      %v1467 = vadd.f32 %v1238, %v1435
      %v1468 = vadd.f32 %v1239, %v1436
      %v1469 = vadd.f32 %v1240, %v1437
      %v1470 = vadd.f32 %v1241, %v1438
      %v1471 = vadd.f32 %v1242, %v1439
      %v1472 = vadd.f32 %v1243, %v1440
      %v1473 = vld [vmem:[%s3 + $0x1] sm:$0x1]
      %1474 = vset.pattern.permute.xlu0 1
      %1475 = vperm.xlu0 %1474, %v589
      %v1476 = vpop.permute.xlu0 %1475
      %1478 = vset.pattern.permute.xlu0 1
      %1479 = vperm.xlu0 %1478, %v590
      %v1480 = vpop.permute.xlu0 %1479
      %1482 = vset.pattern.permute.xlu0 1
      %1483 = vperm.xlu0 %1482, %v591
      %v1484 = vpop.permute.xlu0 %1483
      %1486 = vset.pattern.permute.xlu0 1
      %1487 = vperm.xlu0 %1486, %v592
      %v1488 = vpop.permute.xlu0 %1487
      %1490 = vset.pattern.permute.xlu0 1
      %1491 = vperm.xlu0 %1490, %v593
      %v1492 = vpop.permute.xlu0 %1491
      %1494 = vset.pattern.permute.xlu0 1
      %1495 = vperm.xlu0 %1494, %v594
      %v1496 = vpop.permute.xlu0 %1495
      %1498 = vset.pattern.permute.xlu0 1
      %1499 = vperm.xlu0 %1498, %v595
      %v1500 = vpop.permute.xlu0 %1499
      %1502 = vset.pattern.permute.xlu0 1
      %1503 = vperm.xlu0 %1502, %v596
      %v1504 = vpop.permute.xlu0 %1503
      %1506 = vset.pattern.permute.xlu0 1
      %1507 = vperm.xlu0 %1506, %v597
      %v1508 = vpop.permute.xlu0 %1507
      %1510 = vset.pattern.permute.xlu0 1
      %1511 = vperm.xlu0 %1510, %v598
      %v1512 = vpop.permute.xlu0 %1511
      %1514 = vset.pattern.permute.xlu0 1
      %1515 = vperm.xlu0 %1514, %v599
      %v1516 = vpop.permute.xlu0 %1515
      %1518 = vset.pattern.permute.xlu0 1
      %1519 = vperm.xlu0 %1518, %v600
      %v1520 = vpop.permute.xlu0 %1519
      %1522 = vset.pattern.permute.xlu0 1
      %1523 = vperm.xlu0 %1522, %v601
      %v1524 = vpop.permute.xlu0 %1523
      %1526 = vset.pattern.permute.xlu0 1
      %1527 = vperm.xlu0 %1526, %v602
      %v1528 = vpop.permute.xlu0 %1527
      %1530 = vset.pattern.permute.xlu0 1
      %1531 = vperm.xlu0 %1530, %v603
      %v1532 = vpop.permute.xlu0 %1531
      %1534 = vset.pattern.permute.xlu0 1
      %1535 = vperm.xlu0 %1534, %v604
      %v1536 = vpop.permute.xlu0 %1535
      %1538 = vset.pattern.permute.xlu0 1
      %1539 = vperm.xlu0 %1538, %v605
      %v1540 = vpop.permute.xlu0 %1539
      %1542 = vset.pattern.permute.xlu0 1
      %1543 = vperm.xlu0 %1542, %v606
      %v1544 = vpop.permute.xlu0 %1543
      %1546 = vset.pattern.permute.xlu0 1
      %1547 = vperm.xlu0 %1546, %v607
      %v1548 = vpop.permute.xlu0 %1547
      %1550 = vset.pattern.permute.xlu0 1
      %1551 = vperm.xlu0 %1550, %v608
      %v1552 = vpop.permute.xlu0 %1551
      %1554 = vset.pattern.permute.xlu0 1
      %1555 = vperm.xlu0 %1554, %v609
      %v1556 = vpop.permute.xlu0 %1555
      %1558 = vset.pattern.permute.xlu0 1
      %1559 = vperm.xlu0 %1558, %v610
      %v1560 = vpop.permute.xlu0 %1559
      %1562 = vset.pattern.permute.xlu0 1
      %1563 = vperm.xlu0 %1562, %v611
      %v1564 = vpop.permute.xlu0 %1563
      %1566 = vset.pattern.permute.xlu0 1
      %1567 = vperm.xlu0 %1566, %v612
      %v1568 = vpop.permute.xlu0 %1567
      %1570 = vset.pattern.permute.xlu0 1
      %1571 = vperm.xlu0 %1570, %v613
      %v1572 = vpop.permute.xlu0 %1571
      %1574 = vset.pattern.permute.xlu0 1
      %1575 = vperm.xlu0 %1574, %v614
      %v1576 = vpop.permute.xlu0 %1575
      %1578 = vset.pattern.permute.xlu0 1
      %1579 = vperm.xlu0 %1578, %v615
      %v1580 = vpop.permute.xlu0 %1579
      %1582 = vset.pattern.permute.xlu0 1
      %1583 = vperm.xlu0 %1582, %v616
      %v1584 = vpop.permute.xlu0 %1583
      %1586 = vset.pattern.permute.xlu0 1
      %1587 = vperm.xlu0 %1586, %v617
      %v1588 = vpop.permute.xlu0 %1587
      %1590 = vset.pattern.permute.xlu0 1
      %1591 = vperm.xlu0 %1590, %v618
      %v1592 = vpop.permute.xlu0 %1591
      %1594 = vset.pattern.permute.xlu0 1
      %1595 = vperm.xlu0 %1594, %v619
      %v1596 = vpop.permute.xlu0 %1595
      %1598 = vset.pattern.permute.xlu0 1
      %1599 = vperm.xlu0 %1598, %v620
      %v1600 = vpop.permute.xlu0 %1599
      %v1602 = vlaneseq
      %v1603 = vshrl.u32 %v1602, 7
      %v1604 = vsub.s32 0, %v1603
      %v1605 = vrot.slane %v1473, %v1604
      %v1606 = vmul.f32 %v1476, %v1605
      %v1607 = vmul.f32 %v1480, %v1605
      %v1608 = vmul.f32 %v1484, %v1605
      %v1609 = vmul.f32 %v1488, %v1605
      %v1610 = vmul.f32 %v1492, %v1605
      %v1611 = vmul.f32 %v1496, %v1605
      %v1612 = vmul.f32 %v1500, %v1605
      %v1613 = vmul.f32 %v1504, %v1605
      %v1614 = vmul.f32 %v1508, %v1605
      %v1615 = vmul.f32 %v1512, %v1605
      %v1616 = vmul.f32 %v1516, %v1605
      %v1617 = vmul.f32 %v1520, %v1605
      %v1618 = vmul.f32 %v1524, %v1605
      %v1619 = vmul.f32 %v1528, %v1605
      %v1620 = vmul.f32 %v1532, %v1605
      %v1621 = vmul.f32 %v1536, %v1605
      %v1622 = vmul.f32 %v1540, %v1605
      %v1623 = vmul.f32 %v1544, %v1605
      %v1624 = vmul.f32 %v1548, %v1605
      %v1625 = vmul.f32 %v1552, %v1605
      %v1626 = vmul.f32 %v1556, %v1605
      %v1627 = vmul.f32 %v1560, %v1605
      %v1628 = vmul.f32 %v1564, %v1605
      %v1629 = vmul.f32 %v1568, %v1605
      %v1630 = vmul.f32 %v1572, %v1605
      %v1631 = vmul.f32 %v1576, %v1605
      %v1632 = vmul.f32 %v1580, %v1605
      %v1633 = vmul.f32 %v1584, %v1605
      %v1634 = vmul.f32 %v1588, %v1605
      %v1635 = vmul.f32 %v1592, %v1605
      %v1636 = vmul.f32 %v1596, %v1605
      %v1637 = vmul.f32 %v1600, %v1605
      %v1638 = vadd.f32 %v1441, %v1606
      %v1639 = vadd.f32 %v1442, %v1607
      %v1640 = vadd.f32 %v1443, %v1608
      %v1641 = vadd.f32 %v1444, %v1609
      %v1642 = vadd.f32 %v1445, %v1610
      %v1643 = vadd.f32 %v1446, %v1611
      %v1644 = vadd.f32 %v1447, %v1612
      %v1645 = vadd.f32 %v1448, %v1613
      %v1646 = vadd.f32 %v1449, %v1614
      %v1647 = vadd.f32 %v1450, %v1615
      %v1648 = vadd.f32 %v1451, %v1616
      %v1649 = vadd.f32 %v1452, %v1617
      %v1650 = vadd.f32 %v1453, %v1618
      %v1651 = vadd.f32 %v1454, %v1619
      %v1652 = vadd.f32 %v1455, %v1620
      %v1653 = vadd.f32 %v1456, %v1621
      %v1654 = vadd.f32 %v1457, %v1622
      %v1655 = vadd.f32 %v1458, %v1623
      %v1656 = vadd.f32 %v1459, %v1624
      %v1657 = vadd.f32 %v1460, %v1625
      %v1658 = vadd.f32 %v1461, %v1626
      %v1659 = vadd.f32 %v1462, %v1627
      %v1660 = vadd.f32 %v1463, %v1628
      %v1661 = vadd.f32 %v1464, %v1629
      %v1662 = vadd.f32 %v1465, %v1630
      %v1663 = vadd.f32 %v1466, %v1631
      %v1664 = vadd.f32 %v1467, %v1632
      %v1665 = vadd.f32 %v1468, %v1633
      %v1666 = vadd.f32 %v1469, %v1634
      %v1667 = vadd.f32 %v1470, %v1635
      %v1668 = vadd.f32 %v1471, %v1636
      %v1669 = vadd.f32 %v1472, %v1637
      %v1670 = vld [vmem:[%s4] sm:$0x1]
      %v1672 = vlaneseq
      %v1673 = vshrl.u32 %v1672, 7
      %v1674 = vsub.s32 0, %v1673
      %v1675 = vrot.slane %v1670, %v1674
      %v1677 = vadd.f32 %v1638, %v1675
      %v1678 = vadd.f32 %v1639, %v1675
      %v1679 = vadd.f32 %v1640, %v1675
      %v1680 = vadd.f32 %v1641, %v1675
      %v1681 = vadd.f32 %v1642, %v1675
      %v1682 = vadd.f32 %v1643, %v1675
      %v1683 = vadd.f32 %v1644, %v1675
      %v1684 = vadd.f32 %v1645, %v1675
      %v1685 = vadd.f32 %v1646, %v1675
      %v1686 = vadd.f32 %v1647, %v1675
      %v1687 = vadd.f32 %v1648, %v1675
      %v1688 = vadd.f32 %v1649, %v1675
      %v1689 = vadd.f32 %v1650, %v1675
      %v1690 = vadd.f32 %v1651, %v1675
      %v1691 = vadd.f32 %v1652, %v1675
      %v1692 = vadd.f32 %v1653, %v1675
      %v1693 = vadd.f32 %v1654, %v1675
      %v1694 = vadd.f32 %v1655, %v1675
      %v1695 = vadd.f32 %v1656, %v1675
      %v1696 = vadd.f32 %v1657, %v1675
      %v1697 = vadd.f32 %v1658, %v1675
      %v1698 = vadd.f32 %v1659, %v1675
      %v1699 = vadd.f32 %v1660, %v1675
      %v1700 = vadd.f32 %v1661, %v1675
      %v1701 = vadd.f32 %v1662, %v1675
      %v1702 = vadd.f32 %v1663, %v1675
      %v1703 = vadd.f32 %v1664, %v1675
      %v1704 = vadd.f32 %v1665, %v1675
      %v1705 = vadd.f32 %v1666, %v1675
      %v1706 = vadd.f32 %v1667, %v1675
      %v1707 = vadd.f32 %v1668, %v1675
      %v1708 = vadd.f32 %v1669, %v1675
      %v1709 = vmax.f32 %v1677, 0.0
      %v1710 = vmax.f32 %v1678, 0.0
      %v1711 = vmax.f32 %v1679, 0.0
      %v1712 = vmax.f32 %v1680, 0.0
      %v1713 = vmax.f32 %v1681, 0.0
      %v1714 = vmax.f32 %v1682, 0.0
      %v1715 = vmax.f32 %v1683, 0.0
      %v1716 = vmax.f32 %v1684, 0.0
      %v1717 = vmax.f32 %v1685, 0.0
      %v1718 = vmax.f32 %v1686, 0.0
      %v1719 = vmax.f32 %v1687, 0.0
      %v1720 = vmax.f32 %v1688, 0.0
      %v1721 = vmax.f32 %v1689, 0.0
      %v1722 = vmax.f32 %v1690, 0.0
      %v1723 = vmax.f32 %v1691, 0.0
      %v1724 = vmax.f32 %v1692, 0.0
      %v1725 = vmax.f32 %v1693, 0.0
      %v1726 = vmax.f32 %v1694, 0.0
      %v1727 = vmax.f32 %v1695, 0.0
      %v1728 = vmax.f32 %v1696, 0.0
      %v1729 = vmax.f32 %v1697, 0.0
      %v1730 = vmax.f32 %v1698, 0.0
      %v1731 = vmax.f32 %v1699, 0.0
      %v1732 = vmax.f32 %v1700, 0.0
      %v1733 = vmax.f32 %v1701, 0.0
      %v1734 = vmax.f32 %v1702, 0.0
      %v1735 = vmax.f32 %v1703, 0.0
      %v1736 = vmax.f32 %v1704, 0.0
      %v1737 = vmax.f32 %v1705, 0.0
      %v1738 = vmax.f32 %v1706, 0.0
      %v1739 = vmax.f32 %v1707, 0.0
      %v1740 = vmax.f32 %v1708, 0.0
      %s1741 = scalar_lea.vmem [#allocation2], 72
      %1742 = vst.msk [vmem:[%s1741 + $0x3] sm:$0xff] %vm489, %v1709
      %1743 = vst.msk [vmem:[%s1741 + $0xb] sm:$0xff] %vm489, %v1710
      %1744 = vst.msk [vmem:[%s1741 + $0x1b] sm:$0xff] %vm489, %v1711
      %1745 = vst.msk [vmem:[%s1741 + $0x23] sm:$0xff] %vm489, %v1712
      %1746 = vst.msk [vmem:[%s1741 + $0x33] sm:$0xff] %vm489, %v1713
      %1747 = vst.msk [vmem:[%s1741 + $0x3b] sm:$0xff] %vm489, %v1714
      %1748 = vst.msk [vmem:[%s1741 + $0x4b] sm:$0xff] %vm489, %v1715
      %1749 = vst.msk [vmem:[%s1741 + $0x53] sm:$0xff] %vm489, %v1716
      %1750 = vst.msk [vmem:[%s1741 + $0x63] sm:$0xff] %vm489, %v1717
      %1751 = vst.msk [vmem:[%s1741 + $0x6b] sm:$0xff] %vm489, %v1718
      %1752 = vst.msk [vmem:[%s1741 + $0x7b] sm:$0xff] %vm489, %v1719
      %1753 = vst.msk [vmem:[%s1741 + $0x83] sm:$0xff] %vm489, %v1720
      %1754 = vst.msk [vmem:[%s1741 + $0x93] sm:$0xff] %vm489, %v1721
      %1755 = vst.msk [vmem:[%s1741 + $0x9b] sm:$0xff] %vm489, %v1722
      %1756 = vst.msk [vmem:[%s1741 + $0xab] sm:$0xff] %vm489, %v1723
      %1757 = vst.msk [vmem:[%s1741 + $0xb3] sm:$0xff] %vm489, %v1724
      %1758 = vst.msk [vmem:[%s1741 + $0xc3] sm:$0xff] %vm489, %v1725
      %1759 = vst.msk [vmem:[%s1741 + $0xcb] sm:$0xff] %vm489, %v1726
      %1760 = vst.msk [vmem:[%s1741 + $0xdb] sm:$0xff] %vm489, %v1727
      %1761 = vst.msk [vmem:[%s1741 + $0xe3] sm:$0xff] %vm489, %v1728
      %1762 = vst.msk [vmem:[%s1741 + $0xf3] sm:$0xff] %vm489, %v1729
      %1763 = vst.msk [vmem:[%s1741 + $0xfb] sm:$0xff] %vm489, %v1730
      %1764 = vst.msk [vmem:[%s1741 + $0x10b] sm:$0xff] %vm489, %v1731
      %1765 = vst.msk [vmem:[%s1741 + $0x113] sm:$0xff] %vm489, %v1732
      %1766 = vst.msk [vmem:[%s1741 + $0x123] sm:$0xff] %vm489, %v1733
      %1767 = vst.msk [vmem:[%s1741 + $0x12b] sm:$0xff] %vm489, %v1734
      %1768 = vst.msk [vmem:[%s1741 + $0x13b] sm:$0xff] %vm489, %v1735
      %1769 = vst.msk [vmem:[%s1741 + $0x143] sm:$0xff] %vm489, %v1736
      %1770 = vst.msk [vmem:[%s1741 + $0x153] sm:$0xff] %vm489, %v1737
      %1771 = vst.msk [vmem:[%s1741 + $0x15b] sm:$0xff] %vm489, %v1738
      %1772 = vst.msk [vmem:[%s1741 + $0x16b] sm:$0xff] %vm489, %v1739
      %1773 = vst.msk [vmem:[%s1741 + $0x173] sm:$0xff] %vm489, %v1740
      %s1774 = scalar_lea.vmem [#allocation2], 48
      %v1775 = vld [vmem:[%s1774 + $0x2] sm:$0xff]
      %v1776 = vld [vmem:[%s1774 + $0xa] sm:$0xff]
      %v1777 = vld [vmem:[%s1774 + $0x12] sm:$0x3]
      %v1778 = vld [vmem:[%s1774 + $0x1a] sm:$0xff]
      %v1779 = vld [vmem:[%s1774 + $0x22] sm:$0xff]
      %v1780 = vld [vmem:[%s1774 + $0x2a] sm:$0x3]
      %v1781 = vld [vmem:[%s1774 + $0x32] sm:$0xff]
      %v1782 = vld [vmem:[%s1774 + $0x3a] sm:$0xff]
      %v1783 = vld [vmem:[%s1774 + $0x42] sm:$0x3]
      %v1784 = vld [vmem:[%s1774 + $0x4a] sm:$0xff]
      %v1785 = vld [vmem:[%s1774 + $0x52] sm:$0xff]
      %v1786 = vld [vmem:[%s1774 + $0x5a] sm:$0x3]
      %v1787 = vld [vmem:[%s1774 + $0x62] sm:$0xff]
      %v1788 = vld [vmem:[%s1774 + $0x6a] sm:$0xff]
      %v1789 = vld [vmem:[%s1774 + $0x72] sm:$0x3]
      %v1790 = vld [vmem:[%s1774 + $0x7a] sm:$0xff]
      %v1791 = vld [vmem:[%s1774 + $0x82] sm:$0xff]
      %v1792 = vld [vmem:[%s1774 + $0x8a] sm:$0x3]
      %v1793 = vld [vmem:[%s1774 + $0x92] sm:$0xff]
      %v1794 = vld [vmem:[%s1774 + $0x9a] sm:$0xff]
      %v1795 = vld [vmem:[%s1774 + $0xa2] sm:$0x3]
      %v1796 = vld [vmem:[%s1774 + $0xaa] sm:$0xff]
      %v1797 = vld [vmem:[%s1774 + $0xb2] sm:$0xff]
      %v1798 = vld [vmem:[%s1774 + $0xba] sm:$0x3]
      %v1799 = vld [vmem:[%s1774 + $0xc2] sm:$0xff]
      %v1800 = vld [vmem:[%s1774 + $0xca] sm:$0xff]
      %v1801 = vld [vmem:[%s1774 + $0xd2] sm:$0x3]
      %v1802 = vld [vmem:[%s1774 + $0xda] sm:$0xff]
      %v1803 = vld [vmem:[%s1774 + $0xe2] sm:$0xff]
      %v1804 = vld [vmem:[%s1774 + $0xea] sm:$0x3]
      %v1805 = vld [vmem:[%s1774 + $0xf2] sm:$0xff]
      %v1806 = vld [vmem:[%s1774 + $0xfa] sm:$0xff]
      %v1807 = vld [vmem:[%s1774 + $0x102] sm:$0x3]
      %v1808 = vld [vmem:[%s1774 + $0x10a] sm:$0xff]
      %v1809 = vld [vmem:[%s1774 + $0x112] sm:$0xff]
      %v1810 = vld [vmem:[%s1774 + $0x11a] sm:$0x3]
      %v1811 = vld [vmem:[%s1774 + $0x122] sm:$0xff]
      %v1812 = vld [vmem:[%s1774 + $0x12a] sm:$0xff]
      %v1813 = vld [vmem:[%s1774 + $0x132] sm:$0x3]
      %v1814 = vld [vmem:[%s1774 + $0x13a] sm:$0xff]
      %v1815 = vld [vmem:[%s1774 + $0x142] sm:$0xff]
      %v1816 = vld [vmem:[%s1774 + $0x14a] sm:$0x3]
      %v1817 = vld [vmem:[%s1774 + $0x152] sm:$0xff]
      %v1818 = vld [vmem:[%s1774 + $0x15a] sm:$0xff]
      %v1819 = vld [vmem:[%s1774 + $0x162] sm:$0x3]
      %v1820 = vld [vmem:[%s1774 + $0x16a] sm:$0xff]
      %v1821 = vld [vmem:[%s1774 + $0x172] sm:$0xff]
      %v1822 = vld [vmem:[%s1774 + $0x17a] sm:$0x3]
      %v1823 = vld [vmem:[%s1774 + $0x182] sm:$0xff]
      %v1824 = vld [vmem:[%s1774 + $0x18a] sm:$0xff]
      %v1825 = vld [vmem:[%s1774 + $0x192] sm:$0x3]
      %v1826 = vld [vmem:[%s1774 + $0x19a] sm:$0xff]
      %v1827 = vld [vmem:[%s1774 + $0x1a2] sm:$0xff]
      %v1828 = vld [vmem:[%s1774 + $0x1aa] sm:$0x3]
      %v1829 = vpack.c.bf16 %v1776, %v1775
      %v1830 = vpack.c.bf16 %v1777, %v1777
      %v1831 = vpack.c.bf16 %v1779, %v1778
      %v1832 = vpack.c.bf16 %v1780, %v1780
      %v1833 = vpack.c.bf16 %v1782, %v1781
      %v1834 = vpack.c.bf16 %v1783, %v1783
      %v1835 = vpack.c.bf16 %v1785, %v1784
      %v1836 = vpack.c.bf16 %v1786, %v1786
      %v1837 = vpack.c.bf16 %v1788, %v1787
      %v1838 = vpack.c.bf16 %v1789, %v1789
      %v1839 = vpack.c.bf16 %v1791, %v1790
      %v1840 = vpack.c.bf16 %v1792, %v1792
      %v1841 = vpack.c.bf16 %v1794, %v1793
      %v1842 = vpack.c.bf16 %v1795, %v1795
      %v1843 = vpack.c.bf16 %v1797, %v1796
      %v1844 = vpack.c.bf16 %v1798, %v1798
      %v1845 = vpack.c.bf16 %v1800, %v1799
      %v1846 = vpack.c.bf16 %v1801, %v1801
      %v1847 = vpack.c.bf16 %v1803, %v1802
      %v1848 = vpack.c.bf16 %v1804, %v1804
      %v1849 = vpack.c.bf16 %v1806, %v1805
      %v1850 = vpack.c.bf16 %v1807, %v1807
      %v1851 = vpack.c.bf16 %v1809, %v1808
      %v1852 = vpack.c.bf16 %v1810, %v1810
      %v1853 = vpack.c.bf16 %v1812, %v1811
      %v1854 = vpack.c.bf16 %v1813, %v1813
      %v1855 = vpack.c.bf16 %v1815, %v1814
      %v1856 = vpack.c.bf16 %v1816, %v1816
      %v1857 = vpack.c.bf16 %v1818, %v1817
      %v1858 = vpack.c.bf16 %v1819, %v1819
      %v1859 = vpack.c.bf16 %v1821, %v1820
      %v1860 = vpack.c.bf16 %v1822, %v1822
      %v1861 = vpack.c.bf16 %v1824, %v1823
      %v1862 = vpack.c.bf16 %v1825, %v1825
      %v1863 = vpack.c.bf16 %v1827, %v1826
      %v1864 = vpack.c.bf16 %v1828, %v1828
      %vm1865 = vsmask.f32 7424
      %v1867 = vshrl.u32 %v1829, 16
      %v1869 = vshll.u32 %v1829, 16
      %v1871 = vrot.slane %v1869, 1
      %v1872 = vor.u32 %v1867, %v1871
      %v1874 = vshll.u32 %v1830, 16
      %v1876 = vrot.slane %v1874, 1
      %v1877 = vsel %vm1865, %v1872, %v1876
      %v1879 = vshrl.u32 %v1831, 16
      %v1881 = vshll.u32 %v1831, 16
      %v1883 = vrot.slane %v1881, 1
      %v1884 = vor.u32 %v1879, %v1883
      %v1886 = vshll.u32 %v1832, 16
      %v1888 = vrot.slane %v1886, 1
      %v1889 = vsel %vm1865, %v1884, %v1888
      %v1891 = vshrl.u32 %v1833, 16
      %v1893 = vshll.u32 %v1833, 16
      %v1895 = vrot.slane %v1893, 1
      %v1896 = vor.u32 %v1891, %v1895
      %v1898 = vshll.u32 %v1834, 16
      %v1900 = vrot.slane %v1898, 1
      %v1901 = vsel %vm1865, %v1896, %v1900
      %v1903 = vshrl.u32 %v1835, 16
      %v1905 = vshll.u32 %v1835, 16
      %v1907 = vrot.slane %v1905, 1
      %v1908 = vor.u32 %v1903, %v1907
      %v1910 = vshll.u32 %v1836, 16
      %v1912 = vrot.slane %v1910, 1
      %v1913 = vsel %vm1865, %v1908, %v1912
      %v1915 = vshrl.u32 %v1837, 16
      %v1917 = vshll.u32 %v1837, 16
      %v1919 = vrot.slane %v1917, 1
      %v1920 = vor.u32 %v1915, %v1919
      %v1922 = vshll.u32 %v1838, 16
      %v1924 = vrot.slane %v1922, 1
      %v1925 = vsel %vm1865, %v1920, %v1924
      %v1927 = vshrl.u32 %v1839, 16
      %v1929 = vshll.u32 %v1839, 16
      %v1931 = vrot.slane %v1929, 1
      %v1932 = vor.u32 %v1927, %v1931
      %v1934 = vshll.u32 %v1840, 16
      %v1936 = vrot.slane %v1934, 1
      %v1937 = vsel %vm1865, %v1932, %v1936
      %v1939 = vshrl.u32 %v1841, 16
      %v1941 = vshll.u32 %v1841, 16
      %v1943 = vrot.slane %v1941, 1
      %v1944 = vor.u32 %v1939, %v1943
      %v1946 = vshll.u32 %v1842, 16
      %v1948 = vrot.slane %v1946, 1
      %v1949 = vsel %vm1865, %v1944, %v1948
      %v1951 = vshrl.u32 %v1843, 16
      %v1953 = vshll.u32 %v1843, 16
      %v1955 = vrot.slane %v1953, 1
      %v1956 = vor.u32 %v1951, %v1955
      %v1958 = vshll.u32 %v1844, 16
      %v1960 = vrot.slane %v1958, 1
      %v1961 = vsel %vm1865, %v1956, %v1960
      %v1963 = vshrl.u32 %v1845, 16
      %v1965 = vshll.u32 %v1845, 16
      %v1967 = vrot.slane %v1965, 1
      %v1968 = vor.u32 %v1963, %v1967
      %v1970 = vshll.u32 %v1846, 16
      %v1972 = vrot.slane %v1970, 1
      %v1973 = vsel %vm1865, %v1968, %v1972
      %v1975 = vshrl.u32 %v1847, 16
      %v1977 = vshll.u32 %v1847, 16
      %v1979 = vrot.slane %v1977, 1
      %v1980 = vor.u32 %v1975, %v1979
      %v1982 = vshll.u32 %v1848, 16
      %v1984 = vrot.slane %v1982, 1
      %v1985 = vsel %vm1865, %v1980, %v1984
      %v1987 = vshrl.u32 %v1849, 16
      %v1989 = vshll.u32 %v1849, 16
      %v1991 = vrot.slane %v1989, 1
      %v1992 = vor.u32 %v1987, %v1991
      %v1994 = vshll.u32 %v1850, 16
      %v1996 = vrot.slane %v1994, 1
      %v1997 = vsel %vm1865, %v1992, %v1996
      %v1999 = vshrl.u32 %v1851, 16
      %v2001 = vshll.u32 %v1851, 16
      %v2003 = vrot.slane %v2001, 1
      %v2004 = vor.u32 %v1999, %v2003
      %v2006 = vshll.u32 %v1852, 16
      %v2008 = vrot.slane %v2006, 1
      %v2009 = vsel %vm1865, %v2004, %v2008
      %v2011 = vshrl.u32 %v1853, 16
      %v2013 = vshll.u32 %v1853, 16
      %v2015 = vrot.slane %v2013, 1
      %v2016 = vor.u32 %v2011, %v2015
      %v2018 = vshll.u32 %v1854, 16
      %v2020 = vrot.slane %v2018, 1
      %v2021 = vsel %vm1865, %v2016, %v2020
      %v2023 = vshrl.u32 %v1855, 16
      %v2025 = vshll.u32 %v1855, 16
      %v2027 = vrot.slane %v2025, 1
      %v2028 = vor.u32 %v2023, %v2027
      %v2030 = vshll.u32 %v1856, 16
      %v2032 = vrot.slane %v2030, 1
      %v2033 = vsel %vm1865, %v2028, %v2032
      %v2035 = vshrl.u32 %v1857, 16
      %v2037 = vshll.u32 %v1857, 16
      %v2039 = vrot.slane %v2037, 1
      %v2040 = vor.u32 %v2035, %v2039
      %v2042 = vshll.u32 %v1858, 16
      %v2044 = vrot.slane %v2042, 1
      %v2045 = vsel %vm1865, %v2040, %v2044
      %v2047 = vshrl.u32 %v1859, 16
      %v2049 = vshll.u32 %v1859, 16
      %v2051 = vrot.slane %v2049, 1
      %v2052 = vor.u32 %v2047, %v2051
      %v2054 = vshll.u32 %v1860, 16
      %v2056 = vrot.slane %v2054, 1
      %v2057 = vsel %vm1865, %v2052, %v2056
      %2058 = vrot.lane.b32.xlu0 %v1877, 32
      %v2059 = vpop.permute.xlu0 %2058
      %2060 = vrot.lane.b32.xlu0 %v1889, 32
      %v2061 = vpop.permute.xlu0 %2060
      %2062 = vrot.lane.b32.xlu0 %v1901, 32
      %v2063 = vpop.permute.xlu0 %2062
      %2064 = vrot.lane.b32.xlu0 %v1913, 32
      %v2065 = vpop.permute.xlu0 %2064
      %2066 = vrot.lane.b32.xlu0 %v1925, 32
      %v2067 = vpop.permute.xlu0 %2066
      %2068 = vrot.lane.b32.xlu0 %v1937, 32
      %v2069 = vpop.permute.xlu0 %2068
      %2070 = vrot.lane.b32.xlu0 %v1949, 32
      %v2071 = vpop.permute.xlu0 %2070
      %2072 = vrot.lane.b32.xlu0 %v1961, 32
      %v2073 = vpop.permute.xlu0 %2072
      %2074 = vrot.lane.b32.xlu0 %v1973, 32
      %v2075 = vpop.permute.xlu0 %2074
      %2076 = vrot.lane.b32.xlu0 %v1985, 32
      %v2077 = vpop.permute.xlu0 %2076
      %2078 = vrot.lane.b32.xlu0 %v1997, 32
      %v2079 = vpop.permute.xlu0 %2078
      %2080 = vrot.lane.b32.xlu0 %v2009, 32
      %v2081 = vpop.permute.xlu0 %2080
      %2082 = vrot.lane.b32.xlu0 %v2021, 32
      %v2083 = vpop.permute.xlu0 %2082
      %2084 = vrot.lane.b32.xlu0 %v2033, 32
      %v2085 = vpop.permute.xlu0 %2084
      %2086 = vrot.lane.b32.xlu0 %v2045, 32
      %v2087 = vpop.permute.xlu0 %2086
      %2088 = vrot.lane.b32.xlu0 %v2057, 32
      %v2089 = vpop.permute.xlu0 %2088
      %vm2122 = vcmask 1046528
      %v2123 = vrot.slane %v1829, 1
      %v2124 = vrot.slane %v1830, 1
      %v2125 = vsel %vm2122, %v2123, %v2124
      %v2126 = vrot.slane %v1831, 1
      %v2127 = vrot.slane %v1832, 1
      %v2128 = vsel %vm2122, %v2126, %v2127
      %v2129 = vrot.slane %v1833, 1
      %v2130 = vrot.slane %v1834, 1
      %v2131 = vsel %vm2122, %v2129, %v2130
      %v2132 = vrot.slane %v1835, 1
      %v2133 = vrot.slane %v1836, 1
      %v2134 = vsel %vm2122, %v2132, %v2133
      %v2135 = vrot.slane %v1837, 1
      %v2136 = vrot.slane %v1838, 1
      %v2137 = vsel %vm2122, %v2135, %v2136
      %v2138 = vrot.slane %v1839, 1
      %v2139 = vrot.slane %v1840, 1
      %v2140 = vsel %vm2122, %v2138, %v2139
      %v2141 = vrot.slane %v1841, 1
      %v2142 = vrot.slane %v1842, 1
      %v2143 = vsel %vm2122, %v2141, %v2142
      %v2144 = vrot.slane %v1843, 1
      %v2145 = vrot.slane %v1844, 1
      %v2146 = vsel %vm2122, %v2144, %v2145
      %v2147 = vrot.slane %v1845, 1
      %v2148 = vrot.slane %v1846, 1
      %v2149 = vsel %vm2122, %v2147, %v2148
      %v2150 = vrot.slane %v1847, 1
      %v2151 = vrot.slane %v1848, 1
      %v2152 = vsel %vm2122, %v2150, %v2151
      %v2153 = vrot.slane %v1849, 1
      %v2154 = vrot.slane %v1850, 1
      %v2155 = vsel %vm2122, %v2153, %v2154
      %v2156 = vrot.slane %v1851, 1
      %v2157 = vrot.slane %v1852, 1
      %v2158 = vsel %vm2122, %v2156, %v2157
      %v2159 = vrot.slane %v1853, 1
      %v2160 = vrot.slane %v1854, 1
      %v2161 = vsel %vm2122, %v2159, %v2160
      %v2162 = vrot.slane %v1855, 1
      %v2163 = vrot.slane %v1856, 1
      %v2164 = vsel %vm2122, %v2162, %v2163
      %v2165 = vrot.slane %v1857, 1
      %v2166 = vrot.slane %v1858, 1
      %v2167 = vsel %vm2122, %v2165, %v2166
      %v2168 = vrot.slane %v1859, 1
      %v2169 = vrot.slane %v1860, 1
      %v2170 = vsel %vm2122, %v2168, %v2169
      %2171 = vrot.lane.b32.xlu0 %v2125, 64
      %v2172 = vpop.permute.xlu0 %2171
      %2173 = vrot.lane.b32.xlu0 %v2128, 64
      %v2174 = vpop.permute.xlu0 %2173
      %2175 = vrot.lane.b32.xlu0 %v2131, 64
      %v2176 = vpop.permute.xlu0 %2175
      %2177 = vrot.lane.b32.xlu0 %v2134, 64
      %v2178 = vpop.permute.xlu0 %2177
      %2179 = vrot.lane.b32.xlu0 %v2137, 64
      %v2180 = vpop.permute.xlu0 %2179
      %2181 = vrot.lane.b32.xlu0 %v2140, 64
      %v2182 = vpop.permute.xlu0 %2181
      %2183 = vrot.lane.b32.xlu0 %v2143, 64
      %v2184 = vpop.permute.xlu0 %2183
      %2185 = vrot.lane.b32.xlu0 %v2146, 64
      %v2186 = vpop.permute.xlu0 %2185
      %2187 = vrot.lane.b32.xlu0 %v2149, 64
      %v2188 = vpop.permute.xlu0 %2187
      %2189 = vrot.lane.b32.xlu0 %v2152, 64
      %v2190 = vpop.permute.xlu0 %2189
      %2191 = vrot.lane.b32.xlu0 %v2155, 64
      %v2192 = vpop.permute.xlu0 %2191
      %2193 = vrot.lane.b32.xlu0 %v2158, 64
      %v2194 = vpop.permute.xlu0 %2193
      %2195 = vrot.lane.b32.xlu0 %v2161, 64
      %v2196 = vpop.permute.xlu0 %2195
      %2197 = vrot.lane.b32.xlu0 %v2164, 64
      %v2198 = vpop.permute.xlu0 %2197
      %2199 = vrot.lane.b32.xlu0 %v2167, 64
      %v2200 = vpop.permute.xlu0 %2199
      %2201 = vrot.lane.b32.xlu0 %v2170, 64
      %v2202 = vpop.permute.xlu0 %2201
      %v2204 = vsel %vm489, %v1829, %v2059
      %v2206 = vsel %vm489, %v1831, %v2061
      %v2208 = vsel %vm489, %v1833, %v2063
      %v2210 = vsel %vm489, %v1835, %v2065
      %v2212 = vsel %vm489, %v1837, %v2067
      %v2214 = vsel %vm489, %v1839, %v2069
      %v2216 = vsel %vm489, %v1841, %v2071
      %v2218 = vsel %vm489, %v1843, %v2073
      %v2220 = vsel %vm489, %v1845, %v2075
      %v2222 = vsel %vm489, %v1847, %v2077
      %v2224 = vsel %vm489, %v1849, %v2079
      %v2226 = vsel %vm489, %v1851, %v2081
      %v2228 = vsel %vm489, %v1853, %v2083
      %v2230 = vsel %vm489, %v1855, %v2085
      %v2232 = vsel %vm489, %v1857, %v2087
      %v2234 = vsel %vm489, %v1859, %v2089
      %vm2235 = vcmask 523264
      %v2237 = vsel %vm2235, %v2204, %v2172
      %v2239 = vsel %vm2235, %v2206, %v2174
      %v2241 = vsel %vm2235, %v2208, %v2176
      %v2243 = vsel %vm2235, %v2210, %v2178
      %v2245 = vsel %vm2235, %v2212, %v2180
      %v2247 = vsel %vm2235, %v2214, %v2182
      %v2249 = vsel %vm2235, %v2216, %v2184
      %v2251 = vsel %vm2235, %v2218, %v2186
      %v2253 = vsel %vm2235, %v2220, %v2188
      %v2255 = vsel %vm2235, %v2222, %v2190
      %v2257 = vsel %vm2235, %v2224, %v2192
      %v2259 = vsel %vm2235, %v2226, %v2194
      %v2261 = vsel %vm2235, %v2228, %v2196
      %v2263 = vsel %vm2235, %v2230, %v2198
      %v2265 = vsel %vm2235, %v2232, %v2200
      %v2267 = vsel %vm2235, %v2234, %v2202
      %v2268 = vld [vmem:[%s5] sm:$0xf]
      %v2269 = vld [vmem:[%s5 + $0x4] sm:$0xf]
      %v2270 = vld [vmem:[%s5 + $0x8] sm:$0xf]
      %v2271 = vld [vmem:[%s5 + $0xc] sm:$0xf]
      %v2272 = vld [vmem:[%s5 + $0x10] sm:$0xf]
      %v2273 = vld [vmem:[%s5 + $0x14] sm:$0xf]
      %v2274 = vld [vmem:[%s5 + $0x18] sm:$0xf]
      %v2275 = vld [vmem:[%s5 + $0x1c] sm:$0xf]
      %v2276 = vld [vmem:[%s5 + $0x20] sm:$0xf]
      %v2277 = vld [vmem:[%s5 + $0x24] sm:$0xf]
      %v2278 = vld [vmem:[%s5 + $0x28] sm:$0xf]
      %v2279 = vld [vmem:[%s5 + $0x2c] sm:$0xf]
      %v2281 = vshrl.u32 %v1861, 16
      %v2283 = vshll.u32 %v1861, 16
      %v2285 = vrot.slane %v2283, 1
      %v2286 = vor.u32 %v2281, %v2285
      %v2288 = vshll.u32 %v1862, 16
      %v2290 = vrot.slane %v2288, 1
      %v2291 = vsel %vm1865, %v2286, %v2290
      %2292 = vrot.lane.b32.xlu0 %v2291, 32
      %v2293 = vpop.permute.xlu0 %2292
      %v2296 = vrot.slane %v1861, 1
      %v2297 = vrot.slane %v1862, 1
      %v2298 = vsel %vm2122, %v2296, %v2297
      %2299 = vrot.lane.b32.xlu0 %v2298, 64
      %v2300 = vpop.permute.xlu0 %2299
      %v2302 = vsel %vm489, %v1861, %v2293
      %v2304 = vsel %vm2235, %v2302, %v2300
      %v2305 = vld [vmem:[%s5 + $0x30] sm:$0xf]
      %v2306 = vld [vmem:[%s5 + $0x34] sm:$0xf]
      %v2307 = vld [vmem:[%s5 + $0x38] sm:$0xf]
      %v2308 = vld [vmem:[%s5 + $0x3c] sm:$0xf]
      %v2309 = vld [vmem:[%s5 + $0x40] sm:$0xf]
      %v2310 = vld [vmem:[%s5 + $0x44] sm:$0xf]
      %v2311 = vld [vmem:[%s5 + $0x48] sm:$0xf]
      %v2312 = vld [vmem:[%s5 + $0x4c] sm:$0xf]
      %v2313 = vld [vmem:[%s5 + $0x50] sm:$0xf]
      %v2314 = vld [vmem:[%s5 + $0x54] sm:$0xf]
      %v2315 = vld [vmem:[%s5 + $0x58] sm:$0xf]
      %v2316 = vld [vmem:[%s5 + $0x5c] sm:$0xf]
      %v2329 = vunpack.c.l.b16 %v2305
      %v2330 = vunpack.c.l.b16 %v2306
      %v2331 = vunpack.c.l.b16 %v2307
      %v2332 = vunpack.c.l.b16 %v2308
      %v2333 = vunpack.c.l.b16 %v2309
      %v2334 = vunpack.c.l.b16 %v2310
      %v2335 = vunpack.c.l.b16 %v2311
      %v2336 = vunpack.c.l.b16 %v2312
      %v2337 = vunpack.c.l.b16 %v2313
      %v2338 = vunpack.c.l.b16 %v2314
      %v2339 = vunpack.c.l.b16 %v2315
      %v2340 = vunpack.c.l.b16 %v2316
      %v2341 = vpack.c.b16 %v2330, %v2329
      %v2342 = vpack.c.b16 %v2332, %v2331
      %v2343 = vpack.c.b16 %v2334, %v2333
      %v2344 = vpack.c.b16 %v2336, %v2335
      %v2345 = vpack.c.b16 %v2338, %v2337
      %v2346 = vpack.c.b16 %v2340, %v2339
      %vm2353 = vcmask 785408
      %v2354 = vsel %vm2353, %v2239, 0
      %v2356 = vsel %vm2353, %v2241, 0
      %v2358 = vsel %vm2353, %v2243, 0
      %v2360 = vsel %vm2353, %v2245, 0
      %v2362 = vsel %vm2353, %v2247, 0
      %v2364 = vsel %vm2353, %v2249, 0
      %v2366 = vsel %vm2353, %v2251, 0
      %v2368 = vsel %vm2353, %v2253, 0
      %v2370 = vsel %vm2353, %v2255, 0
      %v2372 = vsel %vm2353, %v2257, 0
      %v2374 = vsel %vm2353, %v2259, 0
      %v2376 = vsel %vm2353, %v2261, 0
      %v2378 = vsel %vm2353, %v2263, 0
      %v2380 = vsel %vm2353, %v2265, 0
      %v2382 = vsel %vm2353, %v2267, 0
      %v2384 = vsel %vm2353, %v2304, 0
      %2386 = vmatprep.subr.bf16.mxu0 0
      %2387 = vmatpush1.bf16.msra.mxu0 0
      %2388 = vmatprep.subr.bf16.mxu0 0
      %2389 = vmatpush1.bf16.msra.mxu0 0
      %2390 = vmatprep.subr.bf16.mxu0 0
      %2391 = vmatpush1.bf16.msra.mxu0 %v2346
      %2392 = vmatprep.subr.bf16.mxu0 0
      %2393 = vmatpush1.bf16.msra.mxu0 %v2345
      %2394 = vmatprep.subr.bf16.mxu0 0
      %2395 = vmatpush1.bf16.msra.mxu0 %v2344
      %2396 = vmatprep.subr.bf16.mxu0 0
      %2397 = vmatpush1.bf16.msra.mxu0 %v2343
      %2398 = vmatprep.subr.bf16.mxu0 0
      %2399 = vmatpush1.bf16.msra.mxu0 %v2342
      %2400 = vmatprep.subr.bf16.mxu0 0
      %2401 = vmatpush1.bf16.msra.mxu0 %v2341
      %2402 = vmatprep.subr.bf16.mxu0 0
      %2403 = vmatpush2.bf16.msra.mxu0 0
      %2404 = vmatprep.subr.bf16.mxu0 0
      %2405 = vmatpush2.bf16.msra.mxu0 0
      %2406 = vmatprep.subr.bf16.mxu0 0
      %2407 = vmatpush2.bf16.msra.mxu0 0
      %2408 = vmatprep.subr.bf16.mxu0 0
      %2409 = vmatpush2.bf16.msra.mxu0 0
      %2410 = vmatprep.subr.bf16.mxu0 0
      %2411 = vmatpush2.bf16.msra.mxu0 0
      %2412 = vmatprep.subr.bf16.mxu0 0
      %2413 = vmatpush2.bf16.msra.mxu0 0
      %2414 = vmatprep.subr.bf16.mxu0 0
      %2415 = vmatpush2.bf16.msra.mxu0 0
      %2416 = vmatprep.subr.bf16.mxu0 0
      %2417 = vmatpush2.bf16.msra.mxu0 0
      %2418 = vmatprep.mubr.bf16.mxu0 0
      %2419 = vmatmul.mubr.bf16.gmra.mxu0 %v2354
      %v2420 = vpop.f32.mrf.mxu0
      %v2421 = vadd.f32 0.0, %v2420
      %v2422 = vpop.f32.mrf.mxu0
      %v2423 = vpop.f32.mrf.mxu0
      %v2424 = vadd.f32 0.0, %v2423
      %v2425 = vpop.f32.mrf.mxu0
      %2426 = vmatprep.mubr.bf16.mxu0 0
      %2427 = vmatmul.mubr.bf16.gmra.mxu0 %v2356
      %v2428 = vpop.f32.mrf.mxu0
      %v2429 = vadd.f32 0.0, %v2428
      %v2430 = vpop.f32.mrf.mxu0
      %v2431 = vpop.f32.mrf.mxu0
      %v2432 = vadd.f32 0.0, %v2431
      %v2433 = vpop.f32.mrf.mxu0
      %2434 = vmatprep.mubr.bf16.mxu0 0
      %2435 = vmatmul.mubr.bf16.gmra.mxu0 %v2358
      %v2436 = vpop.f32.mrf.mxu0
      %v2437 = vadd.f32 0.0, %v2436
      %v2438 = vpop.f32.mrf.mxu0
      %v2439 = vpop.f32.mrf.mxu0
      %v2440 = vadd.f32 0.0, %v2439
      %v2441 = vpop.f32.mrf.mxu0
      %2442 = vmatprep.mubr.bf16.mxu0 0
      %2443 = vmatmul.mubr.bf16.gmra.mxu0 %v2360
      %v2444 = vpop.f32.mrf.mxu0
      %v2445 = vadd.f32 0.0, %v2444
      %v2446 = vpop.f32.mrf.mxu0
      %v2447 = vpop.f32.mrf.mxu0
      %v2448 = vadd.f32 0.0, %v2447
      %v2449 = vpop.f32.mrf.mxu0
      %2450 = vmatprep.mubr.bf16.mxu0 0
      %2451 = vmatmul.mubr.bf16.gmra.mxu0 %v2362
      %v2452 = vpop.f32.mrf.mxu0
      %v2453 = vadd.f32 0.0, %v2452
      %v2454 = vpop.f32.mrf.mxu0
      %v2455 = vpop.f32.mrf.mxu0
      %v2456 = vadd.f32 0.0, %v2455
      %v2457 = vpop.f32.mrf.mxu0
      %2458 = vmatprep.mubr.bf16.mxu0 0
      %2459 = vmatmul.mubr.bf16.gmra.mxu0 %v2364
      %v2460 = vpop.f32.mrf.mxu0
      %v2461 = vadd.f32 0.0, %v2460
      %v2462 = vpop.f32.mrf.mxu0
      %v2463 = vpop.f32.mrf.mxu0
      %v2464 = vadd.f32 0.0, %v2463
      %v2465 = vpop.f32.mrf.mxu0
      %2466 = vmatprep.mubr.bf16.mxu0 0
      %2467 = vmatmul.mubr.bf16.gmra.mxu0 %v2366
      %v2468 = vpop.f32.mrf.mxu0
      %v2469 = vadd.f32 0.0, %v2468
      %v2470 = vpop.f32.mrf.mxu0
      %v2471 = vpop.f32.mrf.mxu0
      %v2472 = vadd.f32 0.0, %v2471
      %v2473 = vpop.f32.mrf.mxu0
      %2474 = vmatprep.mubr.bf16.mxu0 0
      %2475 = vmatmul.mubr.bf16.gmra.mxu0 %v2368
      %v2476 = vpop.f32.mrf.mxu0
      %v2477 = vadd.f32 0.0, %v2476
      %v2478 = vpop.f32.mrf.mxu0
      %v2479 = vpop.f32.mrf.mxu0
      %v2480 = vadd.f32 0.0, %v2479
      %v2481 = vpop.f32.mrf.mxu0
      %2482 = vmatprep.mubr.bf16.mxu0 0
      %2483 = vmatmul.mubr.bf16.gmra.mxu0 %v2370
      %v2484 = vpop.f32.mrf.mxu0
      %v2485 = vadd.f32 0.0, %v2484
      %v2486 = vpop.f32.mrf.mxu0
      %v2487 = vpop.f32.mrf.mxu0
      %v2488 = vadd.f32 0.0, %v2487
      %v2489 = vpop.f32.mrf.mxu0
      %2490 = vmatprep.mubr.bf16.mxu0 0
      %2491 = vmatmul.mubr.bf16.gmra.mxu0 %v2372
      %v2492 = vpop.f32.mrf.mxu0
      %v2493 = vadd.f32 0.0, %v2492
      %v2494 = vpop.f32.mrf.mxu0
      %v2495 = vpop.f32.mrf.mxu0
      %v2496 = vadd.f32 0.0, %v2495
      %v2497 = vpop.f32.mrf.mxu0
      %2498 = vmatprep.mubr.bf16.mxu0 0
      %2499 = vmatmul.mubr.bf16.gmra.mxu0 %v2374
      %v2500 = vpop.f32.mrf.mxu0
      %v2501 = vadd.f32 0.0, %v2500
      %v2502 = vpop.f32.mrf.mxu0
      %v2503 = vpop.f32.mrf.mxu0
      %v2504 = vadd.f32 0.0, %v2503
      %v2505 = vpop.f32.mrf.mxu0
      %2506 = vmatprep.mubr.bf16.mxu0 0
      %2507 = vmatmul.mubr.bf16.gmra.mxu0 %v2376
      %v2508 = vpop.f32.mrf.mxu0
      %v2509 = vadd.f32 0.0, %v2508
      %v2510 = vpop.f32.mrf.mxu0
      %v2511 = vpop.f32.mrf.mxu0
      %v2512 = vadd.f32 0.0, %v2511
      %v2513 = vpop.f32.mrf.mxu0
      %2514 = vmatprep.mubr.bf16.mxu0 0
      %2515 = vmatmul.mubr.bf16.gmra.mxu0 %v2378
      %v2516 = vpop.f32.mrf.mxu0
      %v2517 = vadd.f32 0.0, %v2516
      %v2518 = vpop.f32.mrf.mxu0
      %v2519 = vpop.f32.mrf.mxu0
      %v2520 = vadd.f32 0.0, %v2519
      %v2521 = vpop.f32.mrf.mxu0
      %2522 = vmatprep.mubr.bf16.mxu0 0
      %2523 = vmatmul.mubr.bf16.gmra.mxu0 %v2380
      %v2524 = vpop.f32.mrf.mxu0
      %v2525 = vadd.f32 0.0, %v2524
      %v2526 = vpop.f32.mrf.mxu0
      %v2527 = vpop.f32.mrf.mxu0
      %v2528 = vadd.f32 0.0, %v2527
      %v2529 = vpop.f32.mrf.mxu0
      %2530 = vmatprep.mubr.bf16.mxu0 0
      %2531 = vmatmul.mubr.bf16.gmra.mxu0 %v2382
      %v2532 = vpop.f32.mrf.mxu0
      %v2533 = vadd.f32 0.0, %v2532
      %v2534 = vpop.f32.mrf.mxu0
      %v2535 = vpop.f32.mrf.mxu0
      %v2536 = vadd.f32 0.0, %v2535
      %v2537 = vpop.f32.mrf.mxu0
      %2538 = vmatprep.mubr.bf16.mxu0 0
      %2539 = vmatmul.mubr.bf16.gmra.mxu0 %v2384
      %v2540 = vpop.f32.mrf.mxu0
      %v2541 = vadd.f32 0.0, %v2540
      %v2542 = vpop.f32.mrf.mxu0
      %v2543 = vpop.f32.mrf.mxu0
      %v2544 = vadd.f32 0.0, %v2543
      %v2545 = vpop.f32.mrf.mxu0
      %2546 = vdwg.mxu0
      %v2559 = vunpack.c.l.b16 %v2268
      %v2560 = vunpack.c.l.b16 %v2269
      %v2561 = vunpack.c.l.b16 %v2270
      %v2562 = vunpack.c.l.b16 %v2271
      %v2563 = vunpack.c.l.b16 %v2272
      %v2564 = vunpack.c.l.b16 %v2273
      %v2565 = vunpack.c.l.b16 %v2274
      %v2566 = vunpack.c.l.b16 %v2275
      %v2567 = vunpack.c.l.b16 %v2276
      %v2568 = vunpack.c.l.b16 %v2277
      %v2569 = vunpack.c.l.b16 %v2278
      %v2570 = vunpack.c.l.b16 %v2279
      %v2571 = vpack.c.b16 %v2560, %v2559
      %v2572 = vpack.c.b16 %v2562, %v2561
      %v2573 = vpack.c.b16 %v2564, %v2563
      %v2574 = vpack.c.b16 %v2566, %v2565
      %v2575 = vpack.c.b16 %v2568, %v2567
      %v2576 = vpack.c.b16 %v2570, %v2569
      %v2583 = vsel %vm2353, %v2237, 0
      %2585 = vmatprep.subr.bf16.mxu0 0
      %2586 = vmatpush1.bf16.msra.mxu0 0
      %2587 = vmatprep.subr.bf16.mxu0 0
      %2588 = vmatpush1.bf16.msra.mxu0 0
      %2589 = vmatprep.subr.bf16.mxu0 0
      %2590 = vmatpush1.bf16.msra.mxu0 %v2576
      %2591 = vmatprep.subr.bf16.mxu0 0
      %2592 = vmatpush1.bf16.msra.mxu0 %v2575
      %2593 = vmatprep.subr.bf16.mxu0 0
      %2594 = vmatpush1.bf16.msra.mxu0 %v2574
      %2595 = vmatprep.subr.bf16.mxu0 0
      %2596 = vmatpush1.bf16.msra.mxu0 %v2573
      %2597 = vmatprep.subr.bf16.mxu0 0
      %2598 = vmatpush1.bf16.msra.mxu0 %v2572
      %2599 = vmatprep.subr.bf16.mxu0 0
      %2600 = vmatpush1.bf16.msra.mxu0 %v2571
      %2601 = vmatprep.subr.bf16.mxu0 0
      %2602 = vmatpush2.bf16.msra.mxu0 0
      %2603 = vmatprep.subr.bf16.mxu0 0
      %2604 = vmatpush2.bf16.msra.mxu0 0
      %2605 = vmatprep.subr.bf16.mxu0 0
      %2606 = vmatpush2.bf16.msra.mxu0 0
      %2607 = vmatprep.subr.bf16.mxu0 0
      %2608 = vmatpush2.bf16.msra.mxu0 0
      %2609 = vmatprep.subr.bf16.mxu0 0
      %2610 = vmatpush2.bf16.msra.mxu0 0
      %2611 = vmatprep.subr.bf16.mxu0 0
      %2612 = vmatpush2.bf16.msra.mxu0 0
      %2613 = vmatprep.subr.bf16.mxu0 0
      %2614 = vmatpush2.bf16.msra.mxu0 0
      %2615 = vmatprep.subr.bf16.mxu0 0
      %2616 = vmatpush2.bf16.msra.mxu0 0
      %2617 = vmatprep.mubr.bf16.mxu0 0
      %2618 = vmatmul.mubr.bf16.gmra.mxu0 %v2583
      %v2619 = vpop.f32.mrf.mxu0
      %v2620 = vadd.f32 %v2421, %v2619
      %v2621 = vpop.f32.mrf.mxu0
      %v2622 = vpop.f32.mrf.mxu0
      %v2623 = vadd.f32 %v2424, %v2622
      %v2624 = vpop.f32.mrf.mxu0
      %2625 = vmatprep.mubr.bf16.mxu0 0
      %2626 = vmatmul.mubr.bf16.gmra.mxu0 %v2354
      %v2627 = vpop.f32.mrf.mxu0
      %v2628 = vadd.f32 %v2429, %v2627
      %v2629 = vpop.f32.mrf.mxu0
      %v2630 = vpop.f32.mrf.mxu0
      %v2631 = vadd.f32 %v2432, %v2630
      %v2632 = vpop.f32.mrf.mxu0
      %2633 = vmatprep.mubr.bf16.mxu0 0
      %2634 = vmatmul.mubr.bf16.gmra.mxu0 %v2356
      %v2635 = vpop.f32.mrf.mxu0
      %v2636 = vadd.f32 %v2437, %v2635
      %v2637 = vpop.f32.mrf.mxu0
      %v2638 = vpop.f32.mrf.mxu0
      %v2639 = vadd.f32 %v2440, %v2638
      %v2640 = vpop.f32.mrf.mxu0
      %2641 = vmatprep.mubr.bf16.mxu0 0
      %2642 = vmatmul.mubr.bf16.gmra.mxu0 %v2358
      %v2643 = vpop.f32.mrf.mxu0
      %v2644 = vadd.f32 %v2445, %v2643
      %v2645 = vpop.f32.mrf.mxu0
      %v2646 = vpop.f32.mrf.mxu0
      %v2647 = vadd.f32 %v2448, %v2646
      %v2648 = vpop.f32.mrf.mxu0
      %2649 = vmatprep.mubr.bf16.mxu0 0
      %2650 = vmatmul.mubr.bf16.gmra.mxu0 %v2360
      %v2651 = vpop.f32.mrf.mxu0
      %v2652 = vadd.f32 %v2453, %v2651
      %v2653 = vpop.f32.mrf.mxu0
      %v2654 = vpop.f32.mrf.mxu0
      %v2655 = vadd.f32 %v2456, %v2654
      %v2656 = vpop.f32.mrf.mxu0
      %2657 = vmatprep.mubr.bf16.mxu0 0
      %2658 = vmatmul.mubr.bf16.gmra.mxu0 %v2362
      %v2659 = vpop.f32.mrf.mxu0
      %v2660 = vadd.f32 %v2461, %v2659
      %v2661 = vpop.f32.mrf.mxu0
      %v2662 = vpop.f32.mrf.mxu0
      %v2663 = vadd.f32 %v2464, %v2662
      %v2664 = vpop.f32.mrf.mxu0
      %2665 = vmatprep.mubr.bf16.mxu0 0
      %2666 = vmatmul.mubr.bf16.gmra.mxu0 %v2364
      %v2667 = vpop.f32.mrf.mxu0
      %v2668 = vadd.f32 %v2469, %v2667
      %v2669 = vpop.f32.mrf.mxu0
      %v2670 = vpop.f32.mrf.mxu0
      %v2671 = vadd.f32 %v2472, %v2670
      %v2672 = vpop.f32.mrf.mxu0
      %2673 = vmatprep.mubr.bf16.mxu0 0
      %2674 = vmatmul.mubr.bf16.gmra.mxu0 %v2366
      %v2675 = vpop.f32.mrf.mxu0
      %v2676 = vadd.f32 %v2477, %v2675
      %v2677 = vpop.f32.mrf.mxu0
      %v2678 = vpop.f32.mrf.mxu0
      %v2679 = vadd.f32 %v2480, %v2678
      %v2680 = vpop.f32.mrf.mxu0
      %2681 = vmatprep.mubr.bf16.mxu0 0
      %2682 = vmatmul.mubr.bf16.gmra.mxu0 %v2368
      %v2683 = vpop.f32.mrf.mxu0
      %v2684 = vadd.f32 %v2485, %v2683
      %v2685 = vpop.f32.mrf.mxu0
      %v2686 = vpop.f32.mrf.mxu0
      %v2687 = vadd.f32 %v2488, %v2686
      %v2688 = vpop.f32.mrf.mxu0
      %2689 = vmatprep.mubr.bf16.mxu0 0
      %2690 = vmatmul.mubr.bf16.gmra.mxu0 %v2370
      %v2691 = vpop.f32.mrf.mxu0
      %v2692 = vadd.f32 %v2493, %v2691
      %v2693 = vpop.f32.mrf.mxu0
      %v2694 = vpop.f32.mrf.mxu0
      %v2695 = vadd.f32 %v2496, %v2694
      %v2696 = vpop.f32.mrf.mxu0
      %2697 = vmatprep.mubr.bf16.mxu0 0
      %2698 = vmatmul.mubr.bf16.gmra.mxu0 %v2372
      %v2699 = vpop.f32.mrf.mxu0
      %v2700 = vadd.f32 %v2501, %v2699
      %v2701 = vpop.f32.mrf.mxu0
      %v2702 = vpop.f32.mrf.mxu0
      %v2703 = vadd.f32 %v2504, %v2702
      %v2704 = vpop.f32.mrf.mxu0
      %2705 = vmatprep.mubr.bf16.mxu0 0
      %2706 = vmatmul.mubr.bf16.gmra.mxu0 %v2374
      %v2707 = vpop.f32.mrf.mxu0
      %v2708 = vadd.f32 %v2509, %v2707
      %v2709 = vpop.f32.mrf.mxu0
      %v2710 = vpop.f32.mrf.mxu0
      %v2711 = vadd.f32 %v2512, %v2710
      %v2712 = vpop.f32.mrf.mxu0
      %2713 = vmatprep.mubr.bf16.mxu0 0
      %2714 = vmatmul.mubr.bf16.gmra.mxu0 %v2376
      %v2715 = vpop.f32.mrf.mxu0
      %v2716 = vadd.f32 %v2517, %v2715
      %v2717 = vpop.f32.mrf.mxu0
      %v2718 = vpop.f32.mrf.mxu0
      %v2719 = vadd.f32 %v2520, %v2718
      %v2720 = vpop.f32.mrf.mxu0
      %2721 = vmatprep.mubr.bf16.mxu0 0
      %2722 = vmatmul.mubr.bf16.gmra.mxu0 %v2378
      %v2723 = vpop.f32.mrf.mxu0
      %v2724 = vadd.f32 %v2525, %v2723
      %v2725 = vpop.f32.mrf.mxu0
      %v2726 = vpop.f32.mrf.mxu0
      %v2727 = vadd.f32 %v2528, %v2726
      %v2728 = vpop.f32.mrf.mxu0
      %2729 = vmatprep.mubr.bf16.mxu0 0
      %2730 = vmatmul.mubr.bf16.gmra.mxu0 %v2380
      %v2731 = vpop.f32.mrf.mxu0
      %v2732 = vadd.f32 %v2533, %v2731
      %v2733 = vpop.f32.mrf.mxu0
      %v2734 = vpop.f32.mrf.mxu0
      %v2735 = vadd.f32 %v2536, %v2734
      %v2736 = vpop.f32.mrf.mxu0
      %2737 = vmatprep.mubr.bf16.mxu0 0
      %2738 = vmatmul.mubr.bf16.gmra.mxu0 %v2382
      %v2739 = vpop.f32.mrf.mxu0
      %v2740 = vadd.f32 %v2541, %v2739
      %v2741 = vpop.f32.mrf.mxu0
      %v2742 = vpop.f32.mrf.mxu0
      %v2743 = vadd.f32 %v2544, %v2742
      %v2744 = vpop.f32.mrf.mxu0
      %2745 = vdwg.mxu0
      %v2747 = vshrl.u32 %v1863, 16
      %v2749 = vshll.u32 %v1863, 16
      %v2751 = vrot.slane %v2749, 1
      %v2752 = vor.u32 %v2747, %v2751
      %v2754 = vshll.u32 %v1864, 16
      %v2756 = vrot.slane %v2754, 1
      %v2757 = vsel %vm1865, %v2752, %v2756
      %2758 = vrot.lane.b32.xlu0 %v2757, 32
      %v2759 = vpop.permute.xlu0 %2758
      %v2762 = vrot.slane %v1863, 1
      %v2763 = vrot.slane %v1864, 1
      %v2764 = vsel %vm2122, %v2762, %v2763
      %2765 = vrot.lane.b32.xlu0 %v2764, 64
      %v2766 = vpop.permute.xlu0 %2765
      %v2768 = vsel %vm489, %v1863, %v2759
      %v2770 = vsel %vm2235, %v2768, %v2766
      %v2771 = vld [vmem:[%s5 + $0x60] sm:$0xf]
      %v2772 = vld [vmem:[%s5 + $0x64] sm:$0xf]
      %v2773 = vld [vmem:[%s5 + $0x68] sm:$0xf]
      %v2774 = vld [vmem:[%s5 + $0x6c] sm:$0xf]
      %v2775 = vld [vmem:[%s5 + $0x70] sm:$0xf]
      %v2776 = vld [vmem:[%s5 + $0x74] sm:$0xf]
      %v2777 = vld [vmem:[%s5 + $0x78] sm:$0xf]
      %v2778 = vld [vmem:[%s5 + $0x7c] sm:$0xf]
      %v2779 = vld [vmem:[%s5 + $0x80] sm:$0xf]
      %v2780 = vld [vmem:[%s5 + $0x84] sm:$0xf]
      %v2781 = vld [vmem:[%s5 + $0x88] sm:$0xf]
      %v2782 = vld [vmem:[%s5 + $0x8c] sm:$0xf]
      %v2795 = vunpack.c.l.b16 %v2771
      %v2796 = vunpack.c.l.b16 %v2772
      %v2797 = vunpack.c.l.b16 %v2773
      %v2798 = vunpack.c.l.b16 %v2774
      %v2799 = vunpack.c.l.b16 %v2775
      %v2800 = vunpack.c.l.b16 %v2776
      %v2801 = vunpack.c.l.b16 %v2777
      %v2802 = vunpack.c.l.b16 %v2778
      %v2803 = vunpack.c.l.b16 %v2779
      %v2804 = vunpack.c.l.b16 %v2780
      %v2805 = vunpack.c.l.b16 %v2781
      %v2806 = vunpack.c.l.b16 %v2782
      %v2807 = vpack.c.b16 %v2796, %v2795
      %v2808 = vpack.c.b16 %v2798, %v2797
      %v2809 = vpack.c.b16 %v2800, %v2799
      %v2810 = vpack.c.b16 %v2802, %v2801
      %v2811 = vpack.c.b16 %v2804, %v2803
      %v2812 = vpack.c.b16 %v2806, %v2805
      %v2819 = vsel %vm2353, %v2770, 0
      %2821 = vmatprep.subr.bf16.mxu0 0
      %2822 = vmatpush1.bf16.msra.mxu0 0
      %2823 = vmatprep.subr.bf16.mxu0 0
      %2824 = vmatpush1.bf16.msra.mxu0 0
      %2825 = vmatprep.subr.bf16.mxu0 0
      %2826 = vmatpush1.bf16.msra.mxu0 %v2812
      %2827 = vmatprep.subr.bf16.mxu0 0
      %2828 = vmatpush1.bf16.msra.mxu0 %v2811
      %2829 = vmatprep.subr.bf16.mxu0 0
      %2830 = vmatpush1.bf16.msra.mxu0 %v2810
      %2831 = vmatprep.subr.bf16.mxu0 0
      %2832 = vmatpush1.bf16.msra.mxu0 %v2809
      %2833 = vmatprep.subr.bf16.mxu0 0
      %2834 = vmatpush1.bf16.msra.mxu0 %v2808
      %2835 = vmatprep.subr.bf16.mxu0 0
      %2836 = vmatpush1.bf16.msra.mxu0 %v2807
      %2837 = vmatprep.subr.bf16.mxu0 0
      %2838 = vmatpush2.bf16.msra.mxu0 0
      %2839 = vmatprep.subr.bf16.mxu0 0
      %2840 = vmatpush2.bf16.msra.mxu0 0
      %2841 = vmatprep.subr.bf16.mxu0 0
      %2842 = vmatpush2.bf16.msra.mxu0 0
      %2843 = vmatprep.subr.bf16.mxu0 0
      %2844 = vmatpush2.bf16.msra.mxu0 0
      %2845 = vmatprep.subr.bf16.mxu0 0
      %2846 = vmatpush2.bf16.msra.mxu0 0
      %2847 = vmatprep.subr.bf16.mxu0 0
      %2848 = vmatpush2.bf16.msra.mxu0 0
      %2849 = vmatprep.subr.bf16.mxu0 0
      %2850 = vmatpush2.bf16.msra.mxu0 0
      %2851 = vmatprep.subr.bf16.mxu0 0
      %2852 = vmatpush2.bf16.msra.mxu0 0
      %2853 = vmatprep.mubr.bf16.mxu0 0
      %2854 = vmatmul.mubr.bf16.gmra.mxu0 %v2356
      %v2855 = vpop.f32.mrf.mxu0
      %v2856 = vadd.f32 0.0, %v2855
      %v2857 = vpop.f32.mrf.mxu0
      %v2858 = vpop.f32.mrf.mxu0
      %v2859 = vadd.f32 0.0, %v2858
      %v2860 = vpop.f32.mrf.mxu0
      %2861 = vmatprep.mubr.bf16.mxu0 0
      %2862 = vmatmul.mubr.bf16.gmra.mxu0 %v2358
      %v2863 = vpop.f32.mrf.mxu0
      %v2864 = vadd.f32 0.0, %v2863
      %v2865 = vpop.f32.mrf.mxu0
      %v2866 = vpop.f32.mrf.mxu0
      %v2867 = vadd.f32 0.0, %v2866
      %v2868 = vpop.f32.mrf.mxu0
      %2869 = vmatprep.mubr.bf16.mxu0 0
      %2870 = vmatmul.mubr.bf16.gmra.mxu0 %v2360
      %v2871 = vpop.f32.mrf.mxu0
      %v2872 = vadd.f32 0.0, %v2871
      %v2873 = vpop.f32.mrf.mxu0
      %v2874 = vpop.f32.mrf.mxu0
      %v2875 = vadd.f32 0.0, %v2874
      %v2876 = vpop.f32.mrf.mxu0
      %2877 = vmatprep.mubr.bf16.mxu0 0
      %2878 = vmatmul.mubr.bf16.gmra.mxu0 %v2362
      %v2879 = vpop.f32.mrf.mxu0
      %v2880 = vadd.f32 0.0, %v2879
      %v2881 = vpop.f32.mrf.mxu0
      %v2882 = vpop.f32.mrf.mxu0
      %v2883 = vadd.f32 0.0, %v2882
      %v2884 = vpop.f32.mrf.mxu0
      %2885 = vmatprep.mubr.bf16.mxu0 0
      %2886 = vmatmul.mubr.bf16.gmra.mxu0 %v2364
      %v2887 = vpop.f32.mrf.mxu0
      %v2888 = vadd.f32 0.0, %v2887
      %v2889 = vpop.f32.mrf.mxu0
      %v2890 = vpop.f32.mrf.mxu0
      %v2891 = vadd.f32 0.0, %v2890
      %v2892 = vpop.f32.mrf.mxu0
      %2893 = vmatprep.mubr.bf16.mxu0 0
      %2894 = vmatmul.mubr.bf16.gmra.mxu0 %v2366
      %v2895 = vpop.f32.mrf.mxu0
      %v2896 = vadd.f32 0.0, %v2895
      %v2897 = vpop.f32.mrf.mxu0
      %v2898 = vpop.f32.mrf.mxu0
      %v2899 = vadd.f32 0.0, %v2898
      %v2900 = vpop.f32.mrf.mxu0
      %2901 = vmatprep.mubr.bf16.mxu0 0
      %2902 = vmatmul.mubr.bf16.gmra.mxu0 %v2368
      %v2903 = vpop.f32.mrf.mxu0
      %v2904 = vadd.f32 0.0, %v2903
      %v2905 = vpop.f32.mrf.mxu0
      %v2906 = vpop.f32.mrf.mxu0
      %v2907 = vadd.f32 0.0, %v2906
      %v2908 = vpop.f32.mrf.mxu0
      %2909 = vmatprep.mubr.bf16.mxu0 0
      %2910 = vmatmul.mubr.bf16.gmra.mxu0 %v2370
      %v2911 = vpop.f32.mrf.mxu0
      %v2912 = vadd.f32 0.0, %v2911
      %v2913 = vpop.f32.mrf.mxu0
      %v2914 = vpop.f32.mrf.mxu0
      %v2915 = vadd.f32 0.0, %v2914
      %v2916 = vpop.f32.mrf.mxu0
      %2917 = vmatprep.mubr.bf16.mxu0 0
      %2918 = vmatmul.mubr.bf16.gmra.mxu0 %v2372
      %v2919 = vpop.f32.mrf.mxu0
      %v2920 = vadd.f32 0.0, %v2919
      %v2921 = vpop.f32.mrf.mxu0
      %v2922 = vpop.f32.mrf.mxu0
      %v2923 = vadd.f32 0.0, %v2922
      %v2924 = vpop.f32.mrf.mxu0
      %2925 = vmatprep.mubr.bf16.mxu0 0
      %2926 = vmatmul.mubr.bf16.gmra.mxu0 %v2374
      %v2927 = vpop.f32.mrf.mxu0
      %v2928 = vadd.f32 0.0, %v2927
      %v2929 = vpop.f32.mrf.mxu0
      %v2930 = vpop.f32.mrf.mxu0
      %v2931 = vadd.f32 0.0, %v2930
      %v2932 = vpop.f32.mrf.mxu0
      %2933 = vmatprep.mubr.bf16.mxu0 0
      %2934 = vmatmul.mubr.bf16.gmra.mxu0 %v2376
      %v2935 = vpop.f32.mrf.mxu0
      %v2936 = vadd.f32 0.0, %v2935
      %v2937 = vpop.f32.mrf.mxu0
      %v2938 = vpop.f32.mrf.mxu0
      %v2939 = vadd.f32 0.0, %v2938
      %v2940 = vpop.f32.mrf.mxu0
      %2941 = vmatprep.mubr.bf16.mxu0 0
      %2942 = vmatmul.mubr.bf16.gmra.mxu0 %v2378
      %v2943 = vpop.f32.mrf.mxu0
      %v2944 = vadd.f32 0.0, %v2943
      %v2945 = vpop.f32.mrf.mxu0
      %v2946 = vpop.f32.mrf.mxu0
      %v2947 = vadd.f32 0.0, %v2946
      %v2948 = vpop.f32.mrf.mxu0
      %2949 = vmatprep.mubr.bf16.mxu0 0
      %2950 = vmatmul.mubr.bf16.gmra.mxu0 %v2380
      %v2951 = vpop.f32.mrf.mxu0
      %v2952 = vadd.f32 0.0, %v2951
      %v2953 = vpop.f32.mrf.mxu0
      %v2954 = vpop.f32.mrf.mxu0
      %v2955 = vadd.f32 0.0, %v2954
      %v2956 = vpop.f32.mrf.mxu0
      %2957 = vmatprep.mubr.bf16.mxu0 0
      %2958 = vmatmul.mubr.bf16.gmra.mxu0 %v2382
      %v2959 = vpop.f32.mrf.mxu0
      %v2960 = vadd.f32 0.0, %v2959
      %v2961 = vpop.f32.mrf.mxu0
      %v2962 = vpop.f32.mrf.mxu0
      %v2963 = vadd.f32 0.0, %v2962
      %v2964 = vpop.f32.mrf.mxu0
      %2965 = vmatprep.mubr.bf16.mxu0 0
      %2966 = vmatmul.mubr.bf16.gmra.mxu0 %v2384
      %v2967 = vpop.f32.mrf.mxu0
      %v2968 = vadd.f32 0.0, %v2967
      %v2969 = vpop.f32.mrf.mxu0
      %v2970 = vpop.f32.mrf.mxu0
      %v2971 = vadd.f32 0.0, %v2970
      %v2972 = vpop.f32.mrf.mxu0
      %2973 = vmatprep.mubr.bf16.mxu0 0
      %2974 = vmatmul.mubr.bf16.gmra.mxu0 %v2819
      %v2975 = vpop.f32.mrf.mxu0
      %v2976 = vadd.f32 0.0, %v2975
      %v2977 = vpop.f32.mrf.mxu0
      %v2978 = vpop.f32.mrf.mxu0
      %v2979 = vadd.f32 0.0, %v2978
      %v2980 = vpop.f32.mrf.mxu0
      %2981 = vdwg.mxu0
      %v2982 = vadd.f32 %v2620, %v2856
      %v2983 = vadd.f32 %v2623, %v2859
      %v2984 = vadd.f32 %v2628, %v2864
      %v2985 = vadd.f32 %v2631, %v2867
      %v2986 = vadd.f32 %v2636, %v2872
      %v2987 = vadd.f32 %v2639, %v2875
      %v2988 = vadd.f32 %v2644, %v2880
      %v2989 = vadd.f32 %v2647, %v2883
      %v2990 = vadd.f32 %v2652, %v2888
      %v2991 = vadd.f32 %v2655, %v2891
      %v2992 = vadd.f32 %v2660, %v2896
      %v2993 = vadd.f32 %v2663, %v2899
      %v2994 = vadd.f32 %v2668, %v2904
      %v2995 = vadd.f32 %v2671, %v2907
      %v2996 = vadd.f32 %v2676, %v2912
      %v2997 = vadd.f32 %v2679, %v2915
      %v2998 = vadd.f32 %v2684, %v2920
      %v2999 = vadd.f32 %v2687, %v2923
      %v3000 = vadd.f32 %v2692, %v2928
      %v3001 = vadd.f32 %v2695, %v2931
      %v3002 = vadd.f32 %v2700, %v2936
      %v3003 = vadd.f32 %v2703, %v2939
      %v3004 = vadd.f32 %v2708, %v2944
      %v3005 = vadd.f32 %v2711, %v2947
      %v3006 = vadd.f32 %v2716, %v2952
      %v3007 = vadd.f32 %v2719, %v2955
      %v3008 = vadd.f32 %v2724, %v2960
      %v3009 = vadd.f32 %v2727, %v2963
      %v3010 = vadd.f32 %v2732, %v2968
      %v3011 = vadd.f32 %v2735, %v2971
      %v3012 = vadd.f32 %v2740, %v2976
      %v3013 = vadd.f32 %v2743, %v2979
      %v3014 = vld [vmem:[%s6] sm:$0x1]
      %v3016 = vlaneseq
      %v3017 = vshrl.u32 %v3016, 7
      %v3018 = vsub.s32 0, %v3017
      %v3019 = vrot.slane %v3014, %v3018
      %v3021 = vadd.f32 %v2982, %v3019
      %v3022 = vadd.f32 %v2983, %v3019
      %v3023 = vadd.f32 %v2984, %v3019
      %v3024 = vadd.f32 %v2985, %v3019
      %v3025 = vadd.f32 %v2986, %v3019
      %v3026 = vadd.f32 %v2987, %v3019
      %v3027 = vadd.f32 %v2988, %v3019
      %v3028 = vadd.f32 %v2989, %v3019
      %v3029 = vadd.f32 %v2990, %v3019
      %v3030 = vadd.f32 %v2991, %v3019
      %v3031 = vadd.f32 %v2992, %v3019
      %v3032 = vadd.f32 %v2993, %v3019
      %v3033 = vadd.f32 %v2994, %v3019
      %v3034 = vadd.f32 %v2995, %v3019
      %v3035 = vadd.f32 %v2996, %v3019
      %v3036 = vadd.f32 %v2997, %v3019
      %v3037 = vadd.f32 %v2998, %v3019
      %v3038 = vadd.f32 %v2999, %v3019
      %v3039 = vadd.f32 %v3000, %v3019
      %v3040 = vadd.f32 %v3001, %v3019
      %v3041 = vadd.f32 %v3002, %v3019
      %v3042 = vadd.f32 %v3003, %v3019
      %v3043 = vadd.f32 %v3004, %v3019
      %v3044 = vadd.f32 %v3005, %v3019
      %v3045 = vadd.f32 %v3006, %v3019
      %v3046 = vadd.f32 %v3007, %v3019
      %v3047 = vadd.f32 %v3008, %v3019
      %v3048 = vadd.f32 %v3009, %v3019
      %v3049 = vadd.f32 %v3010, %v3019
      %v3050 = vadd.f32 %v3011, %v3019
      %v3051 = vadd.f32 %v3012, %v3019
      %v3052 = vadd.f32 %v3013, %v3019
      %3053 = vst.msk [vmem:[%s1741 + $0x3] sm:$0xff] %vm489, %v3021
      %3054 = vst.msk [vmem:[%s1741 + $0xb] sm:$0xff] %vm489, %v3022
      %3055 = vst.msk [vmem:[%s1741 + $0x1b] sm:$0xff] %vm489, %v3023
      %3056 = vst.msk [vmem:[%s1741 + $0x23] sm:$0xff] %vm489, %v3024
      %3057 = vst.msk [vmem:[%s1741 + $0x33] sm:$0xff] %vm489, %v3025
      %3058 = vst.msk [vmem:[%s1741 + $0x3b] sm:$0xff] %vm489, %v3026
      %3059 = vst.msk [vmem:[%s1741 + $0x4b] sm:$0xff] %vm489, %v3027
      %3060 = vst.msk [vmem:[%s1741 + $0x53] sm:$0xff] %vm489, %v3028
      %3061 = vst.msk [vmem:[%s1741 + $0x63] sm:$0xff] %vm489, %v3029
      %3062 = vst.msk [vmem:[%s1741 + $0x6b] sm:$0xff] %vm489, %v3030
      %3063 = vst.msk [vmem:[%s1741 + $0x7b] sm:$0xff] %vm489, %v3031
      %3064 = vst.msk [vmem:[%s1741 + $0x83] sm:$0xff] %vm489, %v3032
      %3065 = vst.msk [vmem:[%s1741 + $0x93] sm:$0xff] %vm489, %v3033
      %3066 = vst.msk [vmem:[%s1741 + $0x9b] sm:$0xff] %vm489, %v3034
      %3067 = vst.msk [vmem:[%s1741 + $0xab] sm:$0xff] %vm489, %v3035
      %3068 = vst.msk [vmem:[%s1741 + $0xb3] sm:$0xff] %vm489, %v3036
      %3069 = vst.msk [vmem:[%s1741 + $0xc3] sm:$0xff] %vm489, %v3037
      %3070 = vst.msk [vmem:[%s1741 + $0xcb] sm:$0xff] %vm489, %v3038
      %3071 = vst.msk [vmem:[%s1741 + $0xdb] sm:$0xff] %vm489, %v3039
      %3072 = vst.msk [vmem:[%s1741 + $0xe3] sm:$0xff] %vm489, %v3040
      %3073 = vst.msk [vmem:[%s1741 + $0xf3] sm:$0xff] %vm489, %v3041
      %3074 = vst.msk [vmem:[%s1741 + $0xfb] sm:$0xff] %vm489, %v3042
      %3075 = vst.msk [vmem:[%s1741 + $0x10b] sm:$0xff] %vm489, %v3043
      %3076 = vst.msk [vmem:[%s1741 + $0x113] sm:$0xff] %vm489, %v3044
      %3077 = vst.msk [vmem:[%s1741 + $0x123] sm:$0xff] %vm489, %v3045
      %3078 = vst.msk [vmem:[%s1741 + $0x12b] sm:$0xff] %vm489, %v3046
      %3079 = vst.msk [vmem:[%s1741 + $0x13b] sm:$0xff] %vm489, %v3047
      %3080 = vst.msk [vmem:[%s1741 + $0x143] sm:$0xff] %vm489, %v3048
      %3081 = vst.msk [vmem:[%s1741 + $0x153] sm:$0xff] %vm489, %v3049
      %3082 = vst.msk [vmem:[%s1741 + $0x15b] sm:$0xff] %vm489, %v3050
      %3083 = vst.msk [vmem:[%s1741 + $0x16b] sm:$0xff] %vm489, %v3051
      %3084 = vst.msk [vmem:[%s1741 + $0x173] sm:$0xff] %vm489, %v3052
      %s3085 = scalar_lea.vmem [#allocation2], 24
      %v3086 = vld [vmem:[%s3085 + $0x1] sm:$0xff]
      %v3087 = vld [vmem:[%s3085 + $0x9] sm:$0xff]
      %v3088 = vld [vmem:[%s3085 + $0x11] sm:$0xf]
      %v3089 = vld [vmem:[%s3085 + $0x19] sm:$0xff]
      %v3090 = vld [vmem:[%s3085 + $0x21] sm:$0xff]
      %v3091 = vld [vmem:[%s3085 + $0x29] sm:$0xf]
      %v3092 = vld [vmem:[%s3085 + $0x31] sm:$0xff]
      %v3093 = vld [vmem:[%s3085 + $0x39] sm:$0xff]
      %v3094 = vld [vmem:[%s3085 + $0x41] sm:$0xf]
      %v3095 = vld [vmem:[%s3085 + $0x49] sm:$0xff]
      %v3096 = vld [vmem:[%s3085 + $0x51] sm:$0xff]
      %v3097 = vld [vmem:[%s3085 + $0x59] sm:$0xf]
      %v3098 = vld [vmem:[%s3085 + $0x61] sm:$0xff]
      %v3099 = vld [vmem:[%s3085 + $0x69] sm:$0xff]
      %v3100 = vld [vmem:[%s3085 + $0x71] sm:$0xf]
      %v3101 = vld [vmem:[%s3085 + $0x79] sm:$0xff]
      %v3102 = vld [vmem:[%s3085 + $0x81] sm:$0xff]
      %v3103 = vld [vmem:[%s3085 + $0x89] sm:$0xf]
      %v3104 = vld [vmem:[%s3085 + $0x91] sm:$0xff]
      %v3105 = vld [vmem:[%s3085 + $0x99] sm:$0xff]
      %v3106 = vld [vmem:[%s3085 + $0xa1] sm:$0xf]
      %v3107 = vld [vmem:[%s3085 + $0xa9] sm:$0xff]
      %v3108 = vld [vmem:[%s3085 + $0xb1] sm:$0xff]
      %v3109 = vld [vmem:[%s3085 + $0xb9] sm:$0xf]
      %v3110 = vld [vmem:[%s3085 + $0xc1] sm:$0xff]
      %v3111 = vld [vmem:[%s3085 + $0xc9] sm:$0xff]
      %v3112 = vld [vmem:[%s3085 + $0xd1] sm:$0xf]
      %v3113 = vld [vmem:[%s3085 + $0xd9] sm:$0xff]
      %v3114 = vld [vmem:[%s3085 + $0xe1] sm:$0xff]
      %v3115 = vld [vmem:[%s3085 + $0xe9] sm:$0xf]
      %v3116 = vld [vmem:[%s3085 + $0xf1] sm:$0xff]
      %v3117 = vld [vmem:[%s3085 + $0xf9] sm:$0xff]
      %v3118 = vld [vmem:[%s3085 + $0x101] sm:$0xf]
      %v3119 = vld [vmem:[%s3085 + $0x109] sm:$0xff]
      %v3120 = vld [vmem:[%s3085 + $0x111] sm:$0xff]
      %v3121 = vld [vmem:[%s3085 + $0x119] sm:$0xf]
      %v3122 = vld [vmem:[%s3085 + $0x121] sm:$0xff]
      %v3123 = vld [vmem:[%s3085 + $0x129] sm:$0xff]
      %v3124 = vld [vmem:[%s3085 + $0x131] sm:$0xf]
      %v3125 = vld [vmem:[%s3085 + $0x139] sm:$0xff]
      %v3126 = vld [vmem:[%s3085 + $0x141] sm:$0xff]
      %v3127 = vld [vmem:[%s3085 + $0x149] sm:$0xf]
      %v3128 = vld [vmem:[%s3085 + $0x151] sm:$0xff]
      %v3129 = vld [vmem:[%s3085 + $0x159] sm:$0xff]
      %v3130 = vld [vmem:[%s3085 + $0x161] sm:$0xf]
      %v3131 = vld [vmem:[%s3085 + $0x169] sm:$0xff]
      %v3132 = vld [vmem:[%s3085 + $0x171] sm:$0xff]
      %v3133 = vld [vmem:[%s3085 + $0x179] sm:$0xf]
      %v3134 = vld [vmem:[%s3085 + $0x181] sm:$0xff]
      %v3135 = vld [vmem:[%s3085 + $0x189] sm:$0xff]
      %v3136 = vld [vmem:[%s3085 + $0x191] sm:$0xf]
      %v3137 = vld [vmem:[%s3085 + $0x199] sm:$0xff]
      %v3138 = vld [vmem:[%s3085 + $0x1a1] sm:$0xff]
      %v3139 = vld [vmem:[%s3085 + $0x1a9] sm:$0xf]
      %v3140 = vld [vmem:[%s3085 + $0x1b1] sm:$0xff]
      %v3141 = vld [vmem:[%s3085 + $0x1b9] sm:$0xff]
      %v3142 = vld [vmem:[%s3085 + $0x1c1] sm:$0xf]
      %v3143 = vld [vmem:[%s3085 + $0x1c9] sm:$0xff]
      %v3144 = vld [vmem:[%s3085 + $0x1d1] sm:$0xff]
      %v3145 = vld [vmem:[%s3085 + $0x1d9] sm:$0xf]
      %v3146 = vpack.c.bf16 %v3087, %v3086
      %v3147 = vpack.c.bf16 %v3088, %v3088
      %v3148 = vpack.c.bf16 %v3090, %v3089
      %v3149 = vpack.c.bf16 %v3091, %v3091
      %v3150 = vpack.c.bf16 %v3093, %v3092
      %v3151 = vpack.c.bf16 %v3094, %v3094
      %v3152 = vpack.c.bf16 %v3096, %v3095
      %v3153 = vpack.c.bf16 %v3097, %v3097
      %v3154 = vpack.c.bf16 %v3099, %v3098
      %v3155 = vpack.c.bf16 %v3100, %v3100
      %v3156 = vpack.c.bf16 %v3102, %v3101
      %v3157 = vpack.c.bf16 %v3103, %v3103
      %v3158 = vpack.c.bf16 %v3105, %v3104
      %v3159 = vpack.c.bf16 %v3106, %v3106
      %v3160 = vpack.c.bf16 %v3108, %v3107
      %v3161 = vpack.c.bf16 %v3109, %v3109
      %v3162 = vpack.c.bf16 %v3111, %v3110
      %v3163 = vpack.c.bf16 %v3112, %v3112
      %v3164 = vpack.c.bf16 %v3114, %v3113
      %v3165 = vpack.c.bf16 %v3115, %v3115
      %v3166 = vpack.c.bf16 %v3117, %v3116
      %v3167 = vpack.c.bf16 %v3118, %v3118
      %v3168 = vpack.c.bf16 %v3120, %v3119
      %v3169 = vpack.c.bf16 %v3121, %v3121
      %v3170 = vpack.c.bf16 %v3123, %v3122
      %v3171 = vpack.c.bf16 %v3124, %v3124
      %v3172 = vpack.c.bf16 %v3126, %v3125
      %v3173 = vpack.c.bf16 %v3127, %v3127
      %v3174 = vpack.c.bf16 %v3129, %v3128
      %v3175 = vpack.c.bf16 %v3130, %v3130
      %v3176 = vpack.c.bf16 %v3132, %v3131
      %v3177 = vpack.c.bf16 %v3133, %v3133
      %v3178 = vpack.c.bf16 %v3135, %v3134
      %v3179 = vpack.c.bf16 %v3136, %v3136
      %v3180 = vpack.c.bf16 %v3138, %v3137
      %v3181 = vpack.c.bf16 %v3139, %v3139
      %v3182 = vpack.c.bf16 %v3141, %v3140
      %v3183 = vpack.c.bf16 %v3142, %v3142
      %v3184 = vpack.c.bf16 %v3144, %v3143
      %v3185 = vpack.c.bf16 %v3145, %v3145
      %v3187 = vshrl.u32 %v3146, 16
      %v3189 = vshll.u32 %v3146, 16
      %v3191 = vrot.slane %v3189, 1
      %v3192 = vor.u32 %v3187, %v3191
      %v3194 = vshll.u32 %v3147, 16
      %v3196 = vrot.slane %v3194, 1
      %v3197 = vsel %vm1865, %v3192, %v3196
      %v3199 = vshrl.u32 %v3148, 16
      %v3201 = vshll.u32 %v3148, 16
      %v3203 = vrot.slane %v3201, 1
      %v3204 = vor.u32 %v3199, %v3203
      %v3206 = vshll.u32 %v3149, 16
      %v3208 = vrot.slane %v3206, 1
      %v3209 = vsel %vm1865, %v3204, %v3208
      %v3211 = vshrl.u32 %v3150, 16
      %v3213 = vshll.u32 %v3150, 16
      %v3215 = vrot.slane %v3213, 1
      %v3216 = vor.u32 %v3211, %v3215
      %v3218 = vshll.u32 %v3151, 16
      %v3220 = vrot.slane %v3218, 1
      %v3221 = vsel %vm1865, %v3216, %v3220
      %v3223 = vshrl.u32 %v3152, 16
      %v3225 = vshll.u32 %v3152, 16
      %v3227 = vrot.slane %v3225, 1
      %v3228 = vor.u32 %v3223, %v3227
      %v3230 = vshll.u32 %v3153, 16
      %v3232 = vrot.slane %v3230, 1
      %v3233 = vsel %vm1865, %v3228, %v3232
      %v3235 = vshrl.u32 %v3154, 16
      %v3237 = vshll.u32 %v3154, 16
      %v3239 = vrot.slane %v3237, 1
      %v3240 = vor.u32 %v3235, %v3239
      %v3242 = vshll.u32 %v3155, 16
      %v3244 = vrot.slane %v3242, 1
      %v3245 = vsel %vm1865, %v3240, %v3244
      %v3247 = vshrl.u32 %v3156, 16
      %v3249 = vshll.u32 %v3156, 16
      %v3251 = vrot.slane %v3249, 1
      %v3252 = vor.u32 %v3247, %v3251
      %v3254 = vshll.u32 %v3157, 16
      %v3256 = vrot.slane %v3254, 1
      %v3257 = vsel %vm1865, %v3252, %v3256
      %v3259 = vshrl.u32 %v3158, 16
      %v3261 = vshll.u32 %v3158, 16
      %v3263 = vrot.slane %v3261, 1
      %v3264 = vor.u32 %v3259, %v3263
      %v3266 = vshll.u32 %v3159, 16
      %v3268 = vrot.slane %v3266, 1
      %v3269 = vsel %vm1865, %v3264, %v3268
      %v3271 = vshrl.u32 %v3160, 16
      %v3273 = vshll.u32 %v3160, 16
      %v3275 = vrot.slane %v3273, 1
      %v3276 = vor.u32 %v3271, %v3275
      %v3278 = vshll.u32 %v3161, 16
      %v3280 = vrot.slane %v3278, 1
      %v3281 = vsel %vm1865, %v3276, %v3280
      %v3283 = vshrl.u32 %v3162, 16
      %v3285 = vshll.u32 %v3162, 16
      %v3287 = vrot.slane %v3285, 1
      %v3288 = vor.u32 %v3283, %v3287
      %v3290 = vshll.u32 %v3163, 16
      %v3292 = vrot.slane %v3290, 1
      %v3293 = vsel %vm1865, %v3288, %v3292
      %v3295 = vshrl.u32 %v3164, 16
      %v3297 = vshll.u32 %v3164, 16
      %v3299 = vrot.slane %v3297, 1
      %v3300 = vor.u32 %v3295, %v3299
      %v3302 = vshll.u32 %v3165, 16
      %v3304 = vrot.slane %v3302, 1
      %v3305 = vsel %vm1865, %v3300, %v3304
      %v3307 = vshrl.u32 %v3166, 16
      %v3309 = vshll.u32 %v3166, 16
      %v3311 = vrot.slane %v3309, 1
      %v3312 = vor.u32 %v3307, %v3311
      %v3314 = vshll.u32 %v3167, 16
      %v3316 = vrot.slane %v3314, 1
      %v3317 = vsel %vm1865, %v3312, %v3316
      %v3319 = vshrl.u32 %v3168, 16
      %v3321 = vshll.u32 %v3168, 16
      %v3323 = vrot.slane %v3321, 1
      %v3324 = vor.u32 %v3319, %v3323
      %v3326 = vshll.u32 %v3169, 16
      %v3328 = vrot.slane %v3326, 1
      %v3329 = vsel %vm1865, %v3324, %v3328
      %v3331 = vshrl.u32 %v3170, 16
      %v3333 = vshll.u32 %v3170, 16
      %v3335 = vrot.slane %v3333, 1
      %v3336 = vor.u32 %v3331, %v3335
      %v3338 = vshll.u32 %v3171, 16
      %v3340 = vrot.slane %v3338, 1
      %v3341 = vsel %vm1865, %v3336, %v3340
      %v3343 = vshrl.u32 %v3172, 16
      %v3345 = vshll.u32 %v3172, 16
      %v3347 = vrot.slane %v3345, 1
      %v3348 = vor.u32 %v3343, %v3347
      %v3350 = vshll.u32 %v3173, 16
      %v3352 = vrot.slane %v3350, 1
      %v3353 = vsel %vm1865, %v3348, %v3352
      %v3355 = vshrl.u32 %v3174, 16
      %v3357 = vshll.u32 %v3174, 16
      %v3359 = vrot.slane %v3357, 1
      %v3360 = vor.u32 %v3355, %v3359
      %v3362 = vshll.u32 %v3175, 16
      %v3364 = vrot.slane %v3362, 1
      %v3365 = vsel %vm1865, %v3360, %v3364
      %v3367 = vshrl.u32 %v3176, 16
      %v3369 = vshll.u32 %v3176, 16
      %v3371 = vrot.slane %v3369, 1
      %v3372 = vor.u32 %v3367, %v3371
      %v3374 = vshll.u32 %v3177, 16
      %v3376 = vrot.slane %v3374, 1
      %v3377 = vsel %vm1865, %v3372, %v3376
      %3378 = vrot.lane.b32.xlu0 %v3197, 32
      %v3379 = vpop.permute.xlu0 %3378
      %3380 = vrot.lane.b32.xlu0 %v3209, 32
      %v3381 = vpop.permute.xlu0 %3380
      %3382 = vrot.lane.b32.xlu0 %v3221, 32
      %v3383 = vpop.permute.xlu0 %3382
      %3384 = vrot.lane.b32.xlu0 %v3233, 32
      %v3385 = vpop.permute.xlu0 %3384
      %3386 = vrot.lane.b32.xlu0 %v3245, 32
      %v3387 = vpop.permute.xlu0 %3386
      %3388 = vrot.lane.b32.xlu0 %v3257, 32
      %v3389 = vpop.permute.xlu0 %3388
      %3390 = vrot.lane.b32.xlu0 %v3269, 32
      %v3391 = vpop.permute.xlu0 %3390
      %3392 = vrot.lane.b32.xlu0 %v3281, 32
      %v3393 = vpop.permute.xlu0 %3392
      %3394 = vrot.lane.b32.xlu0 %v3293, 32
      %v3395 = vpop.permute.xlu0 %3394
      %3396 = vrot.lane.b32.xlu0 %v3305, 32
      %v3397 = vpop.permute.xlu0 %3396
      %3398 = vrot.lane.b32.xlu0 %v3317, 32
      %v3399 = vpop.permute.xlu0 %3398
      %3400 = vrot.lane.b32.xlu0 %v3329, 32
      %v3401 = vpop.permute.xlu0 %3400
      %3402 = vrot.lane.b32.xlu0 %v3341, 32
      %v3403 = vpop.permute.xlu0 %3402
      %3404 = vrot.lane.b32.xlu0 %v3353, 32
      %v3405 = vpop.permute.xlu0 %3404
      %3406 = vrot.lane.b32.xlu0 %v3365, 32
      %v3407 = vpop.permute.xlu0 %3406
      %3408 = vrot.lane.b32.xlu0 %v3377, 32
      %v3409 = vpop.permute.xlu0 %3408
      %v3442 = vrot.slane %v3146, 1
      %v3443 = vrot.slane %v3147, 1
      %v3444 = vsel %vm2122, %v3442, %v3443
      %v3445 = vrot.slane %v3148, 1
      %v3446 = vrot.slane %v3149, 1
      %v3447 = vsel %vm2122, %v3445, %v3446
      %v3448 = vrot.slane %v3150, 1
      %v3449 = vrot.slane %v3151, 1
      %v3450 = vsel %vm2122, %v3448, %v3449
      %v3451 = vrot.slane %v3152, 1
      %v3452 = vrot.slane %v3153, 1
      %v3453 = vsel %vm2122, %v3451, %v3452
      %v3454 = vrot.slane %v3154, 1
      %v3455 = vrot.slane %v3155, 1
      %v3456 = vsel %vm2122, %v3454, %v3455
      %v3457 = vrot.slane %v3156, 1
      %v3458 = vrot.slane %v3157, 1
      %v3459 = vsel %vm2122, %v3457, %v3458
      %v3460 = vrot.slane %v3158, 1
      %v3461 = vrot.slane %v3159, 1
      %v3462 = vsel %vm2122, %v3460, %v3461
      %v3463 = vrot.slane %v3160, 1
      %v3464 = vrot.slane %v3161, 1
      %v3465 = vsel %vm2122, %v3463, %v3464
      %v3466 = vrot.slane %v3162, 1
      %v3467 = vrot.slane %v3163, 1
      %v3468 = vsel %vm2122, %v3466, %v3467
      %v3469 = vrot.slane %v3164, 1
      %v3470 = vrot.slane %v3165, 1
      %v3471 = vsel %vm2122, %v3469, %v3470
      %v3472 = vrot.slane %v3166, 1
      %v3473 = vrot.slane %v3167, 1
      %v3474 = vsel %vm2122, %v3472, %v3473
      %v3475 = vrot.slane %v3168, 1
      %v3476 = vrot.slane %v3169, 1
      %v3477 = vsel %vm2122, %v3475, %v3476
      %v3478 = vrot.slane %v3170, 1
      %v3479 = vrot.slane %v3171, 1
      %v3480 = vsel %vm2122, %v3478, %v3479
      %v3481 = vrot.slane %v3172, 1
      %v3482 = vrot.slane %v3173, 1
      %v3483 = vsel %vm2122, %v3481, %v3482
      %v3484 = vrot.slane %v3174, 1
      %v3485 = vrot.slane %v3175, 1
      %v3486 = vsel %vm2122, %v3484, %v3485
      %v3487 = vrot.slane %v3176, 1
      %v3488 = vrot.slane %v3177, 1
      %v3489 = vsel %vm2122, %v3487, %v3488
      %3490 = vrot.lane.b32.xlu0 %v3444, 64
      %v3491 = vpop.permute.xlu0 %3490
      %3492 = vrot.lane.b32.xlu0 %v3447, 64
      %v3493 = vpop.permute.xlu0 %3492
      %3494 = vrot.lane.b32.xlu0 %v3450, 64
      %v3495 = vpop.permute.xlu0 %3494
      %3496 = vrot.lane.b32.xlu0 %v3453, 64
      %v3497 = vpop.permute.xlu0 %3496
      %3498 = vrot.lane.b32.xlu0 %v3456, 64
      %v3499 = vpop.permute.xlu0 %3498
      %3500 = vrot.lane.b32.xlu0 %v3459, 64
      %v3501 = vpop.permute.xlu0 %3500
      %3502 = vrot.lane.b32.xlu0 %v3462, 64
      %v3503 = vpop.permute.xlu0 %3502
      %3504 = vrot.lane.b32.xlu0 %v3465, 64
      %v3505 = vpop.permute.xlu0 %3504
      %3506 = vrot.lane.b32.xlu0 %v3468, 64
      %v3507 = vpop.permute.xlu0 %3506
      %3508 = vrot.lane.b32.xlu0 %v3471, 64
      %v3509 = vpop.permute.xlu0 %3508
      %3510 = vrot.lane.b32.xlu0 %v3474, 64
      %v3511 = vpop.permute.xlu0 %3510
      %3512 = vrot.lane.b32.xlu0 %v3477, 64
      %v3513 = vpop.permute.xlu0 %3512
      %3514 = vrot.lane.b32.xlu0 %v3480, 64
      %v3515 = vpop.permute.xlu0 %3514
      %3516 = vrot.lane.b32.xlu0 %v3483, 64
      %v3517 = vpop.permute.xlu0 %3516
      %3518 = vrot.lane.b32.xlu0 %v3486, 64
      %v3519 = vpop.permute.xlu0 %3518
      %3520 = vrot.lane.b32.xlu0 %v3489, 64
      %v3521 = vpop.permute.xlu0 %3520
      %vm3522 = vsmask.f32 6400
      %v3523 = vrot.slane %v3187, 1
      %v3524 = vrot.slane %v3189, 2
      %v3525 = vor.u32 %v3523, %v3524
      %v3526 = vshrl.u32 %v3147, 16
      %v3528 = vrot.slane %v3526, 1
      %v3529 = vrot.slane %v3194, 2
      %v3530 = vor.u32 %v3528, %v3529
      %v3531 = vsel %vm3522, %v3525, %v3530
      %v3532 = vrot.slane %v3199, 1
      %v3533 = vrot.slane %v3201, 2
      %v3534 = vor.u32 %v3532, %v3533
      %v3535 = vshrl.u32 %v3149, 16
      %v3537 = vrot.slane %v3535, 1
      %v3538 = vrot.slane %v3206, 2
      %v3539 = vor.u32 %v3537, %v3538
      %v3540 = vsel %vm3522, %v3534, %v3539
      %v3541 = vrot.slane %v3211, 1
      %v3542 = vrot.slane %v3213, 2
      %v3543 = vor.u32 %v3541, %v3542
      %v3544 = vshrl.u32 %v3151, 16
      %v3546 = vrot.slane %v3544, 1
      %v3547 = vrot.slane %v3218, 2
      %v3548 = vor.u32 %v3546, %v3547
      %v3549 = vsel %vm3522, %v3543, %v3548
      %v3550 = vrot.slane %v3223, 1
      %v3551 = vrot.slane %v3225, 2
      %v3552 = vor.u32 %v3550, %v3551
      %v3553 = vshrl.u32 %v3153, 16
      %v3555 = vrot.slane %v3553, 1
      %v3556 = vrot.slane %v3230, 2
      %v3557 = vor.u32 %v3555, %v3556
      %v3558 = vsel %vm3522, %v3552, %v3557
      %v3559 = vrot.slane %v3235, 1
      %v3560 = vrot.slane %v3237, 2
      %v3561 = vor.u32 %v3559, %v3560
      %v3562 = vshrl.u32 %v3155, 16
      %v3564 = vrot.slane %v3562, 1
      %v3565 = vrot.slane %v3242, 2
      %v3566 = vor.u32 %v3564, %v3565
      %v3567 = vsel %vm3522, %v3561, %v3566
      %v3568 = vrot.slane %v3247, 1
      %v3569 = vrot.slane %v3249, 2
      %v3570 = vor.u32 %v3568, %v3569
      %v3571 = vshrl.u32 %v3157, 16
      %v3573 = vrot.slane %v3571, 1
      %v3574 = vrot.slane %v3254, 2
      %v3575 = vor.u32 %v3573, %v3574
      %v3576 = vsel %vm3522, %v3570, %v3575
      %v3577 = vrot.slane %v3259, 1
      %v3578 = vrot.slane %v3261, 2
      %v3579 = vor.u32 %v3577, %v3578
      %v3580 = vshrl.u32 %v3159, 16
      %v3582 = vrot.slane %v3580, 1
      %v3583 = vrot.slane %v3266, 2
      %v3584 = vor.u32 %v3582, %v3583
      %v3585 = vsel %vm3522, %v3579, %v3584
      %v3586 = vrot.slane %v3271, 1
      %v3587 = vrot.slane %v3273, 2
      %v3588 = vor.u32 %v3586, %v3587
      %v3589 = vshrl.u32 %v3161, 16
      %v3591 = vrot.slane %v3589, 1
      %v3592 = vrot.slane %v3278, 2
      %v3593 = vor.u32 %v3591, %v3592
      %v3594 = vsel %vm3522, %v3588, %v3593
      %v3595 = vrot.slane %v3283, 1
      %v3596 = vrot.slane %v3285, 2
      %v3597 = vor.u32 %v3595, %v3596
      %v3598 = vshrl.u32 %v3163, 16
      %v3600 = vrot.slane %v3598, 1
      %v3601 = vrot.slane %v3290, 2
      %v3602 = vor.u32 %v3600, %v3601
      %v3603 = vsel %vm3522, %v3597, %v3602
      %v3604 = vrot.slane %v3295, 1
      %v3605 = vrot.slane %v3297, 2
      %v3606 = vor.u32 %v3604, %v3605
      %v3607 = vshrl.u32 %v3165, 16
      %v3609 = vrot.slane %v3607, 1
      %v3610 = vrot.slane %v3302, 2
      %v3611 = vor.u32 %v3609, %v3610
      %v3612 = vsel %vm3522, %v3606, %v3611
      %v3613 = vrot.slane %v3307, 1
      %v3614 = vrot.slane %v3309, 2
      %v3615 = vor.u32 %v3613, %v3614
      %v3616 = vshrl.u32 %v3167, 16
      %v3618 = vrot.slane %v3616, 1
      %v3619 = vrot.slane %v3314, 2
      %v3620 = vor.u32 %v3618, %v3619
      %v3621 = vsel %vm3522, %v3615, %v3620
      %v3622 = vrot.slane %v3319, 1
      %v3623 = vrot.slane %v3321, 2
      %v3624 = vor.u32 %v3622, %v3623
      %v3625 = vshrl.u32 %v3169, 16
      %v3627 = vrot.slane %v3625, 1
      %v3628 = vrot.slane %v3326, 2
      %v3629 = vor.u32 %v3627, %v3628
      %v3630 = vsel %vm3522, %v3624, %v3629
      %v3631 = vrot.slane %v3331, 1
      %v3632 = vrot.slane %v3333, 2
      %v3633 = vor.u32 %v3631, %v3632
      %v3634 = vshrl.u32 %v3171, 16
      %v3636 = vrot.slane %v3634, 1
      %v3637 = vrot.slane %v3338, 2
      %v3638 = vor.u32 %v3636, %v3637
      %v3639 = vsel %vm3522, %v3633, %v3638
      %v3640 = vrot.slane %v3343, 1
      %v3641 = vrot.slane %v3345, 2
      %v3642 = vor.u32 %v3640, %v3641
      %v3643 = vshrl.u32 %v3173, 16
      %v3645 = vrot.slane %v3643, 1
      %v3646 = vrot.slane %v3350, 2
      %v3647 = vor.u32 %v3645, %v3646
      %v3648 = vsel %vm3522, %v3642, %v3647
      %v3649 = vrot.slane %v3355, 1
      %v3650 = vrot.slane %v3357, 2
      %v3651 = vor.u32 %v3649, %v3650
      %v3652 = vshrl.u32 %v3175, 16
      %v3654 = vrot.slane %v3652, 1
      %v3655 = vrot.slane %v3362, 2
      %v3656 = vor.u32 %v3654, %v3655
      %v3657 = vsel %vm3522, %v3651, %v3656
      %v3658 = vrot.slane %v3367, 1
      %v3659 = vrot.slane %v3369, 2
      %v3660 = vor.u32 %v3658, %v3659
      %v3661 = vshrl.u32 %v3177, 16
      %v3663 = vrot.slane %v3661, 1
      %v3664 = vrot.slane %v3374, 2
      %v3665 = vor.u32 %v3663, %v3664
      %v3666 = vsel %vm3522, %v3660, %v3665
      %3667 = vrot.lane.b32.xlu0 %v3531, 96
      %v3668 = vpop.permute.xlu0 %3667
      %3669 = vrot.lane.b32.xlu0 %v3540, 96
      %v3670 = vpop.permute.xlu0 %3669
      %3671 = vrot.lane.b32.xlu0 %v3549, 96
      %v3672 = vpop.permute.xlu0 %3671
      %3673 = vrot.lane.b32.xlu0 %v3558, 96
      %v3674 = vpop.permute.xlu0 %3673
      %3675 = vrot.lane.b32.xlu0 %v3567, 96
      %v3676 = vpop.permute.xlu0 %3675
      %3677 = vrot.lane.b32.xlu0 %v3576, 96
      %v3678 = vpop.permute.xlu0 %3677
      %3679 = vrot.lane.b32.xlu0 %v3585, 96
      %v3680 = vpop.permute.xlu0 %3679
      %3681 = vrot.lane.b32.xlu0 %v3594, 96
      %v3682 = vpop.permute.xlu0 %3681
      %3683 = vrot.lane.b32.xlu0 %v3603, 96
      %v3684 = vpop.permute.xlu0 %3683
      %3685 = vrot.lane.b32.xlu0 %v3612, 96
      %v3686 = vpop.permute.xlu0 %3685
      %3687 = vrot.lane.b32.xlu0 %v3621, 96
      %v3688 = vpop.permute.xlu0 %3687
      %3689 = vrot.lane.b32.xlu0 %v3630, 96
      %v3690 = vpop.permute.xlu0 %3689
      %3691 = vrot.lane.b32.xlu0 %v3639, 96
      %v3692 = vpop.permute.xlu0 %3691
      %3693 = vrot.lane.b32.xlu0 %v3648, 96
      %v3694 = vpop.permute.xlu0 %3693
      %3695 = vrot.lane.b32.xlu0 %v3657, 96
      %v3696 = vpop.permute.xlu0 %3695
      %3697 = vrot.lane.b32.xlu0 %v3666, 96
      %v3698 = vpop.permute.xlu0 %3697
      %vm3699 = vcmask 1045504
      %v3700 = vrot.slane %v3146, 2
      %v3701 = vrot.slane %v3147, 2
      %v3702 = vsel %vm3699, %v3700, %v3701
      %v3703 = vrot.slane %v3148, 2
      %v3704 = vrot.slane %v3149, 2
      %v3705 = vsel %vm3699, %v3703, %v3704
      %v3706 = vrot.slane %v3150, 2
      %v3707 = vrot.slane %v3151, 2
      %v3708 = vsel %vm3699, %v3706, %v3707
      %v3709 = vrot.slane %v3152, 2
      %v3710 = vrot.slane %v3153, 2
      %v3711 = vsel %vm3699, %v3709, %v3710
      %v3712 = vrot.slane %v3154, 2
      %v3713 = vrot.slane %v3155, 2
      %v3714 = vsel %vm3699, %v3712, %v3713
      %v3715 = vrot.slane %v3156, 2
      %v3716 = vrot.slane %v3157, 2
      %v3717 = vsel %vm3699, %v3715, %v3716
      %v3718 = vrot.slane %v3158, 2
      %v3719 = vrot.slane %v3159, 2
      %v3720 = vsel %vm3699, %v3718, %v3719
      %v3721 = vrot.slane %v3160, 2
      %v3722 = vrot.slane %v3161, 2
      %v3723 = vsel %vm3699, %v3721, %v3722
      %v3724 = vrot.slane %v3162, 2
      %v3725 = vrot.slane %v3163, 2
      %v3726 = vsel %vm3699, %v3724, %v3725
      %v3727 = vrot.slane %v3164, 2
      %v3728 = vrot.slane %v3165, 2
      %v3729 = vsel %vm3699, %v3727, %v3728
      %v3730 = vrot.slane %v3166, 2
      %v3731 = vrot.slane %v3167, 2
      %v3732 = vsel %vm3699, %v3730, %v3731
      %v3733 = vrot.slane %v3168, 2
      %v3734 = vrot.slane %v3169, 2
      %v3735 = vsel %vm3699, %v3733, %v3734
      %v3736 = vrot.slane %v3170, 2
      %v3737 = vrot.slane %v3171, 2
      %v3738 = vsel %vm3699, %v3736, %v3737
      %v3739 = vrot.slane %v3172, 2
      %v3740 = vrot.slane %v3173, 2
      %v3741 = vsel %vm3699, %v3739, %v3740
      %v3742 = vrot.slane %v3174, 2
      %v3743 = vrot.slane %v3175, 2
      %v3744 = vsel %vm3699, %v3742, %v3743
      %v3745 = vrot.slane %v3176, 2
      %v3746 = vrot.slane %v3177, 2
      %v3747 = vsel %vm3699, %v3745, %v3746
      %v3749 = vsel %vm489, %v3146, %v3379
      %v3751 = vsel %vm489, %v3148, %v3381
      %v3753 = vsel %vm489, %v3150, %v3383
      %v3755 = vsel %vm489, %v3152, %v3385
      %v3757 = vsel %vm489, %v3154, %v3387
      %v3759 = vsel %vm489, %v3156, %v3389
      %v3761 = vsel %vm489, %v3158, %v3391
      %v3763 = vsel %vm489, %v3160, %v3393
      %v3765 = vsel %vm489, %v3162, %v3395
      %v3767 = vsel %vm489, %v3164, %v3397
      %v3769 = vsel %vm489, %v3166, %v3399
      %v3771 = vsel %vm489, %v3168, %v3401
      %v3773 = vsel %vm489, %v3170, %v3403
      %v3775 = vsel %vm489, %v3172, %v3405
      %v3777 = vsel %vm489, %v3174, %v3407
      %v3779 = vsel %vm489, %v3176, %v3409
      %v3781 = vsel %vm2235, %v3749, %v3491
      %v3783 = vsel %vm2235, %v3751, %v3493
      %v3785 = vsel %vm2235, %v3753, %v3495
      %v3787 = vsel %vm2235, %v3755, %v3497
      %v3789 = vsel %vm2235, %v3757, %v3499
      %v3791 = vsel %vm2235, %v3759, %v3501
      %v3793 = vsel %vm2235, %v3761, %v3503
      %v3795 = vsel %vm2235, %v3763, %v3505
      %v3797 = vsel %vm2235, %v3765, %v3507
      %v3799 = vsel %vm2235, %v3767, %v3509
      %v3801 = vsel %vm2235, %v3769, %v3511
      %v3803 = vsel %vm2235, %v3771, %v3513
      %v3805 = vsel %vm2235, %v3773, %v3515
      %v3807 = vsel %vm2235, %v3775, %v3517
      %v3809 = vsel %vm2235, %v3777, %v3519
      %v3811 = vsel %vm2235, %v3779, %v3521
      %v3813 = vsel %vm2353, %v3781, %v3668
      %v3816 = vsel %vm2353, %v3783, %v3670
      %v3819 = vsel %vm2353, %v3785, %v3672
      %v3822 = vsel %vm2353, %v3787, %v3674
      %v3825 = vsel %vm2353, %v3789, %v3676
      %v3828 = vsel %vm2353, %v3791, %v3678
      %v3831 = vsel %vm2353, %v3793, %v3680
      %v3834 = vsel %vm2353, %v3795, %v3682
      %v3837 = vsel %vm2353, %v3797, %v3684
      %v3840 = vsel %vm2353, %v3799, %v3686
      %v3843 = vsel %vm2353, %v3801, %v3688
      %v3846 = vsel %vm2353, %v3803, %v3690
      %v3849 = vsel %vm2353, %v3805, %v3692
      %v3852 = vsel %vm2353, %v3807, %v3694
      %v3855 = vsel %vm2353, %v3809, %v3696
      %v3858 = vsel %vm2353, %v3811, %v3698
      %v3860 = vld [vmem:[%s7] sm:$0xf]
      %v3861 = vld [vmem:[%s7 + $0x4] sm:$0xf]
      %v3862 = vld [vmem:[%s7 + $0x8] sm:$0xf]
      %v3863 = vld [vmem:[%s7 + $0xc] sm:$0xf]
      %v3864 = vld [vmem:[%s7 + $0x10] sm:$0xf]
      %v3865 = vld [vmem:[%s7 + $0x14] sm:$0xf]
      %v3866 = vld [vmem:[%s7 + $0x18] sm:$0xf]
      %v3867 = vld [vmem:[%s7 + $0x1c] sm:$0xf]
      %v3868 = vld [vmem:[%s7 + $0x20] sm:$0xf]
      %v3869 = vld [vmem:[%s7 + $0x24] sm:$0xf]
      %v3870 = vld [vmem:[%s7 + $0x28] sm:$0xf]
      %v3871 = vld [vmem:[%s7 + $0x2c] sm:$0xf]
      %v3872 = vld [vmem:[%s7 + $0x30] sm:$0xf]
      %v3873 = vld [vmem:[%s7 + $0x34] sm:$0xf]
      %v3874 = vld [vmem:[%s7 + $0x38] sm:$0xf]
      %v3875 = vld [vmem:[%s7 + $0x3c] sm:$0xf]
      %v3876 = vld [vmem:[%s7 + $0x40] sm:$0xf]
      %v3877 = vld [vmem:[%s7 + $0x44] sm:$0xf]
      %v3878 = vld [vmem:[%s7 + $0x48] sm:$0xf]
      %v3879 = vld [vmem:[%s7 + $0x4c] sm:$0xf]
      %v3881 = vshrl.u32 %v3178, 16
      %v3883 = vshll.u32 %v3178, 16
      %v3885 = vrot.slane %v3883, 1
      %v3886 = vor.u32 %v3881, %v3885
      %v3888 = vshll.u32 %v3179, 16
      %v3890 = vrot.slane %v3888, 1
      %v3891 = vsel %vm1865, %v3886, %v3890
      %3892 = vrot.lane.b32.xlu0 %v3891, 32
      %v3893 = vpop.permute.xlu0 %3892
      %v3896 = vrot.slane %v3178, 1
      %v3897 = vrot.slane %v3179, 1
      %v3898 = vsel %vm2122, %v3896, %v3897
      %3899 = vrot.lane.b32.xlu0 %v3898, 64
      %v3900 = vpop.permute.xlu0 %3899
      %v3901 = vrot.slane %v3881, 1
      %v3902 = vrot.slane %v3883, 2
      %v3903 = vor.u32 %v3901, %v3902
      %v3904 = vshrl.u32 %v3179, 16
      %v3906 = vrot.slane %v3904, 1
      %v3907 = vrot.slane %v3888, 2
      %v3908 = vor.u32 %v3906, %v3907
      %v3909 = vsel %vm3522, %v3903, %v3908
      %3910 = vrot.lane.b32.xlu0 %v3909, 96
      %v3911 = vpop.permute.xlu0 %3910
      %v3912 = vrot.slane %v3178, 2
      %v3913 = vrot.slane %v3179, 2
      %v3914 = vsel %vm3699, %v3912, %v3913
      %v3916 = vsel %vm489, %v3178, %v3893
      %v3918 = vsel %vm2235, %v3916, %v3900
      %v3920 = vsel %vm2353, %v3918, %v3911
      %v3922 = vld [vmem:[%s7 + $0x50] sm:$0xf]
      %v3923 = vld [vmem:[%s7 + $0x54] sm:$0xf]
      %v3924 = vld [vmem:[%s7 + $0x58] sm:$0xf]
      %v3925 = vld [vmem:[%s7 + $0x5c] sm:$0xf]
      %v3926 = vld [vmem:[%s7 + $0x60] sm:$0xf]
      %v3927 = vld [vmem:[%s7 + $0x64] sm:$0xf]
      %v3928 = vld [vmem:[%s7 + $0x68] sm:$0xf]
      %v3929 = vld [vmem:[%s7 + $0x6c] sm:$0xf]
      %v3930 = vld [vmem:[%s7 + $0x70] sm:$0xf]
      %v3931 = vld [vmem:[%s7 + $0x74] sm:$0xf]
      %v3932 = vld [vmem:[%s7 + $0x78] sm:$0xf]
      %v3933 = vld [vmem:[%s7 + $0x7c] sm:$0xf]
      %v3934 = vld [vmem:[%s7 + $0x80] sm:$0xf]
      %v3935 = vld [vmem:[%s7 + $0x84] sm:$0xf]
      %v3936 = vld [vmem:[%s7 + $0x88] sm:$0xf]
      %v3937 = vld [vmem:[%s7 + $0x8c] sm:$0xf]
      %v3938 = vld [vmem:[%s7 + $0x90] sm:$0xf]
      %v3939 = vld [vmem:[%s7 + $0x94] sm:$0xf]
      %v3940 = vld [vmem:[%s7 + $0x98] sm:$0xf]
      %v3941 = vld [vmem:[%s7 + $0x9c] sm:$0xf]
      %v3962 = vunpack.c.l.b16 %v3922
      %v3963 = vunpack.c.l.b16 %v3923
      %v3964 = vunpack.c.l.b16 %v3924
      %v3965 = vunpack.c.l.b16 %v3925
      %v3966 = vunpack.c.l.b16 %v3926
      %v3967 = vunpack.c.l.b16 %v3927
      %v3968 = vunpack.c.l.b16 %v3928
      %v3969 = vunpack.c.l.b16 %v3929
      %v3970 = vunpack.c.l.b16 %v3930
      %v3971 = vunpack.c.l.b16 %v3931
      %v3972 = vunpack.c.l.b16 %v3932
      %v3973 = vunpack.c.l.b16 %v3933
      %v3974 = vunpack.c.l.b16 %v3934
      %v3975 = vunpack.c.l.b16 %v3935
      %v3976 = vunpack.c.l.b16 %v3936
      %v3977 = vunpack.c.l.b16 %v3937
      %v3978 = vunpack.c.l.b16 %v3938
      %v3979 = vunpack.c.l.b16 %v3939
      %v3980 = vunpack.c.l.b16 %v3940
      %v3981 = vunpack.c.l.b16 %v3941
      %v3982 = vpack.c.b16 %v3963, %v3962
      %v3983 = vpack.c.b16 %v3965, %v3964
      %v3984 = vpack.c.b16 %v3967, %v3966
      %v3985 = vpack.c.b16 %v3969, %v3968
      %v3986 = vpack.c.b16 %v3971, %v3970
      %v3987 = vpack.c.b16 %v3973, %v3972
      %v3988 = vpack.c.b16 %v3975, %v3974
      %v3989 = vpack.c.b16 %v3977, %v3976
      %v3990 = vpack.c.b16 %v3979, %v3978
      %v3991 = vpack.c.b16 %v3981, %v3980
      %v4003 = vsel %vm489, %v3705, 0
      %v4006 = vsel %vm489, %v3708, 0
      %v4009 = vsel %vm489, %v3711, 0
      %v4012 = vsel %vm489, %v3714, 0
      %v4015 = vsel %vm489, %v3717, 0
      %v4018 = vsel %vm489, %v3720, 0
      %v4021 = vsel %vm489, %v3723, 0
      %v4024 = vsel %vm489, %v3726, 0
      %v4027 = vsel %vm489, %v3729, 0
      %v4030 = vsel %vm489, %v3732, 0
      %v4033 = vsel %vm489, %v3735, 0
      %v4036 = vsel %vm489, %v3738, 0
      %v4039 = vsel %vm489, %v3741, 0
      %v4042 = vsel %vm489, %v3744, 0
      %v4045 = vsel %vm489, %v3747, 0
      %v4048 = vsel %vm489, %v3914, 0
      %4050 = vmatprep.subr.bf16.mxu0 0
      %4051 = vmatpush1.bf16.msra.mxu0 %v3989
      %4052 = vmatprep.subr.bf16.mxu0 0
      %4053 = vmatpush1.bf16.msra.mxu0 %v3988
      %4054 = vmatprep.subr.bf16.mxu0 0
      %4055 = vmatpush1.bf16.msra.mxu0 %v3987
      %4056 = vmatprep.subr.bf16.mxu0 0
      %4057 = vmatpush1.bf16.msra.mxu0 %v3986
      %4058 = vmatprep.subr.bf16.mxu0 0
      %4059 = vmatpush1.bf16.msra.mxu0 %v3985
      %4060 = vmatprep.subr.bf16.mxu0 0
      %4061 = vmatpush1.bf16.msra.mxu0 %v3984
      %4062 = vmatprep.subr.bf16.mxu0 0
      %4063 = vmatpush1.bf16.msra.mxu0 %v3983
      %4064 = vmatprep.subr.bf16.mxu0 0
      %4065 = vmatpush1.bf16.msra.mxu0 %v3982
      %4066 = vmatprep.subr.bf16.mxu0 0
      %4067 = vmatpush2.bf16.msra.mxu0 0
      %4068 = vmatprep.subr.bf16.mxu0 0
      %4069 = vmatpush2.bf16.msra.mxu0 0
      %4070 = vmatprep.subr.bf16.mxu0 0
      %4071 = vmatpush2.bf16.msra.mxu0 0
      %4072 = vmatprep.subr.bf16.mxu0 0
      %4073 = vmatpush2.bf16.msra.mxu0 0
      %4074 = vmatprep.subr.bf16.mxu0 0
      %4075 = vmatpush2.bf16.msra.mxu0 0
      %4076 = vmatprep.subr.bf16.mxu0 0
      %4077 = vmatpush2.bf16.msra.mxu0 0
      %4078 = vmatprep.subr.bf16.mxu0 0
      %4079 = vmatpush2.bf16.msra.mxu0 %v3991
      %4080 = vmatprep.subr.bf16.mxu0 0
      %4081 = vmatpush2.bf16.msra.mxu0 %v3990
      %4082 = vmatprep.mubr.bf16.mxu0 %v4003
      %4083 = vmatmul.mubr.bf16.gmra.mxu0 %v3816
      %v4084 = vpop.f32.mrf.mxu0
      %v4085 = vadd.f32 0.0, %v4084
      %v4086 = vpop.f32.mrf.mxu0
      %v4087 = vpop.f32.mrf.mxu0
      %v4088 = vadd.f32 0.0, %v4087
      %v4089 = vpop.f32.mrf.mxu0
      %4090 = vmatprep.mubr.bf16.mxu0 %v4006
      %4091 = vmatmul.mubr.bf16.gmra.mxu0 %v3819
      %v4092 = vpop.f32.mrf.mxu0
      %v4093 = vadd.f32 0.0, %v4092
      %v4094 = vpop.f32.mrf.mxu0
      %v4095 = vpop.f32.mrf.mxu0
      %v4096 = vadd.f32 0.0, %v4095
      %v4097 = vpop.f32.mrf.mxu0
      %4098 = vmatprep.mubr.bf16.mxu0 %v4009
      %4099 = vmatmul.mubr.bf16.gmra.mxu0 %v3822
      %v4100 = vpop.f32.mrf.mxu0
      %v4101 = vadd.f32 0.0, %v4100
      %v4102 = vpop.f32.mrf.mxu0
      %v4103 = vpop.f32.mrf.mxu0
      %v4104 = vadd.f32 0.0, %v4103
      %v4105 = vpop.f32.mrf.mxu0
      %4106 = vmatprep.mubr.bf16.mxu0 %v4012
      %4107 = vmatmul.mubr.bf16.gmra.mxu0 %v3825
      %v4108 = vpop.f32.mrf.mxu0
      %v4109 = vadd.f32 0.0, %v4108
      %v4110 = vpop.f32.mrf.mxu0
      %v4111 = vpop.f32.mrf.mxu0
      %v4112 = vadd.f32 0.0, %v4111
      %v4113 = vpop.f32.mrf.mxu0
      %4114 = vmatprep.mubr.bf16.mxu0 %v4015
      %4115 = vmatmul.mubr.bf16.gmra.mxu0 %v3828
      %v4116 = vpop.f32.mrf.mxu0
      %v4117 = vadd.f32 0.0, %v4116
      %v4118 = vpop.f32.mrf.mxu0
      %v4119 = vpop.f32.mrf.mxu0
      %v4120 = vadd.f32 0.0, %v4119
      %v4121 = vpop.f32.mrf.mxu0
      %4122 = vmatprep.mubr.bf16.mxu0 %v4018
      %4123 = vmatmul.mubr.bf16.gmra.mxu0 %v3831
      %v4124 = vpop.f32.mrf.mxu0
      %v4125 = vadd.f32 0.0, %v4124
      %v4126 = vpop.f32.mrf.mxu0
      %v4127 = vpop.f32.mrf.mxu0
      %v4128 = vadd.f32 0.0, %v4127
      %v4129 = vpop.f32.mrf.mxu0
      %4130 = vmatprep.mubr.bf16.mxu0 %v4021
      %4131 = vmatmul.mubr.bf16.gmra.mxu0 %v3834
      %v4132 = vpop.f32.mrf.mxu0
      %v4133 = vadd.f32 0.0, %v4132
      %v4134 = vpop.f32.mrf.mxu0
      %v4135 = vpop.f32.mrf.mxu0
      %v4136 = vadd.f32 0.0, %v4135
      %v4137 = vpop.f32.mrf.mxu0
      %4138 = vmatprep.mubr.bf16.mxu0 %v4024
      %4139 = vmatmul.mubr.bf16.gmra.mxu0 %v3837
      %v4140 = vpop.f32.mrf.mxu0
      %v4141 = vadd.f32 0.0, %v4140
      %v4142 = vpop.f32.mrf.mxu0
      %v4143 = vpop.f32.mrf.mxu0
      %v4144 = vadd.f32 0.0, %v4143
      %v4145 = vpop.f32.mrf.mxu0
      %4146 = vmatprep.mubr.bf16.mxu0 %v4027
      %4147 = vmatmul.mubr.bf16.gmra.mxu0 %v3840
      %v4148 = vpop.f32.mrf.mxu0
      %v4149 = vadd.f32 0.0, %v4148
      %v4150 = vpop.f32.mrf.mxu0
      %v4151 = vpop.f32.mrf.mxu0
      %v4152 = vadd.f32 0.0, %v4151
      %v4153 = vpop.f32.mrf.mxu0
      %4154 = vmatprep.mubr.bf16.mxu0 %v4030
      %4155 = vmatmul.mubr.bf16.gmra.mxu0 %v3843
      %v4156 = vpop.f32.mrf.mxu0
      %v4157 = vadd.f32 0.0, %v4156
      %v4158 = vpop.f32.mrf.mxu0
      %v4159 = vpop.f32.mrf.mxu0
      %v4160 = vadd.f32 0.0, %v4159
      %v4161 = vpop.f32.mrf.mxu0
      %4162 = vmatprep.mubr.bf16.mxu0 %v4033
      %4163 = vmatmul.mubr.bf16.gmra.mxu0 %v3846
      %v4164 = vpop.f32.mrf.mxu0
      %v4165 = vadd.f32 0.0, %v4164
      %v4166 = vpop.f32.mrf.mxu0
      %v4167 = vpop.f32.mrf.mxu0
      %v4168 = vadd.f32 0.0, %v4167
      %v4169 = vpop.f32.mrf.mxu0
      %4170 = vmatprep.mubr.bf16.mxu0 %v4036
      %4171 = vmatmul.mubr.bf16.gmra.mxu0 %v3849
      %v4172 = vpop.f32.mrf.mxu0
      %v4173 = vadd.f32 0.0, %v4172
      %v4174 = vpop.f32.mrf.mxu0
      %v4175 = vpop.f32.mrf.mxu0
      %v4176 = vadd.f32 0.0, %v4175
      %v4177 = vpop.f32.mrf.mxu0
      %4178 = vmatprep.mubr.bf16.mxu0 %v4039
      %4179 = vmatmul.mubr.bf16.gmra.mxu0 %v3852
      %v4180 = vpop.f32.mrf.mxu0
      %v4181 = vadd.f32 0.0, %v4180
      %v4182 = vpop.f32.mrf.mxu0
      %v4183 = vpop.f32.mrf.mxu0
      %v4184 = vadd.f32 0.0, %v4183
      %v4185 = vpop.f32.mrf.mxu0
      %4186 = vmatprep.mubr.bf16.mxu0 %v4042
      %4187 = vmatmul.mubr.bf16.gmra.mxu0 %v3855
      %v4188 = vpop.f32.mrf.mxu0
      %v4189 = vadd.f32 0.0, %v4188
      %v4190 = vpop.f32.mrf.mxu0
      %v4191 = vpop.f32.mrf.mxu0
      %v4192 = vadd.f32 0.0, %v4191
      %v4193 = vpop.f32.mrf.mxu0
      %4194 = vmatprep.mubr.bf16.mxu0 %v4045
      %4195 = vmatmul.mubr.bf16.gmra.mxu0 %v3858
      %v4196 = vpop.f32.mrf.mxu0
      %v4197 = vadd.f32 0.0, %v4196
      %v4198 = vpop.f32.mrf.mxu0
      %v4199 = vpop.f32.mrf.mxu0
      %v4200 = vadd.f32 0.0, %v4199
      %v4201 = vpop.f32.mrf.mxu0
      %4202 = vmatprep.mubr.bf16.mxu0 %v4048
      %4203 = vmatmul.mubr.bf16.gmra.mxu0 %v3920
      %v4204 = vpop.f32.mrf.mxu0
      %v4205 = vadd.f32 0.0, %v4204
      %v4206 = vpop.f32.mrf.mxu0
      %v4207 = vpop.f32.mrf.mxu0
      %v4208 = vadd.f32 0.0, %v4207
      %v4209 = vpop.f32.mrf.mxu0
      %4210 = vdwg.mxu0
      %v4231 = vunpack.c.l.b16 %v3860
      %v4232 = vunpack.c.l.b16 %v3861
      %v4233 = vunpack.c.l.b16 %v3862
      %v4234 = vunpack.c.l.b16 %v3863
      %v4235 = vunpack.c.l.b16 %v3864
      %v4236 = vunpack.c.l.b16 %v3865
      %v4237 = vunpack.c.l.b16 %v3866
      %v4238 = vunpack.c.l.b16 %v3867
      %v4239 = vunpack.c.l.b16 %v3868
      %v4240 = vunpack.c.l.b16 %v3869
      %v4241 = vunpack.c.l.b16 %v3870
      %v4242 = vunpack.c.l.b16 %v3871
      %v4243 = vunpack.c.l.b16 %v3872
      %v4244 = vunpack.c.l.b16 %v3873
      %v4245 = vunpack.c.l.b16 %v3874
      %v4246 = vunpack.c.l.b16 %v3875
      %v4247 = vunpack.c.l.b16 %v3876
      %v4248 = vunpack.c.l.b16 %v3877
      %v4249 = vunpack.c.l.b16 %v3878
      %v4250 = vunpack.c.l.b16 %v3879
      %v4251 = vpack.c.b16 %v4232, %v4231
      %v4252 = vpack.c.b16 %v4234, %v4233
      %v4253 = vpack.c.b16 %v4236, %v4235
      %v4254 = vpack.c.b16 %v4238, %v4237
      %v4255 = vpack.c.b16 %v4240, %v4239
      %v4256 = vpack.c.b16 %v4242, %v4241
      %v4257 = vpack.c.b16 %v4244, %v4243
      %v4258 = vpack.c.b16 %v4246, %v4245
      %v4259 = vpack.c.b16 %v4248, %v4247
      %v4260 = vpack.c.b16 %v4250, %v4249
      %v4272 = vsel %vm489, %v3702, 0
      %4274 = vmatprep.subr.bf16.mxu0 0
      %4275 = vmatpush1.bf16.msra.mxu0 %v4258
      %4276 = vmatprep.subr.bf16.mxu0 0
      %4277 = vmatpush1.bf16.msra.mxu0 %v4257
      %4278 = vmatprep.subr.bf16.mxu0 0
      %4279 = vmatpush1.bf16.msra.mxu0 %v4256
      %4280 = vmatprep.subr.bf16.mxu0 0
      %4281 = vmatpush1.bf16.msra.mxu0 %v4255
      %4282 = vmatprep.subr.bf16.mxu0 0
      %4283 = vmatpush1.bf16.msra.mxu0 %v4254
      %4284 = vmatprep.subr.bf16.mxu0 0
      %4285 = vmatpush1.bf16.msra.mxu0 %v4253
      %4286 = vmatprep.subr.bf16.mxu0 0
      %4287 = vmatpush1.bf16.msra.mxu0 %v4252
      %4288 = vmatprep.subr.bf16.mxu0 0
      %4289 = vmatpush1.bf16.msra.mxu0 %v4251
      %4290 = vmatprep.subr.bf16.mxu0 0
      %4291 = vmatpush2.bf16.msra.mxu0 0
      %4292 = vmatprep.subr.bf16.mxu0 0
      %4293 = vmatpush2.bf16.msra.mxu0 0
      %4294 = vmatprep.subr.bf16.mxu0 0
      %4295 = vmatpush2.bf16.msra.mxu0 0
      %4296 = vmatprep.subr.bf16.mxu0 0
      %4297 = vmatpush2.bf16.msra.mxu0 0
      %4298 = vmatprep.subr.bf16.mxu0 0
      %4299 = vmatpush2.bf16.msra.mxu0 0
      %4300 = vmatprep.subr.bf16.mxu0 0
      %4301 = vmatpush2.bf16.msra.mxu0 0
      %4302 = vmatprep.subr.bf16.mxu0 0
      %4303 = vmatpush2.bf16.msra.mxu0 %v4260
      %4304 = vmatprep.subr.bf16.mxu0 0
      %4305 = vmatpush2.bf16.msra.mxu0 %v4259
      %4306 = vmatprep.mubr.bf16.mxu0 %v4272
      %4307 = vmatmul.mubr.bf16.gmra.mxu0 %v3813
      %v4308 = vpop.f32.mrf.mxu0
      %v4309 = vadd.f32 %v4085, %v4308
      %v4310 = vpop.f32.mrf.mxu0
      %v4311 = vpop.f32.mrf.mxu0
      %v4312 = vadd.f32 %v4088, %v4311
      %v4313 = vpop.f32.mrf.mxu0
      %4314 = vmatprep.mubr.bf16.mxu0 %v4003
      %4315 = vmatmul.mubr.bf16.gmra.mxu0 %v3816
      %v4316 = vpop.f32.mrf.mxu0
      %v4317 = vadd.f32 %v4093, %v4316
      %v4318 = vpop.f32.mrf.mxu0
      %v4319 = vpop.f32.mrf.mxu0
      %v4320 = vadd.f32 %v4096, %v4319
      %v4321 = vpop.f32.mrf.mxu0
      %4322 = vmatprep.mubr.bf16.mxu0 %v4006
      %4323 = vmatmul.mubr.bf16.gmra.mxu0 %v3819
      %v4324 = vpop.f32.mrf.mxu0
      %v4325 = vadd.f32 %v4101, %v4324
      %v4326 = vpop.f32.mrf.mxu0
      %v4327 = vpop.f32.mrf.mxu0
      %v4328 = vadd.f32 %v4104, %v4327
      %v4329 = vpop.f32.mrf.mxu0
      %4330 = vmatprep.mubr.bf16.mxu0 %v4009
      %4331 = vmatmul.mubr.bf16.gmra.mxu0 %v3822
      %v4332 = vpop.f32.mrf.mxu0
      %v4333 = vadd.f32 %v4109, %v4332
      %v4334 = vpop.f32.mrf.mxu0
      %v4335 = vpop.f32.mrf.mxu0
      %v4336 = vadd.f32 %v4112, %v4335
      %v4337 = vpop.f32.mrf.mxu0
      %4338 = vmatprep.mubr.bf16.mxu0 %v4012
      %4339 = vmatmul.mubr.bf16.gmra.mxu0 %v3825
      %v4340 = vpop.f32.mrf.mxu0
      %v4341 = vadd.f32 %v4117, %v4340
      %v4342 = vpop.f32.mrf.mxu0
      %v4343 = vpop.f32.mrf.mxu0
      %v4344 = vadd.f32 %v4120, %v4343
      %v4345 = vpop.f32.mrf.mxu0
      %4346 = vmatprep.mubr.bf16.mxu0 %v4015
      %4347 = vmatmul.mubr.bf16.gmra.mxu0 %v3828
      %v4348 = vpop.f32.mrf.mxu0
      %v4349 = vadd.f32 %v4125, %v4348
      %v4350 = vpop.f32.mrf.mxu0
      %v4351 = vpop.f32.mrf.mxu0
      %v4352 = vadd.f32 %v4128, %v4351
      %v4353 = vpop.f32.mrf.mxu0
      %4354 = vmatprep.mubr.bf16.mxu0 %v4018
      %4355 = vmatmul.mubr.bf16.gmra.mxu0 %v3831
      %v4356 = vpop.f32.mrf.mxu0
      %v4357 = vadd.f32 %v4133, %v4356
      %v4358 = vpop.f32.mrf.mxu0
      %v4359 = vpop.f32.mrf.mxu0
      %v4360 = vadd.f32 %v4136, %v4359
      %v4361 = vpop.f32.mrf.mxu0
      %4362 = vmatprep.mubr.bf16.mxu0 %v4021
      %4363 = vmatmul.mubr.bf16.gmra.mxu0 %v3834
      %v4364 = vpop.f32.mrf.mxu0
      %v4365 = vadd.f32 %v4141, %v4364
      %v4366 = vpop.f32.mrf.mxu0
      %v4367 = vpop.f32.mrf.mxu0
      %v4368 = vadd.f32 %v4144, %v4367
      %v4369 = vpop.f32.mrf.mxu0
      %4370 = vmatprep.mubr.bf16.mxu0 %v4024
      %4371 = vmatmul.mubr.bf16.gmra.mxu0 %v3837
      %v4372 = vpop.f32.mrf.mxu0
      %v4373 = vadd.f32 %v4149, %v4372
      %v4374 = vpop.f32.mrf.mxu0
      %v4375 = vpop.f32.mrf.mxu0
      %v4376 = vadd.f32 %v4152, %v4375
      %v4377 = vpop.f32.mrf.mxu0
      %4378 = vmatprep.mubr.bf16.mxu0 %v4027
      %4379 = vmatmul.mubr.bf16.gmra.mxu0 %v3840
      %v4380 = vpop.f32.mrf.mxu0
      %v4381 = vadd.f32 %v4157, %v4380
      %v4382 = vpop.f32.mrf.mxu0
      %v4383 = vpop.f32.mrf.mxu0
      %v4384 = vadd.f32 %v4160, %v4383
      %v4385 = vpop.f32.mrf.mxu0
      %4386 = vmatprep.mubr.bf16.mxu0 %v4030
      %4387 = vmatmul.mubr.bf16.gmra.mxu0 %v3843
      %v4388 = vpop.f32.mrf.mxu0
      %v4389 = vadd.f32 %v4165, %v4388
      %v4390 = vpop.f32.mrf.mxu0
      %v4391 = vpop.f32.mrf.mxu0
      %v4392 = vadd.f32 %v4168, %v4391
      %v4393 = vpop.f32.mrf.mxu0
      %4394 = vmatprep.mubr.bf16.mxu0 %v4033
      %4395 = vmatmul.mubr.bf16.gmra.mxu0 %v3846
      %v4396 = vpop.f32.mrf.mxu0
      %v4397 = vadd.f32 %v4173, %v4396
      %v4398 = vpop.f32.mrf.mxu0
      %v4399 = vpop.f32.mrf.mxu0
      %v4400 = vadd.f32 %v4176, %v4399
      %v4401 = vpop.f32.mrf.mxu0
      %4402 = vmatprep.mubr.bf16.mxu0 %v4036
      %4403 = vmatmul.mubr.bf16.gmra.mxu0 %v3849
      %v4404 = vpop.f32.mrf.mxu0
      %v4405 = vadd.f32 %v4181, %v4404
      %v4406 = vpop.f32.mrf.mxu0
      %v4407 = vpop.f32.mrf.mxu0
      %v4408 = vadd.f32 %v4184, %v4407
      %v4409 = vpop.f32.mrf.mxu0
      %4410 = vmatprep.mubr.bf16.mxu0 %v4039
      %4411 = vmatmul.mubr.bf16.gmra.mxu0 %v3852
      %v4412 = vpop.f32.mrf.mxu0
      %v4413 = vadd.f32 %v4189, %v4412
      %v4414 = vpop.f32.mrf.mxu0
      %v4415 = vpop.f32.mrf.mxu0
      %v4416 = vadd.f32 %v4192, %v4415
      %v4417 = vpop.f32.mrf.mxu0
      %4418 = vmatprep.mubr.bf16.mxu0 %v4042
      %4419 = vmatmul.mubr.bf16.gmra.mxu0 %v3855
      %v4420 = vpop.f32.mrf.mxu0
      %v4421 = vadd.f32 %v4197, %v4420
      %v4422 = vpop.f32.mrf.mxu0
      %v4423 = vpop.f32.mrf.mxu0
      %v4424 = vadd.f32 %v4200, %v4423
      %v4425 = vpop.f32.mrf.mxu0
      %4426 = vmatprep.mubr.bf16.mxu0 %v4045
      %4427 = vmatmul.mubr.bf16.gmra.mxu0 %v3858
      %v4428 = vpop.f32.mrf.mxu0
      %v4429 = vadd.f32 %v4205, %v4428
      %v4430 = vpop.f32.mrf.mxu0
      %v4431 = vpop.f32.mrf.mxu0
      %v4432 = vadd.f32 %v4208, %v4431
      %v4433 = vpop.f32.mrf.mxu0
      %4434 = vdwg.mxu0
      %v4436 = vshrl.u32 %v3180, 16
      %v4438 = vshll.u32 %v3180, 16
      %v4440 = vrot.slane %v4438, 1
      %v4441 = vor.u32 %v4436, %v4440
      %v4443 = vshll.u32 %v3181, 16
      %v4445 = vrot.slane %v4443, 1
      %v4446 = vsel %vm1865, %v4441, %v4445
      %4447 = vrot.lane.b32.xlu0 %v4446, 32
      %v4448 = vpop.permute.xlu0 %4447
      %v4451 = vrot.slane %v3180, 1
      %v4452 = vrot.slane %v3181, 1
      %v4453 = vsel %vm2122, %v4451, %v4452
      %4454 = vrot.lane.b32.xlu0 %v4453, 64
      %v4455 = vpop.permute.xlu0 %4454
      %v4456 = vrot.slane %v4436, 1
      %v4457 = vrot.slane %v4438, 2
      %v4458 = vor.u32 %v4456, %v4457
      %v4459 = vshrl.u32 %v3181, 16
      %v4461 = vrot.slane %v4459, 1
      %v4462 = vrot.slane %v4443, 2
      %v4463 = vor.u32 %v4461, %v4462
      %v4464 = vsel %vm3522, %v4458, %v4463
      %4465 = vrot.lane.b32.xlu0 %v4464, 96
      %v4466 = vpop.permute.xlu0 %4465
      %v4467 = vrot.slane %v3180, 2
      %v4468 = vrot.slane %v3181, 2
      %v4469 = vsel %vm3699, %v4467, %v4468
      %v4471 = vsel %vm489, %v3180, %v4448
      %v4473 = vsel %vm2235, %v4471, %v4455
      %v4475 = vsel %vm2353, %v4473, %v4466
      %v4477 = vld [vmem:[%s7 + $0xa0] sm:$0xf]
      %v4478 = vld [vmem:[%s7 + $0xa4] sm:$0xf]
      %v4479 = vld [vmem:[%s7 + $0xa8] sm:$0xf]
      %v4480 = vld [vmem:[%s7 + $0xac] sm:$0xf]
      %v4481 = vld [vmem:[%s7 + $0xb0] sm:$0xf]
      %v4482 = vld [vmem:[%s7 + $0xb4] sm:$0xf]
      %v4483 = vld [vmem:[%s7 + $0xb8] sm:$0xf]
      %v4484 = vld [vmem:[%s7 + $0xbc] sm:$0xf]
      %v4485 = vld [vmem:[%s7 + $0xc0] sm:$0xf]
      %v4486 = vld [vmem:[%s7 + $0xc4] sm:$0xf]
      %v4487 = vld [vmem:[%s7 + $0xc8] sm:$0xf]
      %v4488 = vld [vmem:[%s7 + $0xcc] sm:$0xf]
      %v4489 = vld [vmem:[%s7 + $0xd0] sm:$0xf]
      %v4490 = vld [vmem:[%s7 + $0xd4] sm:$0xf]
      %v4491 = vld [vmem:[%s7 + $0xd8] sm:$0xf]
      %v4492 = vld [vmem:[%s7 + $0xdc] sm:$0xf]
      %v4493 = vld [vmem:[%s7 + $0xe0] sm:$0xf]
      %v4494 = vld [vmem:[%s7 + $0xe4] sm:$0xf]
      %v4495 = vld [vmem:[%s7 + $0xe8] sm:$0xf]
      %v4496 = vld [vmem:[%s7 + $0xec] sm:$0xf]
      %v4517 = vunpack.c.l.b16 %v4477
      %v4518 = vunpack.c.l.b16 %v4478
      %v4519 = vunpack.c.l.b16 %v4479
      %v4520 = vunpack.c.l.b16 %v4480
      %v4521 = vunpack.c.l.b16 %v4481
      %v4522 = vunpack.c.l.b16 %v4482
      %v4523 = vunpack.c.l.b16 %v4483
      %v4524 = vunpack.c.l.b16 %v4484
      %v4525 = vunpack.c.l.b16 %v4485
      %v4526 = vunpack.c.l.b16 %v4486
      %v4527 = vunpack.c.l.b16 %v4487
      %v4528 = vunpack.c.l.b16 %v4488
      %v4529 = vunpack.c.l.b16 %v4489
      %v4530 = vunpack.c.l.b16 %v4490
      %v4531 = vunpack.c.l.b16 %v4491
      %v4532 = vunpack.c.l.b16 %v4492
      %v4533 = vunpack.c.l.b16 %v4493
      %v4534 = vunpack.c.l.b16 %v4494
      %v4535 = vunpack.c.l.b16 %v4495
      %v4536 = vunpack.c.l.b16 %v4496
      %v4537 = vpack.c.b16 %v4518, %v4517
      %v4538 = vpack.c.b16 %v4520, %v4519
      %v4539 = vpack.c.b16 %v4522, %v4521
      %v4540 = vpack.c.b16 %v4524, %v4523
      %v4541 = vpack.c.b16 %v4526, %v4525
      %v4542 = vpack.c.b16 %v4528, %v4527
      %v4543 = vpack.c.b16 %v4530, %v4529
      %v4544 = vpack.c.b16 %v4532, %v4531
      %v4545 = vpack.c.b16 %v4534, %v4533
      %v4546 = vpack.c.b16 %v4536, %v4535
      %v4558 = vsel %vm489, %v4469, 0
      %4560 = vmatprep.subr.bf16.mxu0 0
      %4561 = vmatpush1.bf16.msra.mxu0 %v4544
      %4562 = vmatprep.subr.bf16.mxu0 0
      %4563 = vmatpush1.bf16.msra.mxu0 %v4543
      %4564 = vmatprep.subr.bf16.mxu0 0
      %4565 = vmatpush1.bf16.msra.mxu0 %v4542
      %4566 = vmatprep.subr.bf16.mxu0 0
      %4567 = vmatpush1.bf16.msra.mxu0 %v4541
      %4568 = vmatprep.subr.bf16.mxu0 0
      %4569 = vmatpush1.bf16.msra.mxu0 %v4540
      %4570 = vmatprep.subr.bf16.mxu0 0
      %4571 = vmatpush1.bf16.msra.mxu0 %v4539
      %4572 = vmatprep.subr.bf16.mxu0 0
      %4573 = vmatpush1.bf16.msra.mxu0 %v4538
      %4574 = vmatprep.subr.bf16.mxu0 0
      %4575 = vmatpush1.bf16.msra.mxu0 %v4537
      %4576 = vmatprep.subr.bf16.mxu0 0
      %4577 = vmatpush2.bf16.msra.mxu0 0
      %4578 = vmatprep.subr.bf16.mxu0 0
      %4579 = vmatpush2.bf16.msra.mxu0 0
      %4580 = vmatprep.subr.bf16.mxu0 0
      %4581 = vmatpush2.bf16.msra.mxu0 0
      %4582 = vmatprep.subr.bf16.mxu0 0
      %4583 = vmatpush2.bf16.msra.mxu0 0
      %4584 = vmatprep.subr.bf16.mxu0 0
      %4585 = vmatpush2.bf16.msra.mxu0 0
      %4586 = vmatprep.subr.bf16.mxu0 0
      %4587 = vmatpush2.bf16.msra.mxu0 0
      %4588 = vmatprep.subr.bf16.mxu0 0
      %4589 = vmatpush2.bf16.msra.mxu0 %v4546
      %4590 = vmatprep.subr.bf16.mxu0 0
      %4591 = vmatpush2.bf16.msra.mxu0 %v4545
      %4592 = vmatprep.mubr.bf16.mxu0 %v4006
      %4593 = vmatmul.mubr.bf16.gmra.mxu0 %v3819
      %v4594 = vpop.f32.mrf.mxu0
      %v4595 = vadd.f32 0.0, %v4594
      %v4596 = vpop.f32.mrf.mxu0
      %v4597 = vpop.f32.mrf.mxu0
      %v4598 = vadd.f32 0.0, %v4597
      %v4599 = vpop.f32.mrf.mxu0
      %4600 = vmatprep.mubr.bf16.mxu0 %v4009
      %4601 = vmatmul.mubr.bf16.gmra.mxu0 %v3822
      %v4602 = vpop.f32.mrf.mxu0
      %v4603 = vadd.f32 0.0, %v4602
      %v4604 = vpop.f32.mrf.mxu0
      %v4605 = vpop.f32.mrf.mxu0
      %v4606 = vadd.f32 0.0, %v4605
      %v4607 = vpop.f32.mrf.mxu0
      %4608 = vmatprep.mubr.bf16.mxu0 %v4012
      %4609 = vmatmul.mubr.bf16.gmra.mxu0 %v3825
      %v4610 = vpop.f32.mrf.mxu0
      %v4611 = vadd.f32 0.0, %v4610
      %v4612 = vpop.f32.mrf.mxu0
      %v4613 = vpop.f32.mrf.mxu0
      %v4614 = vadd.f32 0.0, %v4613
      %v4615 = vpop.f32.mrf.mxu0
      %4616 = vmatprep.mubr.bf16.mxu0 %v4015
      %4617 = vmatmul.mubr.bf16.gmra.mxu0 %v3828
      %v4618 = vpop.f32.mrf.mxu0
      %v4619 = vadd.f32 0.0, %v4618
      %v4620 = vpop.f32.mrf.mxu0
      %v4621 = vpop.f32.mrf.mxu0
      %v4622 = vadd.f32 0.0, %v4621
      %v4623 = vpop.f32.mrf.mxu0
      %4624 = vmatprep.mubr.bf16.mxu0 %v4018
      %4625 = vmatmul.mubr.bf16.gmra.mxu0 %v3831
      %v4626 = vpop.f32.mrf.mxu0
      %v4627 = vadd.f32 0.0, %v4626
      %v4628 = vpop.f32.mrf.mxu0
      %v4629 = vpop.f32.mrf.mxu0
      %v4630 = vadd.f32 0.0, %v4629
      %v4631 = vpop.f32.mrf.mxu0
      %4632 = vmatprep.mubr.bf16.mxu0 %v4021
      %4633 = vmatmul.mubr.bf16.gmra.mxu0 %v3834
      %v4634 = vpop.f32.mrf.mxu0
      %v4635 = vadd.f32 0.0, %v4634
      %v4636 = vpop.f32.mrf.mxu0
      %v4637 = vpop.f32.mrf.mxu0
      %v4638 = vadd.f32 0.0, %v4637
      %v4639 = vpop.f32.mrf.mxu0
      %4640 = vmatprep.mubr.bf16.mxu0 %v4024
      %4641 = vmatmul.mubr.bf16.gmra.mxu0 %v3837
      %v4642 = vpop.f32.mrf.mxu0
      %v4643 = vadd.f32 0.0, %v4642
      %v4644 = vpop.f32.mrf.mxu0
      %v4645 = vpop.f32.mrf.mxu0
      %v4646 = vadd.f32 0.0, %v4645
      %v4647 = vpop.f32.mrf.mxu0
      %4648 = vmatprep.mubr.bf16.mxu0 %v4027
      %4649 = vmatmul.mubr.bf16.gmra.mxu0 %v3840
      %v4650 = vpop.f32.mrf.mxu0
      %v4651 = vadd.f32 0.0, %v4650
      %v4652 = vpop.f32.mrf.mxu0
      %v4653 = vpop.f32.mrf.mxu0
      %v4654 = vadd.f32 0.0, %v4653
      %v4655 = vpop.f32.mrf.mxu0
      %4656 = vmatprep.mubr.bf16.mxu0 %v4030
      %4657 = vmatmul.mubr.bf16.gmra.mxu0 %v3843
      %v4658 = vpop.f32.mrf.mxu0
      %v4659 = vadd.f32 0.0, %v4658
      %v4660 = vpop.f32.mrf.mxu0
      %v4661 = vpop.f32.mrf.mxu0
      %v4662 = vadd.f32 0.0, %v4661
      %v4663 = vpop.f32.mrf.mxu0
      %4664 = vmatprep.mubr.bf16.mxu0 %v4033
      %4665 = vmatmul.mubr.bf16.gmra.mxu0 %v3846
      %v4666 = vpop.f32.mrf.mxu0
      %v4667 = vadd.f32 0.0, %v4666
      %v4668 = vpop.f32.mrf.mxu0
      %v4669 = vpop.f32.mrf.mxu0
      %v4670 = vadd.f32 0.0, %v4669
      %v4671 = vpop.f32.mrf.mxu0
      %4672 = vmatprep.mubr.bf16.mxu0 %v4036
      %4673 = vmatmul.mubr.bf16.gmra.mxu0 %v3849
      %v4674 = vpop.f32.mrf.mxu0
      %v4675 = vadd.f32 0.0, %v4674
      %v4676 = vpop.f32.mrf.mxu0
      %v4677 = vpop.f32.mrf.mxu0
      %v4678 = vadd.f32 0.0, %v4677
      %v4679 = vpop.f32.mrf.mxu0
      %4680 = vmatprep.mubr.bf16.mxu0 %v4039
      %4681 = vmatmul.mubr.bf16.gmra.mxu0 %v3852
      %v4682 = vpop.f32.mrf.mxu0
      %v4683 = vadd.f32 0.0, %v4682
      %v4684 = vpop.f32.mrf.mxu0
      %v4685 = vpop.f32.mrf.mxu0
      %v4686 = vadd.f32 0.0, %v4685
      %v4687 = vpop.f32.mrf.mxu0
      %4688 = vmatprep.mubr.bf16.mxu0 %v4042
      %4689 = vmatmul.mubr.bf16.gmra.mxu0 %v3855
      %v4690 = vpop.f32.mrf.mxu0
      %v4691 = vadd.f32 0.0, %v4690
      %v4692 = vpop.f32.mrf.mxu0
      %v4693 = vpop.f32.mrf.mxu0
      %v4694 = vadd.f32 0.0, %v4693
      %v4695 = vpop.f32.mrf.mxu0
      %4696 = vmatprep.mubr.bf16.mxu0 %v4045
      %4697 = vmatmul.mubr.bf16.gmra.mxu0 %v3858
      %v4698 = vpop.f32.mrf.mxu0
      %v4699 = vadd.f32 0.0, %v4698
      %v4700 = vpop.f32.mrf.mxu0
      %v4701 = vpop.f32.mrf.mxu0
      %v4702 = vadd.f32 0.0, %v4701
      %v4703 = vpop.f32.mrf.mxu0
      %4704 = vmatprep.mubr.bf16.mxu0 %v4048
      %4705 = vmatmul.mubr.bf16.gmra.mxu0 %v3920
      %v4706 = vpop.f32.mrf.mxu0
      %v4707 = vadd.f32 0.0, %v4706
      %v4708 = vpop.f32.mrf.mxu0
      %v4709 = vpop.f32.mrf.mxu0
      %v4710 = vadd.f32 0.0, %v4709
      %v4711 = vpop.f32.mrf.mxu0
      %4712 = vmatprep.mubr.bf16.mxu0 %v4558
      %4713 = vmatmul.mubr.bf16.gmra.mxu0 %v4475
      %v4714 = vpop.f32.mrf.mxu0
      %v4715 = vadd.f32 0.0, %v4714
      %v4716 = vpop.f32.mrf.mxu0
      %v4717 = vpop.f32.mrf.mxu0
      %v4718 = vadd.f32 0.0, %v4717
      %v4719 = vpop.f32.mrf.mxu0
      %4720 = vdwg.mxu0
      %v4721 = vadd.f32 %v4309, %v4595
      %v4722 = vadd.f32 %v4312, %v4598
      %v4723 = vadd.f32 %v4317, %v4603
      %v4724 = vadd.f32 %v4320, %v4606
      %v4725 = vadd.f32 %v4325, %v4611
      %v4726 = vadd.f32 %v4328, %v4614
      %v4727 = vadd.f32 %v4333, %v4619
      %v4728 = vadd.f32 %v4336, %v4622
      %v4729 = vadd.f32 %v4341, %v4627
      %v4730 = vadd.f32 %v4344, %v4630
      %v4731 = vadd.f32 %v4349, %v4635
      %v4732 = vadd.f32 %v4352, %v4638
      %v4733 = vadd.f32 %v4357, %v4643
      %v4734 = vadd.f32 %v4360, %v4646
      %v4735 = vadd.f32 %v4365, %v4651
      %v4736 = vadd.f32 %v4368, %v4654
      %v4737 = vadd.f32 %v4373, %v4659
      %v4738 = vadd.f32 %v4376, %v4662
      %v4739 = vadd.f32 %v4381, %v4667
      %v4740 = vadd.f32 %v4384, %v4670
      %v4741 = vadd.f32 %v4389, %v4675
      %v4742 = vadd.f32 %v4392, %v4678
      %v4743 = vadd.f32 %v4397, %v4683
      %v4744 = vadd.f32 %v4400, %v4686
      %v4745 = vadd.f32 %v4405, %v4691
      %v4746 = vadd.f32 %v4408, %v4694
      %v4747 = vadd.f32 %v4413, %v4699
      %v4748 = vadd.f32 %v4416, %v4702
      %v4749 = vadd.f32 %v4421, %v4707
      %v4750 = vadd.f32 %v4424, %v4710
      %v4751 = vadd.f32 %v4429, %v4715
      %v4752 = vadd.f32 %v4432, %v4718
      %v4754 = vshrl.u32 %v3182, 16
      %v4756 = vshll.u32 %v3182, 16
      %v4758 = vrot.slane %v4756, 1
      %v4759 = vor.u32 %v4754, %v4758
      %v4761 = vshll.u32 %v3183, 16
      %v4763 = vrot.slane %v4761, 1
      %v4764 = vsel %vm1865, %v4759, %v4763
      %4765 = vrot.lane.b32.xlu0 %v4764, 32
      %v4766 = vpop.permute.xlu0 %4765
      %v4769 = vrot.slane %v3182, 1
      %v4770 = vrot.slane %v3183, 1
      %v4771 = vsel %vm2122, %v4769, %v4770
      %4772 = vrot.lane.b32.xlu0 %v4771, 64
      %v4773 = vpop.permute.xlu0 %4772
      %v4774 = vrot.slane %v4754, 1
      %v4775 = vrot.slane %v4756, 2
      %v4776 = vor.u32 %v4774, %v4775
      %v4777 = vshrl.u32 %v3183, 16
      %v4779 = vrot.slane %v4777, 1
      %v4780 = vrot.slane %v4761, 2
      %v4781 = vor.u32 %v4779, %v4780
      %v4782 = vsel %vm3522, %v4776, %v4781
      %4783 = vrot.lane.b32.xlu0 %v4782, 96
      %v4784 = vpop.permute.xlu0 %4783
      %v4785 = vrot.slane %v3182, 2
      %v4786 = vrot.slane %v3183, 2
      %v4787 = vsel %vm3699, %v4785, %v4786
      %v4789 = vsel %vm489, %v3182, %v4766
      %v4791 = vsel %vm2235, %v4789, %v4773
      %v4793 = vsel %vm2353, %v4791, %v4784
      %v4795 = vld [vmem:[%s7 + $0xf0] sm:$0xf]
      %v4796 = vld [vmem:[%s7 + $0xf4] sm:$0xf]
      %v4797 = vld [vmem:[%s7 + $0xf8] sm:$0xf]
      %v4798 = vld [vmem:[%s7 + $0xfc] sm:$0xf]
      %v4799 = vld [vmem:[%s7 + $0x100] sm:$0xf]
      %v4800 = vld [vmem:[%s7 + $0x104] sm:$0xf]
      %v4801 = vld [vmem:[%s7 + $0x108] sm:$0xf]
      %v4802 = vld [vmem:[%s7 + $0x10c] sm:$0xf]
      %v4803 = vld [vmem:[%s7 + $0x110] sm:$0xf]
      %v4804 = vld [vmem:[%s7 + $0x114] sm:$0xf]
      %v4805 = vld [vmem:[%s7 + $0x118] sm:$0xf]
      %v4806 = vld [vmem:[%s7 + $0x11c] sm:$0xf]
      %v4807 = vld [vmem:[%s7 + $0x120] sm:$0xf]
      %v4808 = vld [vmem:[%s7 + $0x124] sm:$0xf]
      %v4809 = vld [vmem:[%s7 + $0x128] sm:$0xf]
      %v4810 = vld [vmem:[%s7 + $0x12c] sm:$0xf]
      %v4811 = vld [vmem:[%s7 + $0x130] sm:$0xf]
      %v4812 = vld [vmem:[%s7 + $0x134] sm:$0xf]
      %v4813 = vld [vmem:[%s7 + $0x138] sm:$0xf]
      %v4814 = vld [vmem:[%s7 + $0x13c] sm:$0xf]
      %v4835 = vunpack.c.l.b16 %v4795
      %v4836 = vunpack.c.l.b16 %v4796
      %v4837 = vunpack.c.l.b16 %v4797
      %v4838 = vunpack.c.l.b16 %v4798
      %v4839 = vunpack.c.l.b16 %v4799
      %v4840 = vunpack.c.l.b16 %v4800
      %v4841 = vunpack.c.l.b16 %v4801
      %v4842 = vunpack.c.l.b16 %v4802
      %v4843 = vunpack.c.l.b16 %v4803
      %v4844 = vunpack.c.l.b16 %v4804
      %v4845 = vunpack.c.l.b16 %v4805
      %v4846 = vunpack.c.l.b16 %v4806
      %v4847 = vunpack.c.l.b16 %v4807
      %v4848 = vunpack.c.l.b16 %v4808
      %v4849 = vunpack.c.l.b16 %v4809
      %v4850 = vunpack.c.l.b16 %v4810
      %v4851 = vunpack.c.l.b16 %v4811
      %v4852 = vunpack.c.l.b16 %v4812
      %v4853 = vunpack.c.l.b16 %v4813
      %v4854 = vunpack.c.l.b16 %v4814
      %v4855 = vpack.c.b16 %v4836, %v4835
      %v4856 = vpack.c.b16 %v4838, %v4837
      %v4857 = vpack.c.b16 %v4840, %v4839
      %v4858 = vpack.c.b16 %v4842, %v4841
      %v4859 = vpack.c.b16 %v4844, %v4843
      %v4860 = vpack.c.b16 %v4846, %v4845
      %v4861 = vpack.c.b16 %v4848, %v4847
      %v4862 = vpack.c.b16 %v4850, %v4849
      %v4863 = vpack.c.b16 %v4852, %v4851
      %v4864 = vpack.c.b16 %v4854, %v4853
      %v4876 = vsel %vm489, %v4787, 0
      %4878 = vmatprep.subr.bf16.mxu0 0
      %4879 = vmatpush1.bf16.msra.mxu0 %v4862
      %4880 = vmatprep.subr.bf16.mxu0 0
      %4881 = vmatpush1.bf16.msra.mxu0 %v4861
      %4882 = vmatprep.subr.bf16.mxu0 0
      %4883 = vmatpush1.bf16.msra.mxu0 %v4860
      %4884 = vmatprep.subr.bf16.mxu0 0
      %4885 = vmatpush1.bf16.msra.mxu0 %v4859
      %4886 = vmatprep.subr.bf16.mxu0 0
      %4887 = vmatpush1.bf16.msra.mxu0 %v4858
      %4888 = vmatprep.subr.bf16.mxu0 0
      %4889 = vmatpush1.bf16.msra.mxu0 %v4857
      %4890 = vmatprep.subr.bf16.mxu0 0
      %4891 = vmatpush1.bf16.msra.mxu0 %v4856
      %4892 = vmatprep.subr.bf16.mxu0 0
      %4893 = vmatpush1.bf16.msra.mxu0 %v4855
      %4894 = vmatprep.subr.bf16.mxu0 0
      %4895 = vmatpush2.bf16.msra.mxu0 0
      %4896 = vmatprep.subr.bf16.mxu0 0
      %4897 = vmatpush2.bf16.msra.mxu0 0
      %4898 = vmatprep.subr.bf16.mxu0 0
      %4899 = vmatpush2.bf16.msra.mxu0 0
      %4900 = vmatprep.subr.bf16.mxu0 0
      %4901 = vmatpush2.bf16.msra.mxu0 0
      %4902 = vmatprep.subr.bf16.mxu0 0
      %4903 = vmatpush2.bf16.msra.mxu0 0
      %4904 = vmatprep.subr.bf16.mxu0 0
      %4905 = vmatpush2.bf16.msra.mxu0 0
      %4906 = vmatprep.subr.bf16.mxu0 0
      %4907 = vmatpush2.bf16.msra.mxu0 %v4864
      %4908 = vmatprep.subr.bf16.mxu0 0
      %4909 = vmatpush2.bf16.msra.mxu0 %v4863
      %4910 = vmatprep.mubr.bf16.mxu0 %v4009
      %4911 = vmatmul.mubr.bf16.gmra.mxu0 %v3822
      %v4912 = vpop.f32.mrf.mxu0
      %v4913 = vadd.f32 0.0, %v4912
      %v4914 = vpop.f32.mrf.mxu0
      %v4915 = vpop.f32.mrf.mxu0
      %v4916 = vadd.f32 0.0, %v4915
      %v4917 = vpop.f32.mrf.mxu0
      %4918 = vmatprep.mubr.bf16.mxu0 %v4012
      %4919 = vmatmul.mubr.bf16.gmra.mxu0 %v3825
      %v4920 = vpop.f32.mrf.mxu0
      %v4921 = vadd.f32 0.0, %v4920
      %v4922 = vpop.f32.mrf.mxu0
      %v4923 = vpop.f32.mrf.mxu0
      %v4924 = vadd.f32 0.0, %v4923
      %v4925 = vpop.f32.mrf.mxu0
      %4926 = vmatprep.mubr.bf16.mxu0 %v4015
      %4927 = vmatmul.mubr.bf16.gmra.mxu0 %v3828
      %v4928 = vpop.f32.mrf.mxu0
      %v4929 = vadd.f32 0.0, %v4928
      %v4930 = vpop.f32.mrf.mxu0
      %v4931 = vpop.f32.mrf.mxu0
      %v4932 = vadd.f32 0.0, %v4931
      %v4933 = vpop.f32.mrf.mxu0
      %4934 = vmatprep.mubr.bf16.mxu0 %v4018
      %4935 = vmatmul.mubr.bf16.gmra.mxu0 %v3831
      %v4936 = vpop.f32.mrf.mxu0
      %v4937 = vadd.f32 0.0, %v4936
      %v4938 = vpop.f32.mrf.mxu0
      %v4939 = vpop.f32.mrf.mxu0
      %v4940 = vadd.f32 0.0, %v4939
      %v4941 = vpop.f32.mrf.mxu0
      %4942 = vmatprep.mubr.bf16.mxu0 %v4021
      %4943 = vmatmul.mubr.bf16.gmra.mxu0 %v3834
      %v4944 = vpop.f32.mrf.mxu0
      %v4945 = vadd.f32 0.0, %v4944
      %v4946 = vpop.f32.mrf.mxu0
      %v4947 = vpop.f32.mrf.mxu0
      %v4948 = vadd.f32 0.0, %v4947
      %v4949 = vpop.f32.mrf.mxu0
      %4950 = vmatprep.mubr.bf16.mxu0 %v4024
      %4951 = vmatmul.mubr.bf16.gmra.mxu0 %v3837
      %v4952 = vpop.f32.mrf.mxu0
      %v4953 = vadd.f32 0.0, %v4952
      %v4954 = vpop.f32.mrf.mxu0
      %v4955 = vpop.f32.mrf.mxu0
      %v4956 = vadd.f32 0.0, %v4955
      %v4957 = vpop.f32.mrf.mxu0
      %4958 = vmatprep.mubr.bf16.mxu0 %v4027
      %4959 = vmatmul.mubr.bf16.gmra.mxu0 %v3840
      %v4960 = vpop.f32.mrf.mxu0
      %v4961 = vadd.f32 0.0, %v4960
      %v4962 = vpop.f32.mrf.mxu0
      %v4963 = vpop.f32.mrf.mxu0
      %v4964 = vadd.f32 0.0, %v4963
      %v4965 = vpop.f32.mrf.mxu0
      %4966 = vmatprep.mubr.bf16.mxu0 %v4030
      %4967 = vmatmul.mubr.bf16.gmra.mxu0 %v3843
      %v4968 = vpop.f32.mrf.mxu0
      %v4969 = vadd.f32 0.0, %v4968
      %v4970 = vpop.f32.mrf.mxu0
      %v4971 = vpop.f32.mrf.mxu0
      %v4972 = vadd.f32 0.0, %v4971
      %v4973 = vpop.f32.mrf.mxu0
      %4974 = vmatprep.mubr.bf16.mxu0 %v4033
      %4975 = vmatmul.mubr.bf16.gmra.mxu0 %v3846
      %v4976 = vpop.f32.mrf.mxu0
      %v4977 = vadd.f32 0.0, %v4976
      %v4978 = vpop.f32.mrf.mxu0
      %v4979 = vpop.f32.mrf.mxu0
      %v4980 = vadd.f32 0.0, %v4979
      %v4981 = vpop.f32.mrf.mxu0
      %4982 = vmatprep.mubr.bf16.mxu0 %v4036
      %4983 = vmatmul.mubr.bf16.gmra.mxu0 %v3849
      %v4984 = vpop.f32.mrf.mxu0
      %v4985 = vadd.f32 0.0, %v4984
      %v4986 = vpop.f32.mrf.mxu0
      %v4987 = vpop.f32.mrf.mxu0
      %v4988 = vadd.f32 0.0, %v4987
      %v4989 = vpop.f32.mrf.mxu0
      %4990 = vmatprep.mubr.bf16.mxu0 %v4039
      %4991 = vmatmul.mubr.bf16.gmra.mxu0 %v3852
      %v4992 = vpop.f32.mrf.mxu0
      %v4993 = vadd.f32 0.0, %v4992
      %v4994 = vpop.f32.mrf.mxu0
      %v4995 = vpop.f32.mrf.mxu0
      %v4996 = vadd.f32 0.0, %v4995
      %v4997 = vpop.f32.mrf.mxu0
      %4998 = vmatprep.mubr.bf16.mxu0 %v4042
      %4999 = vmatmul.mubr.bf16.gmra.mxu0 %v3855
      %v5000 = vpop.f32.mrf.mxu0
      %v5001 = vadd.f32 0.0, %v5000
      %v5002 = vpop.f32.mrf.mxu0
      %v5003 = vpop.f32.mrf.mxu0
      %v5004 = vadd.f32 0.0, %v5003
      %v5005 = vpop.f32.mrf.mxu0
      %5006 = vmatprep.mubr.bf16.mxu0 %v4045
      %5007 = vmatmul.mubr.bf16.gmra.mxu0 %v3858
      %v5008 = vpop.f32.mrf.mxu0
      %v5009 = vadd.f32 0.0, %v5008
      %v5010 = vpop.f32.mrf.mxu0
      %v5011 = vpop.f32.mrf.mxu0
      %v5012 = vadd.f32 0.0, %v5011
      %v5013 = vpop.f32.mrf.mxu0
      %5014 = vmatprep.mubr.bf16.mxu0 %v4048
      %5015 = vmatmul.mubr.bf16.gmra.mxu0 %v3920
      %v5016 = vpop.f32.mrf.mxu0
      %v5017 = vadd.f32 0.0, %v5016
      %v5018 = vpop.f32.mrf.mxu0
      %v5019 = vpop.f32.mrf.mxu0
      %v5020 = vadd.f32 0.0, %v5019
      %v5021 = vpop.f32.mrf.mxu0
      %5022 = vmatprep.mubr.bf16.mxu0 %v4558
      %5023 = vmatmul.mubr.bf16.gmra.mxu0 %v4475
      %v5024 = vpop.f32.mrf.mxu0
      %v5025 = vadd.f32 0.0, %v5024
      %v5026 = vpop.f32.mrf.mxu0
      %v5027 = vpop.f32.mrf.mxu0
      %v5028 = vadd.f32 0.0, %v5027
      %v5029 = vpop.f32.mrf.mxu0
      %5030 = vmatprep.mubr.bf16.mxu0 %v4876
      %5031 = vmatmul.mubr.bf16.gmra.mxu0 %v4793
      %v5032 = vpop.f32.mrf.mxu0
      %v5033 = vadd.f32 0.0, %v5032
      %v5034 = vpop.f32.mrf.mxu0
      %v5035 = vpop.f32.mrf.mxu0
      %v5036 = vadd.f32 0.0, %v5035
      %v5037 = vpop.f32.mrf.mxu0
      %5038 = vdwg.mxu0
      %v5039 = vadd.f32 %v4721, %v4913
      %v5040 = vadd.f32 %v4722, %v4916
      %v5041 = vadd.f32 %v4723, %v4921
      %v5042 = vadd.f32 %v4724, %v4924
      %v5043 = vadd.f32 %v4725, %v4929
      %v5044 = vadd.f32 %v4726, %v4932
      %v5045 = vadd.f32 %v4727, %v4937
      %v5046 = vadd.f32 %v4728, %v4940
      %v5047 = vadd.f32 %v4729, %v4945
      %v5048 = vadd.f32 %v4730, %v4948
      %v5049 = vadd.f32 %v4731, %v4953
      %v5050 = vadd.f32 %v4732, %v4956
      %v5051 = vadd.f32 %v4733, %v4961
      %v5052 = vadd.f32 %v4734, %v4964
      %v5053 = vadd.f32 %v4735, %v4969
      %v5054 = vadd.f32 %v4736, %v4972
      %v5055 = vadd.f32 %v4737, %v4977
      %v5056 = vadd.f32 %v4738, %v4980
      %v5057 = vadd.f32 %v4739, %v4985
      %v5058 = vadd.f32 %v4740, %v4988
      %v5059 = vadd.f32 %v4741, %v4993
      %v5060 = vadd.f32 %v4742, %v4996
      %v5061 = vadd.f32 %v4743, %v5001
      %v5062 = vadd.f32 %v4744, %v5004
      %v5063 = vadd.f32 %v4745, %v5009
      %v5064 = vadd.f32 %v4746, %v5012
      %v5065 = vadd.f32 %v4747, %v5017
      %v5066 = vadd.f32 %v4748, %v5020
      %v5067 = vadd.f32 %v4749, %v5025
      %v5068 = vadd.f32 %v4750, %v5028
      %v5069 = vadd.f32 %v4751, %v5033
      %v5070 = vadd.f32 %v4752, %v5036
      %v5072 = vshrl.u32 %v3184, 16
      %v5074 = vshll.u32 %v3184, 16
      %v5076 = vrot.slane %v5074, 1
      %v5077 = vor.u32 %v5072, %v5076
      %v5079 = vshll.u32 %v3185, 16
      %v5081 = vrot.slane %v5079, 1
      %v5082 = vsel %vm1865, %v5077, %v5081
      %5083 = vrot.lane.b32.xlu0 %v5082, 32
      %v5084 = vpop.permute.xlu0 %5083
      %v5087 = vrot.slane %v3184, 1
      %v5088 = vrot.slane %v3185, 1
      %v5089 = vsel %vm2122, %v5087, %v5088
      %5090 = vrot.lane.b32.xlu0 %v5089, 64
      %v5091 = vpop.permute.xlu0 %5090
      %v5092 = vrot.slane %v5072, 1
      %v5093 = vrot.slane %v5074, 2
      %v5094 = vor.u32 %v5092, %v5093
      %v5095 = vshrl.u32 %v3185, 16
      %v5097 = vrot.slane %v5095, 1
      %v5098 = vrot.slane %v5079, 2
      %v5099 = vor.u32 %v5097, %v5098
      %v5100 = vsel %vm3522, %v5094, %v5099
      %5101 = vrot.lane.b32.xlu0 %v5100, 96
      %v5102 = vpop.permute.xlu0 %5101
      %v5103 = vrot.slane %v3184, 2
      %v5104 = vrot.slane %v3185, 2
      %v5105 = vsel %vm3699, %v5103, %v5104
      %v5107 = vsel %vm489, %v3184, %v5084
      %v5109 = vsel %vm2235, %v5107, %v5091
      %v5111 = vsel %vm2353, %v5109, %v5102
      %v5113 = vld [vmem:[%s7 + $0x140] sm:$0xf]
      %v5114 = vld [vmem:[%s7 + $0x144] sm:$0xf]
      %v5115 = vld [vmem:[%s7 + $0x148] sm:$0xf]
      %v5116 = vld [vmem:[%s7 + $0x14c] sm:$0xf]
      %v5117 = vld [vmem:[%s7 + $0x150] sm:$0xf]
      %v5118 = vld [vmem:[%s7 + $0x154] sm:$0xf]
      %v5119 = vld [vmem:[%s7 + $0x158] sm:$0xf]
      %v5120 = vld [vmem:[%s7 + $0x15c] sm:$0xf]
      %v5121 = vld [vmem:[%s7 + $0x160] sm:$0xf]
      %v5122 = vld [vmem:[%s7 + $0x164] sm:$0xf]
      %v5123 = vld [vmem:[%s7 + $0x168] sm:$0xf]
      %v5124 = vld [vmem:[%s7 + $0x16c] sm:$0xf]
      %v5125 = vld [vmem:[%s7 + $0x170] sm:$0xf]
      %v5126 = vld [vmem:[%s7 + $0x174] sm:$0xf]
      %v5127 = vld [vmem:[%s7 + $0x178] sm:$0xf]
      %v5128 = vld [vmem:[%s7 + $0x17c] sm:$0xf]
      %v5129 = vld [vmem:[%s7 + $0x180] sm:$0xf]
      %v5130 = vld [vmem:[%s7 + $0x184] sm:$0xf]
      %v5131 = vld [vmem:[%s7 + $0x188] sm:$0xf]
      %v5132 = vld [vmem:[%s7 + $0x18c] sm:$0xf]
      %v5153 = vunpack.c.l.b16 %v5113
      %v5154 = vunpack.c.l.b16 %v5114
      %v5155 = vunpack.c.l.b16 %v5115
      %v5156 = vunpack.c.l.b16 %v5116
      %v5157 = vunpack.c.l.b16 %v5117
      %v5158 = vunpack.c.l.b16 %v5118
      %v5159 = vunpack.c.l.b16 %v5119
      %v5160 = vunpack.c.l.b16 %v5120
      %v5161 = vunpack.c.l.b16 %v5121
      %v5162 = vunpack.c.l.b16 %v5122
      %v5163 = vunpack.c.l.b16 %v5123
      %v5164 = vunpack.c.l.b16 %v5124
      %v5165 = vunpack.c.l.b16 %v5125
      %v5166 = vunpack.c.l.b16 %v5126
      %v5167 = vunpack.c.l.b16 %v5127
      %v5168 = vunpack.c.l.b16 %v5128
      %v5169 = vunpack.c.l.b16 %v5129
      %v5170 = vunpack.c.l.b16 %v5130
      %v5171 = vunpack.c.l.b16 %v5131
      %v5172 = vunpack.c.l.b16 %v5132
      %v5173 = vpack.c.b16 %v5154, %v5153
      %v5174 = vpack.c.b16 %v5156, %v5155
      %v5175 = vpack.c.b16 %v5158, %v5157
      %v5176 = vpack.c.b16 %v5160, %v5159
      %v5177 = vpack.c.b16 %v5162, %v5161
      %v5178 = vpack.c.b16 %v5164, %v5163
      %v5179 = vpack.c.b16 %v5166, %v5165
      %v5180 = vpack.c.b16 %v5168, %v5167
      %v5181 = vpack.c.b16 %v5170, %v5169
      %v5182 = vpack.c.b16 %v5172, %v5171
      %v5194 = vsel %vm489, %v5105, 0
      %5196 = vmatprep.subr.bf16.mxu0 0
      %5197 = vmatpush1.bf16.msra.mxu0 %v5180
      %5198 = vmatprep.subr.bf16.mxu0 0
      %5199 = vmatpush1.bf16.msra.mxu0 %v5179
      %5200 = vmatprep.subr.bf16.mxu0 0
      %5201 = vmatpush1.bf16.msra.mxu0 %v5178
      %5202 = vmatprep.subr.bf16.mxu0 0
      %5203 = vmatpush1.bf16.msra.mxu0 %v5177
      %5204 = vmatprep.subr.bf16.mxu0 0
      %5205 = vmatpush1.bf16.msra.mxu0 %v5176
      %5206 = vmatprep.subr.bf16.mxu0 0
      %5207 = vmatpush1.bf16.msra.mxu0 %v5175
      %5208 = vmatprep.subr.bf16.mxu0 0
      %5209 = vmatpush1.bf16.msra.mxu0 %v5174
      %5210 = vmatprep.subr.bf16.mxu0 0
      %5211 = vmatpush1.bf16.msra.mxu0 %v5173
      %5212 = vmatprep.subr.bf16.mxu0 0
      %5213 = vmatpush2.bf16.msra.mxu0 0
      %5214 = vmatprep.subr.bf16.mxu0 0
      %5215 = vmatpush2.bf16.msra.mxu0 0
      %5216 = vmatprep.subr.bf16.mxu0 0
      %5217 = vmatpush2.bf16.msra.mxu0 0
      %5218 = vmatprep.subr.bf16.mxu0 0
      %5219 = vmatpush2.bf16.msra.mxu0 0
      %5220 = vmatprep.subr.bf16.mxu0 0
      %5221 = vmatpush2.bf16.msra.mxu0 0
      %5222 = vmatprep.subr.bf16.mxu0 0
      %5223 = vmatpush2.bf16.msra.mxu0 0
      %5224 = vmatprep.subr.bf16.mxu0 0
      %5225 = vmatpush2.bf16.msra.mxu0 %v5182
      %5226 = vmatprep.subr.bf16.mxu0 0
      %5227 = vmatpush2.bf16.msra.mxu0 %v5181
      %5228 = vmatprep.mubr.bf16.mxu0 %v4012
      %5229 = vmatmul.mubr.bf16.gmra.mxu0 %v3825
      %v5230 = vpop.f32.mrf.mxu0
      %v5231 = vadd.f32 0.0, %v5230
      %v5232 = vpop.f32.mrf.mxu0
      %v5233 = vpop.f32.mrf.mxu0
      %v5234 = vadd.f32 0.0, %v5233
      %v5235 = vpop.f32.mrf.mxu0
      %5236 = vmatprep.mubr.bf16.mxu0 %v4015
      %5237 = vmatmul.mubr.bf16.gmra.mxu0 %v3828
      %v5238 = vpop.f32.mrf.mxu0
      %v5239 = vadd.f32 0.0, %v5238
      %v5240 = vpop.f32.mrf.mxu0
      %v5241 = vpop.f32.mrf.mxu0
      %v5242 = vadd.f32 0.0, %v5241
      %v5243 = vpop.f32.mrf.mxu0
      %5244 = vmatprep.mubr.bf16.mxu0 %v4018
      %5245 = vmatmul.mubr.bf16.gmra.mxu0 %v3831
      %v5246 = vpop.f32.mrf.mxu0
      %v5247 = vadd.f32 0.0, %v5246
      %v5248 = vpop.f32.mrf.mxu0
      %v5249 = vpop.f32.mrf.mxu0
      %v5250 = vadd.f32 0.0, %v5249
      %v5251 = vpop.f32.mrf.mxu0
      %5252 = vmatprep.mubr.bf16.mxu0 %v4021
      %5253 = vmatmul.mubr.bf16.gmra.mxu0 %v3834
      %v5254 = vpop.f32.mrf.mxu0
      %v5255 = vadd.f32 0.0, %v5254
      %v5256 = vpop.f32.mrf.mxu0
      %v5257 = vpop.f32.mrf.mxu0
      %v5258 = vadd.f32 0.0, %v5257
      %v5259 = vpop.f32.mrf.mxu0
      %5260 = vmatprep.mubr.bf16.mxu0 %v4024
      %5261 = vmatmul.mubr.bf16.gmra.mxu0 %v3837
      %v5262 = vpop.f32.mrf.mxu0
      %v5263 = vadd.f32 0.0, %v5262
      %v5264 = vpop.f32.mrf.mxu0
      %v5265 = vpop.f32.mrf.mxu0
      %v5266 = vadd.f32 0.0, %v5265
      %v5267 = vpop.f32.mrf.mxu0
      %5268 = vmatprep.mubr.bf16.mxu0 %v4027
      %5269 = vmatmul.mubr.bf16.gmra.mxu0 %v3840
      %v5270 = vpop.f32.mrf.mxu0
      %v5271 = vadd.f32 0.0, %v5270
      %v5272 = vpop.f32.mrf.mxu0
      %v5273 = vpop.f32.mrf.mxu0
      %v5274 = vadd.f32 0.0, %v5273
      %v5275 = vpop.f32.mrf.mxu0
      %5276 = vmatprep.mubr.bf16.mxu0 %v4030
      %5277 = vmatmul.mubr.bf16.gmra.mxu0 %v3843
      %v5278 = vpop.f32.mrf.mxu0
      %v5279 = vadd.f32 0.0, %v5278
      %v5280 = vpop.f32.mrf.mxu0
      %v5281 = vpop.f32.mrf.mxu0
      %v5282 = vadd.f32 0.0, %v5281
      %v5283 = vpop.f32.mrf.mxu0
      %5284 = vmatprep.mubr.bf16.mxu0 %v4033
      %5285 = vmatmul.mubr.bf16.gmra.mxu0 %v3846
      %v5286 = vpop.f32.mrf.mxu0
      %v5287 = vadd.f32 0.0, %v5286
      %v5288 = vpop.f32.mrf.mxu0
      %v5289 = vpop.f32.mrf.mxu0
      %v5290 = vadd.f32 0.0, %v5289
      %v5291 = vpop.f32.mrf.mxu0
      %5292 = vmatprep.mubr.bf16.mxu0 %v4036
      %5293 = vmatmul.mubr.bf16.gmra.mxu0 %v3849
      %v5294 = vpop.f32.mrf.mxu0
      %v5295 = vadd.f32 0.0, %v5294
      %v5296 = vpop.f32.mrf.mxu0
      %v5297 = vpop.f32.mrf.mxu0
      %v5298 = vadd.f32 0.0, %v5297
      %v5299 = vpop.f32.mrf.mxu0
      %5300 = vmatprep.mubr.bf16.mxu0 %v4039
      %5301 = vmatmul.mubr.bf16.gmra.mxu0 %v3852
      %v5302 = vpop.f32.mrf.mxu0
      %v5303 = vadd.f32 0.0, %v5302
      %v5304 = vpop.f32.mrf.mxu0
      %v5305 = vpop.f32.mrf.mxu0
      %v5306 = vadd.f32 0.0, %v5305
      %v5307 = vpop.f32.mrf.mxu0
      %5308 = vmatprep.mubr.bf16.mxu0 %v4042
      %5309 = vmatmul.mubr.bf16.gmra.mxu0 %v3855
      %v5310 = vpop.f32.mrf.mxu0
      %v5311 = vadd.f32 0.0, %v5310
      %v5312 = vpop.f32.mrf.mxu0
      %v5313 = vpop.f32.mrf.mxu0
      %v5314 = vadd.f32 0.0, %v5313
      %v5315 = vpop.f32.mrf.mxu0
      %5316 = vmatprep.mubr.bf16.mxu0 %v4045
      %5317 = vmatmul.mubr.bf16.gmra.mxu0 %v3858
      %v5318 = vpop.f32.mrf.mxu0
      %v5319 = vadd.f32 0.0, %v5318
      %v5320 = vpop.f32.mrf.mxu0
      %v5321 = vpop.f32.mrf.mxu0
      %v5322 = vadd.f32 0.0, %v5321
      %v5323 = vpop.f32.mrf.mxu0
      %5324 = vmatprep.mubr.bf16.mxu0 %v4048
      %5325 = vmatmul.mubr.bf16.gmra.mxu0 %v3920
      %v5326 = vpop.f32.mrf.mxu0
      %v5327 = vadd.f32 0.0, %v5326
      %v5328 = vpop.f32.mrf.mxu0
      %v5329 = vpop.f32.mrf.mxu0
      %v5330 = vadd.f32 0.0, %v5329
      %v5331 = vpop.f32.mrf.mxu0
      %5332 = vmatprep.mubr.bf16.mxu0 %v4558
      %5333 = vmatmul.mubr.bf16.gmra.mxu0 %v4475
      %v5334 = vpop.f32.mrf.mxu0
      %v5335 = vadd.f32 0.0, %v5334
      %v5336 = vpop.f32.mrf.mxu0
      %v5337 = vpop.f32.mrf.mxu0
      %v5338 = vadd.f32 0.0, %v5337
      %v5339 = vpop.f32.mrf.mxu0
      %5340 = vmatprep.mubr.bf16.mxu0 %v4876
      %5341 = vmatmul.mubr.bf16.gmra.mxu0 %v4793
      %v5342 = vpop.f32.mrf.mxu0
      %v5343 = vadd.f32 0.0, %v5342
      %v5344 = vpop.f32.mrf.mxu0
      %v5345 = vpop.f32.mrf.mxu0
      %v5346 = vadd.f32 0.0, %v5345
      %v5347 = vpop.f32.mrf.mxu0
      %5348 = vmatprep.mubr.bf16.mxu0 %v5194
      %5349 = vmatmul.mubr.bf16.gmra.mxu0 %v5111
      %v5350 = vpop.f32.mrf.mxu0
      %v5351 = vadd.f32 0.0, %v5350
      %v5352 = vpop.f32.mrf.mxu0
      %v5353 = vpop.f32.mrf.mxu0
      %v5354 = vadd.f32 0.0, %v5353
      %v5355 = vpop.f32.mrf.mxu0
      %5356 = vdwg.mxu0
      %v5357 = vadd.f32 %v5039, %v5231
      %v5358 = vadd.f32 %v5040, %v5234
      %v5359 = vadd.f32 %v5041, %v5239
      %v5360 = vadd.f32 %v5042, %v5242
      %v5361 = vadd.f32 %v5043, %v5247
      %v5362 = vadd.f32 %v5044, %v5250
      %v5363 = vadd.f32 %v5045, %v5255
      %v5364 = vadd.f32 %v5046, %v5258
      %v5365 = vadd.f32 %v5047, %v5263
      %v5366 = vadd.f32 %v5048, %v5266
      %v5367 = vadd.f32 %v5049, %v5271
      %v5368 = vadd.f32 %v5050, %v5274
      %v5369 = vadd.f32 %v5051, %v5279
      %v5370 = vadd.f32 %v5052, %v5282
      %v5371 = vadd.f32 %v5053, %v5287
      %v5372 = vadd.f32 %v5054, %v5290
      %v5373 = vadd.f32 %v5055, %v5295
      %v5374 = vadd.f32 %v5056, %v5298
      %v5375 = vadd.f32 %v5057, %v5303
      %v5376 = vadd.f32 %v5058, %v5306
      %v5377 = vadd.f32 %v5059, %v5311
      %v5378 = vadd.f32 %v5060, %v5314
      %v5379 = vadd.f32 %v5061, %v5319
      %v5380 = vadd.f32 %v5062, %v5322
      %v5381 = vadd.f32 %v5063, %v5327
      %v5382 = vadd.f32 %v5064, %v5330
      %v5383 = vadd.f32 %v5065, %v5335
      %v5384 = vadd.f32 %v5066, %v5338
      %v5385 = vadd.f32 %v5067, %v5343
      %v5386 = vadd.f32 %v5068, %v5346
      %v5387 = vadd.f32 %v5069, %v5351
      %v5388 = vadd.f32 %v5070, %v5354
      %v5389 = vld [vmem:[%s8] sm:$0x1]
      %v5391 = vlaneseq
      %v5392 = vshrl.u32 %v5391, 7
      %v5393 = vsub.s32 0, %v5392
      %v5394 = vrot.slane %v5389, %v5393
      %v5396 = vadd.f32 %v5357, %v5394
      %v5397 = vadd.f32 %v5358, %v5394
      %v5398 = vadd.f32 %v5359, %v5394
      %v5399 = vadd.f32 %v5360, %v5394
      %v5400 = vadd.f32 %v5361, %v5394
      %v5401 = vadd.f32 %v5362, %v5394
      %v5402 = vadd.f32 %v5363, %v5394
      %v5403 = vadd.f32 %v5364, %v5394
      %v5404 = vadd.f32 %v5365, %v5394
      %v5405 = vadd.f32 %v5366, %v5394
      %v5406 = vadd.f32 %v5367, %v5394
      %v5407 = vadd.f32 %v5368, %v5394
      %v5408 = vadd.f32 %v5369, %v5394
      %v5409 = vadd.f32 %v5370, %v5394
      %v5410 = vadd.f32 %v5371, %v5394
      %v5411 = vadd.f32 %v5372, %v5394
      %v5412 = vadd.f32 %v5373, %v5394
      %v5413 = vadd.f32 %v5374, %v5394
      %v5414 = vadd.f32 %v5375, %v5394
      %v5415 = vadd.f32 %v5376, %v5394
      %v5416 = vadd.f32 %v5377, %v5394
      %v5417 = vadd.f32 %v5378, %v5394
      %v5418 = vadd.f32 %v5379, %v5394
      %v5419 = vadd.f32 %v5380, %v5394
      %v5420 = vadd.f32 %v5381, %v5394
      %v5421 = vadd.f32 %v5382, %v5394
      %v5422 = vadd.f32 %v5383, %v5394
      %v5423 = vadd.f32 %v5384, %v5394
      %v5424 = vadd.f32 %v5385, %v5394
      %v5425 = vadd.f32 %v5386, %v5394
      %v5426 = vadd.f32 %v5387, %v5394
      %v5427 = vadd.f32 %v5388, %v5394
      %5428 = vst.msk [vmem:[%s1741 + $0x3] sm:$0xff] %vm489, %v5396
      %5429 = vst.msk [vmem:[%s1741 + $0xb] sm:$0xff] %vm489, %v5397
      %5430 = vst.msk [vmem:[%s1741 + $0x1b] sm:$0xff] %vm489, %v5398
      %5431 = vst.msk [vmem:[%s1741 + $0x23] sm:$0xff] %vm489, %v5399
      %5432 = vst.msk [vmem:[%s1741 + $0x33] sm:$0xff] %vm489, %v5400
      %5433 = vst.msk [vmem:[%s1741 + $0x3b] sm:$0xff] %vm489, %v5401
      %5434 = vst.msk [vmem:[%s1741 + $0x4b] sm:$0xff] %vm489, %v5402
      %5435 = vst.msk [vmem:[%s1741 + $0x53] sm:$0xff] %vm489, %v5403
      %5436 = vst.msk [vmem:[%s1741 + $0x63] sm:$0xff] %vm489, %v5404
      %5437 = vst.msk [vmem:[%s1741 + $0x6b] sm:$0xff] %vm489, %v5405
      %5438 = vst.msk [vmem:[%s1741 + $0x7b] sm:$0xff] %vm489, %v5406
      %5439 = vst.msk [vmem:[%s1741 + $0x83] sm:$0xff] %vm489, %v5407
      %5440 = vst.msk [vmem:[%s1741 + $0x93] sm:$0xff] %vm489, %v5408
      %5441 = vst.msk [vmem:[%s1741 + $0x9b] sm:$0xff] %vm489, %v5409
      %5442 = vst.msk [vmem:[%s1741 + $0xab] sm:$0xff] %vm489, %v5410
      %5443 = vst.msk [vmem:[%s1741 + $0xb3] sm:$0xff] %vm489, %v5411
      %5444 = vst.msk [vmem:[%s1741 + $0xc3] sm:$0xff] %vm489, %v5412
      %5445 = vst.msk [vmem:[%s1741 + $0xcb] sm:$0xff] %vm489, %v5413
      %5446 = vst.msk [vmem:[%s1741 + $0xdb] sm:$0xff] %vm489, %v5414
      %5447 = vst.msk [vmem:[%s1741 + $0xe3] sm:$0xff] %vm489, %v5415
      %5448 = vst.msk [vmem:[%s1741 + $0xf3] sm:$0xff] %vm489, %v5416
      %5449 = vst.msk [vmem:[%s1741 + $0xfb] sm:$0xff] %vm489, %v5417
      %5450 = vst.msk [vmem:[%s1741 + $0x10b] sm:$0xff] %vm489, %v5418
      %5451 = vst.msk [vmem:[%s1741 + $0x113] sm:$0xff] %vm489, %v5419
      %5452 = vst.msk [vmem:[%s1741 + $0x123] sm:$0xff] %vm489, %v5420
      %5453 = vst.msk [vmem:[%s1741 + $0x12b] sm:$0xff] %vm489, %v5421
      %5454 = vst.msk [vmem:[%s1741 + $0x13b] sm:$0xff] %vm489, %v5422
      %5455 = vst.msk [vmem:[%s1741 + $0x143] sm:$0xff] %vm489, %v5423
      %5456 = vst.msk [vmem:[%s1741 + $0x153] sm:$0xff] %vm489, %v5424
      %5457 = vst.msk [vmem:[%s1741 + $0x15b] sm:$0xff] %vm489, %v5425
      %5458 = vst.msk [vmem:[%s1741 + $0x16b] sm:$0xff] %vm489, %v5426
      %5459 = vst.msk [vmem:[%s1741 + $0x173] sm:$0xff] %vm489, %v5427
      %v5460 = vld [vmem:[#allocation2] sm:$0xff]
      %v5461 = vld [vmem:[#allocation2 + $0x8] sm:$0xff]
      %v5462 = vld [vmem:[#allocation2 + $0x10] sm:$0x3f]
      %v5463 = vld [vmem:[#allocation2 + $0x18] sm:$0xff]
      %v5464 = vld [vmem:[#allocation2 + $0x20] sm:$0xff]
      %v5465 = vld [vmem:[#allocation2 + $0x28] sm:$0x3f]
      %v5466 = vld [vmem:[#allocation2 + $0x30] sm:$0xff]
      %v5467 = vld [vmem:[#allocation2 + $0x38] sm:$0xff]
      %v5468 = vld [vmem:[#allocation2 + $0x40] sm:$0x3f]
      %v5469 = vld [vmem:[#allocation2 + $0x48] sm:$0xff]
      %v5470 = vld [vmem:[#allocation2 + $0x50] sm:$0xff]
      %v5471 = vld [vmem:[#allocation2 + $0x58] sm:$0x3f]
      %v5472 = vld [vmem:[#allocation2 + $0x60] sm:$0xff]
      %v5473 = vld [vmem:[#allocation2 + $0x68] sm:$0xff]
      %v5474 = vld [vmem:[#allocation2 + $0x70] sm:$0x3f]
      %v5475 = vld [vmem:[#allocation2 + $0x78] sm:$0xff]
      %v5476 = vld [vmem:[#allocation2 + $0x80] sm:$0xff]
      %v5477 = vld [vmem:[#allocation2 + $0x88] sm:$0x3f]
      %v5478 = vld [vmem:[#allocation2 + $0x90] sm:$0xff]
      %v5479 = vld [vmem:[#allocation2 + $0x98] sm:$0xff]
      %v5480 = vld [vmem:[#allocation2 + $0xa0] sm:$0x3f]
      %v5481 = vld [vmem:[#allocation2 + $0xa8] sm:$0xff]
      %v5482 = vld [vmem:[#allocation2 + $0xb0] sm:$0xff]
      %v5483 = vld [vmem:[#allocation2 + $0xb8] sm:$0x3f]
      %v5484 = vld [vmem:[#allocation2 + $0xc0] sm:$0xff]
      %v5485 = vld [vmem:[#allocation2 + $0xc8] sm:$0xff]
      %v5486 = vld [vmem:[#allocation2 + $0xd0] sm:$0x3f]
      %v5487 = vld [vmem:[#allocation2 + $0xd8] sm:$0xff]
      %v5488 = vld [vmem:[#allocation2 + $0xe0] sm:$0xff]
      %v5489 = vld [vmem:[#allocation2 + $0xe8] sm:$0x3f]
      %v5490 = vld [vmem:[#allocation2 + $0xf0] sm:$0xff]
      %v5491 = vld [vmem:[#allocation2 + $0xf8] sm:$0xff]
      %v5492 = vld [vmem:[#allocation2 + $0x100] sm:$0x3f]
      %v5493 = vld [vmem:[#allocation2 + $0x108] sm:$0xff]
      %v5494 = vld [vmem:[#allocation2 + $0x110] sm:$0xff]
      %v5495 = vld [vmem:[#allocation2 + $0x118] sm:$0x3f]
      %v5496 = vld [vmem:[#allocation2 + $0x120] sm:$0xff]
      %v5497 = vld [vmem:[#allocation2 + $0x128] sm:$0xff]
      %v5498 = vld [vmem:[#allocation2 + $0x130] sm:$0x3f]
      %v5499 = vld [vmem:[#allocation2 + $0x138] sm:$0xff]
      %v5500 = vld [vmem:[#allocation2 + $0x140] sm:$0xff]
      %v5501 = vld [vmem:[#allocation2 + $0x148] sm:$0x3f]
      %v5502 = vld [vmem:[#allocation2 + $0x150] sm:$0xff]
      %v5503 = vld [vmem:[#allocation2 + $0x158] sm:$0xff]
      %v5504 = vld [vmem:[#allocation2 + $0x160] sm:$0x3f]
      %v5505 = vld [vmem:[#allocation2 + $0x168] sm:$0xff]
      %v5506 = vld [vmem:[#allocation2 + $0x170] sm:$0xff]
      %v5507 = vld [vmem:[#allocation2 + $0x178] sm:$0x3f]
      %v5508 = vld [vmem:[#allocation2 + $0x180] sm:$0xff]
      %v5509 = vld [vmem:[#allocation2 + $0x188] sm:$0xff]
      %v5510 = vld [vmem:[#allocation2 + $0x190] sm:$0x3f]
      %v5511 = vld [vmem:[#allocation2 + $0x198] sm:$0xff]
      %v5512 = vld [vmem:[#allocation2 + $0x1a0] sm:$0xff]
      %v5513 = vld [vmem:[#allocation2 + $0x1a8] sm:$0x3f]
      %v5514 = vld [vmem:[#allocation2 + $0x1b0] sm:$0xff]
      %v5515 = vld [vmem:[#allocation2 + $0x1b8] sm:$0xff]
      %v5516 = vld [vmem:[#allocation2 + $0x1c0] sm:$0x3f]
      %v5517 = vld [vmem:[#allocation2 + $0x1c8] sm:$0xff]
      %v5518 = vld [vmem:[#allocation2 + $0x1d0] sm:$0xff]
      %v5519 = vld [vmem:[#allocation2 + $0x1d8] sm:$0x3f]
      %v5520 = vld [vmem:[#allocation2 + $0x1e0] sm:$0xff]
      %v5521 = vld [vmem:[#allocation2 + $0x1e8] sm:$0xff]
      %v5522 = vld [vmem:[#allocation2 + $0x1f0] sm:$0x3f]
      %v5523 = vld [vmem:[#allocation2 + $0x1f8] sm:$0xff]
      %v5524 = vld [vmem:[#allocation2 + $0x200] sm:$0xff]
      %v5525 = vld [vmem:[#allocation2 + $0x208] sm:$0x3f]
      %v5526 = vpack.c.bf16 %v5461, %v5460
      %v5527 = vpack.c.bf16 %v5462, %v5462
      %v5528 = vpack.c.bf16 %v5464, %v5463
      %v5529 = vpack.c.bf16 %v5465, %v5465
      %v5530 = vpack.c.bf16 %v5467, %v5466
      %v5531 = vpack.c.bf16 %v5468, %v5468
      %v5532 = vpack.c.bf16 %v5470, %v5469
      %v5533 = vpack.c.bf16 %v5471, %v5471
      %v5534 = vpack.c.bf16 %v5473, %v5472
      %v5535 = vpack.c.bf16 %v5474, %v5474
      %v5536 = vpack.c.bf16 %v5476, %v5475
      %v5537 = vpack.c.bf16 %v5477, %v5477
      %v5538 = vpack.c.bf16 %v5479, %v5478
      %v5539 = vpack.c.bf16 %v5480, %v5480
      %v5540 = vpack.c.bf16 %v5482, %v5481
      %v5541 = vpack.c.bf16 %v5483, %v5483
      %v5542 = vpack.c.bf16 %v5485, %v5484
      %v5543 = vpack.c.bf16 %v5486, %v5486
      %v5544 = vpack.c.bf16 %v5488, %v5487
      %v5545 = vpack.c.bf16 %v5489, %v5489
      %v5546 = vpack.c.bf16 %v5491, %v5490
      %v5547 = vpack.c.bf16 %v5492, %v5492
      %v5548 = vpack.c.bf16 %v5494, %v5493
      %v5549 = vpack.c.bf16 %v5495, %v5495
      %v5550 = vpack.c.bf16 %v5497, %v5496
      %v5551 = vpack.c.bf16 %v5498, %v5498
      %v5552 = vpack.c.bf16 %v5500, %v5499
      %v5553 = vpack.c.bf16 %v5501, %v5501
      %v5554 = vpack.c.bf16 %v5503, %v5502
      %v5555 = vpack.c.bf16 %v5504, %v5504
      %v5556 = vpack.c.bf16 %v5506, %v5505
      %v5557 = vpack.c.bf16 %v5507, %v5507
      %v5558 = vpack.c.bf16 %v5509, %v5508
      %v5559 = vpack.c.bf16 %v5510, %v5510
      %v5560 = vpack.c.bf16 %v5512, %v5511
      %v5561 = vpack.c.bf16 %v5513, %v5513
      %v5562 = vpack.c.bf16 %v5515, %v5514
      %v5563 = vpack.c.bf16 %v5516, %v5516
      %v5564 = vpack.c.bf16 %v5518, %v5517
      %v5565 = vpack.c.bf16 %v5519, %v5519
      %v5566 = vpack.c.bf16 %v5521, %v5520
      %v5567 = vpack.c.bf16 %v5522, %v5522
      %v5568 = vpack.c.bf16 %v5524, %v5523
      %v5569 = vpack.c.bf16 %v5525, %v5525
      %v5571 = vshrl.u32 %v5526, 16
      %v5573 = vshll.u32 %v5526, 16
      %v5575 = vrot.slane %v5573, 1
      %v5576 = vor.u32 %v5571, %v5575
      %v5578 = vshll.u32 %v5527, 16
      %v5580 = vrot.slane %v5578, 1
      %v5581 = vsel %vm1865, %v5576, %v5580
      %v5583 = vshrl.u32 %v5528, 16
      %v5585 = vshll.u32 %v5528, 16
      %v5587 = vrot.slane %v5585, 1
      %v5588 = vor.u32 %v5583, %v5587
      %v5590 = vshll.u32 %v5529, 16
      %v5592 = vrot.slane %v5590, 1
      %v5593 = vsel %vm1865, %v5588, %v5592
      %v5595 = vshrl.u32 %v5530, 16
      %v5597 = vshll.u32 %v5530, 16
      %v5599 = vrot.slane %v5597, 1
      %v5600 = vor.u32 %v5595, %v5599
      %v5602 = vshll.u32 %v5531, 16
      %v5604 = vrot.slane %v5602, 1
      %v5605 = vsel %vm1865, %v5600, %v5604
      %v5607 = vshrl.u32 %v5532, 16
      %v5609 = vshll.u32 %v5532, 16
      %v5611 = vrot.slane %v5609, 1
      %v5612 = vor.u32 %v5607, %v5611
      %v5614 = vshll.u32 %v5533, 16
      %v5616 = vrot.slane %v5614, 1
      %v5617 = vsel %vm1865, %v5612, %v5616
      %v5619 = vshrl.u32 %v5534, 16
      %v5621 = vshll.u32 %v5534, 16
      %v5623 = vrot.slane %v5621, 1
      %v5624 = vor.u32 %v5619, %v5623
      %v5626 = vshll.u32 %v5535, 16
      %v5628 = vrot.slane %v5626, 1
      %v5629 = vsel %vm1865, %v5624, %v5628
      %v5631 = vshrl.u32 %v5536, 16
      %v5633 = vshll.u32 %v5536, 16
      %v5635 = vrot.slane %v5633, 1
      %v5636 = vor.u32 %v5631, %v5635
      %v5638 = vshll.u32 %v5537, 16
      %v5640 = vrot.slane %v5638, 1
      %v5641 = vsel %vm1865, %v5636, %v5640
      %v5643 = vshrl.u32 %v5538, 16
      %v5645 = vshll.u32 %v5538, 16
      %v5647 = vrot.slane %v5645, 1
      %v5648 = vor.u32 %v5643, %v5647
      %v5650 = vshll.u32 %v5539, 16
      %v5652 = vrot.slane %v5650, 1
      %v5653 = vsel %vm1865, %v5648, %v5652
      %v5655 = vshrl.u32 %v5540, 16
      %v5657 = vshll.u32 %v5540, 16
      %v5659 = vrot.slane %v5657, 1
      %v5660 = vor.u32 %v5655, %v5659
      %v5662 = vshll.u32 %v5541, 16
      %v5664 = vrot.slane %v5662, 1
      %v5665 = vsel %vm1865, %v5660, %v5664
      %v5667 = vshrl.u32 %v5542, 16
      %v5669 = vshll.u32 %v5542, 16
      %v5671 = vrot.slane %v5669, 1
      %v5672 = vor.u32 %v5667, %v5671
      %v5674 = vshll.u32 %v5543, 16
      %v5676 = vrot.slane %v5674, 1
      %v5677 = vsel %vm1865, %v5672, %v5676
      %v5679 = vshrl.u32 %v5544, 16
      %v5681 = vshll.u32 %v5544, 16
      %v5683 = vrot.slane %v5681, 1
      %v5684 = vor.u32 %v5679, %v5683
      %v5686 = vshll.u32 %v5545, 16
      %v5688 = vrot.slane %v5686, 1
      %v5689 = vsel %vm1865, %v5684, %v5688
      %v5691 = vshrl.u32 %v5546, 16
      %v5693 = vshll.u32 %v5546, 16
      %v5695 = vrot.slane %v5693, 1
      %v5696 = vor.u32 %v5691, %v5695
      %v5698 = vshll.u32 %v5547, 16
      %v5700 = vrot.slane %v5698, 1
      %v5701 = vsel %vm1865, %v5696, %v5700
      %v5703 = vshrl.u32 %v5548, 16
      %v5705 = vshll.u32 %v5548, 16
      %v5707 = vrot.slane %v5705, 1
      %v5708 = vor.u32 %v5703, %v5707
      %v5710 = vshll.u32 %v5549, 16
      %v5712 = vrot.slane %v5710, 1
      %v5713 = vsel %vm1865, %v5708, %v5712
      %v5715 = vshrl.u32 %v5550, 16
      %v5717 = vshll.u32 %v5550, 16
      %v5719 = vrot.slane %v5717, 1
      %v5720 = vor.u32 %v5715, %v5719
      %v5722 = vshll.u32 %v5551, 16
      %v5724 = vrot.slane %v5722, 1
      %v5725 = vsel %vm1865, %v5720, %v5724
      %v5727 = vshrl.u32 %v5552, 16
      %v5729 = vshll.u32 %v5552, 16
      %v5731 = vrot.slane %v5729, 1
      %v5732 = vor.u32 %v5727, %v5731
      %v5734 = vshll.u32 %v5553, 16
      %v5736 = vrot.slane %v5734, 1
      %v5737 = vsel %vm1865, %v5732, %v5736
      %v5739 = vshrl.u32 %v5554, 16
      %v5741 = vshll.u32 %v5554, 16
      %v5743 = vrot.slane %v5741, 1
      %v5744 = vor.u32 %v5739, %v5743
      %v5746 = vshll.u32 %v5555, 16
      %v5748 = vrot.slane %v5746, 1
      %v5749 = vsel %vm1865, %v5744, %v5748
      %v5751 = vshrl.u32 %v5556, 16
      %v5753 = vshll.u32 %v5556, 16
      %v5755 = vrot.slane %v5753, 1
      %v5756 = vor.u32 %v5751, %v5755
      %v5758 = vshll.u32 %v5557, 16
      %v5760 = vrot.slane %v5758, 1
      %v5761 = vsel %vm1865, %v5756, %v5760
      %5762 = vrot.lane.b32.xlu0 %v5581, 32
      %v5763 = vpop.permute.xlu0 %5762
      %5764 = vrot.lane.b32.xlu0 %v5593, 32
      %v5765 = vpop.permute.xlu0 %5764
      %5766 = vrot.lane.b32.xlu0 %v5605, 32
      %v5767 = vpop.permute.xlu0 %5766
      %5768 = vrot.lane.b32.xlu0 %v5617, 32
      %v5769 = vpop.permute.xlu0 %5768
      %5770 = vrot.lane.b32.xlu0 %v5629, 32
      %v5771 = vpop.permute.xlu0 %5770
      %5772 = vrot.lane.b32.xlu0 %v5641, 32
      %v5773 = vpop.permute.xlu0 %5772
      %5774 = vrot.lane.b32.xlu0 %v5653, 32
      %v5775 = vpop.permute.xlu0 %5774
      %5776 = vrot.lane.b32.xlu0 %v5665, 32
      %v5777 = vpop.permute.xlu0 %5776
      %5778 = vrot.lane.b32.xlu0 %v5677, 32
      %v5779 = vpop.permute.xlu0 %5778
      %5780 = vrot.lane.b32.xlu0 %v5689, 32
      %v5781 = vpop.permute.xlu0 %5780
      %5782 = vrot.lane.b32.xlu0 %v5701, 32
      %v5783 = vpop.permute.xlu0 %5782
      %5784 = vrot.lane.b32.xlu0 %v5713, 32
      %v5785 = vpop.permute.xlu0 %5784
      %5786 = vrot.lane.b32.xlu0 %v5725, 32
      %v5787 = vpop.permute.xlu0 %5786
      %5788 = vrot.lane.b32.xlu0 %v5737, 32
      %v5789 = vpop.permute.xlu0 %5788
      %5790 = vrot.lane.b32.xlu0 %v5749, 32
      %v5791 = vpop.permute.xlu0 %5790
      %5792 = vrot.lane.b32.xlu0 %v5761, 32
      %v5793 = vpop.permute.xlu0 %5792
      %v5826 = vrot.slane %v5526, 1
      %v5827 = vrot.slane %v5527, 1
      %v5828 = vsel %vm2122, %v5826, %v5827
      %v5829 = vrot.slane %v5528, 1
      %v5830 = vrot.slane %v5529, 1
      %v5831 = vsel %vm2122, %v5829, %v5830
      %v5832 = vrot.slane %v5530, 1
      %v5833 = vrot.slane %v5531, 1
      %v5834 = vsel %vm2122, %v5832, %v5833
      %v5835 = vrot.slane %v5532, 1
      %v5836 = vrot.slane %v5533, 1
      %v5837 = vsel %vm2122, %v5835, %v5836
      %v5838 = vrot.slane %v5534, 1
      %v5839 = vrot.slane %v5535, 1
      %v5840 = vsel %vm2122, %v5838, %v5839
      %v5841 = vrot.slane %v5536, 1
      %v5842 = vrot.slane %v5537, 1
      %v5843 = vsel %vm2122, %v5841, %v5842
      %v5844 = vrot.slane %v5538, 1
      %v5845 = vrot.slane %v5539, 1
      %v5846 = vsel %vm2122, %v5844, %v5845
      %v5847 = vrot.slane %v5540, 1
      %v5848 = vrot.slane %v5541, 1
      %v5849 = vsel %vm2122, %v5847, %v5848
      %v5850 = vrot.slane %v5542, 1
      %v5851 = vrot.slane %v5543, 1
      %v5852 = vsel %vm2122, %v5850, %v5851
      %v5853 = vrot.slane %v5544, 1
      %v5854 = vrot.slane %v5545, 1
      %v5855 = vsel %vm2122, %v5853, %v5854
      %v5856 = vrot.slane %v5546, 1
      %v5857 = vrot.slane %v5547, 1
      %v5858 = vsel %vm2122, %v5856, %v5857
      %v5859 = vrot.slane %v5548, 1
      %v5860 = vrot.slane %v5549, 1
      %v5861 = vsel %vm2122, %v5859, %v5860
      %v5862 = vrot.slane %v5550, 1
      %v5863 = vrot.slane %v5551, 1
      %v5864 = vsel %vm2122, %v5862, %v5863
      %v5865 = vrot.slane %v5552, 1
      %v5866 = vrot.slane %v5553, 1
      %v5867 = vsel %vm2122, %v5865, %v5866
      %v5868 = vrot.slane %v5554, 1
      %v5869 = vrot.slane %v5555, 1
      %v5870 = vsel %vm2122, %v5868, %v5869
      %v5871 = vrot.slane %v5556, 1
      %v5872 = vrot.slane %v5557, 1
      %v5873 = vsel %vm2122, %v5871, %v5872
      %5874 = vrot.lane.b32.xlu0 %v5828, 64
      %v5875 = vpop.permute.xlu0 %5874
      %5876 = vrot.lane.b32.xlu0 %v5831, 64
      %v5877 = vpop.permute.xlu0 %5876
      %5878 = vrot.lane.b32.xlu0 %v5834, 64
      %v5879 = vpop.permute.xlu0 %5878
      %5880 = vrot.lane.b32.xlu0 %v5837, 64
      %v5881 = vpop.permute.xlu0 %5880
      %5882 = vrot.lane.b32.xlu0 %v5840, 64
      %v5883 = vpop.permute.xlu0 %5882
      %5884 = vrot.lane.b32.xlu0 %v5843, 64
      %v5885 = vpop.permute.xlu0 %5884
      %5886 = vrot.lane.b32.xlu0 %v5846, 64
      %v5887 = vpop.permute.xlu0 %5886
      %5888 = vrot.lane.b32.xlu0 %v5849, 64
      %v5889 = vpop.permute.xlu0 %5888
      %5890 = vrot.lane.b32.xlu0 %v5852, 64
      %v5891 = vpop.permute.xlu0 %5890
      %5892 = vrot.lane.b32.xlu0 %v5855, 64
      %v5893 = vpop.permute.xlu0 %5892
      %5894 = vrot.lane.b32.xlu0 %v5858, 64
      %v5895 = vpop.permute.xlu0 %5894
      %5896 = vrot.lane.b32.xlu0 %v5861, 64
      %v5897 = vpop.permute.xlu0 %5896
      %5898 = vrot.lane.b32.xlu0 %v5864, 64
      %v5899 = vpop.permute.xlu0 %5898
      %5900 = vrot.lane.b32.xlu0 %v5867, 64
      %v5901 = vpop.permute.xlu0 %5900
      %5902 = vrot.lane.b32.xlu0 %v5870, 64
      %v5903 = vpop.permute.xlu0 %5902
      %5904 = vrot.lane.b32.xlu0 %v5873, 64
      %v5905 = vpop.permute.xlu0 %5904
      %v5906 = vrot.slane %v5571, 1
      %v5907 = vrot.slane %v5573, 2
      %v5908 = vor.u32 %v5906, %v5907
      %v5909 = vshrl.u32 %v5527, 16
      %v5911 = vrot.slane %v5909, 1
      %v5912 = vrot.slane %v5578, 2
      %v5913 = vor.u32 %v5911, %v5912
      %v5914 = vsel %vm3522, %v5908, %v5913
      %v5915 = vrot.slane %v5583, 1
      %v5916 = vrot.slane %v5585, 2
      %v5917 = vor.u32 %v5915, %v5916
      %v5918 = vshrl.u32 %v5529, 16
      %v5920 = vrot.slane %v5918, 1
      %v5921 = vrot.slane %v5590, 2
      %v5922 = vor.u32 %v5920, %v5921
      %v5923 = vsel %vm3522, %v5917, %v5922
      %v5924 = vrot.slane %v5595, 1
      %v5925 = vrot.slane %v5597, 2
      %v5926 = vor.u32 %v5924, %v5925
      %v5927 = vshrl.u32 %v5531, 16
      %v5929 = vrot.slane %v5927, 1
      %v5930 = vrot.slane %v5602, 2
      %v5931 = vor.u32 %v5929, %v5930
      %v5932 = vsel %vm3522, %v5926, %v5931
      %v5933 = vrot.slane %v5607, 1
      %v5934 = vrot.slane %v5609, 2
      %v5935 = vor.u32 %v5933, %v5934
      %v5936 = vshrl.u32 %v5533, 16
      %v5938 = vrot.slane %v5936, 1
      %v5939 = vrot.slane %v5614, 2
      %v5940 = vor.u32 %v5938, %v5939
      %v5941 = vsel %vm3522, %v5935, %v5940
      %v5942 = vrot.slane %v5619, 1
      %v5943 = vrot.slane %v5621, 2
      %v5944 = vor.u32 %v5942, %v5943
      %v5945 = vshrl.u32 %v5535, 16
      %v5947 = vrot.slane %v5945, 1
      %v5948 = vrot.slane %v5626, 2
      %v5949 = vor.u32 %v5947, %v5948
      %v5950 = vsel %vm3522, %v5944, %v5949
      %v5951 = vrot.slane %v5631, 1
      %v5952 = vrot.slane %v5633, 2
      %v5953 = vor.u32 %v5951, %v5952
      %v5954 = vshrl.u32 %v5537, 16
      %v5956 = vrot.slane %v5954, 1
      %v5957 = vrot.slane %v5638, 2
      %v5958 = vor.u32 %v5956, %v5957
      %v5959 = vsel %vm3522, %v5953, %v5958
      %v5960 = vrot.slane %v5643, 1
      %v5961 = vrot.slane %v5645, 2
      %v5962 = vor.u32 %v5960, %v5961
      %v5963 = vshrl.u32 %v5539, 16
      %v5965 = vrot.slane %v5963, 1
      %v5966 = vrot.slane %v5650, 2
      %v5967 = vor.u32 %v5965, %v5966
      %v5968 = vsel %vm3522, %v5962, %v5967
      %v5969 = vrot.slane %v5655, 1
      %v5970 = vrot.slane %v5657, 2
      %v5971 = vor.u32 %v5969, %v5970
      %v5972 = vshrl.u32 %v5541, 16
      %v5974 = vrot.slane %v5972, 1
      %v5975 = vrot.slane %v5662, 2
      %v5976 = vor.u32 %v5974, %v5975
      %v5977 = vsel %vm3522, %v5971, %v5976
      %v5978 = vrot.slane %v5667, 1
      %v5979 = vrot.slane %v5669, 2
      %v5980 = vor.u32 %v5978, %v5979
      %v5981 = vshrl.u32 %v5543, 16
      %v5983 = vrot.slane %v5981, 1
      %v5984 = vrot.slane %v5674, 2
      %v5985 = vor.u32 %v5983, %v5984
      %v5986 = vsel %vm3522, %v5980, %v5985
      %v5987 = vrot.slane %v5679, 1
      %v5988 = vrot.slane %v5681, 2
      %v5989 = vor.u32 %v5987, %v5988
      %v5990 = vshrl.u32 %v5545, 16
      %v5992 = vrot.slane %v5990, 1
      %v5993 = vrot.slane %v5686, 2
      %v5994 = vor.u32 %v5992, %v5993
      %v5995 = vsel %vm3522, %v5989, %v5994
      %v5996 = vrot.slane %v5691, 1
      %v5997 = vrot.slane %v5693, 2
      %v5998 = vor.u32 %v5996, %v5997
      %v5999 = vshrl.u32 %v5547, 16
      %v6001 = vrot.slane %v5999, 1
      %v6002 = vrot.slane %v5698, 2
      %v6003 = vor.u32 %v6001, %v6002
      %v6004 = vsel %vm3522, %v5998, %v6003
      %v6005 = vrot.slane %v5703, 1
      %v6006 = vrot.slane %v5705, 2
      %v6007 = vor.u32 %v6005, %v6006
      %v6008 = vshrl.u32 %v5549, 16
      %v6010 = vrot.slane %v6008, 1
      %v6011 = vrot.slane %v5710, 2
      %v6012 = vor.u32 %v6010, %v6011
      %v6013 = vsel %vm3522, %v6007, %v6012
      %v6014 = vrot.slane %v5715, 1
      %v6015 = vrot.slane %v5717, 2
      %v6016 = vor.u32 %v6014, %v6015
      %v6017 = vshrl.u32 %v5551, 16
      %v6019 = vrot.slane %v6017, 1
      %v6020 = vrot.slane %v5722, 2
      %v6021 = vor.u32 %v6019, %v6020
      %v6022 = vsel %vm3522, %v6016, %v6021
      %v6023 = vrot.slane %v5727, 1
      %v6024 = vrot.slane %v5729, 2
      %v6025 = vor.u32 %v6023, %v6024
      %v6026 = vshrl.u32 %v5553, 16
      %v6028 = vrot.slane %v6026, 1
      %v6029 = vrot.slane %v5734, 2
      %v6030 = vor.u32 %v6028, %v6029
      %v6031 = vsel %vm3522, %v6025, %v6030
      %v6032 = vrot.slane %v5739, 1
      %v6033 = vrot.slane %v5741, 2
      %v6034 = vor.u32 %v6032, %v6033
      %v6035 = vshrl.u32 %v5555, 16
      %v6037 = vrot.slane %v6035, 1
      %v6038 = vrot.slane %v5746, 2
      %v6039 = vor.u32 %v6037, %v6038
      %v6040 = vsel %vm3522, %v6034, %v6039
      %v6041 = vrot.slane %v5751, 1
      %v6042 = vrot.slane %v5753, 2
      %v6043 = vor.u32 %v6041, %v6042
      %v6044 = vshrl.u32 %v5557, 16
      %v6046 = vrot.slane %v6044, 1
      %v6047 = vrot.slane %v5758, 2
      %v6048 = vor.u32 %v6046, %v6047
      %v6049 = vsel %vm3522, %v6043, %v6048
      %6050 = vrot.lane.b32.xlu0 %v5914, 96
      %v6051 = vpop.permute.xlu0 %6050
      %6052 = vrot.lane.b32.xlu0 %v5923, 96
      %v6053 = vpop.permute.xlu0 %6052
      %6054 = vrot.lane.b32.xlu0 %v5932, 96
      %v6055 = vpop.permute.xlu0 %6054
      %6056 = vrot.lane.b32.xlu0 %v5941, 96
      %v6057 = vpop.permute.xlu0 %6056
      %6058 = vrot.lane.b32.xlu0 %v5950, 96
      %v6059 = vpop.permute.xlu0 %6058
      %6060 = vrot.lane.b32.xlu0 %v5959, 96
      %v6061 = vpop.permute.xlu0 %6060
      %6062 = vrot.lane.b32.xlu0 %v5968, 96
      %v6063 = vpop.permute.xlu0 %6062
      %6064 = vrot.lane.b32.xlu0 %v5977, 96
      %v6065 = vpop.permute.xlu0 %6064
      %6066 = vrot.lane.b32.xlu0 %v5986, 96
      %v6067 = vpop.permute.xlu0 %6066
      %6068 = vrot.lane.b32.xlu0 %v5995, 96
      %v6069 = vpop.permute.xlu0 %6068
      %6070 = vrot.lane.b32.xlu0 %v6004, 96
      %v6071 = vpop.permute.xlu0 %6070
      %6072 = vrot.lane.b32.xlu0 %v6013, 96
      %v6073 = vpop.permute.xlu0 %6072
      %6074 = vrot.lane.b32.xlu0 %v6022, 96
      %v6075 = vpop.permute.xlu0 %6074
      %6076 = vrot.lane.b32.xlu0 %v6031, 96
      %v6077 = vpop.permute.xlu0 %6076
      %6078 = vrot.lane.b32.xlu0 %v6040, 96
      %v6079 = vpop.permute.xlu0 %6078
      %6080 = vrot.lane.b32.xlu0 %v6049, 96
      %v6081 = vpop.permute.xlu0 %6080
      %v6082 = vrot.slane %v5526, 2
      %v6083 = vrot.slane %v5527, 2
      %v6084 = vsel %vm3699, %v6082, %v6083
      %v6085 = vrot.slane %v5528, 2
      %v6086 = vrot.slane %v5529, 2
      %v6087 = vsel %vm3699, %v6085, %v6086
      %v6088 = vrot.slane %v5530, 2
      %v6089 = vrot.slane %v5531, 2
      %v6090 = vsel %vm3699, %v6088, %v6089
      %v6091 = vrot.slane %v5532, 2
      %v6092 = vrot.slane %v5533, 2
      %v6093 = vsel %vm3699, %v6091, %v6092
      %v6094 = vrot.slane %v5534, 2
      %v6095 = vrot.slane %v5535, 2
      %v6096 = vsel %vm3699, %v6094, %v6095
      %v6097 = vrot.slane %v5536, 2
      %v6098 = vrot.slane %v5537, 2
      %v6099 = vsel %vm3699, %v6097, %v6098
      %v6100 = vrot.slane %v5538, 2
      %v6101 = vrot.slane %v5539, 2
      %v6102 = vsel %vm3699, %v6100, %v6101
      %v6103 = vrot.slane %v5540, 2
      %v6104 = vrot.slane %v5541, 2
      %v6105 = vsel %vm3699, %v6103, %v6104
      %v6106 = vrot.slane %v5542, 2
      %v6107 = vrot.slane %v5543, 2
      %v6108 = vsel %vm3699, %v6106, %v6107
      %v6109 = vrot.slane %v5544, 2
      %v6110 = vrot.slane %v5545, 2
      %v6111 = vsel %vm3699, %v6109, %v6110
      %v6112 = vrot.slane %v5546, 2
      %v6113 = vrot.slane %v5547, 2
      %v6114 = vsel %vm3699, %v6112, %v6113
      %v6115 = vrot.slane %v5548, 2
      %v6116 = vrot.slane %v5549, 2
      %v6117 = vsel %vm3699, %v6115, %v6116
      %v6118 = vrot.slane %v5550, 2
      %v6119 = vrot.slane %v5551, 2
      %v6120 = vsel %vm3699, %v6118, %v6119
      %v6121 = vrot.slane %v5552, 2
      %v6122 = vrot.slane %v5553, 2
      %v6123 = vsel %vm3699, %v6121, %v6122
      %v6124 = vrot.slane %v5554, 2
      %v6125 = vrot.slane %v5555, 2
      %v6126 = vsel %vm3699, %v6124, %v6125
      %v6127 = vrot.slane %v5556, 2
      %v6128 = vrot.slane %v5557, 2
      %v6129 = vsel %vm3699, %v6127, %v6128
      %vm6130 = vsmask.f32 5376
      %v6131 = vrot.slane %v5571, 2
      %v6132 = vrot.slane %v5573, 3
      %v6133 = vor.u32 %v6131, %v6132
      %v6134 = vrot.slane %v5909, 2
      %v6135 = vrot.slane %v5578, 3
      %v6136 = vor.u32 %v6134, %v6135
      %v6137 = vsel %vm6130, %v6133, %v6136
      %v6138 = vrot.slane %v5583, 2
      %v6139 = vrot.slane %v5585, 3
      %v6140 = vor.u32 %v6138, %v6139
      %v6141 = vrot.slane %v5918, 2
      %v6142 = vrot.slane %v5590, 3
      %v6143 = vor.u32 %v6141, %v6142
      %v6144 = vsel %vm6130, %v6140, %v6143
      %v6145 = vrot.slane %v5595, 2
      %v6146 = vrot.slane %v5597, 3
      %v6147 = vor.u32 %v6145, %v6146
      %v6148 = vrot.slane %v5927, 2
      %v6149 = vrot.slane %v5602, 3
      %v6150 = vor.u32 %v6148, %v6149
      %v6151 = vsel %vm6130, %v6147, %v6150
      %v6152 = vrot.slane %v5607, 2
      %v6153 = vrot.slane %v5609, 3
      %v6154 = vor.u32 %v6152, %v6153
      %v6155 = vrot.slane %v5936, 2
      %v6156 = vrot.slane %v5614, 3
      %v6157 = vor.u32 %v6155, %v6156
      %v6158 = vsel %vm6130, %v6154, %v6157
      %v6159 = vrot.slane %v5619, 2
      %v6160 = vrot.slane %v5621, 3
      %v6161 = vor.u32 %v6159, %v6160
      %v6162 = vrot.slane %v5945, 2
      %v6163 = vrot.slane %v5626, 3
      %v6164 = vor.u32 %v6162, %v6163
      %v6165 = vsel %vm6130, %v6161, %v6164
      %v6166 = vrot.slane %v5631, 2
      %v6167 = vrot.slane %v5633, 3
      %v6168 = vor.u32 %v6166, %v6167
      %v6169 = vrot.slane %v5954, 2
      %v6170 = vrot.slane %v5638, 3
      %v6171 = vor.u32 %v6169, %v6170
      %v6172 = vsel %vm6130, %v6168, %v6171
      %v6173 = vrot.slane %v5643, 2
      %v6174 = vrot.slane %v5645, 3
      %v6175 = vor.u32 %v6173, %v6174
      %v6176 = vrot.slane %v5963, 2
      %v6177 = vrot.slane %v5650, 3
      %v6178 = vor.u32 %v6176, %v6177
      %v6179 = vsel %vm6130, %v6175, %v6178
      %v6180 = vrot.slane %v5655, 2
      %v6181 = vrot.slane %v5657, 3
      %v6182 = vor.u32 %v6180, %v6181
      %v6183 = vrot.slane %v5972, 2
      %v6184 = vrot.slane %v5662, 3
      %v6185 = vor.u32 %v6183, %v6184
      %v6186 = vsel %vm6130, %v6182, %v6185
      %v6187 = vrot.slane %v5667, 2
      %v6188 = vrot.slane %v5669, 3
      %v6189 = vor.u32 %v6187, %v6188
      %v6190 = vrot.slane %v5981, 2
      %v6191 = vrot.slane %v5674, 3
      %v6192 = vor.u32 %v6190, %v6191
      %v6193 = vsel %vm6130, %v6189, %v6192
      %v6194 = vrot.slane %v5679, 2
      %v6195 = vrot.slane %v5681, 3
      %v6196 = vor.u32 %v6194, %v6195
      %v6197 = vrot.slane %v5990, 2
      %v6198 = vrot.slane %v5686, 3
      %v6199 = vor.u32 %v6197, %v6198
      %v6200 = vsel %vm6130, %v6196, %v6199
      %v6201 = vrot.slane %v5691, 2
      %v6202 = vrot.slane %v5693, 3
      %v6203 = vor.u32 %v6201, %v6202
      %v6204 = vrot.slane %v5999, 2
      %v6205 = vrot.slane %v5698, 3
      %v6206 = vor.u32 %v6204, %v6205
      %v6207 = vsel %vm6130, %v6203, %v6206
      %v6208 = vrot.slane %v5703, 2
      %v6209 = vrot.slane %v5705, 3
      %v6210 = vor.u32 %v6208, %v6209
      %v6211 = vrot.slane %v6008, 2
      %v6212 = vrot.slane %v5710, 3
      %v6213 = vor.u32 %v6211, %v6212
      %v6214 = vsel %vm6130, %v6210, %v6213
      %v6215 = vrot.slane %v5715, 2
      %v6216 = vrot.slane %v5717, 3
      %v6217 = vor.u32 %v6215, %v6216
      %v6218 = vrot.slane %v6017, 2
      %v6219 = vrot.slane %v5722, 3
      %v6220 = vor.u32 %v6218, %v6219
      %v6221 = vsel %vm6130, %v6217, %v6220
      %v6222 = vrot.slane %v5727, 2
      %v6223 = vrot.slane %v5729, 3
      %v6224 = vor.u32 %v6222, %v6223
      %v6225 = vrot.slane %v6026, 2
      %v6226 = vrot.slane %v5734, 3
      %v6227 = vor.u32 %v6225, %v6226
      %v6228 = vsel %vm6130, %v6224, %v6227
      %v6229 = vrot.slane %v5739, 2
      %v6230 = vrot.slane %v5741, 3
      %v6231 = vor.u32 %v6229, %v6230
      %v6232 = vrot.slane %v6035, 2
      %v6233 = vrot.slane %v5746, 3
      %v6234 = vor.u32 %v6232, %v6233
      %v6235 = vsel %vm6130, %v6231, %v6234
      %v6236 = vrot.slane %v5751, 2
      %v6237 = vrot.slane %v5753, 3
      %v6238 = vor.u32 %v6236, %v6237
      %v6239 = vrot.slane %v6044, 2
      %v6240 = vrot.slane %v5758, 3
      %v6241 = vor.u32 %v6239, %v6240
      %v6242 = vsel %vm6130, %v6238, %v6241
      %6243 = vrot.lane.b32.xlu0 %v6137, 32
      %v6244 = vpop.permute.xlu0 %6243
      %6245 = vrot.lane.b32.xlu0 %v6144, 32
      %v6246 = vpop.permute.xlu0 %6245
      %6247 = vrot.lane.b32.xlu0 %v6151, 32
      %v6248 = vpop.permute.xlu0 %6247
      %6249 = vrot.lane.b32.xlu0 %v6158, 32
      %v6250 = vpop.permute.xlu0 %6249
      %6251 = vrot.lane.b32.xlu0 %v6165, 32
      %v6252 = vpop.permute.xlu0 %6251
      %6253 = vrot.lane.b32.xlu0 %v6172, 32
      %v6254 = vpop.permute.xlu0 %6253
      %6255 = vrot.lane.b32.xlu0 %v6179, 32
      %v6256 = vpop.permute.xlu0 %6255
      %6257 = vrot.lane.b32.xlu0 %v6186, 32
      %v6258 = vpop.permute.xlu0 %6257
      %6259 = vrot.lane.b32.xlu0 %v6193, 32
      %v6260 = vpop.permute.xlu0 %6259
      %6261 = vrot.lane.b32.xlu0 %v6200, 32
      %v6262 = vpop.permute.xlu0 %6261
      %6263 = vrot.lane.b32.xlu0 %v6207, 32
      %v6264 = vpop.permute.xlu0 %6263
      %6265 = vrot.lane.b32.xlu0 %v6214, 32
      %v6266 = vpop.permute.xlu0 %6265
      %6267 = vrot.lane.b32.xlu0 %v6221, 32
      %v6268 = vpop.permute.xlu0 %6267
      %6269 = vrot.lane.b32.xlu0 %v6228, 32
      %v6270 = vpop.permute.xlu0 %6269
      %6271 = vrot.lane.b32.xlu0 %v6235, 32
      %v6272 = vpop.permute.xlu0 %6271
      %6273 = vrot.lane.b32.xlu0 %v6242, 32
      %v6274 = vpop.permute.xlu0 %6273
      %vm6275 = vcmask 1044480
      %v6276 = vrot.slane %v5526, 3
      %v6277 = vrot.slane %v5527, 3
      %v6278 = vsel %vm6275, %v6276, %v6277
      %v6279 = vrot.slane %v5528, 3
      %v6280 = vrot.slane %v5529, 3
      %v6281 = vsel %vm6275, %v6279, %v6280
      %v6282 = vrot.slane %v5530, 3
      %v6283 = vrot.slane %v5531, 3
      %v6284 = vsel %vm6275, %v6282, %v6283
      %v6285 = vrot.slane %v5532, 3
      %v6286 = vrot.slane %v5533, 3
      %v6287 = vsel %vm6275, %v6285, %v6286
      %v6288 = vrot.slane %v5534, 3
      %v6289 = vrot.slane %v5535, 3
      %v6290 = vsel %vm6275, %v6288, %v6289
      %v6291 = vrot.slane %v5536, 3
      %v6292 = vrot.slane %v5537, 3
      %v6293 = vsel %vm6275, %v6291, %v6292
      %v6294 = vrot.slane %v5538, 3
      %v6295 = vrot.slane %v5539, 3
      %v6296 = vsel %vm6275, %v6294, %v6295
      %v6297 = vrot.slane %v5540, 3
      %v6298 = vrot.slane %v5541, 3
      %v6299 = vsel %vm6275, %v6297, %v6298
      %v6300 = vrot.slane %v5542, 3
      %v6301 = vrot.slane %v5543, 3
      %v6302 = vsel %vm6275, %v6300, %v6301
      %v6303 = vrot.slane %v5544, 3
      %v6304 = vrot.slane %v5545, 3
      %v6305 = vsel %vm6275, %v6303, %v6304
      %v6306 = vrot.slane %v5546, 3
      %v6307 = vrot.slane %v5547, 3
      %v6308 = vsel %vm6275, %v6306, %v6307
      %v6309 = vrot.slane %v5548, 3
      %v6310 = vrot.slane %v5549, 3
      %v6311 = vsel %vm6275, %v6309, %v6310
      %v6312 = vrot.slane %v5550, 3
      %v6313 = vrot.slane %v5551, 3
      %v6314 = vsel %vm6275, %v6312, %v6313
      %v6315 = vrot.slane %v5552, 3
      %v6316 = vrot.slane %v5553, 3
      %v6317 = vsel %vm6275, %v6315, %v6316
      %v6318 = vrot.slane %v5554, 3
      %v6319 = vrot.slane %v5555, 3
      %v6320 = vsel %vm6275, %v6318, %v6319
      %v6321 = vrot.slane %v5556, 3
      %v6322 = vrot.slane %v5557, 3
      %v6323 = vsel %vm6275, %v6321, %v6322
      %6324 = vrot.lane.b32.xlu0 %v6278, 64
      %v6325 = vpop.permute.xlu0 %6324
      %6326 = vrot.lane.b32.xlu0 %v6281, 64
      %v6327 = vpop.permute.xlu0 %6326
      %6328 = vrot.lane.b32.xlu0 %v6284, 64
      %v6329 = vpop.permute.xlu0 %6328
      %6330 = vrot.lane.b32.xlu0 %v6287, 64
      %v6331 = vpop.permute.xlu0 %6330
      %6332 = vrot.lane.b32.xlu0 %v6290, 64
      %v6333 = vpop.permute.xlu0 %6332
      %6334 = vrot.lane.b32.xlu0 %v6293, 64
      %v6335 = vpop.permute.xlu0 %6334
      %6336 = vrot.lane.b32.xlu0 %v6296, 64
      %v6337 = vpop.permute.xlu0 %6336
      %6338 = vrot.lane.b32.xlu0 %v6299, 64
      %v6339 = vpop.permute.xlu0 %6338
      %6340 = vrot.lane.b32.xlu0 %v6302, 64
      %v6341 = vpop.permute.xlu0 %6340
      %6342 = vrot.lane.b32.xlu0 %v6305, 64
      %v6343 = vpop.permute.xlu0 %6342
      %6344 = vrot.lane.b32.xlu0 %v6308, 64
      %v6345 = vpop.permute.xlu0 %6344
      %6346 = vrot.lane.b32.xlu0 %v6311, 64
      %v6347 = vpop.permute.xlu0 %6346
      %6348 = vrot.lane.b32.xlu0 %v6314, 64
      %v6349 = vpop.permute.xlu0 %6348
      %6350 = vrot.lane.b32.xlu0 %v6317, 64
      %v6351 = vpop.permute.xlu0 %6350
      %6352 = vrot.lane.b32.xlu0 %v6320, 64
      %v6353 = vpop.permute.xlu0 %6352
      %6354 = vrot.lane.b32.xlu0 %v6323, 64
      %v6355 = vpop.permute.xlu0 %6354
      %v6357 = vsel %vm489, %v5526, %v5763
      %v6359 = vsel %vm489, %v5528, %v5765
      %v6361 = vsel %vm489, %v5530, %v5767
      %v6363 = vsel %vm489, %v5532, %v5769
      %v6365 = vsel %vm489, %v5534, %v5771
      %v6367 = vsel %vm489, %v5536, %v5773
      %v6369 = vsel %vm489, %v5538, %v5775
      %v6371 = vsel %vm489, %v5540, %v5777
      %v6373 = vsel %vm489, %v5542, %v5779
      %v6375 = vsel %vm489, %v5544, %v5781
      %v6377 = vsel %vm489, %v5546, %v5783
      %v6379 = vsel %vm489, %v5548, %v5785
      %v6381 = vsel %vm489, %v5550, %v5787
      %v6383 = vsel %vm489, %v5552, %v5789
      %v6385 = vsel %vm489, %v5554, %v5791
      %v6387 = vsel %vm489, %v5556, %v5793
      %v6389 = vsel %vm2235, %v6357, %v5875
      %v6391 = vsel %vm2235, %v6359, %v5877
      %v6393 = vsel %vm2235, %v6361, %v5879
      %v6395 = vsel %vm2235, %v6363, %v5881
      %v6397 = vsel %vm2235, %v6365, %v5883
      %v6399 = vsel %vm2235, %v6367, %v5885
      %v6401 = vsel %vm2235, %v6369, %v5887
      %v6403 = vsel %vm2235, %v6371, %v5889
      %v6405 = vsel %vm2235, %v6373, %v5891
      %v6407 = vsel %vm2235, %v6375, %v5893
      %v6409 = vsel %vm2235, %v6377, %v5895
      %v6411 = vsel %vm2235, %v6379, %v5897
      %v6413 = vsel %vm2235, %v6381, %v5899
      %v6415 = vsel %vm2235, %v6383, %v5901
      %v6417 = vsel %vm2235, %v6385, %v5903
      %v6419 = vsel %vm2235, %v6387, %v5905
      %v6421 = vsel %vm2353, %v6389, %v6051
      %v6424 = vsel %vm2353, %v6391, %v6053
      %v6427 = vsel %vm2353, %v6393, %v6055
      %v6430 = vsel %vm2353, %v6395, %v6057
      %v6433 = vsel %vm2353, %v6397, %v6059
      %v6436 = vsel %vm2353, %v6399, %v6061
      %v6439 = vsel %vm2353, %v6401, %v6063
      %v6442 = vsel %vm2353, %v6403, %v6065
      %v6445 = vsel %vm2353, %v6405, %v6067
      %v6448 = vsel %vm2353, %v6407, %v6069
      %v6451 = vsel %vm2353, %v6409, %v6071
      %v6454 = vsel %vm2353, %v6411, %v6073
      %v6457 = vsel %vm2353, %v6413, %v6075
      %v6460 = vsel %vm2353, %v6415, %v6077
      %v6463 = vsel %vm2353, %v6417, %v6079
      %v6466 = vsel %vm2353, %v6419, %v6081
      %v6470 = vsel %vm489, %v6084, %v6244
      %v6473 = vsel %vm489, %v6087, %v6246
      %v6476 = vsel %vm489, %v6090, %v6248
      %v6479 = vsel %vm489, %v6093, %v6250
      %v6482 = vsel %vm489, %v6096, %v6252
      %v6485 = vsel %vm489, %v6099, %v6254
      %v6488 = vsel %vm489, %v6102, %v6256
      %v6491 = vsel %vm489, %v6105, %v6258
      %v6494 = vsel %vm489, %v6108, %v6260
      %v6497 = vsel %vm489, %v6111, %v6262
      %v6500 = vsel %vm489, %v6114, %v6264
      %v6503 = vsel %vm489, %v6117, %v6266
      %v6506 = vsel %vm489, %v6120, %v6268
      %v6509 = vsel %vm489, %v6123, %v6270
      %v6512 = vsel %vm489, %v6126, %v6272
      %v6515 = vsel %vm489, %v6129, %v6274
      %v6517 = vsel %vm2235, %v6470, %v6325
      %v6519 = vsel %vm2235, %v6473, %v6327
      %v6521 = vsel %vm2235, %v6476, %v6329
      %v6523 = vsel %vm2235, %v6479, %v6331
      %v6525 = vsel %vm2235, %v6482, %v6333
      %v6527 = vsel %vm2235, %v6485, %v6335
      %v6529 = vsel %vm2235, %v6488, %v6337
      %v6531 = vsel %vm2235, %v6491, %v6339
      %v6533 = vsel %vm2235, %v6494, %v6341
      %v6535 = vsel %vm2235, %v6497, %v6343
      %v6537 = vsel %vm2235, %v6500, %v6345
      %v6539 = vsel %vm2235, %v6503, %v6347
      %v6541 = vsel %vm2235, %v6506, %v6349
      %v6543 = vsel %vm2235, %v6509, %v6351
      %v6545 = vsel %vm2235, %v6512, %v6353
      %v6547 = vsel %vm2235, %v6515, %v6355
      %v6548 = vld [vmem:[%s9] sm:$0xf]
      %v6549 = vld [vmem:[%s9 + $0x4] sm:$0xf]
      %v6550 = vld [vmem:[%s9 + $0x8] sm:$0xf]
      %v6551 = vld [vmem:[%s9 + $0xc] sm:$0xf]
      %v6552 = vld [vmem:[%s9 + $0x10] sm:$0xf]
      %v6553 = vld [vmem:[%s9 + $0x14] sm:$0xf]
      %v6554 = vld [vmem:[%s9 + $0x18] sm:$0xf]
      %v6555 = vld [vmem:[%s9 + $0x1c] sm:$0xf]
      %v6556 = vld [vmem:[%s9 + $0x20] sm:$0xf]
      %v6557 = vld [vmem:[%s9 + $0x24] sm:$0xf]
      %v6558 = vld [vmem:[%s9 + $0x28] sm:$0xf]
      %v6559 = vld [vmem:[%s9 + $0x2c] sm:$0xf]
      %v6560 = vld [vmem:[%s9 + $0x30] sm:$0xf]
      %v6561 = vld [vmem:[%s9 + $0x34] sm:$0xf]
      %v6562 = vld [vmem:[%s9 + $0x38] sm:$0xf]
      %v6563 = vld [vmem:[%s9 + $0x3c] sm:$0xf]
      %v6564 = vld [vmem:[%s9 + $0x40] sm:$0xf]
      %v6565 = vld [vmem:[%s9 + $0x44] sm:$0xf]
      %v6566 = vld [vmem:[%s9 + $0x48] sm:$0xf]
      %v6567 = vld [vmem:[%s9 + $0x4c] sm:$0xf]
      %v6568 = vld [vmem:[%s9 + $0x50] sm:$0xf]
      %v6569 = vld [vmem:[%s9 + $0x54] sm:$0xf]
      %v6570 = vld [vmem:[%s9 + $0x58] sm:$0xf]
      %v6571 = vld [vmem:[%s9 + $0x5c] sm:$0xf]
      %v6572 = vld [vmem:[%s9 + $0x60] sm:$0xf]
      %v6573 = vld [vmem:[%s9 + $0x64] sm:$0xf]
      %v6574 = vld [vmem:[%s9 + $0x68] sm:$0xf]
      %v6575 = vld [vmem:[%s9 + $0x6c] sm:$0xf]
      %v6577 = vshrl.u32 %v5558, 16
      %v6579 = vshll.u32 %v5558, 16
      %v6581 = vrot.slane %v6579, 1
      %v6582 = vor.u32 %v6577, %v6581
      %v6584 = vshll.u32 %v5559, 16
      %v6586 = vrot.slane %v6584, 1
      %v6587 = vsel %vm1865, %v6582, %v6586
      %6588 = vrot.lane.b32.xlu0 %v6587, 32
      %v6589 = vpop.permute.xlu0 %6588
      %v6592 = vrot.slane %v5558, 1
      %v6593 = vrot.slane %v5559, 1
      %v6594 = vsel %vm2122, %v6592, %v6593
      %6595 = vrot.lane.b32.xlu0 %v6594, 64
      %v6596 = vpop.permute.xlu0 %6595
      %v6597 = vrot.slane %v6577, 1
      %v6598 = vrot.slane %v6579, 2
      %v6599 = vor.u32 %v6597, %v6598
      %v6600 = vshrl.u32 %v5559, 16
      %v6602 = vrot.slane %v6600, 1
      %v6603 = vrot.slane %v6584, 2
      %v6604 = vor.u32 %v6602, %v6603
      %v6605 = vsel %vm3522, %v6599, %v6604
      %6606 = vrot.lane.b32.xlu0 %v6605, 96
      %v6607 = vpop.permute.xlu0 %6606
      %v6608 = vrot.slane %v5558, 2
      %v6609 = vrot.slane %v5559, 2
      %v6610 = vsel %vm3699, %v6608, %v6609
      %v6611 = vrot.slane %v6577, 2
      %v6612 = vrot.slane %v6579, 3
      %v6613 = vor.u32 %v6611, %v6612
      %v6614 = vrot.slane %v6600, 2
      %v6615 = vrot.slane %v6584, 3
      %v6616 = vor.u32 %v6614, %v6615
      %v6617 = vsel %vm6130, %v6613, %v6616
      %6618 = vrot.lane.b32.xlu0 %v6617, 32
      %v6619 = vpop.permute.xlu0 %6618
      %v6620 = vrot.slane %v5558, 3
      %v6621 = vrot.slane %v5559, 3
      %v6622 = vsel %vm6275, %v6620, %v6621
      %6623 = vrot.lane.b32.xlu0 %v6622, 64
      %v6624 = vpop.permute.xlu0 %6623
      %v6626 = vsel %vm489, %v5558, %v6589
      %v6628 = vsel %vm2235, %v6626, %v6596
      %v6630 = vsel %vm2353, %v6628, %v6607
      %v6634 = vsel %vm489, %v6610, %v6619
      %v6636 = vsel %vm2235, %v6634, %v6624
      %v6637 = vld [vmem:[%s9 + $0x70] sm:$0xf]
      %v6638 = vld [vmem:[%s9 + $0x74] sm:$0xf]
      %v6639 = vld [vmem:[%s9 + $0x78] sm:$0xf]
      %v6640 = vld [vmem:[%s9 + $0x7c] sm:$0xf]
      %v6641 = vld [vmem:[%s9 + $0x80] sm:$0xf]
      %v6642 = vld [vmem:[%s9 + $0x84] sm:$0xf]
      %v6643 = vld [vmem:[%s9 + $0x88] sm:$0xf]
      %v6644 = vld [vmem:[%s9 + $0x8c] sm:$0xf]
      %v6645 = vld [vmem:[%s9 + $0x90] sm:$0xf]
      %v6646 = vld [vmem:[%s9 + $0x94] sm:$0xf]
      %v6647 = vld [vmem:[%s9 + $0x98] sm:$0xf]
      %v6648 = vld [vmem:[%s9 + $0x9c] sm:$0xf]
      %v6649 = vld [vmem:[%s9 + $0xa0] sm:$0xf]
      %v6650 = vld [vmem:[%s9 + $0xa4] sm:$0xf]
      %v6651 = vld [vmem:[%s9 + $0xa8] sm:$0xf]
      %v6652 = vld [vmem:[%s9 + $0xac] sm:$0xf]
      %v6653 = vld [vmem:[%s9 + $0xb0] sm:$0xf]
      %v6654 = vld [vmem:[%s9 + $0xb4] sm:$0xf]
      %v6655 = vld [vmem:[%s9 + $0xb8] sm:$0xf]
      %v6656 = vld [vmem:[%s9 + $0xbc] sm:$0xf]
      %v6657 = vld [vmem:[%s9 + $0xc0] sm:$0xf]
      %v6658 = vld [vmem:[%s9 + $0xc4] sm:$0xf]
      %v6659 = vld [vmem:[%s9 + $0xc8] sm:$0xf]
      %v6660 = vld [vmem:[%s9 + $0xcc] sm:$0xf]
      %v6661 = vld [vmem:[%s9 + $0xd0] sm:$0xf]
      %v6662 = vld [vmem:[%s9 + $0xd4] sm:$0xf]
      %v6663 = vld [vmem:[%s9 + $0xd8] sm:$0xf]
      %v6664 = vld [vmem:[%s9 + $0xdc] sm:$0xf]
      %v6693 = vunpack.c.l.b16 %v6637
      %v6694 = vunpack.c.l.b16 %v6638
      %v6695 = vunpack.c.l.b16 %v6639
      %v6696 = vunpack.c.l.b16 %v6640
      %v6697 = vunpack.c.l.b16 %v6641
      %v6698 = vunpack.c.l.b16 %v6642
      %v6699 = vunpack.c.l.b16 %v6643
      %v6700 = vunpack.c.l.b16 %v6644
      %v6701 = vunpack.c.l.b16 %v6645
      %v6702 = vunpack.c.l.b16 %v6646
      %v6703 = vunpack.c.l.b16 %v6647
      %v6704 = vunpack.c.l.b16 %v6648
      %v6705 = vunpack.c.l.b16 %v6649
      %v6706 = vunpack.c.l.b16 %v6650
      %v6707 = vunpack.c.l.b16 %v6651
      %v6708 = vunpack.c.l.b16 %v6652
      %v6709 = vunpack.c.l.b16 %v6653
      %v6710 = vunpack.c.l.b16 %v6654
      %v6711 = vunpack.c.l.b16 %v6655
      %v6712 = vunpack.c.l.b16 %v6656
      %v6713 = vunpack.c.l.b16 %v6657
      %v6714 = vunpack.c.l.b16 %v6658
      %v6715 = vunpack.c.l.b16 %v6659
      %v6716 = vunpack.c.l.b16 %v6660
      %v6717 = vunpack.c.l.b16 %v6661
      %v6718 = vunpack.c.l.b16 %v6662
      %v6719 = vunpack.c.l.b16 %v6663
      %v6720 = vunpack.c.l.b16 %v6664
      %v6721 = vpack.c.b16 %v6694, %v6693
      %v6722 = vpack.c.b16 %v6696, %v6695
      %v6723 = vpack.c.b16 %v6698, %v6697
      %v6724 = vpack.c.b16 %v6700, %v6699
      %v6725 = vpack.c.b16 %v6702, %v6701
      %v6726 = vpack.c.b16 %v6704, %v6703
      %v6727 = vpack.c.b16 %v6706, %v6705
      %v6728 = vpack.c.b16 %v6708, %v6707
      %v6729 = vpack.c.b16 %v6710, %v6709
      %v6730 = vpack.c.b16 %v6712, %v6711
      %v6731 = vpack.c.b16 %v6714, %v6713
      %v6732 = vpack.c.b16 %v6716, %v6715
      %v6733 = vpack.c.b16 %v6718, %v6717
      %v6734 = vpack.c.b16 %v6720, %v6719
      %v6749 = vsel %vm2353, %v6519, 0
      %v6751 = vsel %vm2353, %v6521, 0
      %v6753 = vsel %vm2353, %v6523, 0
      %v6755 = vsel %vm2353, %v6525, 0
      %v6757 = vsel %vm2353, %v6527, 0
      %v6759 = vsel %vm2353, %v6529, 0
      %v6761 = vsel %vm2353, %v6531, 0
      %v6763 = vsel %vm2353, %v6533, 0
      %v6765 = vsel %vm2353, %v6535, 0
      %v6767 = vsel %vm2353, %v6537, 0
      %v6769 = vsel %vm2353, %v6539, 0
      %v6771 = vsel %vm2353, %v6541, 0
      %v6773 = vsel %vm2353, %v6543, 0
      %v6775 = vsel %vm2353, %v6545, 0
      %v6777 = vsel %vm2353, %v6547, 0
      %v6779 = vsel %vm2353, %v6636, 0
      %6781 = vmatprep.subr.bf16.mxu0 0
      %6782 = vmatpush1.bf16.msra.mxu0 %v6728
      %6783 = vmatprep.subr.bf16.mxu0 0
      %6784 = vmatpush1.bf16.msra.mxu0 %v6727
      %6785 = vmatprep.subr.bf16.mxu0 0
      %6786 = vmatpush1.bf16.msra.mxu0 %v6726
      %6787 = vmatprep.subr.bf16.mxu0 0
      %6788 = vmatpush1.bf16.msra.mxu0 %v6725
      %6789 = vmatprep.subr.bf16.mxu0 0
      %6790 = vmatpush1.bf16.msra.mxu0 %v6724
      %6791 = vmatprep.subr.bf16.mxu0 0
      %6792 = vmatpush1.bf16.msra.mxu0 %v6723
      %6793 = vmatprep.subr.bf16.mxu0 0
      %6794 = vmatpush1.bf16.msra.mxu0 %v6722
      %6795 = vmatprep.subr.bf16.mxu0 0
      %6796 = vmatpush1.bf16.msra.mxu0 %v6721
      %6797 = vmatprep.subr.bf16.mxu0 0
      %6798 = vmatpush2.bf16.msra.mxu0 0
      %6799 = vmatprep.subr.bf16.mxu0 0
      %6800 = vmatpush2.bf16.msra.mxu0 0
      %6801 = vmatprep.subr.bf16.mxu0 0
      %6802 = vmatpush2.bf16.msra.mxu0 %v6734
      %6803 = vmatprep.subr.bf16.mxu0 0
      %6804 = vmatpush2.bf16.msra.mxu0 %v6733
      %6805 = vmatprep.subr.bf16.mxu0 0
      %6806 = vmatpush2.bf16.msra.mxu0 %v6732
      %6807 = vmatprep.subr.bf16.mxu0 0
      %6808 = vmatpush2.bf16.msra.mxu0 %v6731
      %6809 = vmatprep.subr.bf16.mxu0 0
      %6810 = vmatpush2.bf16.msra.mxu0 %v6730
      %6811 = vmatprep.subr.bf16.mxu0 0
      %6812 = vmatpush2.bf16.msra.mxu0 %v6729
      %6813 = vmatprep.mubr.bf16.mxu0 %v6749
      %6814 = vmatmul.mubr.bf16.gmra.mxu0 %v6424
      %v6815 = vpop.f32.mrf.mxu0
      %v6816 = vadd.f32 0.0, %v6815
      %v6817 = vpop.f32.mrf.mxu0
      %v6818 = vpop.f32.mrf.mxu0
      %v6819 = vadd.f32 0.0, %v6818
      %v6820 = vpop.f32.mrf.mxu0
      %6821 = vmatprep.mubr.bf16.mxu0 %v6751
      %6822 = vmatmul.mubr.bf16.gmra.mxu0 %v6427
      %v6823 = vpop.f32.mrf.mxu0
      %v6824 = vadd.f32 0.0, %v6823
      %v6825 = vpop.f32.mrf.mxu0
      %v6826 = vpop.f32.mrf.mxu0
      %v6827 = vadd.f32 0.0, %v6826
      %v6828 = vpop.f32.mrf.mxu0
      %6829 = vmatprep.mubr.bf16.mxu0 %v6753
      %6830 = vmatmul.mubr.bf16.gmra.mxu0 %v6430
      %v6831 = vpop.f32.mrf.mxu0
      %v6832 = vadd.f32 0.0, %v6831
      %v6833 = vpop.f32.mrf.mxu0
      %v6834 = vpop.f32.mrf.mxu0
      %v6835 = vadd.f32 0.0, %v6834
      %v6836 = vpop.f32.mrf.mxu0
      %6837 = vmatprep.mubr.bf16.mxu0 %v6755
      %6838 = vmatmul.mubr.bf16.gmra.mxu0 %v6433
      %v6839 = vpop.f32.mrf.mxu0
      %v6840 = vadd.f32 0.0, %v6839
      %v6841 = vpop.f32.mrf.mxu0
      %v6842 = vpop.f32.mrf.mxu0
      %v6843 = vadd.f32 0.0, %v6842
      %v6844 = vpop.f32.mrf.mxu0
      %6845 = vmatprep.mubr.bf16.mxu0 %v6757
      %6846 = vmatmul.mubr.bf16.gmra.mxu0 %v6436
      %v6847 = vpop.f32.mrf.mxu0
      %v6848 = vadd.f32 0.0, %v6847
      %v6849 = vpop.f32.mrf.mxu0
      %v6850 = vpop.f32.mrf.mxu0
      %v6851 = vadd.f32 0.0, %v6850
      %v6852 = vpop.f32.mrf.mxu0
      %6853 = vmatprep.mubr.bf16.mxu0 %v6759
      %6854 = vmatmul.mubr.bf16.gmra.mxu0 %v6439
      %v6855 = vpop.f32.mrf.mxu0
      %v6856 = vadd.f32 0.0, %v6855
      %v6857 = vpop.f32.mrf.mxu0
      %v6858 = vpop.f32.mrf.mxu0
      %v6859 = vadd.f32 0.0, %v6858
      %v6860 = vpop.f32.mrf.mxu0
      %6861 = vmatprep.mubr.bf16.mxu0 %v6761
      %6862 = vmatmul.mubr.bf16.gmra.mxu0 %v6442
      %v6863 = vpop.f32.mrf.mxu0
      %v6864 = vadd.f32 0.0, %v6863
      %v6865 = vpop.f32.mrf.mxu0
      %v6866 = vpop.f32.mrf.mxu0
      %v6867 = vadd.f32 0.0, %v6866
      %v6868 = vpop.f32.mrf.mxu0
      %6869 = vmatprep.mubr.bf16.mxu0 %v6763
      %6870 = vmatmul.mubr.bf16.gmra.mxu0 %v6445
      %v6871 = vpop.f32.mrf.mxu0
      %v6872 = vadd.f32 0.0, %v6871
      %v6873 = vpop.f32.mrf.mxu0
      %v6874 = vpop.f32.mrf.mxu0
      %v6875 = vadd.f32 0.0, %v6874
      %v6876 = vpop.f32.mrf.mxu0
      %6877 = vmatprep.mubr.bf16.mxu0 %v6765
      %6878 = vmatmul.mubr.bf16.gmra.mxu0 %v6448
      %v6879 = vpop.f32.mrf.mxu0
      %v6880 = vadd.f32 0.0, %v6879
      %v6881 = vpop.f32.mrf.mxu0
      %v6882 = vpop.f32.mrf.mxu0
      %v6883 = vadd.f32 0.0, %v6882
      %v6884 = vpop.f32.mrf.mxu0
      %6885 = vmatprep.mubr.bf16.mxu0 %v6767
      %6886 = vmatmul.mubr.bf16.gmra.mxu0 %v6451
      %v6887 = vpop.f32.mrf.mxu0
      %v6888 = vadd.f32 0.0, %v6887
      %v6889 = vpop.f32.mrf.mxu0
      %v6890 = vpop.f32.mrf.mxu0
      %v6891 = vadd.f32 0.0, %v6890
      %v6892 = vpop.f32.mrf.mxu0
      %6893 = vmatprep.mubr.bf16.mxu0 %v6769
      %6894 = vmatmul.mubr.bf16.gmra.mxu0 %v6454
      %v6895 = vpop.f32.mrf.mxu0
      %v6896 = vadd.f32 0.0, %v6895
      %v6897 = vpop.f32.mrf.mxu0
      %v6898 = vpop.f32.mrf.mxu0
      %v6899 = vadd.f32 0.0, %v6898
      %v6900 = vpop.f32.mrf.mxu0
      %6901 = vmatprep.mubr.bf16.mxu0 %v6771
      %6902 = vmatmul.mubr.bf16.gmra.mxu0 %v6457
      %v6903 = vpop.f32.mrf.mxu0
      %v6904 = vadd.f32 0.0, %v6903
      %v6905 = vpop.f32.mrf.mxu0
      %v6906 = vpop.f32.mrf.mxu0
      %v6907 = vadd.f32 0.0, %v6906
      %v6908 = vpop.f32.mrf.mxu0
      %6909 = vmatprep.mubr.bf16.mxu0 %v6773
      %6910 = vmatmul.mubr.bf16.gmra.mxu0 %v6460
      %v6911 = vpop.f32.mrf.mxu0
      %v6912 = vadd.f32 0.0, %v6911
      %v6913 = vpop.f32.mrf.mxu0
      %v6914 = vpop.f32.mrf.mxu0
      %v6915 = vadd.f32 0.0, %v6914
      %v6916 = vpop.f32.mrf.mxu0
      %6917 = vmatprep.mubr.bf16.mxu0 %v6775
      %6918 = vmatmul.mubr.bf16.gmra.mxu0 %v6463
      %v6919 = vpop.f32.mrf.mxu0
      %v6920 = vadd.f32 0.0, %v6919
      %v6921 = vpop.f32.mrf.mxu0
      %v6922 = vpop.f32.mrf.mxu0
      %v6923 = vadd.f32 0.0, %v6922
      %v6924 = vpop.f32.mrf.mxu0
      %6925 = vmatprep.mubr.bf16.mxu0 %v6777
      %6926 = vmatmul.mubr.bf16.gmra.mxu0 %v6466
      %v6927 = vpop.f32.mrf.mxu0
      %v6928 = vadd.f32 0.0, %v6927
      %v6929 = vpop.f32.mrf.mxu0
      %v6930 = vpop.f32.mrf.mxu0
      %v6931 = vadd.f32 0.0, %v6930
      %v6932 = vpop.f32.mrf.mxu0
      %6933 = vmatprep.mubr.bf16.mxu0 %v6779
      %6934 = vmatmul.mubr.bf16.gmra.mxu0 %v6630
      %v6935 = vpop.f32.mrf.mxu0
      %v6936 = vadd.f32 0.0, %v6935
      %v6937 = vpop.f32.mrf.mxu0
      %v6938 = vpop.f32.mrf.mxu0
      %v6939 = vadd.f32 0.0, %v6938
      %v6940 = vpop.f32.mrf.mxu0
      %6941 = vdwg.mxu0
      %v6970 = vunpack.c.l.b16 %v6548
      %v6971 = vunpack.c.l.b16 %v6549
      %v6972 = vunpack.c.l.b16 %v6550
      %v6973 = vunpack.c.l.b16 %v6551
      %v6974 = vunpack.c.l.b16 %v6552
      %v6975 = vunpack.c.l.b16 %v6553
      %v6976 = vunpack.c.l.b16 %v6554
      %v6977 = vunpack.c.l.b16 %v6555
      %v6978 = vunpack.c.l.b16 %v6556
      %v6979 = vunpack.c.l.b16 %v6557
      %v6980 = vunpack.c.l.b16 %v6558
      %v6981 = vunpack.c.l.b16 %v6559
      %v6982 = vunpack.c.l.b16 %v6560
      %v6983 = vunpack.c.l.b16 %v6561
      %v6984 = vunpack.c.l.b16 %v6562
      %v6985 = vunpack.c.l.b16 %v6563
      %v6986 = vunpack.c.l.b16 %v6564
      %v6987 = vunpack.c.l.b16 %v6565
      %v6988 = vunpack.c.l.b16 %v6566
      %v6989 = vunpack.c.l.b16 %v6567
      %v6990 = vunpack.c.l.b16 %v6568
      %v6991 = vunpack.c.l.b16 %v6569
      %v6992 = vunpack.c.l.b16 %v6570
      %v6993 = vunpack.c.l.b16 %v6571
      %v6994 = vunpack.c.l.b16 %v6572
      %v6995 = vunpack.c.l.b16 %v6573
      %v6996 = vunpack.c.l.b16 %v6574
      %v6997 = vunpack.c.l.b16 %v6575
      %v6998 = vpack.c.b16 %v6971, %v6970
      %v6999 = vpack.c.b16 %v6973, %v6972
      %v7000 = vpack.c.b16 %v6975, %v6974
      %v7001 = vpack.c.b16 %v6977, %v6976
      %v7002 = vpack.c.b16 %v6979, %v6978
      %v7003 = vpack.c.b16 %v6981, %v6980
      %v7004 = vpack.c.b16 %v6983, %v6982
      %v7005 = vpack.c.b16 %v6985, %v6984
      %v7006 = vpack.c.b16 %v6987, %v6986
      %v7007 = vpack.c.b16 %v6989, %v6988
      %v7008 = vpack.c.b16 %v6991, %v6990
      %v7009 = vpack.c.b16 %v6993, %v6992
      %v7010 = vpack.c.b16 %v6995, %v6994
      %v7011 = vpack.c.b16 %v6997, %v6996
      %v7026 = vsel %vm2353, %v6517, 0
      %7028 = vmatprep.subr.bf16.mxu0 0
      %7029 = vmatpush1.bf16.msra.mxu0 %v7005
      %7030 = vmatprep.subr.bf16.mxu0 0
      %7031 = vmatpush1.bf16.msra.mxu0 %v7004
      %7032 = vmatprep.subr.bf16.mxu0 0
      %7033 = vmatpush1.bf16.msra.mxu0 %v7003
      %7034 = vmatprep.subr.bf16.mxu0 0
      %7035 = vmatpush1.bf16.msra.mxu0 %v7002
      %7036 = vmatprep.subr.bf16.mxu0 0
      %7037 = vmatpush1.bf16.msra.mxu0 %v7001
      %7038 = vmatprep.subr.bf16.mxu0 0
      %7039 = vmatpush1.bf16.msra.mxu0 %v7000
      %7040 = vmatprep.subr.bf16.mxu0 0
      %7041 = vmatpush1.bf16.msra.mxu0 %v6999
      %7042 = vmatprep.subr.bf16.mxu0 0
      %7043 = vmatpush1.bf16.msra.mxu0 %v6998
      %7044 = vmatprep.subr.bf16.mxu0 0
      %7045 = vmatpush2.bf16.msra.mxu0 0
      %7046 = vmatprep.subr.bf16.mxu0 0
      %7047 = vmatpush2.bf16.msra.mxu0 0
      %7048 = vmatprep.subr.bf16.mxu0 0
      %7049 = vmatpush2.bf16.msra.mxu0 %v7011
      %7050 = vmatprep.subr.bf16.mxu0 0
      %7051 = vmatpush2.bf16.msra.mxu0 %v7010
      %7052 = vmatprep.subr.bf16.mxu0 0
      %7053 = vmatpush2.bf16.msra.mxu0 %v7009
      %7054 = vmatprep.subr.bf16.mxu0 0
      %7055 = vmatpush2.bf16.msra.mxu0 %v7008
      %7056 = vmatprep.subr.bf16.mxu0 0
      %7057 = vmatpush2.bf16.msra.mxu0 %v7007
      %7058 = vmatprep.subr.bf16.mxu0 0
      %7059 = vmatpush2.bf16.msra.mxu0 %v7006
      %7060 = vmatprep.mubr.bf16.mxu0 %v7026
      %7061 = vmatmul.mubr.bf16.gmra.mxu0 %v6421
      %v7062 = vpop.f32.mrf.mxu0
      %v7063 = vadd.f32 %v6816, %v7062
      %v7064 = vpop.f32.mrf.mxu0
      %v7065 = vpop.f32.mrf.mxu0
      %v7066 = vadd.f32 %v6819, %v7065
      %v7067 = vpop.f32.mrf.mxu0
      %7068 = vmatprep.mubr.bf16.mxu0 %v6749
      %7069 = vmatmul.mubr.bf16.gmra.mxu0 %v6424
      %v7070 = vpop.f32.mrf.mxu0
      %v7071 = vadd.f32 %v6824, %v7070
      %v7072 = vpop.f32.mrf.mxu0
      %v7073 = vpop.f32.mrf.mxu0
      %v7074 = vadd.f32 %v6827, %v7073
      %v7075 = vpop.f32.mrf.mxu0
      %7076 = vmatprep.mubr.bf16.mxu0 %v6751
      %7077 = vmatmul.mubr.bf16.gmra.mxu0 %v6427
      %v7078 = vpop.f32.mrf.mxu0
      %v7079 = vadd.f32 %v6832, %v7078
      %v7080 = vpop.f32.mrf.mxu0
      %v7081 = vpop.f32.mrf.mxu0
      %v7082 = vadd.f32 %v6835, %v7081
      %v7083 = vpop.f32.mrf.mxu0
      %7084 = vmatprep.mubr.bf16.mxu0 %v6753
      %7085 = vmatmul.mubr.bf16.gmra.mxu0 %v6430
      %v7086 = vpop.f32.mrf.mxu0
      %v7087 = vadd.f32 %v6840, %v7086
      %v7088 = vpop.f32.mrf.mxu0
      %v7089 = vpop.f32.mrf.mxu0
      %v7090 = vadd.f32 %v6843, %v7089
      %v7091 = vpop.f32.mrf.mxu0
      %7092 = vmatprep.mubr.bf16.mxu0 %v6755
      %7093 = vmatmul.mubr.bf16.gmra.mxu0 %v6433
      %v7094 = vpop.f32.mrf.mxu0
      %v7095 = vadd.f32 %v6848, %v7094
      %v7096 = vpop.f32.mrf.mxu0
      %v7097 = vpop.f32.mrf.mxu0
      %v7098 = vadd.f32 %v6851, %v7097
      %v7099 = vpop.f32.mrf.mxu0
      %7100 = vmatprep.mubr.bf16.mxu0 %v6757
      %7101 = vmatmul.mubr.bf16.gmra.mxu0 %v6436
      %v7102 = vpop.f32.mrf.mxu0
      %v7103 = vadd.f32 %v6856, %v7102
      %v7104 = vpop.f32.mrf.mxu0
      %v7105 = vpop.f32.mrf.mxu0
      %v7106 = vadd.f32 %v6859, %v7105
      %v7107 = vpop.f32.mrf.mxu0
      %7108 = vmatprep.mubr.bf16.mxu0 %v6759
      %7109 = vmatmul.mubr.bf16.gmra.mxu0 %v6439
      %v7110 = vpop.f32.mrf.mxu0
      %v7111 = vadd.f32 %v6864, %v7110
      %v7112 = vpop.f32.mrf.mxu0
      %v7113 = vpop.f32.mrf.mxu0
      %v7114 = vadd.f32 %v6867, %v7113
      %v7115 = vpop.f32.mrf.mxu0
      %7116 = vmatprep.mubr.bf16.mxu0 %v6761
      %7117 = vmatmul.mubr.bf16.gmra.mxu0 %v6442
      %v7118 = vpop.f32.mrf.mxu0
      %v7119 = vadd.f32 %v6872, %v7118
      %v7120 = vpop.f32.mrf.mxu0
      %v7121 = vpop.f32.mrf.mxu0
      %v7122 = vadd.f32 %v6875, %v7121
      %v7123 = vpop.f32.mrf.mxu0
      %7124 = vmatprep.mubr.bf16.mxu0 %v6763
      %7125 = vmatmul.mubr.bf16.gmra.mxu0 %v6445
      %v7126 = vpop.f32.mrf.mxu0
      %v7127 = vadd.f32 %v6880, %v7126
      %v7128 = vpop.f32.mrf.mxu0
      %v7129 = vpop.f32.mrf.mxu0
      %v7130 = vadd.f32 %v6883, %v7129
      %v7131 = vpop.f32.mrf.mxu0
      %7132 = vmatprep.mubr.bf16.mxu0 %v6765
      %7133 = vmatmul.mubr.bf16.gmra.mxu0 %v6448
      %v7134 = vpop.f32.mrf.mxu0
      %v7135 = vadd.f32 %v6888, %v7134
      %v7136 = vpop.f32.mrf.mxu0
      %v7137 = vpop.f32.mrf.mxu0
      %v7138 = vadd.f32 %v6891, %v7137
      %v7139 = vpop.f32.mrf.mxu0
      %7140 = vmatprep.mubr.bf16.mxu0 %v6767
      %7141 = vmatmul.mubr.bf16.gmra.mxu0 %v6451
      %v7142 = vpop.f32.mrf.mxu0
      %v7143 = vadd.f32 %v6896, %v7142
      %v7144 = vpop.f32.mrf.mxu0
      %v7145 = vpop.f32.mrf.mxu0
      %v7146 = vadd.f32 %v6899, %v7145
      %v7147 = vpop.f32.mrf.mxu0
      %7148 = vmatprep.mubr.bf16.mxu0 %v6769
      %7149 = vmatmul.mubr.bf16.gmra.mxu0 %v6454
      %v7150 = vpop.f32.mrf.mxu0
      %v7151 = vadd.f32 %v6904, %v7150
      %v7152 = vpop.f32.mrf.mxu0
      %v7153 = vpop.f32.mrf.mxu0
      %v7154 = vadd.f32 %v6907, %v7153
      %v7155 = vpop.f32.mrf.mxu0
      %7156 = vmatprep.mubr.bf16.mxu0 %v6771
      %7157 = vmatmul.mubr.bf16.gmra.mxu0 %v6457
      %v7158 = vpop.f32.mrf.mxu0
      %v7159 = vadd.f32 %v6912, %v7158
      %v7160 = vpop.f32.mrf.mxu0
      %v7161 = vpop.f32.mrf.mxu0
      %v7162 = vadd.f32 %v6915, %v7161
      %v7163 = vpop.f32.mrf.mxu0
      %7164 = vmatprep.mubr.bf16.mxu0 %v6773
      %7165 = vmatmul.mubr.bf16.gmra.mxu0 %v6460
      %v7166 = vpop.f32.mrf.mxu0
      %v7167 = vadd.f32 %v6920, %v7166
      %v7168 = vpop.f32.mrf.mxu0
      %v7169 = vpop.f32.mrf.mxu0
      %v7170 = vadd.f32 %v6923, %v7169
      %v7171 = vpop.f32.mrf.mxu0
      %7172 = vmatprep.mubr.bf16.mxu0 %v6775
      %7173 = vmatmul.mubr.bf16.gmra.mxu0 %v6463
      %v7174 = vpop.f32.mrf.mxu0
      %v7175 = vadd.f32 %v6928, %v7174
      %v7176 = vpop.f32.mrf.mxu0
      %v7177 = vpop.f32.mrf.mxu0
      %v7178 = vadd.f32 %v6931, %v7177
      %v7179 = vpop.f32.mrf.mxu0
      %7180 = vmatprep.mubr.bf16.mxu0 %v6777
      %7181 = vmatmul.mubr.bf16.gmra.mxu0 %v6466
      %v7182 = vpop.f32.mrf.mxu0
      %v7183 = vadd.f32 %v6936, %v7182
      %v7184 = vpop.f32.mrf.mxu0
      %v7185 = vpop.f32.mrf.mxu0
      %v7186 = vadd.f32 %v6939, %v7185
      %v7187 = vpop.f32.mrf.mxu0
      %7188 = vdwg.mxu0
      %v7190 = vshrl.u32 %v5560, 16
      %v7192 = vshll.u32 %v5560, 16
      %v7194 = vrot.slane %v7192, 1
      %v7195 = vor.u32 %v7190, %v7194
      %v7197 = vshll.u32 %v5561, 16
      %v7199 = vrot.slane %v7197, 1
      %v7200 = vsel %vm1865, %v7195, %v7199
      %7201 = vrot.lane.b32.xlu0 %v7200, 32
      %v7202 = vpop.permute.xlu0 %7201
      %v7205 = vrot.slane %v5560, 1
      %v7206 = vrot.slane %v5561, 1
      %v7207 = vsel %vm2122, %v7205, %v7206
      %7208 = vrot.lane.b32.xlu0 %v7207, 64
      %v7209 = vpop.permute.xlu0 %7208
      %v7210 = vrot.slane %v7190, 1
      %v7211 = vrot.slane %v7192, 2
      %v7212 = vor.u32 %v7210, %v7211
      %v7213 = vshrl.u32 %v5561, 16
      %v7215 = vrot.slane %v7213, 1
      %v7216 = vrot.slane %v7197, 2
      %v7217 = vor.u32 %v7215, %v7216
      %v7218 = vsel %vm3522, %v7212, %v7217
      %7219 = vrot.lane.b32.xlu0 %v7218, 96
      %v7220 = vpop.permute.xlu0 %7219
      %v7221 = vrot.slane %v5560, 2
      %v7222 = vrot.slane %v5561, 2
      %v7223 = vsel %vm3699, %v7221, %v7222
      %v7224 = vrot.slane %v7190, 2
      %v7225 = vrot.slane %v7192, 3
      %v7226 = vor.u32 %v7224, %v7225
      %v7227 = vrot.slane %v7213, 2
      %v7228 = vrot.slane %v7197, 3
      %v7229 = vor.u32 %v7227, %v7228
      %v7230 = vsel %vm6130, %v7226, %v7229
      %7231 = vrot.lane.b32.xlu0 %v7230, 32
      %v7232 = vpop.permute.xlu0 %7231
      %v7233 = vrot.slane %v5560, 3
      %v7234 = vrot.slane %v5561, 3
      %v7235 = vsel %vm6275, %v7233, %v7234
      %7236 = vrot.lane.b32.xlu0 %v7235, 64
      %v7237 = vpop.permute.xlu0 %7236
      %v7239 = vsel %vm489, %v5560, %v7202
      %v7241 = vsel %vm2235, %v7239, %v7209
      %v7243 = vsel %vm2353, %v7241, %v7220
      %v7247 = vsel %vm489, %v7223, %v7232
      %v7249 = vsel %vm2235, %v7247, %v7237
      %v7250 = vld [vmem:[%s9 + $0xe0] sm:$0xf]
      %v7251 = vld [vmem:[%s9 + $0xe4] sm:$0xf]
      %v7252 = vld [vmem:[%s9 + $0xe8] sm:$0xf]
      %v7253 = vld [vmem:[%s9 + $0xec] sm:$0xf]
      %v7254 = vld [vmem:[%s9 + $0xf0] sm:$0xf]
      %v7255 = vld [vmem:[%s9 + $0xf4] sm:$0xf]
      %v7256 = vld [vmem:[%s9 + $0xf8] sm:$0xf]
      %v7257 = vld [vmem:[%s9 + $0xfc] sm:$0xf]
      %v7258 = vld [vmem:[%s9 + $0x100] sm:$0xf]
      %v7259 = vld [vmem:[%s9 + $0x104] sm:$0xf]
      %v7260 = vld [vmem:[%s9 + $0x108] sm:$0xf]
      %v7261 = vld [vmem:[%s9 + $0x10c] sm:$0xf]
      %v7262 = vld [vmem:[%s9 + $0x110] sm:$0xf]
      %v7263 = vld [vmem:[%s9 + $0x114] sm:$0xf]
      %v7264 = vld [vmem:[%s9 + $0x118] sm:$0xf]
      %v7265 = vld [vmem:[%s9 + $0x11c] sm:$0xf]
      %v7266 = vld [vmem:[%s9 + $0x120] sm:$0xf]
      %v7267 = vld [vmem:[%s9 + $0x124] sm:$0xf]
      %v7268 = vld [vmem:[%s9 + $0x128] sm:$0xf]
      %v7269 = vld [vmem:[%s9 + $0x12c] sm:$0xf]
      %v7270 = vld [vmem:[%s9 + $0x130] sm:$0xf]
      %v7271 = vld [vmem:[%s9 + $0x134] sm:$0xf]
      %v7272 = vld [vmem:[%s9 + $0x138] sm:$0xf]
      %v7273 = vld [vmem:[%s9 + $0x13c] sm:$0xf]
      %v7274 = vld [vmem:[%s9 + $0x140] sm:$0xf]
      %v7275 = vld [vmem:[%s9 + $0x144] sm:$0xf]
      %v7276 = vld [vmem:[%s9 + $0x148] sm:$0xf]
      %v7277 = vld [vmem:[%s9 + $0x14c] sm:$0xf]
      %v7306 = vunpack.c.l.b16 %v7250
      %v7307 = vunpack.c.l.b16 %v7251
      %v7308 = vunpack.c.l.b16 %v7252
      %v7309 = vunpack.c.l.b16 %v7253
      %v7310 = vunpack.c.l.b16 %v7254
      %v7311 = vunpack.c.l.b16 %v7255
      %v7312 = vunpack.c.l.b16 %v7256
      %v7313 = vunpack.c.l.b16 %v7257
      %v7314 = vunpack.c.l.b16 %v7258
      %v7315 = vunpack.c.l.b16 %v7259
      %v7316 = vunpack.c.l.b16 %v7260
      %v7317 = vunpack.c.l.b16 %v7261
      %v7318 = vunpack.c.l.b16 %v7262
      %v7319 = vunpack.c.l.b16 %v7263
      %v7320 = vunpack.c.l.b16 %v7264
      %v7321 = vunpack.c.l.b16 %v7265
      %v7322 = vunpack.c.l.b16 %v7266
      %v7323 = vunpack.c.l.b16 %v7267
      %v7324 = vunpack.c.l.b16 %v7268
      %v7325 = vunpack.c.l.b16 %v7269
      %v7326 = vunpack.c.l.b16 %v7270
      %v7327 = vunpack.c.l.b16 %v7271
      %v7328 = vunpack.c.l.b16 %v7272
      %v7329 = vunpack.c.l.b16 %v7273
      %v7330 = vunpack.c.l.b16 %v7274
      %v7331 = vunpack.c.l.b16 %v7275
      %v7332 = vunpack.c.l.b16 %v7276
      %v7333 = vunpack.c.l.b16 %v7277
      %v7334 = vpack.c.b16 %v7307, %v7306
      %v7335 = vpack.c.b16 %v7309, %v7308
      %v7336 = vpack.c.b16 %v7311, %v7310
      %v7337 = vpack.c.b16 %v7313, %v7312
      %v7338 = vpack.c.b16 %v7315, %v7314
      %v7339 = vpack.c.b16 %v7317, %v7316
      %v7340 = vpack.c.b16 %v7319, %v7318
      %v7341 = vpack.c.b16 %v7321, %v7320
      %v7342 = vpack.c.b16 %v7323, %v7322
      %v7343 = vpack.c.b16 %v7325, %v7324
      %v7344 = vpack.c.b16 %v7327, %v7326
      %v7345 = vpack.c.b16 %v7329, %v7328
      %v7346 = vpack.c.b16 %v7331, %v7330
      %v7347 = vpack.c.b16 %v7333, %v7332
      %v7362 = vsel %vm2353, %v7249, 0
      %7364 = vmatprep.subr.bf16.mxu0 0
      %7365 = vmatpush1.bf16.msra.mxu0 %v7341
      %7366 = vmatprep.subr.bf16.mxu0 0
      %7367 = vmatpush1.bf16.msra.mxu0 %v7340
      %7368 = vmatprep.subr.bf16.mxu0 0
      %7369 = vmatpush1.bf16.msra.mxu0 %v7339
      %7370 = vmatprep.subr.bf16.mxu0 0
      %7371 = vmatpush1.bf16.msra.mxu0 %v7338
      %7372 = vmatprep.subr.bf16.mxu0 0
      %7373 = vmatpush1.bf16.msra.mxu0 %v7337
      %7374 = vmatprep.subr.bf16.mxu0 0
      %7375 = vmatpush1.bf16.msra.mxu0 %v7336
      %7376 = vmatprep.subr.bf16.mxu0 0
      %7377 = vmatpush1.bf16.msra.mxu0 %v7335
      %7378 = vmatprep.subr.bf16.mxu0 0
      %7379 = vmatpush1.bf16.msra.mxu0 %v7334
      %7380 = vmatprep.subr.bf16.mxu0 0
      %7381 = vmatpush2.bf16.msra.mxu0 0
      %7382 = vmatprep.subr.bf16.mxu0 0
      %7383 = vmatpush2.bf16.msra.mxu0 0
      %7384 = vmatprep.subr.bf16.mxu0 0
      %7385 = vmatpush2.bf16.msra.mxu0 %v7347
      %7386 = vmatprep.subr.bf16.mxu0 0
      %7387 = vmatpush2.bf16.msra.mxu0 %v7346
      %7388 = vmatprep.subr.bf16.mxu0 0
      %7389 = vmatpush2.bf16.msra.mxu0 %v7345
      %7390 = vmatprep.subr.bf16.mxu0 0
      %7391 = vmatpush2.bf16.msra.mxu0 %v7344
      %7392 = vmatprep.subr.bf16.mxu0 0
      %7393 = vmatpush2.bf16.msra.mxu0 %v7343
      %7394 = vmatprep.subr.bf16.mxu0 0
      %7395 = vmatpush2.bf16.msra.mxu0 %v7342
      %7396 = vmatprep.mubr.bf16.mxu0 %v6751
      %7397 = vmatmul.mubr.bf16.gmra.mxu0 %v6427
      %v7398 = vpop.f32.mrf.mxu0
      %v7399 = vadd.f32 0.0, %v7398
      %v7400 = vpop.f32.mrf.mxu0
      %v7401 = vpop.f32.mrf.mxu0
      %v7402 = vadd.f32 0.0, %v7401
      %v7403 = vpop.f32.mrf.mxu0
      %7404 = vmatprep.mubr.bf16.mxu0 %v6753
      %7405 = vmatmul.mubr.bf16.gmra.mxu0 %v6430
      %v7406 = vpop.f32.mrf.mxu0
      %v7407 = vadd.f32 0.0, %v7406
      %v7408 = vpop.f32.mrf.mxu0
      %v7409 = vpop.f32.mrf.mxu0
      %v7410 = vadd.f32 0.0, %v7409
      %v7411 = vpop.f32.mrf.mxu0
      %7412 = vmatprep.mubr.bf16.mxu0 %v6755
      %7413 = vmatmul.mubr.bf16.gmra.mxu0 %v6433
      %v7414 = vpop.f32.mrf.mxu0
      %v7415 = vadd.f32 0.0, %v7414
      %v7416 = vpop.f32.mrf.mxu0
      %v7417 = vpop.f32.mrf.mxu0
      %v7418 = vadd.f32 0.0, %v7417
      %v7419 = vpop.f32.mrf.mxu0
      %7420 = vmatprep.mubr.bf16.mxu0 %v6757
      %7421 = vmatmul.mubr.bf16.gmra.mxu0 %v6436
      %v7422 = vpop.f32.mrf.mxu0
      %v7423 = vadd.f32 0.0, %v7422
      %v7424 = vpop.f32.mrf.mxu0
      %v7425 = vpop.f32.mrf.mxu0
      %v7426 = vadd.f32 0.0, %v7425
      %v7427 = vpop.f32.mrf.mxu0
      %7428 = vmatprep.mubr.bf16.mxu0 %v6759
      %7429 = vmatmul.mubr.bf16.gmra.mxu0 %v6439
      %v7430 = vpop.f32.mrf.mxu0
      %v7431 = vadd.f32 0.0, %v7430
      %v7432 = vpop.f32.mrf.mxu0
      %v7433 = vpop.f32.mrf.mxu0
      %v7434 = vadd.f32 0.0, %v7433
      %v7435 = vpop.f32.mrf.mxu0
      %7436 = vmatprep.mubr.bf16.mxu0 %v6761
      %7437 = vmatmul.mubr.bf16.gmra.mxu0 %v6442
      %v7438 = vpop.f32.mrf.mxu0
      %v7439 = vadd.f32 0.0, %v7438
      %v7440 = vpop.f32.mrf.mxu0
      %v7441 = vpop.f32.mrf.mxu0
      %v7442 = vadd.f32 0.0, %v7441
      %v7443 = vpop.f32.mrf.mxu0
      %7444 = vmatprep.mubr.bf16.mxu0 %v6763
      %7445 = vmatmul.mubr.bf16.gmra.mxu0 %v6445
      %v7446 = vpop.f32.mrf.mxu0
      %v7447 = vadd.f32 0.0, %v7446
      %v7448 = vpop.f32.mrf.mxu0
      %v7449 = vpop.f32.mrf.mxu0
      %v7450 = vadd.f32 0.0, %v7449
      %v7451 = vpop.f32.mrf.mxu0
      %7452 = vmatprep.mubr.bf16.mxu0 %v6765
      %7453 = vmatmul.mubr.bf16.gmra.mxu0 %v6448
      %v7454 = vpop.f32.mrf.mxu0
      %v7455 = vadd.f32 0.0, %v7454
      %v7456 = vpop.f32.mrf.mxu0
      %v7457 = vpop.f32.mrf.mxu0
      %v7458 = vadd.f32 0.0, %v7457
      %v7459 = vpop.f32.mrf.mxu0
      %7460 = vmatprep.mubr.bf16.mxu0 %v6767
      %7461 = vmatmul.mubr.bf16.gmra.mxu0 %v6451
      %v7462 = vpop.f32.mrf.mxu0
      %v7463 = vadd.f32 0.0, %v7462
      %v7464 = vpop.f32.mrf.mxu0
      %v7465 = vpop.f32.mrf.mxu0
      %v7466 = vadd.f32 0.0, %v7465
      %v7467 = vpop.f32.mrf.mxu0
      %7468 = vmatprep.mubr.bf16.mxu0 %v6769
      %7469 = vmatmul.mubr.bf16.gmra.mxu0 %v6454
      %v7470 = vpop.f32.mrf.mxu0
      %v7471 = vadd.f32 0.0, %v7470
      %v7472 = vpop.f32.mrf.mxu0
      %v7473 = vpop.f32.mrf.mxu0
      %v7474 = vadd.f32 0.0, %v7473
      %v7475 = vpop.f32.mrf.mxu0
      %7476 = vmatprep.mubr.bf16.mxu0 %v6771
      %7477 = vmatmul.mubr.bf16.gmra.mxu0 %v6457
      %v7478 = vpop.f32.mrf.mxu0
      %v7479 = vadd.f32 0.0, %v7478
      %v7480 = vpop.f32.mrf.mxu0
      %v7481 = vpop.f32.mrf.mxu0
      %v7482 = vadd.f32 0.0, %v7481
      %v7483 = vpop.f32.mrf.mxu0
      %7484 = vmatprep.mubr.bf16.mxu0 %v6773
      %7485 = vmatmul.mubr.bf16.gmra.mxu0 %v6460
      %v7486 = vpop.f32.mrf.mxu0
      %v7487 = vadd.f32 0.0, %v7486
      %v7488 = vpop.f32.mrf.mxu0
      %v7489 = vpop.f32.mrf.mxu0
      %v7490 = vadd.f32 0.0, %v7489
      %v7491 = vpop.f32.mrf.mxu0
      %7492 = vmatprep.mubr.bf16.mxu0 %v6775
      %7493 = vmatmul.mubr.bf16.gmra.mxu0 %v6463
      %v7494 = vpop.f32.mrf.mxu0
      %v7495 = vadd.f32 0.0, %v7494
      %v7496 = vpop.f32.mrf.mxu0
      %v7497 = vpop.f32.mrf.mxu0
      %v7498 = vadd.f32 0.0, %v7497
      %v7499 = vpop.f32.mrf.mxu0
      %7500 = vmatprep.mubr.bf16.mxu0 %v6777
      %7501 = vmatmul.mubr.bf16.gmra.mxu0 %v6466
      %v7502 = vpop.f32.mrf.mxu0
      %v7503 = vadd.f32 0.0, %v7502
      %v7504 = vpop.f32.mrf.mxu0
      %v7505 = vpop.f32.mrf.mxu0
      %v7506 = vadd.f32 0.0, %v7505
      %v7507 = vpop.f32.mrf.mxu0
      %7508 = vmatprep.mubr.bf16.mxu0 %v6779
      %7509 = vmatmul.mubr.bf16.gmra.mxu0 %v6630
      %v7510 = vpop.f32.mrf.mxu0
      %v7511 = vadd.f32 0.0, %v7510
      %v7512 = vpop.f32.mrf.mxu0
      %v7513 = vpop.f32.mrf.mxu0
      %v7514 = vadd.f32 0.0, %v7513
      %v7515 = vpop.f32.mrf.mxu0
      %7516 = vmatprep.mubr.bf16.mxu0 %v7362
      %7517 = vmatmul.mubr.bf16.gmra.mxu0 %v7243
      %v7518 = vpop.f32.mrf.mxu0
      %v7519 = vadd.f32 0.0, %v7518
      %v7520 = vpop.f32.mrf.mxu0
      %v7521 = vpop.f32.mrf.mxu0
      %v7522 = vadd.f32 0.0, %v7521
      %v7523 = vpop.f32.mrf.mxu0
      %7524 = vdwg.mxu0
      %v7525 = vadd.f32 %v7063, %v7399
      %v7526 = vadd.f32 %v7066, %v7402
      %v7527 = vadd.f32 %v7071, %v7407
      %v7528 = vadd.f32 %v7074, %v7410
      %v7529 = vadd.f32 %v7079, %v7415
      %v7530 = vadd.f32 %v7082, %v7418
      %v7531 = vadd.f32 %v7087, %v7423
      %v7532 = vadd.f32 %v7090, %v7426
      %v7533 = vadd.f32 %v7095, %v7431
      %v7534 = vadd.f32 %v7098, %v7434
      %v7535 = vadd.f32 %v7103, %v7439
      %v7536 = vadd.f32 %v7106, %v7442
      %v7537 = vadd.f32 %v7111, %v7447
      %v7538 = vadd.f32 %v7114, %v7450
      %v7539 = vadd.f32 %v7119, %v7455
      %v7540 = vadd.f32 %v7122, %v7458
      %v7541 = vadd.f32 %v7127, %v7463
      %v7542 = vadd.f32 %v7130, %v7466
      %v7543 = vadd.f32 %v7135, %v7471
      %v7544 = vadd.f32 %v7138, %v7474
      %v7545 = vadd.f32 %v7143, %v7479
      %v7546 = vadd.f32 %v7146, %v7482
      %v7547 = vadd.f32 %v7151, %v7487
      %v7548 = vadd.f32 %v7154, %v7490
      %v7549 = vadd.f32 %v7159, %v7495
      %v7550 = vadd.f32 %v7162, %v7498
      %v7551 = vadd.f32 %v7167, %v7503
      %v7552 = vadd.f32 %v7170, %v7506
      %v7553 = vadd.f32 %v7175, %v7511
      %v7554 = vadd.f32 %v7178, %v7514
      %v7555 = vadd.f32 %v7183, %v7519
      %v7556 = vadd.f32 %v7186, %v7522
      %v7558 = vshrl.u32 %v5562, 16
      %v7560 = vshll.u32 %v5562, 16
      %v7562 = vrot.slane %v7560, 1
      %v7563 = vor.u32 %v7558, %v7562
      %v7565 = vshll.u32 %v5563, 16
      %v7567 = vrot.slane %v7565, 1
      %v7568 = vsel %vm1865, %v7563, %v7567
      %7569 = vrot.lane.b32.xlu0 %v7568, 32
      %v7570 = vpop.permute.xlu0 %7569
      %v7573 = vrot.slane %v5562, 1
      %v7574 = vrot.slane %v5563, 1
      %v7575 = vsel %vm2122, %v7573, %v7574
      %7576 = vrot.lane.b32.xlu0 %v7575, 64
      %v7577 = vpop.permute.xlu0 %7576
      %v7578 = vrot.slane %v7558, 1
      %v7579 = vrot.slane %v7560, 2
      %v7580 = vor.u32 %v7578, %v7579
      %v7581 = vshrl.u32 %v5563, 16
      %v7583 = vrot.slane %v7581, 1
      %v7584 = vrot.slane %v7565, 2
      %v7585 = vor.u32 %v7583, %v7584
      %v7586 = vsel %vm3522, %v7580, %v7585
      %7587 = vrot.lane.b32.xlu0 %v7586, 96
      %v7588 = vpop.permute.xlu0 %7587
      %v7589 = vrot.slane %v5562, 2
      %v7590 = vrot.slane %v5563, 2
      %v7591 = vsel %vm3699, %v7589, %v7590
      %v7592 = vrot.slane %v7558, 2
      %v7593 = vrot.slane %v7560, 3
      %v7594 = vor.u32 %v7592, %v7593
      %v7595 = vrot.slane %v7581, 2
      %v7596 = vrot.slane %v7565, 3
      %v7597 = vor.u32 %v7595, %v7596
      %v7598 = vsel %vm6130, %v7594, %v7597
      %7599 = vrot.lane.b32.xlu0 %v7598, 32
      %v7600 = vpop.permute.xlu0 %7599
      %v7601 = vrot.slane %v5562, 3
      %v7602 = vrot.slane %v5563, 3
      %v7603 = vsel %vm6275, %v7601, %v7602
      %7604 = vrot.lane.b32.xlu0 %v7603, 64
      %v7605 = vpop.permute.xlu0 %7604
      %v7607 = vsel %vm489, %v5562, %v7570
      %v7609 = vsel %vm2235, %v7607, %v7577
      %v7611 = vsel %vm2353, %v7609, %v7588
      %v7615 = vsel %vm489, %v7591, %v7600
      %v7617 = vsel %vm2235, %v7615, %v7605
      %v7618 = vld [vmem:[%s9 + $0x150] sm:$0xf]
      %v7619 = vld [vmem:[%s9 + $0x154] sm:$0xf]
      %v7620 = vld [vmem:[%s9 + $0x158] sm:$0xf]
      %v7621 = vld [vmem:[%s9 + $0x15c] sm:$0xf]
      %v7622 = vld [vmem:[%s9 + $0x160] sm:$0xf]
      %v7623 = vld [vmem:[%s9 + $0x164] sm:$0xf]
      %v7624 = vld [vmem:[%s9 + $0x168] sm:$0xf]
      %v7625 = vld [vmem:[%s9 + $0x16c] sm:$0xf]
      %v7626 = vld [vmem:[%s9 + $0x170] sm:$0xf]
      %v7627 = vld [vmem:[%s9 + $0x174] sm:$0xf]
      %v7628 = vld [vmem:[%s9 + $0x178] sm:$0xf]
      %v7629 = vld [vmem:[%s9 + $0x17c] sm:$0xf]
      %v7630 = vld [vmem:[%s9 + $0x180] sm:$0xf]
      %v7631 = vld [vmem:[%s9 + $0x184] sm:$0xf]
      %v7632 = vld [vmem:[%s9 + $0x188] sm:$0xf]
      %v7633 = vld [vmem:[%s9 + $0x18c] sm:$0xf]
      %v7634 = vld [vmem:[%s9 + $0x190] sm:$0xf]
      %v7635 = vld [vmem:[%s9 + $0x194] sm:$0xf]
      %v7636 = vld [vmem:[%s9 + $0x198] sm:$0xf]
      %v7637 = vld [vmem:[%s9 + $0x19c] sm:$0xf]
      %v7638 = vld [vmem:[%s9 + $0x1a0] sm:$0xf]
      %v7639 = vld [vmem:[%s9 + $0x1a4] sm:$0xf]
      %v7640 = vld [vmem:[%s9 + $0x1a8] sm:$0xf]
      %v7641 = vld [vmem:[%s9 + $0x1ac] sm:$0xf]
      %v7642 = vld [vmem:[%s9 + $0x1b0] sm:$0xf]
      %v7643 = vld [vmem:[%s9 + $0x1b4] sm:$0xf]
      %v7644 = vld [vmem:[%s9 + $0x1b8] sm:$0xf]
      %v7645 = vld [vmem:[%s9 + $0x1bc] sm:$0xf]
      %v7674 = vunpack.c.l.b16 %v7618
      %v7675 = vunpack.c.l.b16 %v7619
      %v7676 = vunpack.c.l.b16 %v7620
      %v7677 = vunpack.c.l.b16 %v7621
      %v7678 = vunpack.c.l.b16 %v7622
      %v7679 = vunpack.c.l.b16 %v7623
      %v7680 = vunpack.c.l.b16 %v7624
      %v7681 = vunpack.c.l.b16 %v7625
      %v7682 = vunpack.c.l.b16 %v7626
      %v7683 = vunpack.c.l.b16 %v7627
      %v7684 = vunpack.c.l.b16 %v7628
      %v7685 = vunpack.c.l.b16 %v7629
      %v7686 = vunpack.c.l.b16 %v7630
      %v7687 = vunpack.c.l.b16 %v7631
      %v7688 = vunpack.c.l.b16 %v7632
      %v7689 = vunpack.c.l.b16 %v7633
      %v7690 = vunpack.c.l.b16 %v7634
      %v7691 = vunpack.c.l.b16 %v7635
      %v7692 = vunpack.c.l.b16 %v7636
      %v7693 = vunpack.c.l.b16 %v7637
      %v7694 = vunpack.c.l.b16 %v7638
      %v7695 = vunpack.c.l.b16 %v7639
      %v7696 = vunpack.c.l.b16 %v7640
      %v7697 = vunpack.c.l.b16 %v7641
      %v7698 = vunpack.c.l.b16 %v7642
      %v7699 = vunpack.c.l.b16 %v7643
      %v7700 = vunpack.c.l.b16 %v7644
      %v7701 = vunpack.c.l.b16 %v7645
      %v7702 = vpack.c.b16 %v7675, %v7674
      %v7703 = vpack.c.b16 %v7677, %v7676
      %v7704 = vpack.c.b16 %v7679, %v7678
      %v7705 = vpack.c.b16 %v7681, %v7680
      %v7706 = vpack.c.b16 %v7683, %v7682
      %v7707 = vpack.c.b16 %v7685, %v7684
      %v7708 = vpack.c.b16 %v7687, %v7686
      %v7709 = vpack.c.b16 %v7689, %v7688
      %v7710 = vpack.c.b16 %v7691, %v7690
      %v7711 = vpack.c.b16 %v7693, %v7692
      %v7712 = vpack.c.b16 %v7695, %v7694
      %v7713 = vpack.c.b16 %v7697, %v7696
      %v7714 = vpack.c.b16 %v7699, %v7698
      %v7715 = vpack.c.b16 %v7701, %v7700
      %v7730 = vsel %vm2353, %v7617, 0
      %7732 = vmatprep.subr.bf16.mxu0 0
      %7733 = vmatpush1.bf16.msra.mxu0 %v7709
      %7734 = vmatprep.subr.bf16.mxu0 0
      %7735 = vmatpush1.bf16.msra.mxu0 %v7708
      %7736 = vmatprep.subr.bf16.mxu0 0
      %7737 = vmatpush1.bf16.msra.mxu0 %v7707
      %7738 = vmatprep.subr.bf16.mxu0 0
      %7739 = vmatpush1.bf16.msra.mxu0 %v7706
      %7740 = vmatprep.subr.bf16.mxu0 0
      %7741 = vmatpush1.bf16.msra.mxu0 %v7705
      %7742 = vmatprep.subr.bf16.mxu0 0
      %7743 = vmatpush1.bf16.msra.mxu0 %v7704
      %7744 = vmatprep.subr.bf16.mxu0 0
      %7745 = vmatpush1.bf16.msra.mxu0 %v7703
      %7746 = vmatprep.subr.bf16.mxu0 0
      %7747 = vmatpush1.bf16.msra.mxu0 %v7702
      %7748 = vmatprep.subr.bf16.mxu0 0
      %7749 = vmatpush2.bf16.msra.mxu0 0
      %7750 = vmatprep.subr.bf16.mxu0 0
      %7751 = vmatpush2.bf16.msra.mxu0 0
      %7752 = vmatprep.subr.bf16.mxu0 0
      %7753 = vmatpush2.bf16.msra.mxu0 %v7715
      %7754 = vmatprep.subr.bf16.mxu0 0
      %7755 = vmatpush2.bf16.msra.mxu0 %v7714
      %7756 = vmatprep.subr.bf16.mxu0 0
      %7757 = vmatpush2.bf16.msra.mxu0 %v7713
      %7758 = vmatprep.subr.bf16.mxu0 0
      %7759 = vmatpush2.bf16.msra.mxu0 %v7712
      %7760 = vmatprep.subr.bf16.mxu0 0
      %7761 = vmatpush2.bf16.msra.mxu0 %v7711
      %7762 = vmatprep.subr.bf16.mxu0 0
      %7763 = vmatpush2.bf16.msra.mxu0 %v7710
      %7764 = vmatprep.mubr.bf16.mxu0 %v6753
      %7765 = vmatmul.mubr.bf16.gmra.mxu0 %v6430
      %v7766 = vpop.f32.mrf.mxu0
      %v7767 = vadd.f32 0.0, %v7766
      %v7768 = vpop.f32.mrf.mxu0
      %v7769 = vpop.f32.mrf.mxu0
      %v7770 = vadd.f32 0.0, %v7769
      %v7771 = vpop.f32.mrf.mxu0
      %7772 = vmatprep.mubr.bf16.mxu0 %v6755
      %7773 = vmatmul.mubr.bf16.gmra.mxu0 %v6433
      %v7774 = vpop.f32.mrf.mxu0
      %v7775 = vadd.f32 0.0, %v7774
      %v7776 = vpop.f32.mrf.mxu0
      %v7777 = vpop.f32.mrf.mxu0
      %v7778 = vadd.f32 0.0, %v7777
      %v7779 = vpop.f32.mrf.mxu0
      %7780 = vmatprep.mubr.bf16.mxu0 %v6757
      %7781 = vmatmul.mubr.bf16.gmra.mxu0 %v6436
      %v7782 = vpop.f32.mrf.mxu0
      %v7783 = vadd.f32 0.0, %v7782
      %v7784 = vpop.f32.mrf.mxu0
      %v7785 = vpop.f32.mrf.mxu0
      %v7786 = vadd.f32 0.0, %v7785
      %v7787 = vpop.f32.mrf.mxu0
      %7788 = vmatprep.mubr.bf16.mxu0 %v6759
      %7789 = vmatmul.mubr.bf16.gmra.mxu0 %v6439
      %v7790 = vpop.f32.mrf.mxu0
      %v7791 = vadd.f32 0.0, %v7790
      %v7792 = vpop.f32.mrf.mxu0
      %v7793 = vpop.f32.mrf.mxu0
      %v7794 = vadd.f32 0.0, %v7793
      %v7795 = vpop.f32.mrf.mxu0
      %7796 = vmatprep.mubr.bf16.mxu0 %v6761
      %7797 = vmatmul.mubr.bf16.gmra.mxu0 %v6442
      %v7798 = vpop.f32.mrf.mxu0
      %v7799 = vadd.f32 0.0, %v7798
      %v7800 = vpop.f32.mrf.mxu0
      %v7801 = vpop.f32.mrf.mxu0
      %v7802 = vadd.f32 0.0, %v7801
      %v7803 = vpop.f32.mrf.mxu0
      %7804 = vmatprep.mubr.bf16.mxu0 %v6763
      %7805 = vmatmul.mubr.bf16.gmra.mxu0 %v6445
      %v7806 = vpop.f32.mrf.mxu0
      %v7807 = vadd.f32 0.0, %v7806
      %v7808 = vpop.f32.mrf.mxu0
      %v7809 = vpop.f32.mrf.mxu0
      %v7810 = vadd.f32 0.0, %v7809
      %v7811 = vpop.f32.mrf.mxu0
      %7812 = vmatprep.mubr.bf16.mxu0 %v6765
      %7813 = vmatmul.mubr.bf16.gmra.mxu0 %v6448
      %v7814 = vpop.f32.mrf.mxu0
      %v7815 = vadd.f32 0.0, %v7814
      %v7816 = vpop.f32.mrf.mxu0
      %v7817 = vpop.f32.mrf.mxu0
      %v7818 = vadd.f32 0.0, %v7817
      %v7819 = vpop.f32.mrf.mxu0
      %7820 = vmatprep.mubr.bf16.mxu0 %v6767
      %7821 = vmatmul.mubr.bf16.gmra.mxu0 %v6451
      %v7822 = vpop.f32.mrf.mxu0
      %v7823 = vadd.f32 0.0, %v7822
      %v7824 = vpop.f32.mrf.mxu0
      %v7825 = vpop.f32.mrf.mxu0
      %v7826 = vadd.f32 0.0, %v7825
      %v7827 = vpop.f32.mrf.mxu0
      %7828 = vmatprep.mubr.bf16.mxu0 %v6769
      %7829 = vmatmul.mubr.bf16.gmra.mxu0 %v6454
      %v7830 = vpop.f32.mrf.mxu0
      %v7831 = vadd.f32 0.0, %v7830
      %v7832 = vpop.f32.mrf.mxu0
      %v7833 = vpop.f32.mrf.mxu0
      %v7834 = vadd.f32 0.0, %v7833
      %v7835 = vpop.f32.mrf.mxu0
      %7836 = vmatprep.mubr.bf16.mxu0 %v6771
      %7837 = vmatmul.mubr.bf16.gmra.mxu0 %v6457
      %v7838 = vpop.f32.mrf.mxu0
      %v7839 = vadd.f32 0.0, %v7838
      %v7840 = vpop.f32.mrf.mxu0
      %v7841 = vpop.f32.mrf.mxu0
      %v7842 = vadd.f32 0.0, %v7841
      %v7843 = vpop.f32.mrf.mxu0
      %7844 = vmatprep.mubr.bf16.mxu0 %v6773
      %7845 = vmatmul.mubr.bf16.gmra.mxu0 %v6460
      %v7846 = vpop.f32.mrf.mxu0
      %v7847 = vadd.f32 0.0, %v7846
      %v7848 = vpop.f32.mrf.mxu0
      %v7849 = vpop.f32.mrf.mxu0
      %v7850 = vadd.f32 0.0, %v7849
      %v7851 = vpop.f32.mrf.mxu0
      %7852 = vmatprep.mubr.bf16.mxu0 %v6775
      %7853 = vmatmul.mubr.bf16.gmra.mxu0 %v6463
      %v7854 = vpop.f32.mrf.mxu0
      %v7855 = vadd.f32 0.0, %v7854
      %v7856 = vpop.f32.mrf.mxu0
      %v7857 = vpop.f32.mrf.mxu0
      %v7858 = vadd.f32 0.0, %v7857
      %v7859 = vpop.f32.mrf.mxu0
      %7860 = vmatprep.mubr.bf16.mxu0 %v6777
      %7861 = vmatmul.mubr.bf16.gmra.mxu0 %v6466
      %v7862 = vpop.f32.mrf.mxu0
      %v7863 = vadd.f32 0.0, %v7862
      %v7864 = vpop.f32.mrf.mxu0
      %v7865 = vpop.f32.mrf.mxu0
      %v7866 = vadd.f32 0.0, %v7865
      %v7867 = vpop.f32.mrf.mxu0
      %7868 = vmatprep.mubr.bf16.mxu0 %v6779
      %7869 = vmatmul.mubr.bf16.gmra.mxu0 %v6630
      %v7870 = vpop.f32.mrf.mxu0
      %v7871 = vadd.f32 0.0, %v7870
      %v7872 = vpop.f32.mrf.mxu0
      %v7873 = vpop.f32.mrf.mxu0
      %v7874 = vadd.f32 0.0, %v7873
      %v7875 = vpop.f32.mrf.mxu0
      %7876 = vmatprep.mubr.bf16.mxu0 %v7362
      %7877 = vmatmul.mubr.bf16.gmra.mxu0 %v7243
      %v7878 = vpop.f32.mrf.mxu0
      %v7879 = vadd.f32 0.0, %v7878
      %v7880 = vpop.f32.mrf.mxu0
      %v7881 = vpop.f32.mrf.mxu0
      %v7882 = vadd.f32 0.0, %v7881
      %v7883 = vpop.f32.mrf.mxu0
      %7884 = vmatprep.mubr.bf16.mxu0 %v7730
      %7885 = vmatmul.mubr.bf16.gmra.mxu0 %v7611
      %v7886 = vpop.f32.mrf.mxu0
      %v7887 = vadd.f32 0.0, %v7886
      %v7888 = vpop.f32.mrf.mxu0
      %v7889 = vpop.f32.mrf.mxu0
      %v7890 = vadd.f32 0.0, %v7889
      %v7891 = vpop.f32.mrf.mxu0
      %7892 = vdwg.mxu0
      %v7893 = vadd.f32 %v7525, %v7767
      %v7894 = vadd.f32 %v7526, %v7770
      %v7895 = vadd.f32 %v7527, %v7775
      %v7896 = vadd.f32 %v7528, %v7778
      %v7897 = vadd.f32 %v7529, %v7783
      %v7898 = vadd.f32 %v7530, %v7786
      %v7899 = vadd.f32 %v7531, %v7791
      %v7900 = vadd.f32 %v7532, %v7794
      %v7901 = vadd.f32 %v7533, %v7799
      %v7902 = vadd.f32 %v7534, %v7802
      %v7903 = vadd.f32 %v7535, %v7807
      %v7904 = vadd.f32 %v7536, %v7810
      %v7905 = vadd.f32 %v7537, %v7815
      %v7906 = vadd.f32 %v7538, %v7818
      %v7907 = vadd.f32 %v7539, %v7823
      %v7908 = vadd.f32 %v7540, %v7826
      %v7909 = vadd.f32 %v7541, %v7831
      %v7910 = vadd.f32 %v7542, %v7834
      %v7911 = vadd.f32 %v7543, %v7839
      %v7912 = vadd.f32 %v7544, %v7842
      %v7913 = vadd.f32 %v7545, %v7847
      %v7914 = vadd.f32 %v7546, %v7850
      %v7915 = vadd.f32 %v7547, %v7855
      %v7916 = vadd.f32 %v7548, %v7858
      %v7917 = vadd.f32 %v7549, %v7863
      %v7918 = vadd.f32 %v7550, %v7866
      %v7919 = vadd.f32 %v7551, %v7871
      %v7920 = vadd.f32 %v7552, %v7874
      %v7921 = vadd.f32 %v7553, %v7879
      %v7922 = vadd.f32 %v7554, %v7882
      %v7923 = vadd.f32 %v7555, %v7887
      %v7924 = vadd.f32 %v7556, %v7890
      %v7926 = vshrl.u32 %v5564, 16
      %v7928 = vshll.u32 %v5564, 16
      %v7930 = vrot.slane %v7928, 1
      %v7931 = vor.u32 %v7926, %v7930
      %v7933 = vshll.u32 %v5565, 16
      %v7935 = vrot.slane %v7933, 1
      %v7936 = vsel %vm1865, %v7931, %v7935
      %7937 = vrot.lane.b32.xlu0 %v7936, 32
      %v7938 = vpop.permute.xlu0 %7937
      %v7941 = vrot.slane %v5564, 1
      %v7942 = vrot.slane %v5565, 1
      %v7943 = vsel %vm2122, %v7941, %v7942
      %7944 = vrot.lane.b32.xlu0 %v7943, 64
      %v7945 = vpop.permute.xlu0 %7944
      %v7946 = vrot.slane %v7926, 1
      %v7947 = vrot.slane %v7928, 2
      %v7948 = vor.u32 %v7946, %v7947
      %v7949 = vshrl.u32 %v5565, 16
      %v7951 = vrot.slane %v7949, 1
      %v7952 = vrot.slane %v7933, 2
      %v7953 = vor.u32 %v7951, %v7952
      %v7954 = vsel %vm3522, %v7948, %v7953
      %7955 = vrot.lane.b32.xlu0 %v7954, 96
      %v7956 = vpop.permute.xlu0 %7955
      %v7957 = vrot.slane %v5564, 2
      %v7958 = vrot.slane %v5565, 2
      %v7959 = vsel %vm3699, %v7957, %v7958
      %v7960 = vrot.slane %v7926, 2
      %v7961 = vrot.slane %v7928, 3
      %v7962 = vor.u32 %v7960, %v7961
      %v7963 = vrot.slane %v7949, 2
      %v7964 = vrot.slane %v7933, 3
      %v7965 = vor.u32 %v7963, %v7964
      %v7966 = vsel %vm6130, %v7962, %v7965
      %7967 = vrot.lane.b32.xlu0 %v7966, 32
      %v7968 = vpop.permute.xlu0 %7967
      %v7969 = vrot.slane %v5564, 3
      %v7970 = vrot.slane %v5565, 3
      %v7971 = vsel %vm6275, %v7969, %v7970
      %7972 = vrot.lane.b32.xlu0 %v7971, 64
      %v7973 = vpop.permute.xlu0 %7972
      %v7975 = vsel %vm489, %v5564, %v7938
      %v7977 = vsel %vm2235, %v7975, %v7945
      %v7979 = vsel %vm2353, %v7977, %v7956
      %v7983 = vsel %vm489, %v7959, %v7968
      %v7985 = vsel %vm2235, %v7983, %v7973
      %v7986 = vld [vmem:[%s9 + $0x1c0] sm:$0xf]
      %v7987 = vld [vmem:[%s9 + $0x1c4] sm:$0xf]
      %v7988 = vld [vmem:[%s9 + $0x1c8] sm:$0xf]
      %v7989 = vld [vmem:[%s9 + $0x1cc] sm:$0xf]
      %v7990 = vld [vmem:[%s9 + $0x1d0] sm:$0xf]
      %v7991 = vld [vmem:[%s9 + $0x1d4] sm:$0xf]
      %v7992 = vld [vmem:[%s9 + $0x1d8] sm:$0xf]
      %v7993 = vld [vmem:[%s9 + $0x1dc] sm:$0xf]
      %v7994 = vld [vmem:[%s9 + $0x1e0] sm:$0xf]
      %v7995 = vld [vmem:[%s9 + $0x1e4] sm:$0xf]
      %v7996 = vld [vmem:[%s9 + $0x1e8] sm:$0xf]
      %v7997 = vld [vmem:[%s9 + $0x1ec] sm:$0xf]
      %v7998 = vld [vmem:[%s9 + $0x1f0] sm:$0xf]
      %v7999 = vld [vmem:[%s9 + $0x1f4] sm:$0xf]
      %v8000 = vld [vmem:[%s9 + $0x1f8] sm:$0xf]
      %v8001 = vld [vmem:[%s9 + $0x1fc] sm:$0xf]
      %v8002 = vld [vmem:[%s9 + $0x200] sm:$0xf]
      %v8003 = vld [vmem:[%s9 + $0x204] sm:$0xf]
      %v8004 = vld [vmem:[%s9 + $0x208] sm:$0xf]
      %v8005 = vld [vmem:[%s9 + $0x20c] sm:$0xf]
      %v8006 = vld [vmem:[%s9 + $0x210] sm:$0xf]
      %v8007 = vld [vmem:[%s9 + $0x214] sm:$0xf]
      %v8008 = vld [vmem:[%s9 + $0x218] sm:$0xf]
      %v8009 = vld [vmem:[%s9 + $0x21c] sm:$0xf]
      %v8010 = vld [vmem:[%s9 + $0x220] sm:$0xf]
      %v8011 = vld [vmem:[%s9 + $0x224] sm:$0xf]
      %v8012 = vld [vmem:[%s9 + $0x228] sm:$0xf]
      %v8013 = vld [vmem:[%s9 + $0x22c] sm:$0xf]
      %v8042 = vunpack.c.l.b16 %v7986
      %v8043 = vunpack.c.l.b16 %v7987
      %v8044 = vunpack.c.l.b16 %v7988
      %v8045 = vunpack.c.l.b16 %v7989
      %v8046 = vunpack.c.l.b16 %v7990
      %v8047 = vunpack.c.l.b16 %v7991
      %v8048 = vunpack.c.l.b16 %v7992
      %v8049 = vunpack.c.l.b16 %v7993
      %v8050 = vunpack.c.l.b16 %v7994
      %v8051 = vunpack.c.l.b16 %v7995
      %v8052 = vunpack.c.l.b16 %v7996
      %v8053 = vunpack.c.l.b16 %v7997
      %v8054 = vunpack.c.l.b16 %v7998
      %v8055 = vunpack.c.l.b16 %v7999
      %v8056 = vunpack.c.l.b16 %v8000
      %v8057 = vunpack.c.l.b16 %v8001
      %v8058 = vunpack.c.l.b16 %v8002
      %v8059 = vunpack.c.l.b16 %v8003
      %v8060 = vunpack.c.l.b16 %v8004
      %v8061 = vunpack.c.l.b16 %v8005
      %v8062 = vunpack.c.l.b16 %v8006
      %v8063 = vunpack.c.l.b16 %v8007
      %v8064 = vunpack.c.l.b16 %v8008
      %v8065 = vunpack.c.l.b16 %v8009
      %v8066 = vunpack.c.l.b16 %v8010
      %v8067 = vunpack.c.l.b16 %v8011
      %v8068 = vunpack.c.l.b16 %v8012
      %v8069 = vunpack.c.l.b16 %v8013
      %v8070 = vpack.c.b16 %v8043, %v8042
      %v8071 = vpack.c.b16 %v8045, %v8044
      %v8072 = vpack.c.b16 %v8047, %v8046
      %v8073 = vpack.c.b16 %v8049, %v8048
      %v8074 = vpack.c.b16 %v8051, %v8050
      %v8075 = vpack.c.b16 %v8053, %v8052
      %v8076 = vpack.c.b16 %v8055, %v8054
      %v8077 = vpack.c.b16 %v8057, %v8056
      %v8078 = vpack.c.b16 %v8059, %v8058
      %v8079 = vpack.c.b16 %v8061, %v8060
      %v8080 = vpack.c.b16 %v8063, %v8062
      %v8081 = vpack.c.b16 %v8065, %v8064
      %v8082 = vpack.c.b16 %v8067, %v8066
      %v8083 = vpack.c.b16 %v8069, %v8068
      %v8098 = vsel %vm2353, %v7985, 0
      %8100 = vmatprep.subr.bf16.mxu0 0
      %8101 = vmatpush1.bf16.msra.mxu0 %v8077
      %8102 = vmatprep.subr.bf16.mxu0 0
      %8103 = vmatpush1.bf16.msra.mxu0 %v8076
      %8104 = vmatprep.subr.bf16.mxu0 0
      %8105 = vmatpush1.bf16.msra.mxu0 %v8075
      %8106 = vmatprep.subr.bf16.mxu0 0
      %8107 = vmatpush1.bf16.msra.mxu0 %v8074
      %8108 = vmatprep.subr.bf16.mxu0 0
      %8109 = vmatpush1.bf16.msra.mxu0 %v8073
      %8110 = vmatprep.subr.bf16.mxu0 0
      %8111 = vmatpush1.bf16.msra.mxu0 %v8072
      %8112 = vmatprep.subr.bf16.mxu0 0
      %8113 = vmatpush1.bf16.msra.mxu0 %v8071
      %8114 = vmatprep.subr.bf16.mxu0 0
      %8115 = vmatpush1.bf16.msra.mxu0 %v8070
      %8116 = vmatprep.subr.bf16.mxu0 0
      %8117 = vmatpush2.bf16.msra.mxu0 0
      %8118 = vmatprep.subr.bf16.mxu0 0
      %8119 = vmatpush2.bf16.msra.mxu0 0
      %8120 = vmatprep.subr.bf16.mxu0 0
      %8121 = vmatpush2.bf16.msra.mxu0 %v8083
      %8122 = vmatprep.subr.bf16.mxu0 0
      %8123 = vmatpush2.bf16.msra.mxu0 %v8082
      %8124 = vmatprep.subr.bf16.mxu0 0
      %8125 = vmatpush2.bf16.msra.mxu0 %v8081
      %8126 = vmatprep.subr.bf16.mxu0 0
      %8127 = vmatpush2.bf16.msra.mxu0 %v8080
      %8128 = vmatprep.subr.bf16.mxu0 0
      %8129 = vmatpush2.bf16.msra.mxu0 %v8079
      %8130 = vmatprep.subr.bf16.mxu0 0
      %8131 = vmatpush2.bf16.msra.mxu0 %v8078
      %8132 = vmatprep.mubr.bf16.mxu0 %v6755
      %8133 = vmatmul.mubr.bf16.gmra.mxu0 %v6433
      %v8134 = vpop.f32.mrf.mxu0
      %v8135 = vadd.f32 0.0, %v8134
      %v8136 = vpop.f32.mrf.mxu0
      %v8137 = vpop.f32.mrf.mxu0
      %v8138 = vadd.f32 0.0, %v8137
      %v8139 = vpop.f32.mrf.mxu0
      %8140 = vmatprep.mubr.bf16.mxu0 %v6757
      %8141 = vmatmul.mubr.bf16.gmra.mxu0 %v6436
      %v8142 = vpop.f32.mrf.mxu0
      %v8143 = vadd.f32 0.0, %v8142
      %v8144 = vpop.f32.mrf.mxu0
      %v8145 = vpop.f32.mrf.mxu0
      %v8146 = vadd.f32 0.0, %v8145
      %v8147 = vpop.f32.mrf.mxu0
      %8148 = vmatprep.mubr.bf16.mxu0 %v6759
      %8149 = vmatmul.mubr.bf16.gmra.mxu0 %v6439
      %v8150 = vpop.f32.mrf.mxu0
      %v8151 = vadd.f32 0.0, %v8150
      %v8152 = vpop.f32.mrf.mxu0
      %v8153 = vpop.f32.mrf.mxu0
      %v8154 = vadd.f32 0.0, %v8153
      %v8155 = vpop.f32.mrf.mxu0
      %8156 = vmatprep.mubr.bf16.mxu0 %v6761
      %8157 = vmatmul.mubr.bf16.gmra.mxu0 %v6442
      %v8158 = vpop.f32.mrf.mxu0
      %v8159 = vadd.f32 0.0, %v8158
      %v8160 = vpop.f32.mrf.mxu0
      %v8161 = vpop.f32.mrf.mxu0
      %v8162 = vadd.f32 0.0, %v8161
      %v8163 = vpop.f32.mrf.mxu0
      %8164 = vmatprep.mubr.bf16.mxu0 %v6763
      %8165 = vmatmul.mubr.bf16.gmra.mxu0 %v6445
      %v8166 = vpop.f32.mrf.mxu0
      %v8167 = vadd.f32 0.0, %v8166
      %v8168 = vpop.f32.mrf.mxu0
      %v8169 = vpop.f32.mrf.mxu0
      %v8170 = vadd.f32 0.0, %v8169
      %v8171 = vpop.f32.mrf.mxu0
      %8172 = vmatprep.mubr.bf16.mxu0 %v6765
      %8173 = vmatmul.mubr.bf16.gmra.mxu0 %v6448
      %v8174 = vpop.f32.mrf.mxu0
      %v8175 = vadd.f32 0.0, %v8174
      %v8176 = vpop.f32.mrf.mxu0
      %v8177 = vpop.f32.mrf.mxu0
      %v8178 = vadd.f32 0.0, %v8177
      %v8179 = vpop.f32.mrf.mxu0
      %8180 = vmatprep.mubr.bf16.mxu0 %v6767
      %8181 = vmatmul.mubr.bf16.gmra.mxu0 %v6451
      %v8182 = vpop.f32.mrf.mxu0
      %v8183 = vadd.f32 0.0, %v8182
      %v8184 = vpop.f32.mrf.mxu0
      %v8185 = vpop.f32.mrf.mxu0
      %v8186 = vadd.f32 0.0, %v8185
      %v8187 = vpop.f32.mrf.mxu0
      %8188 = vmatprep.mubr.bf16.mxu0 %v6769
      %8189 = vmatmul.mubr.bf16.gmra.mxu0 %v6454
      %v8190 = vpop.f32.mrf.mxu0
      %v8191 = vadd.f32 0.0, %v8190
      %v8192 = vpop.f32.mrf.mxu0
      %v8193 = vpop.f32.mrf.mxu0
      %v8194 = vadd.f32 0.0, %v8193
      %v8195 = vpop.f32.mrf.mxu0
      %8196 = vmatprep.mubr.bf16.mxu0 %v6771
      %8197 = vmatmul.mubr.bf16.gmra.mxu0 %v6457
      %v8198 = vpop.f32.mrf.mxu0
      %v8199 = vadd.f32 0.0, %v8198
      %v8200 = vpop.f32.mrf.mxu0
      %v8201 = vpop.f32.mrf.mxu0
      %v8202 = vadd.f32 0.0, %v8201
      %v8203 = vpop.f32.mrf.mxu0
      %8204 = vmatprep.mubr.bf16.mxu0 %v6773
      %8205 = vmatmul.mubr.bf16.gmra.mxu0 %v6460
      %v8206 = vpop.f32.mrf.mxu0
      %v8207 = vadd.f32 0.0, %v8206
      %v8208 = vpop.f32.mrf.mxu0
      %v8209 = vpop.f32.mrf.mxu0
      %v8210 = vadd.f32 0.0, %v8209
      %v8211 = vpop.f32.mrf.mxu0
      %8212 = vmatprep.mubr.bf16.mxu0 %v6775
      %8213 = vmatmul.mubr.bf16.gmra.mxu0 %v6463
      %v8214 = vpop.f32.mrf.mxu0
      %v8215 = vadd.f32 0.0, %v8214
      %v8216 = vpop.f32.mrf.mxu0
      %v8217 = vpop.f32.mrf.mxu0
      %v8218 = vadd.f32 0.0, %v8217
      %v8219 = vpop.f32.mrf.mxu0
      %8220 = vmatprep.mubr.bf16.mxu0 %v6777
      %8221 = vmatmul.mubr.bf16.gmra.mxu0 %v6466
      %v8222 = vpop.f32.mrf.mxu0
      %v8223 = vadd.f32 0.0, %v8222
      %v8224 = vpop.f32.mrf.mxu0
      %v8225 = vpop.f32.mrf.mxu0
      %v8226 = vadd.f32 0.0, %v8225
      %v8227 = vpop.f32.mrf.mxu0
      %8228 = vmatprep.mubr.bf16.mxu0 %v6779
      %8229 = vmatmul.mubr.bf16.gmra.mxu0 %v6630
      %v8230 = vpop.f32.mrf.mxu0
      %v8231 = vadd.f32 0.0, %v8230
      %v8232 = vpop.f32.mrf.mxu0
      %v8233 = vpop.f32.mrf.mxu0
      %v8234 = vadd.f32 0.0, %v8233
      %v8235 = vpop.f32.mrf.mxu0
      %8236 = vmatprep.mubr.bf16.mxu0 %v7362
      %8237 = vmatmul.mubr.bf16.gmra.mxu0 %v7243
      %v8238 = vpop.f32.mrf.mxu0
      %v8239 = vadd.f32 0.0, %v8238
      %v8240 = vpop.f32.mrf.mxu0
      %v8241 = vpop.f32.mrf.mxu0
      %v8242 = vadd.f32 0.0, %v8241
      %v8243 = vpop.f32.mrf.mxu0
      %8244 = vmatprep.mubr.bf16.mxu0 %v7730
      %8245 = vmatmul.mubr.bf16.gmra.mxu0 %v7611
      %v8246 = vpop.f32.mrf.mxu0
      %v8247 = vadd.f32 0.0, %v8246
      %v8248 = vpop.f32.mrf.mxu0
      %v8249 = vpop.f32.mrf.mxu0
      %v8250 = vadd.f32 0.0, %v8249
      %v8251 = vpop.f32.mrf.mxu0
      %8252 = vmatprep.mubr.bf16.mxu0 %v8098
      %8253 = vmatmul.mubr.bf16.gmra.mxu0 %v7979
      %v8254 = vpop.f32.mrf.mxu0
      %v8255 = vadd.f32 0.0, %v8254
      %v8256 = vpop.f32.mrf.mxu0
      %v8257 = vpop.f32.mrf.mxu0
      %v8258 = vadd.f32 0.0, %v8257
      %v8259 = vpop.f32.mrf.mxu0
      %8260 = vdwg.mxu0
      %v8261 = vadd.f32 %v7893, %v8135
      %v8262 = vadd.f32 %v7894, %v8138
      %v8263 = vadd.f32 %v7895, %v8143
      %v8264 = vadd.f32 %v7896, %v8146
      %v8265 = vadd.f32 %v7897, %v8151
      %v8266 = vadd.f32 %v7898, %v8154
      %v8267 = vadd.f32 %v7899, %v8159
      %v8268 = vadd.f32 %v7900, %v8162
      %v8269 = vadd.f32 %v7901, %v8167
      %v8270 = vadd.f32 %v7902, %v8170
      %v8271 = vadd.f32 %v7903, %v8175
      %v8272 = vadd.f32 %v7904, %v8178
      %v8273 = vadd.f32 %v7905, %v8183
      %v8274 = vadd.f32 %v7906, %v8186
      %v8275 = vadd.f32 %v7907, %v8191
      %v8276 = vadd.f32 %v7908, %v8194
      %v8277 = vadd.f32 %v7909, %v8199
      %v8278 = vadd.f32 %v7910, %v8202
      %v8279 = vadd.f32 %v7911, %v8207
      %v8280 = vadd.f32 %v7912, %v8210
      %v8281 = vadd.f32 %v7913, %v8215
      %v8282 = vadd.f32 %v7914, %v8218
      %v8283 = vadd.f32 %v7915, %v8223
      %v8284 = vadd.f32 %v7916, %v8226
      %v8285 = vadd.f32 %v7917, %v8231
      %v8286 = vadd.f32 %v7918, %v8234
      %v8287 = vadd.f32 %v7919, %v8239
      %v8288 = vadd.f32 %v7920, %v8242
      %v8289 = vadd.f32 %v7921, %v8247
      %v8290 = vadd.f32 %v7922, %v8250
      %v8291 = vadd.f32 %v7923, %v8255
      %v8292 = vadd.f32 %v7924, %v8258
      %v8294 = vshrl.u32 %v5566, 16
      %v8296 = vshll.u32 %v5566, 16
      %v8298 = vrot.slane %v8296, 1
      %v8299 = vor.u32 %v8294, %v8298
      %v8301 = vshll.u32 %v5567, 16
      %v8303 = vrot.slane %v8301, 1
      %v8304 = vsel %vm1865, %v8299, %v8303
      %8305 = vrot.lane.b32.xlu0 %v8304, 32
      %v8306 = vpop.permute.xlu0 %8305
      %v8309 = vrot.slane %v5566, 1
      %v8310 = vrot.slane %v5567, 1
      %v8311 = vsel %vm2122, %v8309, %v8310
      %8312 = vrot.lane.b32.xlu0 %v8311, 64
      %v8313 = vpop.permute.xlu0 %8312
      %v8314 = vrot.slane %v8294, 1
      %v8315 = vrot.slane %v8296, 2
      %v8316 = vor.u32 %v8314, %v8315
      %v8317 = vshrl.u32 %v5567, 16
      %v8319 = vrot.slane %v8317, 1
      %v8320 = vrot.slane %v8301, 2
      %v8321 = vor.u32 %v8319, %v8320
      %v8322 = vsel %vm3522, %v8316, %v8321
      %8323 = vrot.lane.b32.xlu0 %v8322, 96
      %v8324 = vpop.permute.xlu0 %8323
      %v8325 = vrot.slane %v5566, 2
      %v8326 = vrot.slane %v5567, 2
      %v8327 = vsel %vm3699, %v8325, %v8326
      %v8328 = vrot.slane %v8294, 2
      %v8329 = vrot.slane %v8296, 3
      %v8330 = vor.u32 %v8328, %v8329
      %v8331 = vrot.slane %v8317, 2
      %v8332 = vrot.slane %v8301, 3
      %v8333 = vor.u32 %v8331, %v8332
      %v8334 = vsel %vm6130, %v8330, %v8333
      %8335 = vrot.lane.b32.xlu0 %v8334, 32
      %v8336 = vpop.permute.xlu0 %8335
      %v8337 = vrot.slane %v5566, 3
      %v8338 = vrot.slane %v5567, 3
      %v8339 = vsel %vm6275, %v8337, %v8338
      %8340 = vrot.lane.b32.xlu0 %v8339, 64
      %v8341 = vpop.permute.xlu0 %8340
      %v8343 = vsel %vm489, %v5566, %v8306
      %v8345 = vsel %vm2235, %v8343, %v8313
      %v8347 = vsel %vm2353, %v8345, %v8324
      %v8351 = vsel %vm489, %v8327, %v8336
      %v8353 = vsel %vm2235, %v8351, %v8341
      %v8354 = vld [vmem:[%s9 + $0x230] sm:$0xf]
      %v8355 = vld [vmem:[%s9 + $0x234] sm:$0xf]
      %v8356 = vld [vmem:[%s9 + $0x238] sm:$0xf]
      %v8357 = vld [vmem:[%s9 + $0x23c] sm:$0xf]
      %v8358 = vld [vmem:[%s9 + $0x240] sm:$0xf]
      %v8359 = vld [vmem:[%s9 + $0x244] sm:$0xf]
      %v8360 = vld [vmem:[%s9 + $0x248] sm:$0xf]
      %v8361 = vld [vmem:[%s9 + $0x24c] sm:$0xf]
      %v8362 = vld [vmem:[%s9 + $0x250] sm:$0xf]
      %v8363 = vld [vmem:[%s9 + $0x254] sm:$0xf]
      %v8364 = vld [vmem:[%s9 + $0x258] sm:$0xf]
      %v8365 = vld [vmem:[%s9 + $0x25c] sm:$0xf]
      %v8366 = vld [vmem:[%s9 + $0x260] sm:$0xf]
      %v8367 = vld [vmem:[%s9 + $0x264] sm:$0xf]
      %v8368 = vld [vmem:[%s9 + $0x268] sm:$0xf]
      %v8369 = vld [vmem:[%s9 + $0x26c] sm:$0xf]
      %v8370 = vld [vmem:[%s9 + $0x270] sm:$0xf]
      %v8371 = vld [vmem:[%s9 + $0x274] sm:$0xf]
      %v8372 = vld [vmem:[%s9 + $0x278] sm:$0xf]
      %v8373 = vld [vmem:[%s9 + $0x27c] sm:$0xf]
      %v8374 = vld [vmem:[%s9 + $0x280] sm:$0xf]
      %v8375 = vld [vmem:[%s9 + $0x284] sm:$0xf]
      %v8376 = vld [vmem:[%s9 + $0x288] sm:$0xf]
      %v8377 = vld [vmem:[%s9 + $0x28c] sm:$0xf]
      %v8378 = vld [vmem:[%s9 + $0x290] sm:$0xf]
      %v8379 = vld [vmem:[%s9 + $0x294] sm:$0xf]
      %v8380 = vld [vmem:[%s9 + $0x298] sm:$0xf]
      %v8381 = vld [vmem:[%s9 + $0x29c] sm:$0xf]
      %v8410 = vunpack.c.l.b16 %v8354
      %v8411 = vunpack.c.l.b16 %v8355
      %v8412 = vunpack.c.l.b16 %v8356
      %v8413 = vunpack.c.l.b16 %v8357
      %v8414 = vunpack.c.l.b16 %v8358
      %v8415 = vunpack.c.l.b16 %v8359
      %v8416 = vunpack.c.l.b16 %v8360
      %v8417 = vunpack.c.l.b16 %v8361
      %v8418 = vunpack.c.l.b16 %v8362
      %v8419 = vunpack.c.l.b16 %v8363
      %v8420 = vunpack.c.l.b16 %v8364
      %v8421 = vunpack.c.l.b16 %v8365
      %v8422 = vunpack.c.l.b16 %v8366
      %v8423 = vunpack.c.l.b16 %v8367
      %v8424 = vunpack.c.l.b16 %v8368
      %v8425 = vunpack.c.l.b16 %v8369
      %v8426 = vunpack.c.l.b16 %v8370
      %v8427 = vunpack.c.l.b16 %v8371
      %v8428 = vunpack.c.l.b16 %v8372
      %v8429 = vunpack.c.l.b16 %v8373
      %v8430 = vunpack.c.l.b16 %v8374
      %v8431 = vunpack.c.l.b16 %v8375
      %v8432 = vunpack.c.l.b16 %v8376
      %v8433 = vunpack.c.l.b16 %v8377
      %v8434 = vunpack.c.l.b16 %v8378
      %v8435 = vunpack.c.l.b16 %v8379
      %v8436 = vunpack.c.l.b16 %v8380
      %v8437 = vunpack.c.l.b16 %v8381
      %v8438 = vpack.c.b16 %v8411, %v8410
      %v8439 = vpack.c.b16 %v8413, %v8412
      %v8440 = vpack.c.b16 %v8415, %v8414
      %v8441 = vpack.c.b16 %v8417, %v8416
      %v8442 = vpack.c.b16 %v8419, %v8418
      %v8443 = vpack.c.b16 %v8421, %v8420
      %v8444 = vpack.c.b16 %v8423, %v8422
      %v8445 = vpack.c.b16 %v8425, %v8424
      %v8446 = vpack.c.b16 %v8427, %v8426
      %v8447 = vpack.c.b16 %v8429, %v8428
      %v8448 = vpack.c.b16 %v8431, %v8430
      %v8449 = vpack.c.b16 %v8433, %v8432
      %v8450 = vpack.c.b16 %v8435, %v8434
      %v8451 = vpack.c.b16 %v8437, %v8436
      %v8466 = vsel %vm2353, %v8353, 0
      %8468 = vmatprep.subr.bf16.mxu0 0
      %8469 = vmatpush1.bf16.msra.mxu0 %v8445
      %8470 = vmatprep.subr.bf16.mxu0 0
      %8471 = vmatpush1.bf16.msra.mxu0 %v8444
      %8472 = vmatprep.subr.bf16.mxu0 0
      %8473 = vmatpush1.bf16.msra.mxu0 %v8443
      %8474 = vmatprep.subr.bf16.mxu0 0
      %8475 = vmatpush1.bf16.msra.mxu0 %v8442
      %8476 = vmatprep.subr.bf16.mxu0 0
      %8477 = vmatpush1.bf16.msra.mxu0 %v8441
      %8478 = vmatprep.subr.bf16.mxu0 0
      %8479 = vmatpush1.bf16.msra.mxu0 %v8440
      %8480 = vmatprep.subr.bf16.mxu0 0
      %8481 = vmatpush1.bf16.msra.mxu0 %v8439
      %8482 = vmatprep.subr.bf16.mxu0 0
      %8483 = vmatpush1.bf16.msra.mxu0 %v8438
      %8484 = vmatprep.subr.bf16.mxu0 0
      %8485 = vmatpush2.bf16.msra.mxu0 0
      %8486 = vmatprep.subr.bf16.mxu0 0
      %8487 = vmatpush2.bf16.msra.mxu0 0
      %8488 = vmatprep.subr.bf16.mxu0 0
      %8489 = vmatpush2.bf16.msra.mxu0 %v8451
      %8490 = vmatprep.subr.bf16.mxu0 0
      %8491 = vmatpush2.bf16.msra.mxu0 %v8450
      %8492 = vmatprep.subr.bf16.mxu0 0
      %8493 = vmatpush2.bf16.msra.mxu0 %v8449
      %8494 = vmatprep.subr.bf16.mxu0 0
      %8495 = vmatpush2.bf16.msra.mxu0 %v8448
      %8496 = vmatprep.subr.bf16.mxu0 0
      %8497 = vmatpush2.bf16.msra.mxu0 %v8447
      %8498 = vmatprep.subr.bf16.mxu0 0
      %8499 = vmatpush2.bf16.msra.mxu0 %v8446
      %8500 = vmatprep.mubr.bf16.mxu0 %v6757
      %8501 = vmatmul.mubr.bf16.gmra.mxu0 %v6436
      %v8502 = vpop.f32.mrf.mxu0
      %v8503 = vadd.f32 0.0, %v8502
      %v8504 = vpop.f32.mrf.mxu0
      %v8505 = vpop.f32.mrf.mxu0
      %v8506 = vadd.f32 0.0, %v8505
      %v8507 = vpop.f32.mrf.mxu0
      %8508 = vmatprep.mubr.bf16.mxu0 %v6759
      %8509 = vmatmul.mubr.bf16.gmra.mxu0 %v6439
      %v8510 = vpop.f32.mrf.mxu0
      %v8511 = vadd.f32 0.0, %v8510
      %v8512 = vpop.f32.mrf.mxu0
      %v8513 = vpop.f32.mrf.mxu0
      %v8514 = vadd.f32 0.0, %v8513
      %v8515 = vpop.f32.mrf.mxu0
      %8516 = vmatprep.mubr.bf16.mxu0 %v6761
      %8517 = vmatmul.mubr.bf16.gmra.mxu0 %v6442
      %v8518 = vpop.f32.mrf.mxu0
      %v8519 = vadd.f32 0.0, %v8518
      %v8520 = vpop.f32.mrf.mxu0
      %v8521 = vpop.f32.mrf.mxu0
      %v8522 = vadd.f32 0.0, %v8521
      %v8523 = vpop.f32.mrf.mxu0
      %8524 = vmatprep.mubr.bf16.mxu0 %v6763
      %8525 = vmatmul.mubr.bf16.gmra.mxu0 %v6445
      %v8526 = vpop.f32.mrf.mxu0
      %v8527 = vadd.f32 0.0, %v8526
      %v8528 = vpop.f32.mrf.mxu0
      %v8529 = vpop.f32.mrf.mxu0
      %v8530 = vadd.f32 0.0, %v8529
      %v8531 = vpop.f32.mrf.mxu0
      %8532 = vmatprep.mubr.bf16.mxu0 %v6765
      %8533 = vmatmul.mubr.bf16.gmra.mxu0 %v6448
      %v8534 = vpop.f32.mrf.mxu0
      %v8535 = vadd.f32 0.0, %v8534
      %v8536 = vpop.f32.mrf.mxu0
      %v8537 = vpop.f32.mrf.mxu0
      %v8538 = vadd.f32 0.0, %v8537
      %v8539 = vpop.f32.mrf.mxu0
      %8540 = vmatprep.mubr.bf16.mxu0 %v6767
      %8541 = vmatmul.mubr.bf16.gmra.mxu0 %v6451
      %v8542 = vpop.f32.mrf.mxu0
      %v8543 = vadd.f32 0.0, %v8542
      %v8544 = vpop.f32.mrf.mxu0
      %v8545 = vpop.f32.mrf.mxu0
      %v8546 = vadd.f32 0.0, %v8545
      %v8547 = vpop.f32.mrf.mxu0
      %8548 = vmatprep.mubr.bf16.mxu0 %v6769
      %8549 = vmatmul.mubr.bf16.gmra.mxu0 %v6454
      %v8550 = vpop.f32.mrf.mxu0
      %v8551 = vadd.f32 0.0, %v8550
      %v8552 = vpop.f32.mrf.mxu0
      %v8553 = vpop.f32.mrf.mxu0
      %v8554 = vadd.f32 0.0, %v8553
      %v8555 = vpop.f32.mrf.mxu0
      %8556 = vmatprep.mubr.bf16.mxu0 %v6771
      %8557 = vmatmul.mubr.bf16.gmra.mxu0 %v6457
      %v8558 = vpop.f32.mrf.mxu0
      %v8559 = vadd.f32 0.0, %v8558
      %v8560 = vpop.f32.mrf.mxu0
      %v8561 = vpop.f32.mrf.mxu0
      %v8562 = vadd.f32 0.0, %v8561
      %v8563 = vpop.f32.mrf.mxu0
      %8564 = vmatprep.mubr.bf16.mxu0 %v6773
      %8565 = vmatmul.mubr.bf16.gmra.mxu0 %v6460
      %v8566 = vpop.f32.mrf.mxu0
      %v8567 = vadd.f32 0.0, %v8566
      %v8568 = vpop.f32.mrf.mxu0
      %v8569 = vpop.f32.mrf.mxu0
      %v8570 = vadd.f32 0.0, %v8569
      %v8571 = vpop.f32.mrf.mxu0
      %8572 = vmatprep.mubr.bf16.mxu0 %v6775
      %8573 = vmatmul.mubr.bf16.gmra.mxu0 %v6463
      %v8574 = vpop.f32.mrf.mxu0
      %v8575 = vadd.f32 0.0, %v8574
      %v8576 = vpop.f32.mrf.mxu0
      %v8577 = vpop.f32.mrf.mxu0
      %v8578 = vadd.f32 0.0, %v8577
      %v8579 = vpop.f32.mrf.mxu0
      %8580 = vmatprep.mubr.bf16.mxu0 %v6777
      %8581 = vmatmul.mubr.bf16.gmra.mxu0 %v6466
      %v8582 = vpop.f32.mrf.mxu0
      %v8583 = vadd.f32 0.0, %v8582
      %v8584 = vpop.f32.mrf.mxu0
      %v8585 = vpop.f32.mrf.mxu0
      %v8586 = vadd.f32 0.0, %v8585
      %v8587 = vpop.f32.mrf.mxu0
      %8588 = vmatprep.mubr.bf16.mxu0 %v6779
      %8589 = vmatmul.mubr.bf16.gmra.mxu0 %v6630
      %v8590 = vpop.f32.mrf.mxu0
      %v8591 = vadd.f32 0.0, %v8590
      %v8592 = vpop.f32.mrf.mxu0
      %v8593 = vpop.f32.mrf.mxu0
      %v8594 = vadd.f32 0.0, %v8593
      %v8595 = vpop.f32.mrf.mxu0
      %8596 = vmatprep.mubr.bf16.mxu0 %v7362
      %8597 = vmatmul.mubr.bf16.gmra.mxu0 %v7243
      %v8598 = vpop.f32.mrf.mxu0
      %v8599 = vadd.f32 0.0, %v8598
      %v8600 = vpop.f32.mrf.mxu0
      %v8601 = vpop.f32.mrf.mxu0
      %v8602 = vadd.f32 0.0, %v8601
      %v8603 = vpop.f32.mrf.mxu0
      %8604 = vmatprep.mubr.bf16.mxu0 %v7730
      %8605 = vmatmul.mubr.bf16.gmra.mxu0 %v7611
      %v8606 = vpop.f32.mrf.mxu0
      %v8607 = vadd.f32 0.0, %v8606
      %v8608 = vpop.f32.mrf.mxu0
      %v8609 = vpop.f32.mrf.mxu0
      %v8610 = vadd.f32 0.0, %v8609
      %v8611 = vpop.f32.mrf.mxu0
      %8612 = vmatprep.mubr.bf16.mxu0 %v8098
      %8613 = vmatmul.mubr.bf16.gmra.mxu0 %v7979
      %v8614 = vpop.f32.mrf.mxu0
      %v8615 = vadd.f32 0.0, %v8614
      %v8616 = vpop.f32.mrf.mxu0
      %v8617 = vpop.f32.mrf.mxu0
      %v8618 = vadd.f32 0.0, %v8617
      %v8619 = vpop.f32.mrf.mxu0
      %8620 = vmatprep.mubr.bf16.mxu0 %v8466
      %8621 = vmatmul.mubr.bf16.gmra.mxu0 %v8347
      %v8622 = vpop.f32.mrf.mxu0
      %v8623 = vadd.f32 0.0, %v8622
      %v8624 = vpop.f32.mrf.mxu0
      %v8625 = vpop.f32.mrf.mxu0
      %v8626 = vadd.f32 0.0, %v8625
      %v8627 = vpop.f32.mrf.mxu0
      %8628 = vdwg.mxu0
      %v8629 = vadd.f32 %v8261, %v8503
      %v8630 = vadd.f32 %v8262, %v8506
      %v8631 = vadd.f32 %v8263, %v8511
      %v8632 = vadd.f32 %v8264, %v8514
      %v8633 = vadd.f32 %v8265, %v8519
      %v8634 = vadd.f32 %v8266, %v8522
      %v8635 = vadd.f32 %v8267, %v8527
      %v8636 = vadd.f32 %v8268, %v8530
      %v8637 = vadd.f32 %v8269, %v8535
      %v8638 = vadd.f32 %v8270, %v8538
      %v8639 = vadd.f32 %v8271, %v8543
      %v8640 = vadd.f32 %v8272, %v8546
      %v8641 = vadd.f32 %v8273, %v8551
      %v8642 = vadd.f32 %v8274, %v8554
      %v8643 = vadd.f32 %v8275, %v8559
      %v8644 = vadd.f32 %v8276, %v8562
      %v8645 = vadd.f32 %v8277, %v8567
      %v8646 = vadd.f32 %v8278, %v8570
      %v8647 = vadd.f32 %v8279, %v8575
      %v8648 = vadd.f32 %v8280, %v8578
      %v8649 = vadd.f32 %v8281, %v8583
      %v8650 = vadd.f32 %v8282, %v8586
      %v8651 = vadd.f32 %v8283, %v8591
      %v8652 = vadd.f32 %v8284, %v8594
      %v8653 = vadd.f32 %v8285, %v8599
      %v8654 = vadd.f32 %v8286, %v8602
      %v8655 = vadd.f32 %v8287, %v8607
      %v8656 = vadd.f32 %v8288, %v8610
      %v8657 = vadd.f32 %v8289, %v8615
      %v8658 = vadd.f32 %v8290, %v8618
      %v8659 = vadd.f32 %v8291, %v8623
      %v8660 = vadd.f32 %v8292, %v8626
      %v8662 = vshrl.u32 %v5568, 16
      %v8664 = vshll.u32 %v5568, 16
      %v8666 = vrot.slane %v8664, 1
      %v8667 = vor.u32 %v8662, %v8666
      %v8669 = vshll.u32 %v5569, 16
      %v8671 = vrot.slane %v8669, 1
      %v8672 = vsel %vm1865, %v8667, %v8671
      %8673 = vrot.lane.b32.xlu0 %v8672, 32
      %v8674 = vpop.permute.xlu0 %8673
      %v8677 = vrot.slane %v5568, 1
      %v8678 = vrot.slane %v5569, 1
      %v8679 = vsel %vm2122, %v8677, %v8678
      %8680 = vrot.lane.b32.xlu0 %v8679, 64
      %v8681 = vpop.permute.xlu0 %8680
      %v8682 = vrot.slane %v8662, 1
      %v8683 = vrot.slane %v8664, 2
      %v8684 = vor.u32 %v8682, %v8683
      %v8685 = vshrl.u32 %v5569, 16
      %v8687 = vrot.slane %v8685, 1
      %v8688 = vrot.slane %v8669, 2
      %v8689 = vor.u32 %v8687, %v8688
      %v8690 = vsel %vm3522, %v8684, %v8689
      %8691 = vrot.lane.b32.xlu0 %v8690, 96
      %v8692 = vpop.permute.xlu0 %8691
      %v8693 = vrot.slane %v5568, 2
      %v8694 = vrot.slane %v5569, 2
      %v8695 = vsel %vm3699, %v8693, %v8694
      %v8696 = vrot.slane %v8662, 2
      %v8697 = vrot.slane %v8664, 3
      %v8698 = vor.u32 %v8696, %v8697
      %v8699 = vrot.slane %v8685, 2
      %v8700 = vrot.slane %v8669, 3
      %v8701 = vor.u32 %v8699, %v8700
      %v8702 = vsel %vm6130, %v8698, %v8701
      %8703 = vrot.lane.b32.xlu0 %v8702, 32
      %v8704 = vpop.permute.xlu0 %8703
      %v8705 = vrot.slane %v5568, 3
      %v8706 = vrot.slane %v5569, 3
      %v8707 = vsel %vm6275, %v8705, %v8706
      %8708 = vrot.lane.b32.xlu0 %v8707, 64
      %v8709 = vpop.permute.xlu0 %8708
      %v8711 = vsel %vm489, %v5568, %v8674
      %v8713 = vsel %vm2235, %v8711, %v8681
      %v8715 = vsel %vm2353, %v8713, %v8692
      %v8719 = vsel %vm489, %v8695, %v8704
      %v8721 = vsel %vm2235, %v8719, %v8709
      %v8722 = vld [vmem:[%s9 + $0x2a0] sm:$0xf]
      %v8723 = vld [vmem:[%s9 + $0x2a4] sm:$0xf]
      %v8724 = vld [vmem:[%s9 + $0x2a8] sm:$0xf]
      %v8725 = vld [vmem:[%s9 + $0x2ac] sm:$0xf]
      %v8726 = vld [vmem:[%s9 + $0x2b0] sm:$0xf]
      %v8727 = vld [vmem:[%s9 + $0x2b4] sm:$0xf]
      %v8728 = vld [vmem:[%s9 + $0x2b8] sm:$0xf]
      %v8729 = vld [vmem:[%s9 + $0x2bc] sm:$0xf]
      %v8730 = vld [vmem:[%s9 + $0x2c0] sm:$0xf]
      %v8731 = vld [vmem:[%s9 + $0x2c4] sm:$0xf]
      %v8732 = vld [vmem:[%s9 + $0x2c8] sm:$0xf]
      %v8733 = vld [vmem:[%s9 + $0x2cc] sm:$0xf]
      %v8734 = vld [vmem:[%s9 + $0x2d0] sm:$0xf]
      %v8735 = vld [vmem:[%s9 + $0x2d4] sm:$0xf]
      %v8736 = vld [vmem:[%s9 + $0x2d8] sm:$0xf]
      %v8737 = vld [vmem:[%s9 + $0x2dc] sm:$0xf]
      %v8738 = vld [vmem:[%s9 + $0x2e0] sm:$0xf]
      %v8739 = vld [vmem:[%s9 + $0x2e4] sm:$0xf]
      %v8740 = vld [vmem:[%s9 + $0x2e8] sm:$0xf]
      %v8741 = vld [vmem:[%s9 + $0x2ec] sm:$0xf]
      %v8742 = vld [vmem:[%s9 + $0x2f0] sm:$0xf]
      %v8743 = vld [vmem:[%s9 + $0x2f4] sm:$0xf]
      %v8744 = vld [vmem:[%s9 + $0x2f8] sm:$0xf]
      %v8745 = vld [vmem:[%s9 + $0x2fc] sm:$0xf]
      %v8746 = vld [vmem:[%s9 + $0x300] sm:$0xf]
      %v8747 = vld [vmem:[%s9 + $0x304] sm:$0xf]
      %v8748 = vld [vmem:[%s9 + $0x308] sm:$0xf]
      %v8749 = vld [vmem:[%s9 + $0x30c] sm:$0xf]
      %v8778 = vunpack.c.l.b16 %v8722
      %v8779 = vunpack.c.l.b16 %v8723
      %v8780 = vunpack.c.l.b16 %v8724
      %v8781 = vunpack.c.l.b16 %v8725
      %v8782 = vunpack.c.l.b16 %v8726
      %v8783 = vunpack.c.l.b16 %v8727
      %v8784 = vunpack.c.l.b16 %v8728
      %v8785 = vunpack.c.l.b16 %v8729
      %v8786 = vunpack.c.l.b16 %v8730
      %v8787 = vunpack.c.l.b16 %v8731
      %v8788 = vunpack.c.l.b16 %v8732
      %v8789 = vunpack.c.l.b16 %v8733
      %v8790 = vunpack.c.l.b16 %v8734
      %v8791 = vunpack.c.l.b16 %v8735
      %v8792 = vunpack.c.l.b16 %v8736
      %v8793 = vunpack.c.l.b16 %v8737
      %v8794 = vunpack.c.l.b16 %v8738
      %v8795 = vunpack.c.l.b16 %v8739
      %v8796 = vunpack.c.l.b16 %v8740
      %v8797 = vunpack.c.l.b16 %v8741
      %v8798 = vunpack.c.l.b16 %v8742
      %v8799 = vunpack.c.l.b16 %v8743
      %v8800 = vunpack.c.l.b16 %v8744
      %v8801 = vunpack.c.l.b16 %v8745
      %v8802 = vunpack.c.l.b16 %v8746
      %v8803 = vunpack.c.l.b16 %v8747
      %v8804 = vunpack.c.l.b16 %v8748
      %v8805 = vunpack.c.l.b16 %v8749
      %v8806 = vpack.c.b16 %v8779, %v8778
      %v8807 = vpack.c.b16 %v8781, %v8780
      %v8808 = vpack.c.b16 %v8783, %v8782
      %v8809 = vpack.c.b16 %v8785, %v8784
      %v8810 = vpack.c.b16 %v8787, %v8786
      %v8811 = vpack.c.b16 %v8789, %v8788
      %v8812 = vpack.c.b16 %v8791, %v8790
      %v8813 = vpack.c.b16 %v8793, %v8792
      %v8814 = vpack.c.b16 %v8795, %v8794
      %v8815 = vpack.c.b16 %v8797, %v8796
      %v8816 = vpack.c.b16 %v8799, %v8798
      %v8817 = vpack.c.b16 %v8801, %v8800
      %v8818 = vpack.c.b16 %v8803, %v8802
      %v8819 = vpack.c.b16 %v8805, %v8804
      %v8834 = vsel %vm2353, %v8721, 0
      %8836 = vmatprep.subr.bf16.mxu0 0
      %8837 = vmatpush1.bf16.msra.mxu0 %v8813
      %8838 = vmatprep.subr.bf16.mxu0 0
      %8839 = vmatpush1.bf16.msra.mxu0 %v8812
      %8840 = vmatprep.subr.bf16.mxu0 0
      %8841 = vmatpush1.bf16.msra.mxu0 %v8811
      %8842 = vmatprep.subr.bf16.mxu0 0
      %8843 = vmatpush1.bf16.msra.mxu0 %v8810
      %8844 = vmatprep.subr.bf16.mxu0 0
      %8845 = vmatpush1.bf16.msra.mxu0 %v8809
      %8846 = vmatprep.subr.bf16.mxu0 0
      %8847 = vmatpush1.bf16.msra.mxu0 %v8808
      %8848 = vmatprep.subr.bf16.mxu0 0
      %8849 = vmatpush1.bf16.msra.mxu0 %v8807
      %8850 = vmatprep.subr.bf16.mxu0 0
      %8851 = vmatpush1.bf16.msra.mxu0 %v8806
      %8852 = vmatprep.subr.bf16.mxu0 0
      %8853 = vmatpush2.bf16.msra.mxu0 0
      %8854 = vmatprep.subr.bf16.mxu0 0
      %8855 = vmatpush2.bf16.msra.mxu0 0
      %8856 = vmatprep.subr.bf16.mxu0 0
      %8857 = vmatpush2.bf16.msra.mxu0 %v8819
      %8858 = vmatprep.subr.bf16.mxu0 0
      %8859 = vmatpush2.bf16.msra.mxu0 %v8818
      %8860 = vmatprep.subr.bf16.mxu0 0
      %8861 = vmatpush2.bf16.msra.mxu0 %v8817
      %8862 = vmatprep.subr.bf16.mxu0 0
      %8863 = vmatpush2.bf16.msra.mxu0 %v8816
      %8864 = vmatprep.subr.bf16.mxu0 0
      %8865 = vmatpush2.bf16.msra.mxu0 %v8815
      %8866 = vmatprep.subr.bf16.mxu0 0
      %8867 = vmatpush2.bf16.msra.mxu0 %v8814
      %8868 = vmatprep.mubr.bf16.mxu0 %v6759
      %8869 = vmatmul.mubr.bf16.gmra.mxu0 %v6439
      %v8870 = vpop.f32.mrf.mxu0
      %v8871 = vadd.f32 0.0, %v8870
      %v8872 = vpop.f32.mrf.mxu0
      %v8873 = vpop.f32.mrf.mxu0
      %v8874 = vadd.f32 0.0, %v8873
      %v8875 = vpop.f32.mrf.mxu0
      %8876 = vmatprep.mubr.bf16.mxu0 %v6761
      %8877 = vmatmul.mubr.bf16.gmra.mxu0 %v6442
      %v8878 = vpop.f32.mrf.mxu0
      %v8879 = vadd.f32 0.0, %v8878
      %v8880 = vpop.f32.mrf.mxu0
      %v8881 = vpop.f32.mrf.mxu0
      %v8882 = vadd.f32 0.0, %v8881
      %v8883 = vpop.f32.mrf.mxu0
      %8884 = vmatprep.mubr.bf16.mxu0 %v6763
      %8885 = vmatmul.mubr.bf16.gmra.mxu0 %v6445
      %v8886 = vpop.f32.mrf.mxu0
      %v8887 = vadd.f32 0.0, %v8886
      %v8888 = vpop.f32.mrf.mxu0
      %v8889 = vpop.f32.mrf.mxu0
      %v8890 = vadd.f32 0.0, %v8889
      %v8891 = vpop.f32.mrf.mxu0
      %8892 = vmatprep.mubr.bf16.mxu0 %v6765
      %8893 = vmatmul.mubr.bf16.gmra.mxu0 %v6448
      %v8894 = vpop.f32.mrf.mxu0
      %v8895 = vadd.f32 0.0, %v8894
      %v8896 = vpop.f32.mrf.mxu0
      %v8897 = vpop.f32.mrf.mxu0
      %v8898 = vadd.f32 0.0, %v8897
      %v8899 = vpop.f32.mrf.mxu0
      %8900 = vmatprep.mubr.bf16.mxu0 %v6767
      %8901 = vmatmul.mubr.bf16.gmra.mxu0 %v6451
      %v8902 = vpop.f32.mrf.mxu0
      %v8903 = vadd.f32 0.0, %v8902
      %v8904 = vpop.f32.mrf.mxu0
      %v8905 = vpop.f32.mrf.mxu0
      %v8906 = vadd.f32 0.0, %v8905
      %v8907 = vpop.f32.mrf.mxu0
      %8908 = vmatprep.mubr.bf16.mxu0 %v6769
      %8909 = vmatmul.mubr.bf16.gmra.mxu0 %v6454
      %v8910 = vpop.f32.mrf.mxu0
      %v8911 = vadd.f32 0.0, %v8910
      %v8912 = vpop.f32.mrf.mxu0
      %v8913 = vpop.f32.mrf.mxu0
      %v8914 = vadd.f32 0.0, %v8913
      %v8915 = vpop.f32.mrf.mxu0
      %8916 = vmatprep.mubr.bf16.mxu0 %v6771
      %8917 = vmatmul.mubr.bf16.gmra.mxu0 %v6457
      %v8918 = vpop.f32.mrf.mxu0
      %v8919 = vadd.f32 0.0, %v8918
      %v8920 = vpop.f32.mrf.mxu0
      %v8921 = vpop.f32.mrf.mxu0
      %v8922 = vadd.f32 0.0, %v8921
      %v8923 = vpop.f32.mrf.mxu0
      %8924 = vmatprep.mubr.bf16.mxu0 %v6773
      %8925 = vmatmul.mubr.bf16.gmra.mxu0 %v6460
      %v8926 = vpop.f32.mrf.mxu0
      %v8927 = vadd.f32 0.0, %v8926
      %v8928 = vpop.f32.mrf.mxu0
      %v8929 = vpop.f32.mrf.mxu0
      %v8930 = vadd.f32 0.0, %v8929
      %v8931 = vpop.f32.mrf.mxu0
      %8932 = vmatprep.mubr.bf16.mxu0 %v6775
      %8933 = vmatmul.mubr.bf16.gmra.mxu0 %v6463
      %v8934 = vpop.f32.mrf.mxu0
      %v8935 = vadd.f32 0.0, %v8934
      %v8936 = vpop.f32.mrf.mxu0
      %v8937 = vpop.f32.mrf.mxu0
      %v8938 = vadd.f32 0.0, %v8937
      %v8939 = vpop.f32.mrf.mxu0
      %8940 = vmatprep.mubr.bf16.mxu0 %v6777
      %8941 = vmatmul.mubr.bf16.gmra.mxu0 %v6466
      %v8942 = vpop.f32.mrf.mxu0
      %v8943 = vadd.f32 0.0, %v8942
      %v8944 = vpop.f32.mrf.mxu0
      %v8945 = vpop.f32.mrf.mxu0
      %v8946 = vadd.f32 0.0, %v8945
      %v8947 = vpop.f32.mrf.mxu0
      %8948 = vmatprep.mubr.bf16.mxu0 %v6779
      %8949 = vmatmul.mubr.bf16.gmra.mxu0 %v6630
      %v8950 = vpop.f32.mrf.mxu0
      %v8951 = vadd.f32 0.0, %v8950
      %v8952 = vpop.f32.mrf.mxu0
      %v8953 = vpop.f32.mrf.mxu0
      %v8954 = vadd.f32 0.0, %v8953
      %v8955 = vpop.f32.mrf.mxu0
      %8956 = vmatprep.mubr.bf16.mxu0 %v7362
      %8957 = vmatmul.mubr.bf16.gmra.mxu0 %v7243
      %v8958 = vpop.f32.mrf.mxu0
      %v8959 = vadd.f32 0.0, %v8958
      %v8960 = vpop.f32.mrf.mxu0
      %v8961 = vpop.f32.mrf.mxu0
      %v8962 = vadd.f32 0.0, %v8961
      %v8963 = vpop.f32.mrf.mxu0
      %8964 = vmatprep.mubr.bf16.mxu0 %v7730
      %8965 = vmatmul.mubr.bf16.gmra.mxu0 %v7611
      %v8966 = vpop.f32.mrf.mxu0
      %v8967 = vadd.f32 0.0, %v8966
      %v8968 = vpop.f32.mrf.mxu0
      %v8969 = vpop.f32.mrf.mxu0
      %v8970 = vadd.f32 0.0, %v8969
      %v8971 = vpop.f32.mrf.mxu0
      %8972 = vmatprep.mubr.bf16.mxu0 %v8098
      %8973 = vmatmul.mubr.bf16.gmra.mxu0 %v7979
      %v8974 = vpop.f32.mrf.mxu0
      %v8975 = vadd.f32 0.0, %v8974
      %v8976 = vpop.f32.mrf.mxu0
      %v8977 = vpop.f32.mrf.mxu0
      %v8978 = vadd.f32 0.0, %v8977
      %v8979 = vpop.f32.mrf.mxu0
      %8980 = vmatprep.mubr.bf16.mxu0 %v8466
      %8981 = vmatmul.mubr.bf16.gmra.mxu0 %v8347
      %v8982 = vpop.f32.mrf.mxu0
      %v8983 = vadd.f32 0.0, %v8982
      %v8984 = vpop.f32.mrf.mxu0
      %v8985 = vpop.f32.mrf.mxu0
      %v8986 = vadd.f32 0.0, %v8985
      %v8987 = vpop.f32.mrf.mxu0
      %8988 = vmatprep.mubr.bf16.mxu0 %v8834
      %8989 = vmatmul.mubr.bf16.gmra.mxu0 %v8715
      %v8990 = vpop.f32.mrf.mxu0
      %v8991 = vadd.f32 0.0, %v8990
      %v8992 = vpop.f32.mrf.mxu0
      %v8993 = vpop.f32.mrf.mxu0
      %v8994 = vadd.f32 0.0, %v8993
      %v8995 = vpop.f32.mrf.mxu0
      %8996 = vdwg.mxu0
      %v8997 = vadd.f32 %v8629, %v8871
      %v8998 = vadd.f32 %v8630, %v8874
      %v8999 = vadd.f32 %v8631, %v8879
      %v9000 = vadd.f32 %v8632, %v8882
      %v9001 = vadd.f32 %v8633, %v8887
      %v9002 = vadd.f32 %v8634, %v8890
      %v9003 = vadd.f32 %v8635, %v8895
      %v9004 = vadd.f32 %v8636, %v8898
      %v9005 = vadd.f32 %v8637, %v8903
      %v9006 = vadd.f32 %v8638, %v8906
      %v9007 = vadd.f32 %v8639, %v8911
      %v9008 = vadd.f32 %v8640, %v8914
      %v9009 = vadd.f32 %v8641, %v8919
      %v9010 = vadd.f32 %v8642, %v8922
      %v9011 = vadd.f32 %v8643, %v8927
      %v9012 = vadd.f32 %v8644, %v8930
      %v9013 = vadd.f32 %v8645, %v8935
      %v9014 = vadd.f32 %v8646, %v8938
      %v9015 = vadd.f32 %v8647, %v8943
      %v9016 = vadd.f32 %v8648, %v8946
      %v9017 = vadd.f32 %v8649, %v8951
      %v9018 = vadd.f32 %v8650, %v8954
      %v9019 = vadd.f32 %v8651, %v8959
      %v9020 = vadd.f32 %v8652, %v8962
      %v9021 = vadd.f32 %v8653, %v8967
      %v9022 = vadd.f32 %v8654, %v8970
      %v9023 = vadd.f32 %v8655, %v8975
      %v9024 = vadd.f32 %v8656, %v8978
      %v9025 = vadd.f32 %v8657, %v8983
      %v9026 = vadd.f32 %v8658, %v8986
      %v9027 = vadd.f32 %v8659, %v8991
      %v9028 = vadd.f32 %v8660, %v8994
      %v9029 = vld [vmem:[%s10] sm:$0x1]
      %v9031 = vlaneseq
      %v9032 = vshrl.u32 %v9031, 7
      %v9033 = vsub.s32 0, %v9032
      %v9034 = vrot.slane %v9029, %v9033
      %v9036 = vadd.f32 %v8997, %v9034
      %v9037 = vadd.f32 %v8998, %v9034
      %v9038 = vadd.f32 %v8999, %v9034
      %v9039 = vadd.f32 %v9000, %v9034
      %v9040 = vadd.f32 %v9001, %v9034
      %v9041 = vadd.f32 %v9002, %v9034
      %v9042 = vadd.f32 %v9003, %v9034
      %v9043 = vadd.f32 %v9004, %v9034
      %v9044 = vadd.f32 %v9005, %v9034
      %v9045 = vadd.f32 %v9006, %v9034
      %v9046 = vadd.f32 %v9007, %v9034
      %v9047 = vadd.f32 %v9008, %v9034
      %v9048 = vadd.f32 %v9009, %v9034
      %v9049 = vadd.f32 %v9010, %v9034
      %v9050 = vadd.f32 %v9011, %v9034
      %v9051 = vadd.f32 %v9012, %v9034
      %v9052 = vadd.f32 %v9013, %v9034
      %v9053 = vadd.f32 %v9014, %v9034
      %v9054 = vadd.f32 %v9015, %v9034
      %v9055 = vadd.f32 %v9016, %v9034
      %v9056 = vadd.f32 %v9017, %v9034
      %v9057 = vadd.f32 %v9018, %v9034
      %v9058 = vadd.f32 %v9019, %v9034
      %v9059 = vadd.f32 %v9020, %v9034
      %v9060 = vadd.f32 %v9021, %v9034
      %v9061 = vadd.f32 %v9022, %v9034
      %v9062 = vadd.f32 %v9023, %v9034
      %v9063 = vadd.f32 %v9024, %v9034
      %v9064 = vadd.f32 %v9025, %v9034
      %v9065 = vadd.f32 %v9026, %v9034
      %v9066 = vadd.f32 %v9027, %v9034
      %v9067 = vadd.f32 %v9028, %v9034
      %v9068 = vxor.u32 %v3021, 2147483648
      %v9069 = vxor.u32 %v3022, 2147483648
      %v9070 = vxor.u32 %v3023, 2147483648
      %v9071 = vxor.u32 %v3024, 2147483648
      %v9072 = vxor.u32 %v3025, 2147483648
      %v9073 = vxor.u32 %v3026, 2147483648
      %v9074 = vxor.u32 %v3027, 2147483648
      %v9075 = vxor.u32 %v3028, 2147483648
      %v9076 = vxor.u32 %v3029, 2147483648
      %v9077 = vxor.u32 %v3030, 2147483648
      %v9078 = vxor.u32 %v3031, 2147483648
      %v9079 = vxor.u32 %v3032, 2147483648
      %v9080 = vxor.u32 %v3033, 2147483648
      %v9081 = vxor.u32 %v3034, 2147483648
      %v9082 = vxor.u32 %v3035, 2147483648
      %v9083 = vxor.u32 %v3036, 2147483648
      %v9084 = vxor.u32 %v3037, 2147483648
      %v9085 = vxor.u32 %v3038, 2147483648
      %v9086 = vxor.u32 %v3039, 2147483648
      %v9087 = vxor.u32 %v3040, 2147483648
      %v9088 = vxor.u32 %v3041, 2147483648
      %v9089 = vxor.u32 %v3042, 2147483648
      %v9090 = vxor.u32 %v3043, 2147483648
      %v9091 = vxor.u32 %v3044, 2147483648
      %v9092 = vxor.u32 %v3045, 2147483648
      %v9093 = vxor.u32 %v3046, 2147483648
      %v9094 = vxor.u32 %v3047, 2147483648
      %v9095 = vxor.u32 %v3048, 2147483648
      %v9096 = vxor.u32 %v3049, 2147483648
      %v9097 = vxor.u32 %v3050, 2147483648
      %v9098 = vxor.u32 %v3051, 2147483648
      %v9099 = vxor.u32 %v3052, 2147483648
      %v9100 = vmul.f32 %v9068, 1.442695
      %v9101 = vpow.pop %v9100
      %v9102 = vmul.f32 %v9069, 1.442695
      %v9103 = vpow.pop %v9102
      %v9104 = vmul.f32 %v9070, 1.442695
      %v9105 = vpow.pop %v9104
      %v9106 = vmul.f32 %v9071, 1.442695
      %v9107 = vpow.pop %v9106
      %v9108 = vmul.f32 %v9072, 1.442695
      %v9109 = vpow.pop %v9108
      %v9110 = vmul.f32 %v9073, 1.442695
      %v9111 = vpow.pop %v9110
      %v9112 = vmul.f32 %v9074, 1.442695
      %v9113 = vpow.pop %v9112
      %v9114 = vmul.f32 %v9075, 1.442695
      %v9115 = vpow.pop %v9114
      %v9116 = vmul.f32 %v9076, 1.442695
      %v9117 = vpow.pop %v9116
      %v9118 = vmul.f32 %v9077, 1.442695
      %v9119 = vpow.pop %v9118
      %v9120 = vmul.f32 %v9078, 1.442695
      %v9121 = vpow.pop %v9120
      %v9122 = vmul.f32 %v9079, 1.442695
      %v9123 = vpow.pop %v9122
      %v9124 = vmul.f32 %v9080, 1.442695
      %v9125 = vpow.pop %v9124
      %v9126 = vmul.f32 %v9081, 1.442695
      %v9127 = vpow.pop %v9126
      %v9128 = vmul.f32 %v9082, 1.442695
      %v9129 = vpow.pop %v9128
      %v9130 = vmul.f32 %v9083, 1.442695
      %v9131 = vpow.pop %v9130
      %v9132 = vmul.f32 %v9084, 1.442695
      %v9133 = vpow.pop %v9132
      %v9134 = vmul.f32 %v9085, 1.442695
      %v9135 = vpow.pop %v9134
      %v9136 = vmul.f32 %v9086, 1.442695
      %v9137 = vpow.pop %v9136
      %v9138 = vmul.f32 %v9087, 1.442695
      %v9139 = vpow.pop %v9138
      %v9140 = vmul.f32 %v9088, 1.442695
      %v9141 = vpow.pop %v9140
      %v9142 = vmul.f32 %v9089, 1.442695
      %v9143 = vpow.pop %v9142
      %v9144 = vmul.f32 %v9090, 1.442695
      %v9145 = vpow.pop %v9144
      %v9146 = vmul.f32 %v9091, 1.442695
      %v9147 = vpow.pop %v9146
      %v9148 = vmul.f32 %v9092, 1.442695
      %v9149 = vpow.pop %v9148
      %v9150 = vmul.f32 %v9093, 1.442695
      %v9151 = vpow.pop %v9150
      %v9152 = vmul.f32 %v9094, 1.442695
      %v9153 = vpow.pop %v9152
      %v9154 = vmul.f32 %v9095, 1.442695
      %v9155 = vpow.pop %v9154
      %v9156 = vmul.f32 %v9096, 1.442695
      %v9157 = vpow.pop %v9156
      %v9158 = vmul.f32 %v9097, 1.442695
      %v9159 = vpow.pop %v9158
      %v9160 = vmul.f32 %v9098, 1.442695
      %v9161 = vpow.pop %v9160
      %v9162 = vmul.f32 %v9099, 1.442695
      %v9163 = vpow.pop %v9162
      %v9164 = vadd.f32 %v9101, 1.0
      %v9165 = vadd.f32 %v9103, 1.0
      %v9166 = vadd.f32 %v9105, 1.0
      %v9167 = vadd.f32 %v9107, 1.0
      %v9168 = vadd.f32 %v9109, 1.0
      %v9169 = vadd.f32 %v9111, 1.0
      %v9170 = vadd.f32 %v9113, 1.0
      %v9171 = vadd.f32 %v9115, 1.0
      %v9172 = vadd.f32 %v9117, 1.0
      %v9173 = vadd.f32 %v9119, 1.0
      %v9174 = vadd.f32 %v9121, 1.0
      %v9175 = vadd.f32 %v9123, 1.0
      %v9176 = vadd.f32 %v9125, 1.0
      %v9177 = vadd.f32 %v9127, 1.0
      %v9178 = vadd.f32 %v9129, 1.0
      %v9179 = vadd.f32 %v9131, 1.0
      %v9180 = vadd.f32 %v9133, 1.0
      %v9181 = vadd.f32 %v9135, 1.0
      %v9182 = vadd.f32 %v9137, 1.0
      %v9183 = vadd.f32 %v9139, 1.0
      %v9184 = vadd.f32 %v9141, 1.0
      %v9185 = vadd.f32 %v9143, 1.0
      %v9186 = vadd.f32 %v9145, 1.0
      %v9187 = vadd.f32 %v9147, 1.0
      %v9188 = vadd.f32 %v9149, 1.0
      %v9189 = vadd.f32 %v9151, 1.0
      %v9190 = vadd.f32 %v9153, 1.0
      %v9191 = vadd.f32 %v9155, 1.0
      %v9192 = vadd.f32 %v9157, 1.0
      %v9193 = vadd.f32 %v9159, 1.0
      %v9194 = vadd.f32 %v9161, 1.0
      %v9195 = vadd.f32 %v9163, 1.0
      %v9196 = vrcp.pop %v9164
      %v9197 = vmul.f32 1.0, %v9196
      %v9198 = vrcp.pop %v9165
      %v9199 = vmul.f32 1.0, %v9198
      %v9200 = vrcp.pop %v9166
      %v9201 = vmul.f32 1.0, %v9200
      %v9202 = vrcp.pop %v9167
      %v9203 = vmul.f32 1.0, %v9202
      %v9204 = vrcp.pop %v9168
      %v9205 = vmul.f32 1.0, %v9204
      %v9206 = vrcp.pop %v9169
      %v9207 = vmul.f32 1.0, %v9206
      %v9208 = vrcp.pop %v9170
      %v9209 = vmul.f32 1.0, %v9208
      %v9210 = vrcp.pop %v9171
      %v9211 = vmul.f32 1.0, %v9210
      %v9212 = vrcp.pop %v9172
      %v9213 = vmul.f32 1.0, %v9212
      %v9214 = vrcp.pop %v9173
      %v9215 = vmul.f32 1.0, %v9214
      %v9216 = vrcp.pop %v9174
      %v9217 = vmul.f32 1.0, %v9216
      %v9218 = vrcp.pop %v9175
      %v9219 = vmul.f32 1.0, %v9218
      %v9220 = vrcp.pop %v9176
      %v9221 = vmul.f32 1.0, %v9220
      %v9222 = vrcp.pop %v9177
      %v9223 = vmul.f32 1.0, %v9222
      %v9224 = vrcp.pop %v9178
      %v9225 = vmul.f32 1.0, %v9224
      %v9226 = vrcp.pop %v9179
      %v9227 = vmul.f32 1.0, %v9226
      %v9228 = vrcp.pop %v9180
      %v9229 = vmul.f32 1.0, %v9228
      %v9230 = vrcp.pop %v9181
      %v9231 = vmul.f32 1.0, %v9230
      %v9232 = vrcp.pop %v9182
      %v9233 = vmul.f32 1.0, %v9232
      %v9234 = vrcp.pop %v9183
      %v9235 = vmul.f32 1.0, %v9234
      %v9236 = vrcp.pop %v9184
      %v9237 = vmul.f32 1.0, %v9236
      %v9238 = vrcp.pop %v9185
      %v9239 = vmul.f32 1.0, %v9238
      %v9240 = vrcp.pop %v9186
      %v9241 = vmul.f32 1.0, %v9240
      %v9242 = vrcp.pop %v9187
      %v9243 = vmul.f32 1.0, %v9242
      %v9244 = vrcp.pop %v9188
      %v9245 = vmul.f32 1.0, %v9244
      %v9246 = vrcp.pop %v9189
      %v9247 = vmul.f32 1.0, %v9246
      %v9248 = vrcp.pop %v9190
      %v9249 = vmul.f32 1.0, %v9248
      %v9250 = vrcp.pop %v9191
      %v9251 = vmul.f32 1.0, %v9250
      %v9252 = vrcp.pop %v9192
      %v9253 = vmul.f32 1.0, %v9252
      %v9254 = vrcp.pop %v9193
      %v9255 = vmul.f32 1.0, %v9254
      %v9256 = vrcp.pop %v9194
      %v9257 = vmul.f32 1.0, %v9256
      %v9258 = vrcp.pop %v9195
      %v9259 = vmul.f32 1.0, %v9258
      %v9260 = vadd.f32 %v9197, 1.0
      %v9261 = vadd.f32 %v9199, 1.0
      %v9262 = vadd.f32 %v9201, 1.0
      %v9263 = vadd.f32 %v9203, 1.0
      %v9264 = vadd.f32 %v9205, 1.0
      %v9265 = vadd.f32 %v9207, 1.0
      %v9266 = vadd.f32 %v9209, 1.0
      %v9267 = vadd.f32 %v9211, 1.0
      %v9268 = vadd.f32 %v9213, 1.0
      %v9269 = vadd.f32 %v9215, 1.0
      %v9270 = vadd.f32 %v9217, 1.0
      %v9271 = vadd.f32 %v9219, 1.0
      %v9272 = vadd.f32 %v9221, 1.0
      %v9273 = vadd.f32 %v9223, 1.0
      %v9274 = vadd.f32 %v9225, 1.0
      %v9275 = vadd.f32 %v9227, 1.0
      %v9276 = vadd.f32 %v9229, 1.0
      %v9277 = vadd.f32 %v9231, 1.0
      %v9278 = vadd.f32 %v9233, 1.0
      %v9279 = vadd.f32 %v9235, 1.0
      %v9280 = vadd.f32 %v9237, 1.0
      %v9281 = vadd.f32 %v9239, 1.0
      %v9282 = vadd.f32 %v9241, 1.0
      %v9283 = vadd.f32 %v9243, 1.0
      %v9284 = vadd.f32 %v9245, 1.0
      %v9285 = vadd.f32 %v9247, 1.0
      %v9286 = vadd.f32 %v9249, 1.0
      %v9287 = vadd.f32 %v9251, 1.0
      %v9288 = vadd.f32 %v9253, 1.0
      %v9289 = vadd.f32 %v9255, 1.0
      %v9290 = vadd.f32 %v9257, 1.0
      %v9291 = vadd.f32 %v9259, 1.0
      %v9292 = vxor.u32 %v5396, 2147483648
      %v9293 = vxor.u32 %v5397, 2147483648
      %v9294 = vxor.u32 %v5398, 2147483648
      %v9295 = vxor.u32 %v5399, 2147483648
      %v9296 = vxor.u32 %v5400, 2147483648
      %v9297 = vxor.u32 %v5401, 2147483648
      %v9298 = vxor.u32 %v5402, 2147483648
      %v9299 = vxor.u32 %v5403, 2147483648
      %v9300 = vxor.u32 %v5404, 2147483648
      %v9301 = vxor.u32 %v5405, 2147483648
      %v9302 = vxor.u32 %v5406, 2147483648
      %v9303 = vxor.u32 %v5407, 2147483648
      %v9304 = vxor.u32 %v5408, 2147483648
      %v9305 = vxor.u32 %v5409, 2147483648
      %v9306 = vxor.u32 %v5410, 2147483648
      %v9307 = vxor.u32 %v5411, 2147483648
      %v9308 = vxor.u32 %v5412, 2147483648
      %v9309 = vxor.u32 %v5413, 2147483648
      %v9310 = vxor.u32 %v5414, 2147483648
      %v9311 = vxor.u32 %v5415, 2147483648
      %v9312 = vxor.u32 %v5416, 2147483648
      %v9313 = vxor.u32 %v5417, 2147483648
      %v9314 = vxor.u32 %v5418, 2147483648
      %v9315 = vxor.u32 %v5419, 2147483648
      %v9316 = vxor.u32 %v5420, 2147483648
      %v9317 = vxor.u32 %v5421, 2147483648
      %v9318 = vxor.u32 %v5422, 2147483648
      %v9319 = vxor.u32 %v5423, 2147483648
      %v9320 = vxor.u32 %v5424, 2147483648
      %v9321 = vxor.u32 %v5425, 2147483648
      %v9322 = vxor.u32 %v5426, 2147483648
      %v9323 = vxor.u32 %v5427, 2147483648
      %v9324 = vmul.f32 %v9292, 1.442695
      %v9325 = vpow.pop %v9324
      %v9326 = vmul.f32 %v9293, 1.442695
      %v9327 = vpow.pop %v9326
      %v9328 = vmul.f32 %v9294, 1.442695
      %v9329 = vpow.pop %v9328
      %v9330 = vmul.f32 %v9295, 1.442695
      %v9331 = vpow.pop %v9330
      %v9332 = vmul.f32 %v9296, 1.442695
      %v9333 = vpow.pop %v9332
      %v9334 = vmul.f32 %v9297, 1.442695
      %v9335 = vpow.pop %v9334
      %v9336 = vmul.f32 %v9298, 1.442695
      %v9337 = vpow.pop %v9336
      %v9338 = vmul.f32 %v9299, 1.442695
      %v9339 = vpow.pop %v9338
      %v9340 = vmul.f32 %v9300, 1.442695
      %v9341 = vpow.pop %v9340
      %v9342 = vmul.f32 %v9301, 1.442695
      %v9343 = vpow.pop %v9342
      %v9344 = vmul.f32 %v9302, 1.442695
      %v9345 = vpow.pop %v9344
      %v9346 = vmul.f32 %v9303, 1.442695
      %v9347 = vpow.pop %v9346
      %v9348 = vmul.f32 %v9304, 1.442695
      %v9349 = vpow.pop %v9348
      %v9350 = vmul.f32 %v9305, 1.442695
      %v9351 = vpow.pop %v9350
      %v9352 = vmul.f32 %v9306, 1.442695
      %v9353 = vpow.pop %v9352
      %v9354 = vmul.f32 %v9307, 1.442695
      %v9355 = vpow.pop %v9354
      %v9356 = vmul.f32 %v9308, 1.442695
      %v9357 = vpow.pop %v9356
      %v9358 = vmul.f32 %v9309, 1.442695
      %v9359 = vpow.pop %v9358
      %v9360 = vmul.f32 %v9310, 1.442695
      %v9361 = vpow.pop %v9360
      %v9362 = vmul.f32 %v9311, 1.442695
      %v9363 = vpow.pop %v9362
      %v9364 = vmul.f32 %v9312, 1.442695
      %v9365 = vpow.pop %v9364
      %v9366 = vmul.f32 %v9313, 1.442695
      %v9367 = vpow.pop %v9366
      %v9368 = vmul.f32 %v9314, 1.442695
      %v9369 = vpow.pop %v9368
      %v9370 = vmul.f32 %v9315, 1.442695
      %v9371 = vpow.pop %v9370
      %v9372 = vmul.f32 %v9316, 1.442695
      %v9373 = vpow.pop %v9372
      %v9374 = vmul.f32 %v9317, 1.442695
      %v9375 = vpow.pop %v9374
      %v9376 = vmul.f32 %v9318, 1.442695
      %v9377 = vpow.pop %v9376
      %v9378 = vmul.f32 %v9319, 1.442695
      %v9379 = vpow.pop %v9378
      %v9380 = vmul.f32 %v9320, 1.442695
      %v9381 = vpow.pop %v9380
      %v9382 = vmul.f32 %v9321, 1.442695
      %v9383 = vpow.pop %v9382
      %v9384 = vmul.f32 %v9322, 1.442695
      %v9385 = vpow.pop %v9384
      %v9386 = vmul.f32 %v9323, 1.442695
      %v9387 = vpow.pop %v9386
      %v9388 = vadd.f32 %v9325, 1.0
      %v9389 = vadd.f32 %v9327, 1.0
      %v9390 = vadd.f32 %v9329, 1.0
      %v9391 = vadd.f32 %v9331, 1.0
      %v9392 = vadd.f32 %v9333, 1.0
      %v9393 = vadd.f32 %v9335, 1.0
      %v9394 = vadd.f32 %v9337, 1.0
      %v9395 = vadd.f32 %v9339, 1.0
      %v9396 = vadd.f32 %v9341, 1.0
      %v9397 = vadd.f32 %v9343, 1.0
      %v9398 = vadd.f32 %v9345, 1.0
      %v9399 = vadd.f32 %v9347, 1.0
      %v9400 = vadd.f32 %v9349, 1.0
      %v9401 = vadd.f32 %v9351, 1.0
      %v9402 = vadd.f32 %v9353, 1.0
      %v9403 = vadd.f32 %v9355, 1.0
      %v9404 = vadd.f32 %v9357, 1.0
      %v9405 = vadd.f32 %v9359, 1.0
      %v9406 = vadd.f32 %v9361, 1.0
      %v9407 = vadd.f32 %v9363, 1.0
      %v9408 = vadd.f32 %v9365, 1.0
      %v9409 = vadd.f32 %v9367, 1.0
      %v9410 = vadd.f32 %v9369, 1.0
      %v9411 = vadd.f32 %v9371, 1.0
      %v9412 = vadd.f32 %v9373, 1.0
      %v9413 = vadd.f32 %v9375, 1.0
      %v9414 = vadd.f32 %v9377, 1.0
      %v9415 = vadd.f32 %v9379, 1.0
      %v9416 = vadd.f32 %v9381, 1.0
      %v9417 = vadd.f32 %v9383, 1.0
      %v9418 = vadd.f32 %v9385, 1.0
      %v9419 = vadd.f32 %v9387, 1.0
      %v9420 = vrcp.pop %v9388
      %v9421 = vmul.f32 1.0, %v9420
      %v9422 = vrcp.pop %v9389
      %v9423 = vmul.f32 1.0, %v9422
      %v9424 = vrcp.pop %v9390
      %v9425 = vmul.f32 1.0, %v9424
      %v9426 = vrcp.pop %v9391
      %v9427 = vmul.f32 1.0, %v9426
      %v9428 = vrcp.pop %v9392
      %v9429 = vmul.f32 1.0, %v9428
      %v9430 = vrcp.pop %v9393
      %v9431 = vmul.f32 1.0, %v9430
      %v9432 = vrcp.pop %v9394
      %v9433 = vmul.f32 1.0, %v9432
      %v9434 = vrcp.pop %v9395
      %v9435 = vmul.f32 1.0, %v9434
      %v9436 = vrcp.pop %v9396
      %v9437 = vmul.f32 1.0, %v9436
      %v9438 = vrcp.pop %v9397
      %v9439 = vmul.f32 1.0, %v9438
      %v9440 = vrcp.pop %v9398
      %v9441 = vmul.f32 1.0, %v9440
      %v9442 = vrcp.pop %v9399
      %v9443 = vmul.f32 1.0, %v9442
      %v9444 = vrcp.pop %v9400
      %v9445 = vmul.f32 1.0, %v9444
      %v9446 = vrcp.pop %v9401
      %v9447 = vmul.f32 1.0, %v9446
      %v9448 = vrcp.pop %v9402
      %v9449 = vmul.f32 1.0, %v9448
      %v9450 = vrcp.pop %v9403
      %v9451 = vmul.f32 1.0, %v9450
      %v9452 = vrcp.pop %v9404
      %v9453 = vmul.f32 1.0, %v9452
      %v9454 = vrcp.pop %v9405
      %v9455 = vmul.f32 1.0, %v9454
      %v9456 = vrcp.pop %v9406
      %v9457 = vmul.f32 1.0, %v9456
      %v9458 = vrcp.pop %v9407
      %v9459 = vmul.f32 1.0, %v9458
      %v9460 = vrcp.pop %v9408
      %v9461 = vmul.f32 1.0, %v9460
      %v9462 = vrcp.pop %v9409
      %v9463 = vmul.f32 1.0, %v9462
      %v9464 = vrcp.pop %v9410
      %v9465 = vmul.f32 1.0, %v9464
      %v9466 = vrcp.pop %v9411
      %v9467 = vmul.f32 1.0, %v9466
      %v9468 = vrcp.pop %v9412
      %v9469 = vmul.f32 1.0, %v9468
      %v9470 = vrcp.pop %v9413
      %v9471 = vmul.f32 1.0, %v9470
      %v9472 = vrcp.pop %v9414
      %v9473 = vmul.f32 1.0, %v9472
      %v9474 = vrcp.pop %v9415
      %v9475 = vmul.f32 1.0, %v9474
      %v9476 = vrcp.pop %v9416
      %v9477 = vmul.f32 1.0, %v9476
      %v9478 = vrcp.pop %v9417
      %v9479 = vmul.f32 1.0, %v9478
      %v9480 = vrcp.pop %v9418
      %v9481 = vmul.f32 1.0, %v9480
      %v9482 = vrcp.pop %v9419
      %v9483 = vmul.f32 1.0, %v9482
      %v9484 = vadd.f32 %v9260, %v9421
      %v9485 = vadd.f32 %v9261, %v9423
      %v9486 = vadd.f32 %v9262, %v9425
      %v9487 = vadd.f32 %v9263, %v9427
      %v9488 = vadd.f32 %v9264, %v9429
      %v9489 = vadd.f32 %v9265, %v9431
      %v9490 = vadd.f32 %v9266, %v9433
      %v9491 = vadd.f32 %v9267, %v9435
      %v9492 = vadd.f32 %v9268, %v9437
      %v9493 = vadd.f32 %v9269, %v9439
      %v9494 = vadd.f32 %v9270, %v9441
      %v9495 = vadd.f32 %v9271, %v9443
      %v9496 = vadd.f32 %v9272, %v9445
      %v9497 = vadd.f32 %v9273, %v9447
      %v9498 = vadd.f32 %v9274, %v9449
      %v9499 = vadd.f32 %v9275, %v9451
      %v9500 = vadd.f32 %v9276, %v9453
      %v9501 = vadd.f32 %v9277, %v9455
      %v9502 = vadd.f32 %v9278, %v9457
      %v9503 = vadd.f32 %v9279, %v9459
      %v9504 = vadd.f32 %v9280, %v9461
      %v9505 = vadd.f32 %v9281, %v9463
      %v9506 = vadd.f32 %v9282, %v9465
      %v9507 = vadd.f32 %v9283, %v9467
      %v9508 = vadd.f32 %v9284, %v9469
      %v9509 = vadd.f32 %v9285, %v9471
      %v9510 = vadd.f32 %v9286, %v9473
      %v9511 = vadd.f32 %v9287, %v9475
      %v9512 = vadd.f32 %v9288, %v9477
      %v9513 = vadd.f32 %v9289, %v9479
      %v9514 = vadd.f32 %v9290, %v9481
      %v9515 = vadd.f32 %v9291, %v9483
      %v9516 = vxor.u32 %v9036, 2147483648
      %v9517 = vxor.u32 %v9037, 2147483648
      %v9518 = vxor.u32 %v9038, 2147483648
      %v9519 = vxor.u32 %v9039, 2147483648
      %v9520 = vxor.u32 %v9040, 2147483648
      %v9521 = vxor.u32 %v9041, 2147483648
      %v9522 = vxor.u32 %v9042, 2147483648
      %v9523 = vxor.u32 %v9043, 2147483648
      %v9524 = vxor.u32 %v9044, 2147483648
      %v9525 = vxor.u32 %v9045, 2147483648
      %v9526 = vxor.u32 %v9046, 2147483648
      %v9527 = vxor.u32 %v9047, 2147483648
      %v9528 = vxor.u32 %v9048, 2147483648
      %v9529 = vxor.u32 %v9049, 2147483648
      %v9530 = vxor.u32 %v9050, 2147483648
      %v9531 = vxor.u32 %v9051, 2147483648
      %v9532 = vxor.u32 %v9052, 2147483648
      %v9533 = vxor.u32 %v9053, 2147483648
      %v9534 = vxor.u32 %v9054, 2147483648
      %v9535 = vxor.u32 %v9055, 2147483648
      %v9536 = vxor.u32 %v9056, 2147483648
      %v9537 = vxor.u32 %v9057, 2147483648
      %v9538 = vxor.u32 %v9058, 2147483648
      %v9539 = vxor.u32 %v9059, 2147483648
      %v9540 = vxor.u32 %v9060, 2147483648
      %v9541 = vxor.u32 %v9061, 2147483648
      %v9542 = vxor.u32 %v9062, 2147483648
      %v9543 = vxor.u32 %v9063, 2147483648
      %v9544 = vxor.u32 %v9064, 2147483648
      %v9545 = vxor.u32 %v9065, 2147483648
      %v9546 = vxor.u32 %v9066, 2147483648
      %v9547 = vxor.u32 %v9067, 2147483648
      %v9548 = vmul.f32 %v9516, 1.442695
      %v9549 = vpow.pop %v9548
      %v9550 = vmul.f32 %v9517, 1.442695
      %v9551 = vpow.pop %v9550
      %v9552 = vmul.f32 %v9518, 1.442695
      %v9553 = vpow.pop %v9552
      %v9554 = vmul.f32 %v9519, 1.442695
      %v9555 = vpow.pop %v9554
      %v9556 = vmul.f32 %v9520, 1.442695
      %v9557 = vpow.pop %v9556
      %v9558 = vmul.f32 %v9521, 1.442695
      %v9559 = vpow.pop %v9558
      %v9560 = vmul.f32 %v9522, 1.442695
      %v9561 = vpow.pop %v9560
      %v9562 = vmul.f32 %v9523, 1.442695
      %v9563 = vpow.pop %v9562
      %v9564 = vmul.f32 %v9524, 1.442695
      %v9565 = vpow.pop %v9564
      %v9566 = vmul.f32 %v9525, 1.442695
      %v9567 = vpow.pop %v9566
      %v9568 = vmul.f32 %v9526, 1.442695
      %v9569 = vpow.pop %v9568
      %v9570 = vmul.f32 %v9527, 1.442695
      %v9571 = vpow.pop %v9570
      %v9572 = vmul.f32 %v9528, 1.442695
      %v9573 = vpow.pop %v9572
      %v9574 = vmul.f32 %v9529, 1.442695
      %v9575 = vpow.pop %v9574
      %v9576 = vmul.f32 %v9530, 1.442695
      %v9577 = vpow.pop %v9576
      %v9578 = vmul.f32 %v9531, 1.442695
      %v9579 = vpow.pop %v9578
      %v9580 = vmul.f32 %v9532, 1.442695
      %v9581 = vpow.pop %v9580
      %v9582 = vmul.f32 %v9533, 1.442695
      %v9583 = vpow.pop %v9582
      %v9584 = vmul.f32 %v9534, 1.442695
      %v9585 = vpow.pop %v9584
      %v9586 = vmul.f32 %v9535, 1.442695
      %v9587 = vpow.pop %v9586
      %v9588 = vmul.f32 %v9536, 1.442695
      %v9589 = vpow.pop %v9588
      %v9590 = vmul.f32 %v9537, 1.442695
      %v9591 = vpow.pop %v9590
      %v9592 = vmul.f32 %v9538, 1.442695
      %v9593 = vpow.pop %v9592
      %v9594 = vmul.f32 %v9539, 1.442695
      %v9595 = vpow.pop %v9594
      %v9596 = vmul.f32 %v9540, 1.442695
      %v9597 = vpow.pop %v9596
      %v9598 = vmul.f32 %v9541, 1.442695
      %v9599 = vpow.pop %v9598
      %v9600 = vmul.f32 %v9542, 1.442695
      %v9601 = vpow.pop %v9600
      %v9602 = vmul.f32 %v9543, 1.442695
      %v9603 = vpow.pop %v9602
      %v9604 = vmul.f32 %v9544, 1.442695
      %v9605 = vpow.pop %v9604
      %v9606 = vmul.f32 %v9545, 1.442695
      %v9607 = vpow.pop %v9606
      %v9608 = vmul.f32 %v9546, 1.442695
      %v9609 = vpow.pop %v9608
      %v9610 = vmul.f32 %v9547, 1.442695
      %v9611 = vpow.pop %v9610
      %v9612 = vadd.f32 %v9549, 1.0
      %v9613 = vadd.f32 %v9551, 1.0
      %v9614 = vadd.f32 %v9553, 1.0
      %v9615 = vadd.f32 %v9555, 1.0
      %v9616 = vadd.f32 %v9557, 1.0
      %v9617 = vadd.f32 %v9559, 1.0
      %v9618 = vadd.f32 %v9561, 1.0
      %v9619 = vadd.f32 %v9563, 1.0
      %v9620 = vadd.f32 %v9565, 1.0
      %v9621 = vadd.f32 %v9567, 1.0
      %v9622 = vadd.f32 %v9569, 1.0
      %v9623 = vadd.f32 %v9571, 1.0
      %v9624 = vadd.f32 %v9573, 1.0
      %v9625 = vadd.f32 %v9575, 1.0
      %v9626 = vadd.f32 %v9577, 1.0
      %v9627 = vadd.f32 %v9579, 1.0
      %v9628 = vadd.f32 %v9581, 1.0
      %v9629 = vadd.f32 %v9583, 1.0
      %v9630 = vadd.f32 %v9585, 1.0
      %v9631 = vadd.f32 %v9587, 1.0
      %v9632 = vadd.f32 %v9589, 1.0
      %v9633 = vadd.f32 %v9591, 1.0
      %v9634 = vadd.f32 %v9593, 1.0
      %v9635 = vadd.f32 %v9595, 1.0
      %v9636 = vadd.f32 %v9597, 1.0
      %v9637 = vadd.f32 %v9599, 1.0
      %v9638 = vadd.f32 %v9601, 1.0
      %v9639 = vadd.f32 %v9603, 1.0
      %v9640 = vadd.f32 %v9605, 1.0
      %v9641 = vadd.f32 %v9607, 1.0
      %v9642 = vadd.f32 %v9609, 1.0
      %v9643 = vadd.f32 %v9611, 1.0
      %v9644 = vrcp.pop %v9612
      %v9645 = vmul.f32 1.0, %v9644
      %v9646 = vrcp.pop %v9613
      %v9647 = vmul.f32 1.0, %v9646
      %v9648 = vrcp.pop %v9614
      %v9649 = vmul.f32 1.0, %v9648
      %v9650 = vrcp.pop %v9615
      %v9651 = vmul.f32 1.0, %v9650
      %v9652 = vrcp.pop %v9616
      %v9653 = vmul.f32 1.0, %v9652
      %v9654 = vrcp.pop %v9617
      %v9655 = vmul.f32 1.0, %v9654
      %v9656 = vrcp.pop %v9618
      %v9657 = vmul.f32 1.0, %v9656
      %v9658 = vrcp.pop %v9619
      %v9659 = vmul.f32 1.0, %v9658
      %v9660 = vrcp.pop %v9620
      %v9661 = vmul.f32 1.0, %v9660
      %v9662 = vrcp.pop %v9621
      %v9663 = vmul.f32 1.0, %v9662
      %v9664 = vrcp.pop %v9622
      %v9665 = vmul.f32 1.0, %v9664
      %v9666 = vrcp.pop %v9623
      %v9667 = vmul.f32 1.0, %v9666
      %v9668 = vrcp.pop %v9624
      %v9669 = vmul.f32 1.0, %v9668
      %v9670 = vrcp.pop %v9625
      %v9671 = vmul.f32 1.0, %v9670
      %v9672 = vrcp.pop %v9626
      %v9673 = vmul.f32 1.0, %v9672
      %v9674 = vrcp.pop %v9627
      %v9675 = vmul.f32 1.0, %v9674
      %v9676 = vrcp.pop %v9628
      %v9677 = vmul.f32 1.0, %v9676
      %v9678 = vrcp.pop %v9629
      %v9679 = vmul.f32 1.0, %v9678
      %v9680 = vrcp.pop %v9630
      %v9681 = vmul.f32 1.0, %v9680
      %v9682 = vrcp.pop %v9631
      %v9683 = vmul.f32 1.0, %v9682
      %v9684 = vrcp.pop %v9632
      %v9685 = vmul.f32 1.0, %v9684
      %v9686 = vrcp.pop %v9633
      %v9687 = vmul.f32 1.0, %v9686
      %v9688 = vrcp.pop %v9634
      %v9689 = vmul.f32 1.0, %v9688
      %v9690 = vrcp.pop %v9635
      %v9691 = vmul.f32 1.0, %v9690
      %v9692 = vrcp.pop %v9636
      %v9693 = vmul.f32 1.0, %v9692
      %v9694 = vrcp.pop %v9637
      %v9695 = vmul.f32 1.0, %v9694
      %v9696 = vrcp.pop %v9638
      %v9697 = vmul.f32 1.0, %v9696
      %v9698 = vrcp.pop %v9639
      %v9699 = vmul.f32 1.0, %v9698
      %v9700 = vrcp.pop %v9640
      %v9701 = vmul.f32 1.0, %v9700
      %v9702 = vrcp.pop %v9641
      %v9703 = vmul.f32 1.0, %v9702
      %v9704 = vrcp.pop %v9642
      %v9705 = vmul.f32 1.0, %v9704
      %v9706 = vrcp.pop %v9643
      %v9707 = vmul.f32 1.0, %v9706
      %v9708 = vadd.f32 %v9484, %v9645
      %v9709 = vadd.f32 %v9485, %v9647
      %v9710 = vadd.f32 %v9486, %v9649
      %v9711 = vadd.f32 %v9487, %v9651
      %v9712 = vadd.f32 %v9488, %v9653
      %v9713 = vadd.f32 %v9489, %v9655
      %v9714 = vadd.f32 %v9490, %v9657
      %v9715 = vadd.f32 %v9491, %v9659
      %v9716 = vadd.f32 %v9492, %v9661
      %v9717 = vadd.f32 %v9493, %v9663
      %v9718 = vadd.f32 %v9494, %v9665
      %v9719 = vadd.f32 %v9495, %v9667
      %v9720 = vadd.f32 %v9496, %v9669
      %v9721 = vadd.f32 %v9497, %v9671
      %v9722 = vadd.f32 %v9498, %v9673
      %v9723 = vadd.f32 %v9499, %v9675
      %v9724 = vadd.f32 %v9500, %v9677
      %v9725 = vadd.f32 %v9501, %v9679
      %v9726 = vadd.f32 %v9502, %v9681
      %v9727 = vadd.f32 %v9503, %v9683
      %v9728 = vadd.f32 %v9504, %v9685
      %v9729 = vadd.f32 %v9505, %v9687
      %v9730 = vadd.f32 %v9506, %v9689
      %v9731 = vadd.f32 %v9507, %v9691
      %v9732 = vadd.f32 %v9508, %v9693
      %v9733 = vadd.f32 %v9509, %v9695
      %v9734 = vadd.f32 %v9510, %v9697
      %v9735 = vadd.f32 %v9511, %v9699
      %v9736 = vadd.f32 %v9512, %v9701
      %v9737 = vadd.f32 %v9513, %v9703
      %v9738 = vadd.f32 %v9514, %v9705
      %v9739 = vadd.f32 %v9515, %v9707
      %v9740 = vmul.f32 %v1709, %v9708
      %v9741 = vmul.f32 %v1710, %v9709
      %v9742 = vmul.f32 %v1711, %v9710
      %v9743 = vmul.f32 %v1712, %v9711
      %v9744 = vmul.f32 %v1713, %v9712
      %v9745 = vmul.f32 %v1714, %v9713
      %v9746 = vmul.f32 %v1715, %v9714
      %v9747 = vmul.f32 %v1716, %v9715
      %v9748 = vmul.f32 %v1717, %v9716
      %v9749 = vmul.f32 %v1718, %v9717
      %v9750 = vmul.f32 %v1719, %v9718
      %v9751 = vmul.f32 %v1720, %v9719
      %v9752 = vmul.f32 %v1721, %v9720
      %v9753 = vmul.f32 %v1722, %v9721
      %v9754 = vmul.f32 %v1723, %v9722
      %v9755 = vmul.f32 %v1724, %v9723
      %v9756 = vmul.f32 %v1725, %v9724
      %v9757 = vmul.f32 %v1726, %v9725
      %v9758 = vmul.f32 %v1727, %v9726
      %v9759 = vmul.f32 %v1728, %v9727
      %v9760 = vmul.f32 %v1729, %v9728
      %v9761 = vmul.f32 %v1730, %v9729
      %v9762 = vmul.f32 %v1731, %v9730
      %v9763 = vmul.f32 %v1732, %v9731
      %v9764 = vmul.f32 %v1733, %v9732
      %v9765 = vmul.f32 %v1734, %v9733
      %v9766 = vmul.f32 %v1735, %v9734
      %v9767 = vmul.f32 %v1736, %v9735
      %v9768 = vmul.f32 %v1737, %v9736
      %v9769 = vmul.f32 %v1738, %v9737
      %v9770 = vmul.f32 %v1739, %v9738
      %v9771 = vmul.f32 %v1740, %v9739
      %9772 = vst.msk [vmem:[%s1741 + $0x3] sm:$0xff] %vm489, %v9740
      %9773 = vst.msk [vmem:[%s1741 + $0xb] sm:$0xff] %vm489, %v9741
      %9774 = vst.msk [vmem:[%s1741 + $0x1b] sm:$0xff] %vm489, %v9742
      %9775 = vst.msk [vmem:[%s1741 + $0x23] sm:$0xff] %vm489, %v9743
      %9776 = vst.msk [vmem:[%s1741 + $0x33] sm:$0xff] %vm489, %v9744
      %9777 = vst.msk [vmem:[%s1741 + $0x3b] sm:$0xff] %vm489, %v9745
      %9778 = vst.msk [vmem:[%s1741 + $0x4b] sm:$0xff] %vm489, %v9746
      %9779 = vst.msk [vmem:[%s1741 + $0x53] sm:$0xff] %vm489, %v9747
      %9780 = vst.msk [vmem:[%s1741 + $0x63] sm:$0xff] %vm489, %v9748
      %9781 = vst.msk [vmem:[%s1741 + $0x6b] sm:$0xff] %vm489, %v9749
      %9782 = vst.msk [vmem:[%s1741 + $0x7b] sm:$0xff] %vm489, %v9750
      %9783 = vst.msk [vmem:[%s1741 + $0x83] sm:$0xff] %vm489, %v9751
      %9784 = vst.msk [vmem:[%s1741 + $0x93] sm:$0xff] %vm489, %v9752
      %9785 = vst.msk [vmem:[%s1741 + $0x9b] sm:$0xff] %vm489, %v9753
      %9786 = vst.msk [vmem:[%s1741 + $0xab] sm:$0xff] %vm489, %v9754
      %9787 = vst.msk [vmem:[%s1741 + $0xb3] sm:$0xff] %vm489, %v9755
      %9788 = vst.msk [vmem:[%s1741 + $0xc3] sm:$0xff] %vm489, %v9756
      %9789 = vst.msk [vmem:[%s1741 + $0xcb] sm:$0xff] %vm489, %v9757
      %9790 = vst.msk [vmem:[%s1741 + $0xdb] sm:$0xff] %vm489, %v9758
      %9791 = vst.msk [vmem:[%s1741 + $0xe3] sm:$0xff] %vm489, %v9759
      %9792 = vst.msk [vmem:[%s1741 + $0xf3] sm:$0xff] %vm489, %v9760
      %9793 = vst.msk [vmem:[%s1741 + $0xfb] sm:$0xff] %vm489, %v9761
      %9794 = vst.msk [vmem:[%s1741 + $0x10b] sm:$0xff] %vm489, %v9762
      %9795 = vst.msk [vmem:[%s1741 + $0x113] sm:$0xff] %vm489, %v9763
      %9796 = vst.msk [vmem:[%s1741 + $0x123] sm:$0xff] %vm489, %v9764
      %9797 = vst.msk [vmem:[%s1741 + $0x12b] sm:$0xff] %vm489, %v9765
      %9798 = vst.msk [vmem:[%s1741 + $0x13b] sm:$0xff] %vm489, %v9766
      %9799 = vst.msk [vmem:[%s1741 + $0x143] sm:$0xff] %vm489, %v9767
      %9800 = vst.msk [vmem:[%s1741 + $0x153] sm:$0xff] %vm489, %v9768
      %9801 = vst.msk [vmem:[%s1741 + $0x15b] sm:$0xff] %vm489, %v9769
      %9802 = vst.msk [vmem:[%s1741 + $0x16b] sm:$0xff] %vm489, %v9770
      %9803 = vst.msk [vmem:[%s1741 + $0x173] sm:$0xff] %vm489, %v9771
      %v9804 = vld [vmem:[%s1774 + $0x2] sm:$0xff]
      %v9805 = vld [vmem:[%s1774 + $0xa] sm:$0xff]
      %v9806 = vld [vmem:[%s1774 + $0x12] sm:$0x3]
      %v9807 = vld [vmem:[%s1774 + $0x1a] sm:$0xff]
      %v9808 = vld [vmem:[%s1774 + $0x22] sm:$0xff]
      %v9809 = vld [vmem:[%s1774 + $0x2a] sm:$0x3]
      %v9810 = vld [vmem:[%s1774 + $0x32] sm:$0xff]
      %v9811 = vld [vmem:[%s1774 + $0x3a] sm:$0xff]
      %v9812 = vld [vmem:[%s1774 + $0x42] sm:$0x3]
      %v9813 = vld [vmem:[%s1774 + $0x4a] sm:$0xff]
      %v9814 = vld [vmem:[%s1774 + $0x52] sm:$0xff]
      %v9815 = vld [vmem:[%s1774 + $0x5a] sm:$0x3]
      %v9816 = vld [vmem:[%s1774 + $0x62] sm:$0xff]
      %v9817 = vld [vmem:[%s1774 + $0x6a] sm:$0xff]
      %v9818 = vld [vmem:[%s1774 + $0x72] sm:$0x3]
      %v9819 = vld [vmem:[%s1774 + $0x7a] sm:$0xff]
      %v9820 = vld [vmem:[%s1774 + $0x82] sm:$0xff]
      %v9821 = vld [vmem:[%s1774 + $0x8a] sm:$0x3]
      %v9822 = vld [vmem:[%s1774 + $0x92] sm:$0xff]
      %v9823 = vld [vmem:[%s1774 + $0x9a] sm:$0xff]
      %v9824 = vld [vmem:[%s1774 + $0xa2] sm:$0x3]
      %v9825 = vld [vmem:[%s1774 + $0xaa] sm:$0xff]
      %v9826 = vld [vmem:[%s1774 + $0xb2] sm:$0xff]
      %v9827 = vld [vmem:[%s1774 + $0xba] sm:$0x3]
      %v9828 = vld [vmem:[%s1774 + $0xc2] sm:$0xff]
      %v9829 = vld [vmem:[%s1774 + $0xca] sm:$0xff]
      %v9830 = vld [vmem:[%s1774 + $0xd2] sm:$0x3]
      %v9831 = vld [vmem:[%s1774 + $0xda] sm:$0xff]
      %v9832 = vld [vmem:[%s1774 + $0xe2] sm:$0xff]
      %v9833 = vld [vmem:[%s1774 + $0xea] sm:$0x3]
      %v9834 = vld [vmem:[%s1774 + $0xf2] sm:$0xff]
      %v9835 = vld [vmem:[%s1774 + $0xfa] sm:$0xff]
      %v9836 = vld [vmem:[%s1774 + $0x102] sm:$0x3]
      %v9837 = vld [vmem:[%s1774 + $0x10a] sm:$0xff]
      %v9838 = vld [vmem:[%s1774 + $0x112] sm:$0xff]
      %v9839 = vld [vmem:[%s1774 + $0x11a] sm:$0x3]
      %v9840 = vld [vmem:[%s1774 + $0x122] sm:$0xff]
      %v9841 = vld [vmem:[%s1774 + $0x12a] sm:$0xff]
      %v9842 = vld [vmem:[%s1774 + $0x132] sm:$0x3]
      %v9843 = vld [vmem:[%s1774 + $0x13a] sm:$0xff]
      %v9844 = vld [vmem:[%s1774 + $0x142] sm:$0xff]
      %v9845 = vld [vmem:[%s1774 + $0x14a] sm:$0x3]
      %v9846 = vld [vmem:[%s1774 + $0x152] sm:$0xff]
      %v9847 = vld [vmem:[%s1774 + $0x15a] sm:$0xff]
      %v9848 = vld [vmem:[%s1774 + $0x162] sm:$0x3]
      %v9849 = vld [vmem:[%s1774 + $0x16a] sm:$0xff]
      %v9850 = vld [vmem:[%s1774 + $0x172] sm:$0xff]
      %v9851 = vld [vmem:[%s1774 + $0x17a] sm:$0x3]
      %v9852 = vld [vmem:[%s1774 + $0x182] sm:$0xff]
      %v9853 = vld [vmem:[%s1774 + $0x18a] sm:$0xff]
      %v9854 = vld [vmem:[%s1774 + $0x192] sm:$0x3]
      %v9855 = vld [vmem:[%s1774 + $0x19a] sm:$0xff]
      %v9856 = vld [vmem:[%s1774 + $0x1a2] sm:$0xff]
      %v9857 = vld [vmem:[%s1774 + $0x1aa] sm:$0x3]
      %v9858 = vpack.c.bf16 %v9805, %v9804
      %v9859 = vpack.c.bf16 %v9806, %v9806
      %v9860 = vpack.c.bf16 %v9808, %v9807
      %v9861 = vpack.c.bf16 %v9809, %v9809
      %v9862 = vpack.c.bf16 %v9811, %v9810
      %v9863 = vpack.c.bf16 %v9812, %v9812
      %v9864 = vpack.c.bf16 %v9814, %v9813
      %v9865 = vpack.c.bf16 %v9815, %v9815
      %v9866 = vpack.c.bf16 %v9817, %v9816
      %v9867 = vpack.c.bf16 %v9818, %v9818
      %v9868 = vpack.c.bf16 %v9820, %v9819
      %v9869 = vpack.c.bf16 %v9821, %v9821
      %v9870 = vpack.c.bf16 %v9823, %v9822
      %v9871 = vpack.c.bf16 %v9824, %v9824
      %v9872 = vpack.c.bf16 %v9826, %v9825
      %v9873 = vpack.c.bf16 %v9827, %v9827
      %v9874 = vpack.c.bf16 %v9829, %v9828
      %v9875 = vpack.c.bf16 %v9830, %v9830
      %v9876 = vpack.c.bf16 %v9832, %v9831
      %v9877 = vpack.c.bf16 %v9833, %v9833
      %v9878 = vpack.c.bf16 %v9835, %v9834
      %v9879 = vpack.c.bf16 %v9836, %v9836
      %v9880 = vpack.c.bf16 %v9838, %v9837
      %v9881 = vpack.c.bf16 %v9839, %v9839
      %v9882 = vpack.c.bf16 %v9841, %v9840
      %v9883 = vpack.c.bf16 %v9842, %v9842
      %v9884 = vpack.c.bf16 %v9844, %v9843
      %v9885 = vpack.c.bf16 %v9845, %v9845
      %v9886 = vpack.c.bf16 %v9847, %v9846
      %v9887 = vpack.c.bf16 %v9848, %v9848
      %v9888 = vpack.c.bf16 %v9850, %v9849
      %v9889 = vpack.c.bf16 %v9851, %v9851
      %v9890 = vpack.c.bf16 %v9853, %v9852
      %v9891 = vpack.c.bf16 %v9854, %v9854
      %v9892 = vpack.c.bf16 %v9856, %v9855
      %v9893 = vpack.c.bf16 %v9857, %v9857
      %v9895 = vshrl.u32 %v9858, 16
      %v9897 = vshll.u32 %v9858, 16
      %v9899 = vrot.slane %v9897, 1
      %v9900 = vor.u32 %v9895, %v9899
      %v9902 = vshll.u32 %v9859, 16
      %v9904 = vrot.slane %v9902, 1
      %v9905 = vsel %vm1865, %v9900, %v9904
      %v9907 = vshrl.u32 %v9860, 16
      %v9909 = vshll.u32 %v9860, 16
      %v9911 = vrot.slane %v9909, 1
      %v9912 = vor.u32 %v9907, %v9911
      %v9914 = vshll.u32 %v9861, 16
      %v9916 = vrot.slane %v9914, 1
      %v9917 = vsel %vm1865, %v9912, %v9916
      %v9919 = vshrl.u32 %v9862, 16
      %v9921 = vshll.u32 %v9862, 16
      %v9923 = vrot.slane %v9921, 1
      %v9924 = vor.u32 %v9919, %v9923
      %v9926 = vshll.u32 %v9863, 16
      %v9928 = vrot.slane %v9926, 1
      %v9929 = vsel %vm1865, %v9924, %v9928
      %v9931 = vshrl.u32 %v9864, 16
      %v9933 = vshll.u32 %v9864, 16
      %v9935 = vrot.slane %v9933, 1
      %v9936 = vor.u32 %v9931, %v9935
      %v9938 = vshll.u32 %v9865, 16
      %v9940 = vrot.slane %v9938, 1
      %v9941 = vsel %vm1865, %v9936, %v9940
      %v9943 = vshrl.u32 %v9866, 16
      %v9945 = vshll.u32 %v9866, 16
      %v9947 = vrot.slane %v9945, 1
      %v9948 = vor.u32 %v9943, %v9947
      %v9950 = vshll.u32 %v9867, 16
      %v9952 = vrot.slane %v9950, 1
      %v9953 = vsel %vm1865, %v9948, %v9952
      %v9955 = vshrl.u32 %v9868, 16
      %v9957 = vshll.u32 %v9868, 16
      %v9959 = vrot.slane %v9957, 1
      %v9960 = vor.u32 %v9955, %v9959
      %v9962 = vshll.u32 %v9869, 16
      %v9964 = vrot.slane %v9962, 1
      %v9965 = vsel %vm1865, %v9960, %v9964
      %v9967 = vshrl.u32 %v9870, 16
      %v9969 = vshll.u32 %v9870, 16
      %v9971 = vrot.slane %v9969, 1
      %v9972 = vor.u32 %v9967, %v9971
      %v9974 = vshll.u32 %v9871, 16
      %v9976 = vrot.slane %v9974, 1
      %v9977 = vsel %vm1865, %v9972, %v9976
      %v9979 = vshrl.u32 %v9872, 16
      %v9981 = vshll.u32 %v9872, 16
      %v9983 = vrot.slane %v9981, 1
      %v9984 = vor.u32 %v9979, %v9983
      %v9986 = vshll.u32 %v9873, 16
      %v9988 = vrot.slane %v9986, 1
      %v9989 = vsel %vm1865, %v9984, %v9988
      %v9991 = vshrl.u32 %v9874, 16
      %v9993 = vshll.u32 %v9874, 16
      %v9995 = vrot.slane %v9993, 1
      %v9996 = vor.u32 %v9991, %v9995
      %v9998 = vshll.u32 %v9875, 16
      %v10000 = vrot.slane %v9998, 1
      %v10001 = vsel %vm1865, %v9996, %v10000
      %v10003 = vshrl.u32 %v9876, 16
      %v10005 = vshll.u32 %v9876, 16
      %v10007 = vrot.slane %v10005, 1
      %v10008 = vor.u32 %v10003, %v10007
      %v10010 = vshll.u32 %v9877, 16
      %v10012 = vrot.slane %v10010, 1
      %v10013 = vsel %vm1865, %v10008, %v10012
      %v10015 = vshrl.u32 %v9878, 16
      %v10017 = vshll.u32 %v9878, 16
      %v10019 = vrot.slane %v10017, 1
      %v10020 = vor.u32 %v10015, %v10019
      %v10022 = vshll.u32 %v9879, 16
      %v10024 = vrot.slane %v10022, 1
      %v10025 = vsel %vm1865, %v10020, %v10024
      %v10027 = vshrl.u32 %v9880, 16
      %v10029 = vshll.u32 %v9880, 16
      %v10031 = vrot.slane %v10029, 1
      %v10032 = vor.u32 %v10027, %v10031
      %v10034 = vshll.u32 %v9881, 16
      %v10036 = vrot.slane %v10034, 1
      %v10037 = vsel %vm1865, %v10032, %v10036
      %v10039 = vshrl.u32 %v9882, 16
      %v10041 = vshll.u32 %v9882, 16
      %v10043 = vrot.slane %v10041, 1
      %v10044 = vor.u32 %v10039, %v10043
      %v10046 = vshll.u32 %v9883, 16
      %v10048 = vrot.slane %v10046, 1
      %v10049 = vsel %vm1865, %v10044, %v10048
      %v10051 = vshrl.u32 %v9884, 16
      %v10053 = vshll.u32 %v9884, 16
      %v10055 = vrot.slane %v10053, 1
      %v10056 = vor.u32 %v10051, %v10055
      %v10058 = vshll.u32 %v9885, 16
      %v10060 = vrot.slane %v10058, 1
      %v10061 = vsel %vm1865, %v10056, %v10060
      %v10063 = vshrl.u32 %v9886, 16
      %v10065 = vshll.u32 %v9886, 16
      %v10067 = vrot.slane %v10065, 1
      %v10068 = vor.u32 %v10063, %v10067
      %v10070 = vshll.u32 %v9887, 16
      %v10072 = vrot.slane %v10070, 1
      %v10073 = vsel %vm1865, %v10068, %v10072
      %v10075 = vshrl.u32 %v9888, 16
      %v10077 = vshll.u32 %v9888, 16
      %v10079 = vrot.slane %v10077, 1
      %v10080 = vor.u32 %v10075, %v10079
      %v10082 = vshll.u32 %v9889, 16
      %v10084 = vrot.slane %v10082, 1
      %v10085 = vsel %vm1865, %v10080, %v10084
      %10086 = vrot.lane.b32.xlu0 %v9905, 32
      %v10087 = vpop.permute.xlu0 %10086
      %10088 = vrot.lane.b32.xlu0 %v9917, 32
      %v10089 = vpop.permute.xlu0 %10088
      %10090 = vrot.lane.b32.xlu0 %v9929, 32
      %v10091 = vpop.permute.xlu0 %10090
      %10092 = vrot.lane.b32.xlu0 %v9941, 32
      %v10093 = vpop.permute.xlu0 %10092
      %10094 = vrot.lane.b32.xlu0 %v9953, 32
      %v10095 = vpop.permute.xlu0 %10094
      %10096 = vrot.lane.b32.xlu0 %v9965, 32
      %v10097 = vpop.permute.xlu0 %10096
      %10098 = vrot.lane.b32.xlu0 %v9977, 32
      %v10099 = vpop.permute.xlu0 %10098
      %10100 = vrot.lane.b32.xlu0 %v9989, 32
      %v10101 = vpop.permute.xlu0 %10100
      %10102 = vrot.lane.b32.xlu0 %v10001, 32
      %v10103 = vpop.permute.xlu0 %10102
      %10104 = vrot.lane.b32.xlu0 %v10013, 32
      %v10105 = vpop.permute.xlu0 %10104
      %10106 = vrot.lane.b32.xlu0 %v10025, 32
      %v10107 = vpop.permute.xlu0 %10106
      %10108 = vrot.lane.b32.xlu0 %v10037, 32
      %v10109 = vpop.permute.xlu0 %10108
      %10110 = vrot.lane.b32.xlu0 %v10049, 32
      %v10111 = vpop.permute.xlu0 %10110
      %10112 = vrot.lane.b32.xlu0 %v10061, 32
      %v10113 = vpop.permute.xlu0 %10112
      %10114 = vrot.lane.b32.xlu0 %v10073, 32
      %v10115 = vpop.permute.xlu0 %10114
      %10116 = vrot.lane.b32.xlu0 %v10085, 32
      %v10117 = vpop.permute.xlu0 %10116
      %v10150 = vrot.slane %v9858, 1
      %v10151 = vrot.slane %v9859, 1
      %v10152 = vsel %vm2122, %v10150, %v10151
      %v10153 = vrot.slane %v9860, 1
      %v10154 = vrot.slane %v9861, 1
      %v10155 = vsel %vm2122, %v10153, %v10154
      %v10156 = vrot.slane %v9862, 1
      %v10157 = vrot.slane %v9863, 1
      %v10158 = vsel %vm2122, %v10156, %v10157
      %v10159 = vrot.slane %v9864, 1
      %v10160 = vrot.slane %v9865, 1
      %v10161 = vsel %vm2122, %v10159, %v10160
      %v10162 = vrot.slane %v9866, 1
      %v10163 = vrot.slane %v9867, 1
      %v10164 = vsel %vm2122, %v10162, %v10163
      %v10165 = vrot.slane %v9868, 1
      %v10166 = vrot.slane %v9869, 1
      %v10167 = vsel %vm2122, %v10165, %v10166
      %v10168 = vrot.slane %v9870, 1
      %v10169 = vrot.slane %v9871, 1
      %v10170 = vsel %vm2122, %v10168, %v10169
      %v10171 = vrot.slane %v9872, 1
      %v10172 = vrot.slane %v9873, 1
      %v10173 = vsel %vm2122, %v10171, %v10172
      %v10174 = vrot.slane %v9874, 1
      %v10175 = vrot.slane %v9875, 1
      %v10176 = vsel %vm2122, %v10174, %v10175
      %v10177 = vrot.slane %v9876, 1
      %v10178 = vrot.slane %v9877, 1
      %v10179 = vsel %vm2122, %v10177, %v10178
      %v10180 = vrot.slane %v9878, 1
      %v10181 = vrot.slane %v9879, 1
      %v10182 = vsel %vm2122, %v10180, %v10181
      %v10183 = vrot.slane %v9880, 1
      %v10184 = vrot.slane %v9881, 1
      %v10185 = vsel %vm2122, %v10183, %v10184
      %v10186 = vrot.slane %v9882, 1
      %v10187 = vrot.slane %v9883, 1
      %v10188 = vsel %vm2122, %v10186, %v10187
      %v10189 = vrot.slane %v9884, 1
      %v10190 = vrot.slane %v9885, 1
      %v10191 = vsel %vm2122, %v10189, %v10190
      %v10192 = vrot.slane %v9886, 1
      %v10193 = vrot.slane %v9887, 1
      %v10194 = vsel %vm2122, %v10192, %v10193
      %v10195 = vrot.slane %v9888, 1
      %v10196 = vrot.slane %v9889, 1
      %v10197 = vsel %vm2122, %v10195, %v10196
      %10198 = vrot.lane.b32.xlu0 %v10152, 64
      %v10199 = vpop.permute.xlu0 %10198
      %10200 = vrot.lane.b32.xlu0 %v10155, 64
      %v10201 = vpop.permute.xlu0 %10200
      %10202 = vrot.lane.b32.xlu0 %v10158, 64
      %v10203 = vpop.permute.xlu0 %10202
      %10204 = vrot.lane.b32.xlu0 %v10161, 64
      %v10205 = vpop.permute.xlu0 %10204
      %10206 = vrot.lane.b32.xlu0 %v10164, 64
      %v10207 = vpop.permute.xlu0 %10206
      %10208 = vrot.lane.b32.xlu0 %v10167, 64
      %v10209 = vpop.permute.xlu0 %10208
      %10210 = vrot.lane.b32.xlu0 %v10170, 64
      %v10211 = vpop.permute.xlu0 %10210
      %10212 = vrot.lane.b32.xlu0 %v10173, 64
      %v10213 = vpop.permute.xlu0 %10212
      %10214 = vrot.lane.b32.xlu0 %v10176, 64
      %v10215 = vpop.permute.xlu0 %10214
      %10216 = vrot.lane.b32.xlu0 %v10179, 64
      %v10217 = vpop.permute.xlu0 %10216
      %10218 = vrot.lane.b32.xlu0 %v10182, 64
      %v10219 = vpop.permute.xlu0 %10218
      %10220 = vrot.lane.b32.xlu0 %v10185, 64
      %v10221 = vpop.permute.xlu0 %10220
      %10222 = vrot.lane.b32.xlu0 %v10188, 64
      %v10223 = vpop.permute.xlu0 %10222
      %10224 = vrot.lane.b32.xlu0 %v10191, 64
      %v10225 = vpop.permute.xlu0 %10224
      %10226 = vrot.lane.b32.xlu0 %v10194, 64
      %v10227 = vpop.permute.xlu0 %10226
      %10228 = vrot.lane.b32.xlu0 %v10197, 64
      %v10229 = vpop.permute.xlu0 %10228
      %v10231 = vsel %vm489, %v9858, %v10087
      %v10233 = vsel %vm489, %v9860, %v10089
      %v10235 = vsel %vm489, %v9862, %v10091
      %v10237 = vsel %vm489, %v9864, %v10093
      %v10239 = vsel %vm489, %v9866, %v10095
      %v10241 = vsel %vm489, %v9868, %v10097
      %v10243 = vsel %vm489, %v9870, %v10099
      %v10245 = vsel %vm489, %v9872, %v10101
      %v10247 = vsel %vm489, %v9874, %v10103
      %v10249 = vsel %vm489, %v9876, %v10105
      %v10251 = vsel %vm489, %v9878, %v10107
      %v10253 = vsel %vm489, %v9880, %v10109
      %v10255 = vsel %vm489, %v9882, %v10111
      %v10257 = vsel %vm489, %v9884, %v10113
      %v10259 = vsel %vm489, %v9886, %v10115
      %v10261 = vsel %vm489, %v9888, %v10117
      %v10263 = vsel %vm2235, %v10231, %v10199
      %v10265 = vsel %vm2235, %v10233, %v10201
      %v10267 = vsel %vm2235, %v10235, %v10203
      %v10269 = vsel %vm2235, %v10237, %v10205
      %v10271 = vsel %vm2235, %v10239, %v10207
      %v10273 = vsel %vm2235, %v10241, %v10209
      %v10275 = vsel %vm2235, %v10243, %v10211
      %v10277 = vsel %vm2235, %v10245, %v10213
      %v10279 = vsel %vm2235, %v10247, %v10215
      %v10281 = vsel %vm2235, %v10249, %v10217
      %v10283 = vsel %vm2235, %v10251, %v10219
      %v10285 = vsel %vm2235, %v10253, %v10221
      %v10287 = vsel %vm2235, %v10255, %v10223
      %v10289 = vsel %vm2235, %v10257, %v10225
      %v10291 = vsel %vm2235, %v10259, %v10227
      %v10293 = vsel %vm2235, %v10261, %v10229
      %v10294 = vld [vmem:[%s11] sm:$0xf]
      %v10295 = vld [vmem:[%s11 + $0x4] sm:$0xf]
      %v10296 = vld [vmem:[%s11 + $0x8] sm:$0xf]
      %v10297 = vld [vmem:[%s11 + $0xc] sm:$0xf]
      %v10298 = vld [vmem:[%s11 + $0x10] sm:$0xf]
      %v10299 = vld [vmem:[%s11 + $0x14] sm:$0xf]
      %v10300 = vld [vmem:[%s11 + $0x18] sm:$0xf]
      %v10301 = vld [vmem:[%s11 + $0x1c] sm:$0xf]
      %v10302 = vld [vmem:[%s11 + $0x20] sm:$0xf]
      %v10303 = vld [vmem:[%s11 + $0x24] sm:$0xf]
      %v10304 = vld [vmem:[%s11 + $0x28] sm:$0xf]
      %v10305 = vld [vmem:[%s11 + $0x2c] sm:$0xf]
      %v10307 = vshrl.u32 %v9890, 16
      %v10309 = vshll.u32 %v9890, 16
      %v10311 = vrot.slane %v10309, 1
      %v10312 = vor.u32 %v10307, %v10311
      %v10314 = vshll.u32 %v9891, 16
      %v10316 = vrot.slane %v10314, 1
      %v10317 = vsel %vm1865, %v10312, %v10316
      %10318 = vrot.lane.b32.xlu0 %v10317, 32
      %v10319 = vpop.permute.xlu0 %10318
      %v10322 = vrot.slane %v9890, 1
      %v10323 = vrot.slane %v9891, 1
      %v10324 = vsel %vm2122, %v10322, %v10323
      %10325 = vrot.lane.b32.xlu0 %v10324, 64
      %v10326 = vpop.permute.xlu0 %10325
      %v10328 = vsel %vm489, %v9890, %v10319
      %v10330 = vsel %vm2235, %v10328, %v10326
      %v10331 = vld [vmem:[%s11 + $0x30] sm:$0xf]
      %v10332 = vld [vmem:[%s11 + $0x34] sm:$0xf]
      %v10333 = vld [vmem:[%s11 + $0x38] sm:$0xf]
      %v10334 = vld [vmem:[%s11 + $0x3c] sm:$0xf]
      %v10335 = vld [vmem:[%s11 + $0x40] sm:$0xf]
      %v10336 = vld [vmem:[%s11 + $0x44] sm:$0xf]
      %v10337 = vld [vmem:[%s11 + $0x48] sm:$0xf]
      %v10338 = vld [vmem:[%s11 + $0x4c] sm:$0xf]
      %v10339 = vld [vmem:[%s11 + $0x50] sm:$0xf]
      %v10340 = vld [vmem:[%s11 + $0x54] sm:$0xf]
      %v10341 = vld [vmem:[%s11 + $0x58] sm:$0xf]
      %v10342 = vld [vmem:[%s11 + $0x5c] sm:$0xf]
      %v10355 = vunpack.c.l.b16 %v10331
      %v10356 = vunpack.c.l.b16 %v10332
      %v10357 = vunpack.c.l.b16 %v10333
      %v10358 = vunpack.c.l.b16 %v10334
      %v10359 = vunpack.c.l.b16 %v10335
      %v10360 = vunpack.c.l.b16 %v10336
      %v10361 = vunpack.c.l.b16 %v10337
      %v10362 = vunpack.c.l.b16 %v10338
      %v10363 = vunpack.c.l.b16 %v10339
      %v10364 = vunpack.c.l.b16 %v10340
      %v10365 = vunpack.c.l.b16 %v10341
      %v10366 = vunpack.c.l.b16 %v10342
      %v10367 = vpack.c.b16 %v10356, %v10355
      %v10368 = vpack.c.b16 %v10358, %v10357
      %v10369 = vpack.c.b16 %v10360, %v10359
      %v10370 = vpack.c.b16 %v10362, %v10361
      %v10371 = vpack.c.b16 %v10364, %v10363
      %v10372 = vpack.c.b16 %v10366, %v10365
      %v10379 = vsel %vm2353, %v10265, 0
      %v10381 = vsel %vm2353, %v10267, 0
      %v10383 = vsel %vm2353, %v10269, 0
      %v10385 = vsel %vm2353, %v10271, 0
      %v10387 = vsel %vm2353, %v10273, 0
      %v10389 = vsel %vm2353, %v10275, 0
      %v10391 = vsel %vm2353, %v10277, 0
      %v10393 = vsel %vm2353, %v10279, 0
      %v10395 = vsel %vm2353, %v10281, 0
      %v10397 = vsel %vm2353, %v10283, 0
      %v10399 = vsel %vm2353, %v10285, 0
      %v10401 = vsel %vm2353, %v10287, 0
      %v10403 = vsel %vm2353, %v10289, 0
      %v10405 = vsel %vm2353, %v10291, 0
      %v10407 = vsel %vm2353, %v10293, 0
      %v10409 = vsel %vm2353, %v10330, 0
      %10411 = vmatprep.subr.bf16.mxu0 0
      %10412 = vmatpush1.bf16.msra.mxu0 0
      %10413 = vmatprep.subr.bf16.mxu0 0
      %10414 = vmatpush1.bf16.msra.mxu0 0
      %10415 = vmatprep.subr.bf16.mxu0 0
      %10416 = vmatpush1.bf16.msra.mxu0 %v10372
      %10417 = vmatprep.subr.bf16.mxu0 0
      %10418 = vmatpush1.bf16.msra.mxu0 %v10371
      %10419 = vmatprep.subr.bf16.mxu0 0
      %10420 = vmatpush1.bf16.msra.mxu0 %v10370
      %10421 = vmatprep.subr.bf16.mxu0 0
      %10422 = vmatpush1.bf16.msra.mxu0 %v10369
      %10423 = vmatprep.subr.bf16.mxu0 0
      %10424 = vmatpush1.bf16.msra.mxu0 %v10368
      %10425 = vmatprep.subr.bf16.mxu0 0
      %10426 = vmatpush1.bf16.msra.mxu0 %v10367
      %10427 = vmatprep.subr.bf16.mxu0 0
      %10428 = vmatpush2.bf16.msra.mxu0 0
      %10429 = vmatprep.subr.bf16.mxu0 0
      %10430 = vmatpush2.bf16.msra.mxu0 0
      %10431 = vmatprep.subr.bf16.mxu0 0
      %10432 = vmatpush2.bf16.msra.mxu0 0
      %10433 = vmatprep.subr.bf16.mxu0 0
      %10434 = vmatpush2.bf16.msra.mxu0 0
      %10435 = vmatprep.subr.bf16.mxu0 0
      %10436 = vmatpush2.bf16.msra.mxu0 0
      %10437 = vmatprep.subr.bf16.mxu0 0
      %10438 = vmatpush2.bf16.msra.mxu0 0
      %10439 = vmatprep.subr.bf16.mxu0 0
      %10440 = vmatpush2.bf16.msra.mxu0 0
      %10441 = vmatprep.subr.bf16.mxu0 0
      %10442 = vmatpush2.bf16.msra.mxu0 0
      %10443 = vmatprep.mubr.bf16.mxu0 0
      %10444 = vmatmul.mubr.bf16.gmra.mxu0 %v10379
      %v10445 = vpop.f32.mrf.mxu0
      %v10446 = vadd.f32 0.0, %v10445
      %v10447 = vpop.f32.mrf.mxu0
      %v10448 = vpop.f32.mrf.mxu0
      %v10449 = vadd.f32 0.0, %v10448
      %v10450 = vpop.f32.mrf.mxu0
      %10451 = vmatprep.mubr.bf16.mxu0 0
      %10452 = vmatmul.mubr.bf16.gmra.mxu0 %v10381
      %v10453 = vpop.f32.mrf.mxu0
      %v10454 = vadd.f32 0.0, %v10453
      %v10455 = vpop.f32.mrf.mxu0
      %v10456 = vpop.f32.mrf.mxu0
      %v10457 = vadd.f32 0.0, %v10456
      %v10458 = vpop.f32.mrf.mxu0
      %10459 = vmatprep.mubr.bf16.mxu0 0
      %10460 = vmatmul.mubr.bf16.gmra.mxu0 %v10383
      %v10461 = vpop.f32.mrf.mxu0
      %v10462 = vadd.f32 0.0, %v10461
      %v10463 = vpop.f32.mrf.mxu0
      %v10464 = vpop.f32.mrf.mxu0
      %v10465 = vadd.f32 0.0, %v10464
      %v10466 = vpop.f32.mrf.mxu0
      %10467 = vmatprep.mubr.bf16.mxu0 0
      %10468 = vmatmul.mubr.bf16.gmra.mxu0 %v10385
      %v10469 = vpop.f32.mrf.mxu0
      %v10470 = vadd.f32 0.0, %v10469
      %v10471 = vpop.f32.mrf.mxu0
      %v10472 = vpop.f32.mrf.mxu0
      %v10473 = vadd.f32 0.0, %v10472
      %v10474 = vpop.f32.mrf.mxu0
      %10475 = vmatprep.mubr.bf16.mxu0 0
      %10476 = vmatmul.mubr.bf16.gmra.mxu0 %v10387
      %v10477 = vpop.f32.mrf.mxu0
      %v10478 = vadd.f32 0.0, %v10477
      %v10479 = vpop.f32.mrf.mxu0
      %v10480 = vpop.f32.mrf.mxu0
      %v10481 = vadd.f32 0.0, %v10480
      %v10482 = vpop.f32.mrf.mxu0
      %10483 = vmatprep.mubr.bf16.mxu0 0
      %10484 = vmatmul.mubr.bf16.gmra.mxu0 %v10389
      %v10485 = vpop.f32.mrf.mxu0
      %v10486 = vadd.f32 0.0, %v10485
      %v10487 = vpop.f32.mrf.mxu0
      %v10488 = vpop.f32.mrf.mxu0
      %v10489 = vadd.f32 0.0, %v10488
      %v10490 = vpop.f32.mrf.mxu0
      %10491 = vmatprep.mubr.bf16.mxu0 0
      %10492 = vmatmul.mubr.bf16.gmra.mxu0 %v10391
      %v10493 = vpop.f32.mrf.mxu0
      %v10494 = vadd.f32 0.0, %v10493
      %v10495 = vpop.f32.mrf.mxu0
      %v10496 = vpop.f32.mrf.mxu0
      %v10497 = vadd.f32 0.0, %v10496
      %v10498 = vpop.f32.mrf.mxu0
      %10499 = vmatprep.mubr.bf16.mxu0 0
      %10500 = vmatmul.mubr.bf16.gmra.mxu0 %v10393
      %v10501 = vpop.f32.mrf.mxu0
      %v10502 = vadd.f32 0.0, %v10501
      %v10503 = vpop.f32.mrf.mxu0
      %v10504 = vpop.f32.mrf.mxu0
      %v10505 = vadd.f32 0.0, %v10504
      %v10506 = vpop.f32.mrf.mxu0
      %10507 = vmatprep.mubr.bf16.mxu0 0
      %10508 = vmatmul.mubr.bf16.gmra.mxu0 %v10395
      %v10509 = vpop.f32.mrf.mxu0
      %v10510 = vadd.f32 0.0, %v10509
      %v10511 = vpop.f32.mrf.mxu0
      %v10512 = vpop.f32.mrf.mxu0
      %v10513 = vadd.f32 0.0, %v10512
      %v10514 = vpop.f32.mrf.mxu0
      %10515 = vmatprep.mubr.bf16.mxu0 0
      %10516 = vmatmul.mubr.bf16.gmra.mxu0 %v10397
      %v10517 = vpop.f32.mrf.mxu0
      %v10518 = vadd.f32 0.0, %v10517
      %v10519 = vpop.f32.mrf.mxu0
      %v10520 = vpop.f32.mrf.mxu0
      %v10521 = vadd.f32 0.0, %v10520
      %v10522 = vpop.f32.mrf.mxu0
      %10523 = vmatprep.mubr.bf16.mxu0 0
      %10524 = vmatmul.mubr.bf16.gmra.mxu0 %v10399
      %v10525 = vpop.f32.mrf.mxu0
      %v10526 = vadd.f32 0.0, %v10525
      %v10527 = vpop.f32.mrf.mxu0
      %v10528 = vpop.f32.mrf.mxu0
      %v10529 = vadd.f32 0.0, %v10528
      %v10530 = vpop.f32.mrf.mxu0
      %10531 = vmatprep.mubr.bf16.mxu0 0
      %10532 = vmatmul.mubr.bf16.gmra.mxu0 %v10401
      %v10533 = vpop.f32.mrf.mxu0
      %v10534 = vadd.f32 0.0, %v10533
      %v10535 = vpop.f32.mrf.mxu0
      %v10536 = vpop.f32.mrf.mxu0
      %v10537 = vadd.f32 0.0, %v10536
      %v10538 = vpop.f32.mrf.mxu0
      %10539 = vmatprep.mubr.bf16.mxu0 0
      %10540 = vmatmul.mubr.bf16.gmra.mxu0 %v10403
      %v10541 = vpop.f32.mrf.mxu0
      %v10542 = vadd.f32 0.0, %v10541
      %v10543 = vpop.f32.mrf.mxu0
      %v10544 = vpop.f32.mrf.mxu0
      %v10545 = vadd.f32 0.0, %v10544
      %v10546 = vpop.f32.mrf.mxu0
      %10547 = vmatprep.mubr.bf16.mxu0 0
      %10548 = vmatmul.mubr.bf16.gmra.mxu0 %v10405
      %v10549 = vpop.f32.mrf.mxu0
      %v10550 = vadd.f32 0.0, %v10549
      %v10551 = vpop.f32.mrf.mxu0
      %v10552 = vpop.f32.mrf.mxu0
      %v10553 = vadd.f32 0.0, %v10552
      %v10554 = vpop.f32.mrf.mxu0
      %10555 = vmatprep.mubr.bf16.mxu0 0
      %10556 = vmatmul.mubr.bf16.gmra.mxu0 %v10407
      %v10557 = vpop.f32.mrf.mxu0
      %v10558 = vadd.f32 0.0, %v10557
      %v10559 = vpop.f32.mrf.mxu0
      %v10560 = vpop.f32.mrf.mxu0
      %v10561 = vadd.f32 0.0, %v10560
      %v10562 = vpop.f32.mrf.mxu0
      %10563 = vmatprep.mubr.bf16.mxu0 0
      %10564 = vmatmul.mubr.bf16.gmra.mxu0 %v10409
      %v10565 = vpop.f32.mrf.mxu0
      %v10566 = vadd.f32 0.0, %v10565
      %v10567 = vpop.f32.mrf.mxu0
      %v10568 = vpop.f32.mrf.mxu0
      %v10569 = vadd.f32 0.0, %v10568
      %v10570 = vpop.f32.mrf.mxu0
      %10571 = vdwg.mxu0
      %v10584 = vunpack.c.l.b16 %v10294
      %v10585 = vunpack.c.l.b16 %v10295
      %v10586 = vunpack.c.l.b16 %v10296
      %v10587 = vunpack.c.l.b16 %v10297
      %v10588 = vunpack.c.l.b16 %v10298
      %v10589 = vunpack.c.l.b16 %v10299
      %v10590 = vunpack.c.l.b16 %v10300
      %v10591 = vunpack.c.l.b16 %v10301
      %v10592 = vunpack.c.l.b16 %v10302
      %v10593 = vunpack.c.l.b16 %v10303
      %v10594 = vunpack.c.l.b16 %v10304
      %v10595 = vunpack.c.l.b16 %v10305
      %v10596 = vpack.c.b16 %v10585, %v10584
      %v10597 = vpack.c.b16 %v10587, %v10586
      %v10598 = vpack.c.b16 %v10589, %v10588
      %v10599 = vpack.c.b16 %v10591, %v10590
      %v10600 = vpack.c.b16 %v10593, %v10592
      %v10601 = vpack.c.b16 %v10595, %v10594
      %v10608 = vsel %vm2353, %v10263, 0
      %10610 = vmatprep.subr.bf16.mxu0 0
      %10611 = vmatpush1.bf16.msra.mxu0 0
      %10612 = vmatprep.subr.bf16.mxu0 0
      %10613 = vmatpush1.bf16.msra.mxu0 0
      %10614 = vmatprep.subr.bf16.mxu0 0
      %10615 = vmatpush1.bf16.msra.mxu0 %v10601
      %10616 = vmatprep.subr.bf16.mxu0 0
      %10617 = vmatpush1.bf16.msra.mxu0 %v10600
      %10618 = vmatprep.subr.bf16.mxu0 0
      %10619 = vmatpush1.bf16.msra.mxu0 %v10599
      %10620 = vmatprep.subr.bf16.mxu0 0
      %10621 = vmatpush1.bf16.msra.mxu0 %v10598
      %10622 = vmatprep.subr.bf16.mxu0 0
      %10623 = vmatpush1.bf16.msra.mxu0 %v10597
      %10624 = vmatprep.subr.bf16.mxu0 0
      %10625 = vmatpush1.bf16.msra.mxu0 %v10596
      %10626 = vmatprep.subr.bf16.mxu0 0
      %10627 = vmatpush2.bf16.msra.mxu0 0
      %10628 = vmatprep.subr.bf16.mxu0 0
      %10629 = vmatpush2.bf16.msra.mxu0 0
      %10630 = vmatprep.subr.bf16.mxu0 0
      %10631 = vmatpush2.bf16.msra.mxu0 0
      %10632 = vmatprep.subr.bf16.mxu0 0
      %10633 = vmatpush2.bf16.msra.mxu0 0
      %10634 = vmatprep.subr.bf16.mxu0 0
      %10635 = vmatpush2.bf16.msra.mxu0 0
      %10636 = vmatprep.subr.bf16.mxu0 0
      %10637 = vmatpush2.bf16.msra.mxu0 0
      %10638 = vmatprep.subr.bf16.mxu0 0
      %10639 = vmatpush2.bf16.msra.mxu0 0
      %10640 = vmatprep.subr.bf16.mxu0 0
      %10641 = vmatpush2.bf16.msra.mxu0 0
      %10642 = vmatprep.mubr.bf16.mxu0 0
      %10643 = vmatmul.mubr.bf16.gmra.mxu0 %v10608
      %v10644 = vpop.f32.mrf.mxu0
      %v10645 = vadd.f32 %v10446, %v10644
      %v10646 = vpop.f32.mrf.mxu0
      %v10647 = vpop.f32.mrf.mxu0
      %v10648 = vadd.f32 %v10449, %v10647
      %v10649 = vpop.f32.mrf.mxu0
      %10650 = vmatprep.mubr.bf16.mxu0 0
      %10651 = vmatmul.mubr.bf16.gmra.mxu0 %v10379
      %v10652 = vpop.f32.mrf.mxu0
      %v10653 = vadd.f32 %v10454, %v10652
      %v10654 = vpop.f32.mrf.mxu0
      %v10655 = vpop.f32.mrf.mxu0
      %v10656 = vadd.f32 %v10457, %v10655
      %v10657 = vpop.f32.mrf.mxu0
      %10658 = vmatprep.mubr.bf16.mxu0 0
      %10659 = vmatmul.mubr.bf16.gmra.mxu0 %v10381
      %v10660 = vpop.f32.mrf.mxu0
      %v10661 = vadd.f32 %v10462, %v10660
      %v10662 = vpop.f32.mrf.mxu0
      %v10663 = vpop.f32.mrf.mxu0
      %v10664 = vadd.f32 %v10465, %v10663
      %v10665 = vpop.f32.mrf.mxu0
      %10666 = vmatprep.mubr.bf16.mxu0 0
      %10667 = vmatmul.mubr.bf16.gmra.mxu0 %v10383
      %v10668 = vpop.f32.mrf.mxu0
      %v10669 = vadd.f32 %v10470, %v10668
      %v10670 = vpop.f32.mrf.mxu0
      %v10671 = vpop.f32.mrf.mxu0
      %v10672 = vadd.f32 %v10473, %v10671
      %v10673 = vpop.f32.mrf.mxu0
      %10674 = vmatprep.mubr.bf16.mxu0 0
      %10675 = vmatmul.mubr.bf16.gmra.mxu0 %v10385
      %v10676 = vpop.f32.mrf.mxu0
      %v10677 = vadd.f32 %v10478, %v10676
      %v10678 = vpop.f32.mrf.mxu0
      %v10679 = vpop.f32.mrf.mxu0
      %v10680 = vadd.f32 %v10481, %v10679
      %v10681 = vpop.f32.mrf.mxu0
      %10682 = vmatprep.mubr.bf16.mxu0 0
      %10683 = vmatmul.mubr.bf16.gmra.mxu0 %v10387
      %v10684 = vpop.f32.mrf.mxu0
      %v10685 = vadd.f32 %v10486, %v10684
      %v10686 = vpop.f32.mrf.mxu0
      %v10687 = vpop.f32.mrf.mxu0
      %v10688 = vadd.f32 %v10489, %v10687
      %v10689 = vpop.f32.mrf.mxu0
      %10690 = vmatprep.mubr.bf16.mxu0 0
      %10691 = vmatmul.mubr.bf16.gmra.mxu0 %v10389
      %v10692 = vpop.f32.mrf.mxu0
      %v10693 = vadd.f32 %v10494, %v10692
      %v10694 = vpop.f32.mrf.mxu0
      %v10695 = vpop.f32.mrf.mxu0
      %v10696 = vadd.f32 %v10497, %v10695
      %v10697 = vpop.f32.mrf.mxu0
      %10698 = vmatprep.mubr.bf16.mxu0 0
      %10699 = vmatmul.mubr.bf16.gmra.mxu0 %v10391
      %v10700 = vpop.f32.mrf.mxu0
      %v10701 = vadd.f32 %v10502, %v10700
      %v10702 = vpop.f32.mrf.mxu0
      %v10703 = vpop.f32.mrf.mxu0
      %v10704 = vadd.f32 %v10505, %v10703
      %v10705 = vpop.f32.mrf.mxu0
      %10706 = vmatprep.mubr.bf16.mxu0 0
      %10707 = vmatmul.mubr.bf16.gmra.mxu0 %v10393
      %v10708 = vpop.f32.mrf.mxu0
      %v10709 = vadd.f32 %v10510, %v10708
      %v10710 = vpop.f32.mrf.mxu0
      %v10711 = vpop.f32.mrf.mxu0
      %v10712 = vadd.f32 %v10513, %v10711
      %v10713 = vpop.f32.mrf.mxu0
      %10714 = vmatprep.mubr.bf16.mxu0 0
      %10715 = vmatmul.mubr.bf16.gmra.mxu0 %v10395
      %v10716 = vpop.f32.mrf.mxu0
      %v10717 = vadd.f32 %v10518, %v10716
      %v10718 = vpop.f32.mrf.mxu0
      %v10719 = vpop.f32.mrf.mxu0
      %v10720 = vadd.f32 %v10521, %v10719
      %v10721 = vpop.f32.mrf.mxu0
      %10722 = vmatprep.mubr.bf16.mxu0 0
      %10723 = vmatmul.mubr.bf16.gmra.mxu0 %v10397
      %v10724 = vpop.f32.mrf.mxu0
      %v10725 = vadd.f32 %v10526, %v10724
      %v10726 = vpop.f32.mrf.mxu0
      %v10727 = vpop.f32.mrf.mxu0
      %v10728 = vadd.f32 %v10529, %v10727
      %v10729 = vpop.f32.mrf.mxu0
      %10730 = vmatprep.mubr.bf16.mxu0 0
      %10731 = vmatmul.mubr.bf16.gmra.mxu0 %v10399
      %v10732 = vpop.f32.mrf.mxu0
      %v10733 = vadd.f32 %v10534, %v10732
      %v10734 = vpop.f32.mrf.mxu0
      %v10735 = vpop.f32.mrf.mxu0
      %v10736 = vadd.f32 %v10537, %v10735
      %v10737 = vpop.f32.mrf.mxu0
      %10738 = vmatprep.mubr.bf16.mxu0 0
      %10739 = vmatmul.mubr.bf16.gmra.mxu0 %v10401
      %v10740 = vpop.f32.mrf.mxu0
      %v10741 = vadd.f32 %v10542, %v10740
      %v10742 = vpop.f32.mrf.mxu0
      %v10743 = vpop.f32.mrf.mxu0
      %v10744 = vadd.f32 %v10545, %v10743
      %v10745 = vpop.f32.mrf.mxu0
      %10746 = vmatprep.mubr.bf16.mxu0 0
      %10747 = vmatmul.mubr.bf16.gmra.mxu0 %v10403
      %v10748 = vpop.f32.mrf.mxu0
      %v10749 = vadd.f32 %v10550, %v10748
      %v10750 = vpop.f32.mrf.mxu0
      %v10751 = vpop.f32.mrf.mxu0
      %v10752 = vadd.f32 %v10553, %v10751
      %v10753 = vpop.f32.mrf.mxu0
      %10754 = vmatprep.mubr.bf16.mxu0 0
      %10755 = vmatmul.mubr.bf16.gmra.mxu0 %v10405
      %v10756 = vpop.f32.mrf.mxu0
      %v10757 = vadd.f32 %v10558, %v10756
      %v10758 = vpop.f32.mrf.mxu0
      %v10759 = vpop.f32.mrf.mxu0
      %v10760 = vadd.f32 %v10561, %v10759
      %v10761 = vpop.f32.mrf.mxu0
      %10762 = vmatprep.mubr.bf16.mxu0 0
      %10763 = vmatmul.mubr.bf16.gmra.mxu0 %v10407
      %v10764 = vpop.f32.mrf.mxu0
      %v10765 = vadd.f32 %v10566, %v10764
      %v10766 = vpop.f32.mrf.mxu0
      %v10767 = vpop.f32.mrf.mxu0
      %v10768 = vadd.f32 %v10569, %v10767
      %v10769 = vpop.f32.mrf.mxu0
      %10770 = vdwg.mxu0
      %v10772 = vshrl.u32 %v9892, 16
      %v10774 = vshll.u32 %v9892, 16
      %v10776 = vrot.slane %v10774, 1
      %v10777 = vor.u32 %v10772, %v10776
      %v10779 = vshll.u32 %v9893, 16
      %v10781 = vrot.slane %v10779, 1
      %v10782 = vsel %vm1865, %v10777, %v10781
      %10783 = vrot.lane.b32.xlu0 %v10782, 32
      %v10784 = vpop.permute.xlu0 %10783
      %v10787 = vrot.slane %v9892, 1
      %v10788 = vrot.slane %v9893, 1
      %v10789 = vsel %vm2122, %v10787, %v10788
      %10790 = vrot.lane.b32.xlu0 %v10789, 64
      %v10791 = vpop.permute.xlu0 %10790
      %v10793 = vsel %vm489, %v9892, %v10784
      %v10795 = vsel %vm2235, %v10793, %v10791
      %v10796 = vld [vmem:[%s11 + $0x60] sm:$0xf]
      %v10797 = vld [vmem:[%s11 + $0x64] sm:$0xf]
      %v10798 = vld [vmem:[%s11 + $0x68] sm:$0xf]
      %v10799 = vld [vmem:[%s11 + $0x6c] sm:$0xf]
      %v10800 = vld [vmem:[%s11 + $0x70] sm:$0xf]
      %v10801 = vld [vmem:[%s11 + $0x74] sm:$0xf]
      %v10802 = vld [vmem:[%s11 + $0x78] sm:$0xf]
      %v10803 = vld [vmem:[%s11 + $0x7c] sm:$0xf]
      %v10804 = vld [vmem:[%s11 + $0x80] sm:$0xf]
      %v10805 = vld [vmem:[%s11 + $0x84] sm:$0xf]
      %v10806 = vld [vmem:[%s11 + $0x88] sm:$0xf]
      %v10807 = vld [vmem:[%s11 + $0x8c] sm:$0xf]
      %v10820 = vunpack.c.l.b16 %v10796
      %v10821 = vunpack.c.l.b16 %v10797
      %v10822 = vunpack.c.l.b16 %v10798
      %v10823 = vunpack.c.l.b16 %v10799
      %v10824 = vunpack.c.l.b16 %v10800
      %v10825 = vunpack.c.l.b16 %v10801
      %v10826 = vunpack.c.l.b16 %v10802
      %v10827 = vunpack.c.l.b16 %v10803
      %v10828 = vunpack.c.l.b16 %v10804
      %v10829 = vunpack.c.l.b16 %v10805
      %v10830 = vunpack.c.l.b16 %v10806
      %v10831 = vunpack.c.l.b16 %v10807
      %v10832 = vpack.c.b16 %v10821, %v10820
      %v10833 = vpack.c.b16 %v10823, %v10822
      %v10834 = vpack.c.b16 %v10825, %v10824
      %v10835 = vpack.c.b16 %v10827, %v10826
      %v10836 = vpack.c.b16 %v10829, %v10828
      %v10837 = vpack.c.b16 %v10831, %v10830
      %v10844 = vsel %vm2353, %v10795, 0
      %10846 = vmatprep.subr.bf16.mxu0 0
      %10847 = vmatpush1.bf16.msra.mxu0 0
      %10848 = vmatprep.subr.bf16.mxu0 0
      %10849 = vmatpush1.bf16.msra.mxu0 0
      %10850 = vmatprep.subr.bf16.mxu0 0
      %10851 = vmatpush1.bf16.msra.mxu0 %v10837
      %10852 = vmatprep.subr.bf16.mxu0 0
      %10853 = vmatpush1.bf16.msra.mxu0 %v10836
      %10854 = vmatprep.subr.bf16.mxu0 0
      %10855 = vmatpush1.bf16.msra.mxu0 %v10835
      %10856 = vmatprep.subr.bf16.mxu0 0
      %10857 = vmatpush1.bf16.msra.mxu0 %v10834
      %10858 = vmatprep.subr.bf16.mxu0 0
      %10859 = vmatpush1.bf16.msra.mxu0 %v10833
      %10860 = vmatprep.subr.bf16.mxu0 0
      %10861 = vmatpush1.bf16.msra.mxu0 %v10832
      %10862 = vmatprep.subr.bf16.mxu0 0
      %10863 = vmatpush2.bf16.msra.mxu0 0
      %10864 = vmatprep.subr.bf16.mxu0 0
      %10865 = vmatpush2.bf16.msra.mxu0 0
      %10866 = vmatprep.subr.bf16.mxu0 0
      %10867 = vmatpush2.bf16.msra.mxu0 0
      %10868 = vmatprep.subr.bf16.mxu0 0
      %10869 = vmatpush2.bf16.msra.mxu0 0
      %10870 = vmatprep.subr.bf16.mxu0 0
      %10871 = vmatpush2.bf16.msra.mxu0 0
      %10872 = vmatprep.subr.bf16.mxu0 0
      %10873 = vmatpush2.bf16.msra.mxu0 0
      %10874 = vmatprep.subr.bf16.mxu0 0
      %10875 = vmatpush2.bf16.msra.mxu0 0
      %10876 = vmatprep.subr.bf16.mxu0 0
      %10877 = vmatpush2.bf16.msra.mxu0 0
      %10878 = vmatprep.mubr.bf16.mxu0 0
      %10879 = vmatmul.mubr.bf16.gmra.mxu0 %v10381
      %v10880 = vpop.f32.mrf.mxu0
      %v10881 = vadd.f32 0.0, %v10880
      %v10882 = vpop.f32.mrf.mxu0
      %v10883 = vpop.f32.mrf.mxu0
      %v10884 = vadd.f32 0.0, %v10883
      %v10885 = vpop.f32.mrf.mxu0
      %10886 = vmatprep.mubr.bf16.mxu0 0
      %10887 = vmatmul.mubr.bf16.gmra.mxu0 %v10383
      %v10888 = vpop.f32.mrf.mxu0
      %v10889 = vadd.f32 0.0, %v10888
      %v10890 = vpop.f32.mrf.mxu0
      %v10891 = vpop.f32.mrf.mxu0
      %v10892 = vadd.f32 0.0, %v10891
      %v10893 = vpop.f32.mrf.mxu0
      %10894 = vmatprep.mubr.bf16.mxu0 0
      %10895 = vmatmul.mubr.bf16.gmra.mxu0 %v10385
      %v10896 = vpop.f32.mrf.mxu0
      %v10897 = vadd.f32 0.0, %v10896
      %v10898 = vpop.f32.mrf.mxu0
      %v10899 = vpop.f32.mrf.mxu0
      %v10900 = vadd.f32 0.0, %v10899
      %v10901 = vpop.f32.mrf.mxu0
      %10902 = vmatprep.mubr.bf16.mxu0 0
      %10903 = vmatmul.mubr.bf16.gmra.mxu0 %v10387
      %v10904 = vpop.f32.mrf.mxu0
      %v10905 = vadd.f32 0.0, %v10904
      %v10906 = vpop.f32.mrf.mxu0
      %v10907 = vpop.f32.mrf.mxu0
      %v10908 = vadd.f32 0.0, %v10907
      %v10909 = vpop.f32.mrf.mxu0
      %10910 = vmatprep.mubr.bf16.mxu0 0
      %10911 = vmatmul.mubr.bf16.gmra.mxu0 %v10389
      %v10912 = vpop.f32.mrf.mxu0
      %v10913 = vadd.f32 0.0, %v10912
      %v10914 = vpop.f32.mrf.mxu0
      %v10915 = vpop.f32.mrf.mxu0
      %v10916 = vadd.f32 0.0, %v10915
      %v10917 = vpop.f32.mrf.mxu0
      %10918 = vmatprep.mubr.bf16.mxu0 0
      %10919 = vmatmul.mubr.bf16.gmra.mxu0 %v10391
      %v10920 = vpop.f32.mrf.mxu0
      %v10921 = vadd.f32 0.0, %v10920
      %v10922 = vpop.f32.mrf.mxu0
      %v10923 = vpop.f32.mrf.mxu0
      %v10924 = vadd.f32 0.0, %v10923
      %v10925 = vpop.f32.mrf.mxu0
      %10926 = vmatprep.mubr.bf16.mxu0 0
      %10927 = vmatmul.mubr.bf16.gmra.mxu0 %v10393
      %v10928 = vpop.f32.mrf.mxu0
      %v10929 = vadd.f32 0.0, %v10928
      %v10930 = vpop.f32.mrf.mxu0
      %v10931 = vpop.f32.mrf.mxu0
      %v10932 = vadd.f32 0.0, %v10931
      %v10933 = vpop.f32.mrf.mxu0
      %10934 = vmatprep.mubr.bf16.mxu0 0
      %10935 = vmatmul.mubr.bf16.gmra.mxu0 %v10395
      %v10936 = vpop.f32.mrf.mxu0
      %v10937 = vadd.f32 0.0, %v10936
      %v10938 = vpop.f32.mrf.mxu0
      %v10939 = vpop.f32.mrf.mxu0
      %v10940 = vadd.f32 0.0, %v10939
      %v10941 = vpop.f32.mrf.mxu0
      %10942 = vmatprep.mubr.bf16.mxu0 0
      %10943 = vmatmul.mubr.bf16.gmra.mxu0 %v10397
      %v10944 = vpop.f32.mrf.mxu0
      %v10945 = vadd.f32 0.0, %v10944
      %v10946 = vpop.f32.mrf.mxu0
      %v10947 = vpop.f32.mrf.mxu0
      %v10948 = vadd.f32 0.0, %v10947
      %v10949 = vpop.f32.mrf.mxu0
      %10950 = vmatprep.mubr.bf16.mxu0 0
      %10951 = vmatmul.mubr.bf16.gmra.mxu0 %v10399
      %v10952 = vpop.f32.mrf.mxu0
      %v10953 = vadd.f32 0.0, %v10952
      %v10954 = vpop.f32.mrf.mxu0
      %v10955 = vpop.f32.mrf.mxu0
      %v10956 = vadd.f32 0.0, %v10955
      %v10957 = vpop.f32.mrf.mxu0
      %10958 = vmatprep.mubr.bf16.mxu0 0
      %10959 = vmatmul.mubr.bf16.gmra.mxu0 %v10401
      %v10960 = vpop.f32.mrf.mxu0
      %v10961 = vadd.f32 0.0, %v10960
      %v10962 = vpop.f32.mrf.mxu0
      %v10963 = vpop.f32.mrf.mxu0
      %v10964 = vadd.f32 0.0, %v10963
      %v10965 = vpop.f32.mrf.mxu0
      %10966 = vmatprep.mubr.bf16.mxu0 0
      %10967 = vmatmul.mubr.bf16.gmra.mxu0 %v10403
      %v10968 = vpop.f32.mrf.mxu0
      %v10969 = vadd.f32 0.0, %v10968
      %v10970 = vpop.f32.mrf.mxu0
      %v10971 = vpop.f32.mrf.mxu0
      %v10972 = vadd.f32 0.0, %v10971
      %v10973 = vpop.f32.mrf.mxu0
      %10974 = vmatprep.mubr.bf16.mxu0 0
      %10975 = vmatmul.mubr.bf16.gmra.mxu0 %v10405
      %v10976 = vpop.f32.mrf.mxu0
      %v10977 = vadd.f32 0.0, %v10976
      %v10978 = vpop.f32.mrf.mxu0
      %v10979 = vpop.f32.mrf.mxu0
      %v10980 = vadd.f32 0.0, %v10979
      %v10981 = vpop.f32.mrf.mxu0
      %10982 = vmatprep.mubr.bf16.mxu0 0
      %10983 = vmatmul.mubr.bf16.gmra.mxu0 %v10407
      %v10984 = vpop.f32.mrf.mxu0
      %v10985 = vadd.f32 0.0, %v10984
      %v10986 = vpop.f32.mrf.mxu0
      %v10987 = vpop.f32.mrf.mxu0
      %v10988 = vadd.f32 0.0, %v10987
      %v10989 = vpop.f32.mrf.mxu0
      %10990 = vmatprep.mubr.bf16.mxu0 0
      %10991 = vmatmul.mubr.bf16.gmra.mxu0 %v10409
      %v10992 = vpop.f32.mrf.mxu0
      %v10993 = vadd.f32 0.0, %v10992
      %v10994 = vpop.f32.mrf.mxu0
      %v10995 = vpop.f32.mrf.mxu0
      %v10996 = vadd.f32 0.0, %v10995
      %v10997 = vpop.f32.mrf.mxu0
      %10998 = vmatprep.mubr.bf16.mxu0 0
      %10999 = vmatmul.mubr.bf16.gmra.mxu0 %v10844
      %v11000 = vpop.f32.mrf.mxu0
      %v11001 = vadd.f32 0.0, %v11000
      %v11002 = vpop.f32.mrf.mxu0
      %v11003 = vpop.f32.mrf.mxu0
      %v11004 = vadd.f32 0.0, %v11003
      %v11005 = vpop.f32.mrf.mxu0
      %11006 = vdwg.mxu0
      %v11007 = vadd.f32 %v10645, %v10881
      %v11008 = vadd.f32 %v10648, %v10884
      %v11009 = vadd.f32 %v10653, %v10889
      %v11010 = vadd.f32 %v10656, %v10892
      %v11011 = vadd.f32 %v10661, %v10897
      %v11012 = vadd.f32 %v10664, %v10900
      %v11013 = vadd.f32 %v10669, %v10905
      %v11014 = vadd.f32 %v10672, %v10908
      %v11015 = vadd.f32 %v10677, %v10913
      %v11016 = vadd.f32 %v10680, %v10916
      %v11017 = vadd.f32 %v10685, %v10921
      %v11018 = vadd.f32 %v10688, %v10924
      %v11019 = vadd.f32 %v10693, %v10929
      %v11020 = vadd.f32 %v10696, %v10932
      %v11021 = vadd.f32 %v10701, %v10937
      %v11022 = vadd.f32 %v10704, %v10940
      %v11023 = vadd.f32 %v10709, %v10945
      %v11024 = vadd.f32 %v10712, %v10948
      %v11025 = vadd.f32 %v10717, %v10953
      %v11026 = vadd.f32 %v10720, %v10956
      %v11027 = vadd.f32 %v10725, %v10961
      %v11028 = vadd.f32 %v10728, %v10964
      %v11029 = vadd.f32 %v10733, %v10969
      %v11030 = vadd.f32 %v10736, %v10972
      %v11031 = vadd.f32 %v10741, %v10977
      %v11032 = vadd.f32 %v10744, %v10980
      %v11033 = vadd.f32 %v10749, %v10985
      %v11034 = vadd.f32 %v10752, %v10988
      %v11035 = vadd.f32 %v10757, %v10993
      %v11036 = vadd.f32 %v10760, %v10996
      %v11037 = vadd.f32 %v10765, %v11001
      %v11038 = vadd.f32 %v10768, %v11004
      %v11039 = vld [vmem:[%s12] sm:$0x1]
      %v11041 = vlaneseq
      %v11042 = vshrl.u32 %v11041, 7
      %v11043 = vsub.s32 0, %v11042
      %v11044 = vrot.slane %v11039, %v11043
      %v11046 = vadd.f32 %v11007, %v11044
      %v11047 = vadd.f32 %v11008, %v11044
      %v11048 = vadd.f32 %v11009, %v11044
      %v11049 = vadd.f32 %v11010, %v11044
      %v11050 = vadd.f32 %v11011, %v11044
      %v11051 = vadd.f32 %v11012, %v11044
      %v11052 = vadd.f32 %v11013, %v11044
      %v11053 = vadd.f32 %v11014, %v11044
      %v11054 = vadd.f32 %v11015, %v11044
      %v11055 = vadd.f32 %v11016, %v11044
      %v11056 = vadd.f32 %v11017, %v11044
      %v11057 = vadd.f32 %v11018, %v11044
      %v11058 = vadd.f32 %v11019, %v11044
      %v11059 = vadd.f32 %v11020, %v11044
      %v11060 = vadd.f32 %v11021, %v11044
      %v11061 = vadd.f32 %v11022, %v11044
      %v11062 = vadd.f32 %v11023, %v11044
      %v11063 = vadd.f32 %v11024, %v11044
      %v11064 = vadd.f32 %v11025, %v11044
      %v11065 = vadd.f32 %v11026, %v11044
      %v11066 = vadd.f32 %v11027, %v11044
      %v11067 = vadd.f32 %v11028, %v11044
      %v11068 = vadd.f32 %v11029, %v11044
      %v11069 = vadd.f32 %v11030, %v11044
      %v11070 = vadd.f32 %v11031, %v11044
      %v11071 = vadd.f32 %v11032, %v11044
      %v11072 = vadd.f32 %v11033, %v11044
      %v11073 = vadd.f32 %v11034, %v11044
      %v11074 = vadd.f32 %v11035, %v11044
      %v11075 = vadd.f32 %v11036, %v11044
      %v11076 = vadd.f32 %v11037, %v11044
      %v11077 = vadd.f32 %v11038, %v11044
      %v11078 = vmax.f32 %v11046, 0.0
      %v11079 = vmax.f32 %v11047, 0.0
      %v11080 = vmax.f32 %v11048, 0.0
      %v11081 = vmax.f32 %v11049, 0.0
      %v11082 = vmax.f32 %v11050, 0.0
      %v11083 = vmax.f32 %v11051, 0.0
      %v11084 = vmax.f32 %v11052, 0.0
      %v11085 = vmax.f32 %v11053, 0.0
      %v11086 = vmax.f32 %v11054, 0.0
      %v11087 = vmax.f32 %v11055, 0.0
      %v11088 = vmax.f32 %v11056, 0.0
      %v11089 = vmax.f32 %v11057, 0.0
      %v11090 = vmax.f32 %v11058, 0.0
      %v11091 = vmax.f32 %v11059, 0.0
      %v11092 = vmax.f32 %v11060, 0.0
      %v11093 = vmax.f32 %v11061, 0.0
      %v11094 = vmax.f32 %v11062, 0.0
      %v11095 = vmax.f32 %v11063, 0.0
      %v11096 = vmax.f32 %v11064, 0.0
      %v11097 = vmax.f32 %v11065, 0.0
      %v11098 = vmax.f32 %v11066, 0.0
      %v11099 = vmax.f32 %v11067, 0.0
      %v11100 = vmax.f32 %v11068, 0.0
      %v11101 = vmax.f32 %v11069, 0.0
      %v11102 = vmax.f32 %v11070, 0.0
      %v11103 = vmax.f32 %v11071, 0.0
      %v11104 = vmax.f32 %v11072, 0.0
      %v11105 = vmax.f32 %v11073, 0.0
      %v11106 = vmax.f32 %v11074, 0.0
      %v11107 = vmax.f32 %v11075, 0.0
      %v11108 = vmax.f32 %v11076, 0.0
      %v11109 = vmax.f32 %v11077, 0.0
      %v11110 = vld [vmem:[%s13] sm:$0x1]
      %v11112 = vlaneseq
      %v11113 = vshrl.u32 %v11112, 7
      %v11114 = vsub.s32 0, %v11113
      %v11115 = vrot.slane %v11110, %v11114
      %v11117 = vmul.f32 %v11078, %v11115
      %v11118 = vmul.f32 %v11079, %v11115
      %v11119 = vmul.f32 %v11080, %v11115
      %v11120 = vmul.f32 %v11081, %v11115
      %v11121 = vmul.f32 %v11082, %v11115
      %v11122 = vmul.f32 %v11083, %v11115
      %v11123 = vmul.f32 %v11084, %v11115
      %v11124 = vmul.f32 %v11085, %v11115
      %v11125 = vmul.f32 %v11086, %v11115
      %v11126 = vmul.f32 %v11087, %v11115
      %v11127 = vmul.f32 %v11088, %v11115
      %v11128 = vmul.f32 %v11089, %v11115
      %v11129 = vmul.f32 %v11090, %v11115
      %v11130 = vmul.f32 %v11091, %v11115
      %v11131 = vmul.f32 %v11092, %v11115
      %v11132 = vmul.f32 %v11093, %v11115
      %v11133 = vmul.f32 %v11094, %v11115
      %v11134 = vmul.f32 %v11095, %v11115
      %v11135 = vmul.f32 %v11096, %v11115
      %v11136 = vmul.f32 %v11097, %v11115
      %v11137 = vmul.f32 %v11098, %v11115
      %v11138 = vmul.f32 %v11099, %v11115
      %v11139 = vmul.f32 %v11100, %v11115
      %v11140 = vmul.f32 %v11101, %v11115
      %v11141 = vmul.f32 %v11102, %v11115
      %v11142 = vmul.f32 %v11103, %v11115
      %v11143 = vmul.f32 %v11104, %v11115
      %v11144 = vmul.f32 %v11105, %v11115
      %v11145 = vmul.f32 %v11106, %v11115
      %v11146 = vmul.f32 %v11107, %v11115
      %v11147 = vmul.f32 %v11108, %v11115
      %v11148 = vmul.f32 %v11109, %v11115
      %v11149 = vsel %vm489, %v11117, 0.0
      %11150 = vadd.xlane.f32.xlu0 %v11149
      %v11151 = vpop.xlane.xlu0 %11150
      %v11152 = vsel %vm489, %v11118, 0.0
      %11153 = vadd.xlane.f32.xlu0 %v11152
      %v11154 = vpop.xlane.xlu0 %11153
      %v11155 = vsel %vm489, %v11119, 0.0
      %11156 = vadd.xlane.f32.xlu0 %v11155
      %v11157 = vpop.xlane.xlu0 %11156
      %v11158 = vsel %vm489, %v11120, 0.0
      %11159 = vadd.xlane.f32.xlu0 %v11158
      %v11160 = vpop.xlane.xlu0 %11159
      %v11161 = vsel %vm489, %v11121, 0.0
      %11162 = vadd.xlane.f32.xlu0 %v11161
      %v11163 = vpop.xlane.xlu0 %11162
      %v11164 = vsel %vm489, %v11122, 0.0
      %11165 = vadd.xlane.f32.xlu0 %v11164
      %v11166 = vpop.xlane.xlu0 %11165
      %v11167 = vsel %vm489, %v11123, 0.0
      %11168 = vadd.xlane.f32.xlu0 %v11167
      %v11169 = vpop.xlane.xlu0 %11168
      %v11170 = vsel %vm489, %v11124, 0.0
      %11171 = vadd.xlane.f32.xlu0 %v11170
      %v11172 = vpop.xlane.xlu0 %11171
      %v11173 = vsel %vm489, %v11125, 0.0
      %11174 = vadd.xlane.f32.xlu0 %v11173
      %v11175 = vpop.xlane.xlu0 %11174
      %v11176 = vsel %vm489, %v11126, 0.0
      %11177 = vadd.xlane.f32.xlu0 %v11176
      %v11178 = vpop.xlane.xlu0 %11177
      %v11179 = vsel %vm489, %v11127, 0.0
      %11180 = vadd.xlane.f32.xlu0 %v11179
      %v11181 = vpop.xlane.xlu0 %11180
      %v11182 = vsel %vm489, %v11128, 0.0
      %11183 = vadd.xlane.f32.xlu0 %v11182
      %v11184 = vpop.xlane.xlu0 %11183
      %v11185 = vsel %vm489, %v11129, 0.0
      %11186 = vadd.xlane.f32.xlu0 %v11185
      %v11187 = vpop.xlane.xlu0 %11186
      %v11188 = vsel %vm489, %v11130, 0.0
      %11189 = vadd.xlane.f32.xlu0 %v11188
      %v11190 = vpop.xlane.xlu0 %11189
      %v11191 = vsel %vm489, %v11131, 0.0
      %11192 = vadd.xlane.f32.xlu0 %v11191
      %v11193 = vpop.xlane.xlu0 %11192
      %v11194 = vsel %vm489, %v11132, 0.0
      %11195 = vadd.xlane.f32.xlu0 %v11194
      %v11196 = vpop.xlane.xlu0 %11195
      %v11197 = vsel %vm489, %v11133, 0.0
      %11198 = vadd.xlane.f32.xlu0 %v11197
      %v11199 = vpop.xlane.xlu0 %11198
      %v11200 = vsel %vm489, %v11134, 0.0
      %11201 = vadd.xlane.f32.xlu0 %v11200
      %v11202 = vpop.xlane.xlu0 %11201
      %v11203 = vsel %vm489, %v11135, 0.0
      %11204 = vadd.xlane.f32.xlu0 %v11203
      %v11205 = vpop.xlane.xlu0 %11204
      %v11206 = vsel %vm489, %v11136, 0.0
      %11207 = vadd.xlane.f32.xlu0 %v11206
      %v11208 = vpop.xlane.xlu0 %11207
      %v11209 = vsel %vm489, %v11137, 0.0
      %11210 = vadd.xlane.f32.xlu0 %v11209
      %v11211 = vpop.xlane.xlu0 %11210
      %v11212 = vsel %vm489, %v11138, 0.0
      %11213 = vadd.xlane.f32.xlu0 %v11212
      %v11214 = vpop.xlane.xlu0 %11213
      %v11215 = vsel %vm489, %v11139, 0.0
      %11216 = vadd.xlane.f32.xlu0 %v11215
      %v11217 = vpop.xlane.xlu0 %11216
      %v11218 = vsel %vm489, %v11140, 0.0
      %11219 = vadd.xlane.f32.xlu0 %v11218
      %v11220 = vpop.xlane.xlu0 %11219
      %v11221 = vsel %vm489, %v11141, 0.0
      %11222 = vadd.xlane.f32.xlu0 %v11221
      %v11223 = vpop.xlane.xlu0 %11222
      %v11224 = vsel %vm489, %v11142, 0.0
      %11225 = vadd.xlane.f32.xlu0 %v11224
      %v11226 = vpop.xlane.xlu0 %11225
      %v11227 = vsel %vm489, %v11143, 0.0
      %11228 = vadd.xlane.f32.xlu0 %v11227
      %v11229 = vpop.xlane.xlu0 %11228
      %v11230 = vsel %vm489, %v11144, 0.0
      %11231 = vadd.xlane.f32.xlu0 %v11230
      %v11232 = vpop.xlane.xlu0 %11231
      %v11233 = vsel %vm489, %v11145, 0.0
      %11234 = vadd.xlane.f32.xlu0 %v11233
      %v11235 = vpop.xlane.xlu0 %11234
      %v11236 = vsel %vm489, %v11146, 0.0
      %11237 = vadd.xlane.f32.xlu0 %v11236
      %v11238 = vpop.xlane.xlu0 %11237
      %v11239 = vsel %vm489, %v11147, 0.0
      %11240 = vadd.xlane.f32.xlu0 %v11239
      %v11241 = vpop.xlane.xlu0 %11240
      %v11242 = vsel %vm489, %v11148, 0.0
      %11243 = vadd.xlane.f32.xlu0 %v11242
      %v11244 = vpop.xlane.xlu0 %11243
      %vm11245 = vcmask 7168
      %11246 = vst.msk [vmem:[%s487] sm:$0xff] %vm11245, %v11151
      %11247 = vst.msk [vmem:[%s487 + $0x8] sm:$0xff] %vm11245, %v11154
      %11248 = vst.msk [vmem:[%s487 + $0x10] sm:$0xff] %vm11245, %v11157
      %11249 = vst.msk [vmem:[%s487 + $0x18] sm:$0xff] %vm11245, %v11160
      %11250 = vst.msk [vmem:[%s487 + $0x20] sm:$0xff] %vm11245, %v11163
      %11251 = vst.msk [vmem:[%s487 + $0x28] sm:$0xff] %vm11245, %v11166
      %11252 = vst.msk [vmem:[%s487 + $0x30] sm:$0xff] %vm11245, %v11169
      %11253 = vst.msk [vmem:[%s487 + $0x38] sm:$0xff] %vm11245, %v11172
      %11254 = vst.msk [vmem:[%s487 + $0x40] sm:$0xff] %vm11245, %v11175
      %11255 = vst.msk [vmem:[%s487 + $0x48] sm:$0xff] %vm11245, %v11178
      %11256 = vst.msk [vmem:[%s487 + $0x50] sm:$0xff] %vm11245, %v11181
      %11257 = vst.msk [vmem:[%s487 + $0x58] sm:$0xff] %vm11245, %v11184
      %11258 = vst.msk [vmem:[%s487 + $0x60] sm:$0xff] %vm11245, %v11187
      %11259 = vst.msk [vmem:[%s487 + $0x68] sm:$0xff] %vm11245, %v11190
      %11260 = vst.msk [vmem:[%s487 + $0x70] sm:$0xff] %vm11245, %v11193
      %11261 = vst.msk [vmem:[%s487 + $0x78] sm:$0xff] %vm11245, %v11196
      %11262 = vst.msk [vmem:[%s487 + $0x80] sm:$0xff] %vm11245, %v11199
      %11263 = vst.msk [vmem:[%s487 + $0x88] sm:$0xff] %vm11245, %v11202
      %11264 = vst.msk [vmem:[%s487 + $0x90] sm:$0xff] %vm11245, %v11205
      %11265 = vst.msk [vmem:[%s487 + $0x98] sm:$0xff] %vm11245, %v11208
      %11266 = vst.msk [vmem:[%s487 + $0xa0] sm:$0xff] %vm11245, %v11211
      %11267 = vst.msk [vmem:[%s487 + $0xa8] sm:$0xff] %vm11245, %v11214
      %11268 = vst.msk [vmem:[%s487 + $0xb0] sm:$0xff] %vm11245, %v11217
      %11269 = vst.msk [vmem:[%s487 + $0xb8] sm:$0xff] %vm11245, %v11220
      %11270 = vst.msk [vmem:[%s487 + $0xc0] sm:$0xff] %vm11245, %v11223
      %11271 = vst.msk [vmem:[%s487 + $0xc8] sm:$0xff] %vm11245, %v11226
      %11272 = vst.msk [vmem:[%s487 + $0xd0] sm:$0xff] %vm11245, %v11229
      %11273 = vst.msk [vmem:[%s487 + $0xd8] sm:$0xff] %vm11245, %v11232
      %11274 = vst.msk [vmem:[%s487 + $0xe0] sm:$0xff] %vm11245, %v11235
      %11275 = vst.msk [vmem:[%s487 + $0xe8] sm:$0xff] %vm11245, %v11238
      %11276 = vst.msk [vmem:[%s487 + $0xf0] sm:$0xff] %vm11245, %v11241
      %11277 = vst.msk [vmem:[%s487 + $0xf8] sm:$0xff] %vm11245, %v11244
      %p11278 = scmp.lt.s32.totalorder %s25, 1
      %s11279 = scalar_select %p11278, %s25, 1
      %s11280 = smul.addr %s11279, 32
      %s11281 = smul.addr %s11280, 8
      %s11282 = scalar_lea.vmem %s14, %s11281
      // Predicated region
      $region77: #{tpu_custom_call.1} parent=75 // pred_check
        %p11283 = pneg %p347
      $region78: #{tpu_custom_call.1} parent=75 // pred_check_branch
        %11285 = sbr.rel (%p11283) target = $region80
      $region79: #{tpu_custom_call.1} parent=75 // pred_region
        _
      $region80: #{tpu_custom_call.1} parent=75 // pred_fallthru
        _
    $region76: #{tpu_custom_call.1} parent=5 // pred_fallthru
      _
    %p11286 = scmp.le.s32.totalorder 2, %s20
    // Predicated region
    $region81: #{tpu_custom_call.1} parent=5 // pred_check
      %p11287 = pneg %p11286
    $region82: #{tpu_custom_call.1} parent=5 // pred_check_branch
      %11289 = sbr.rel (%p11287) target = $region84
    $region83: #{tpu_custom_call.1} parent=5 // pred_region
      %s11290 = ssub.s32 %s20, 2
      // Predicated region
      $region85: #{tpu_custom_call.1} parent=83 // pred_check
        %p11291 = pneg %p353
      $region86: #{tpu_custom_call.1} parent=83 // pred_check_branch
        %11293 = sbr.rel (%p11291) target = $region88
      $region87: #{tpu_custom_call.1} parent=83 // pred_region
        %p11294 = scmp.lt.s32.totalorder %s26, 1
        %s11295 = scalar_select %p11294, %s26, 1
        %s11296 = smul.addr %s11295, 32
        %s11297 = smul.addr %s11296, 8
        %s11298 = scalar_lea.vmem %s14, %s11297
      $region88: #{tpu_custom_call.1} parent=83 // pred_fallthru
        _
    $region84: #{tpu_custom_call.1} parent=5 // pred_fallthru
      _
  $region6: #{tpu_custom_call.1} parent=0 // loop_footer
    %s24 = sadd.s32 1, %s20
  $region7: #{tpu_custom_call.1} parent=0 // loop_footer_branch
    %19 = sbr.rel target = $region3
  $region8: #{tpu_custom_call.1} parent=0 // loop_exit
    _

</llo_original>
